<compile_context>
chip_gen: v7x
topology: tpu7x:2x2x1
jax: 0.10.0
libtpu: 0.0.40
codegen_flags: <defaults>
</compile_context>

<pallas_src>
import functools

import jax
import jax.numpy as jnp
from jax import lax
from jax.experimental import pallas as pl
from jax.experimental.pallas import tpu as pltpu

CHANNELS = 3
N_CLASSES = 10
LRELU_SLOPE = 0.2
SN_EPS = 1e-12
VMEM_LIMIT = 16 * 1024 * 1024  # generation-safe (v7x has 64 MiB physical)


def _round_up(x, m):
    return ((x + m - 1) // m) * m


# ----------------------------------------------------------------------------
# Kernel 1: tiled matmul, weight in native (N, K) layout, fused
#           (acc * scale + bias) -> LeakyReLU epilogue.  Used by all convs.
# ----------------------------------------------------------------------------
def _matmul_nk_lrelu_kernel(a_ref, w_ref, scale_ref, bias_ref, o_ref, acc_ref):
    @pl.when(pl.program_id(2) == 0)
    def _():
        acc_ref[...] = jnp.zeros_like(acc_ref)

    # A:(tm,tk) x W:(tn,tk) contracted on dim 1 of both -> (tm,tn), f32 acc.
    acc_ref[...] += lax.dot_general(
        a_ref[...], w_ref[...], (((1,), (1,)), ((), ())),
        preferred_element_type=jnp.float32)

    @pl.when(pl.program_id(2) == pl.num_programs(2) - 1)
    def _():
        r = acc_ref[...] * scale_ref[...] + bias_ref[...]   # spectral-norm fold
        r = jnp.where(r >= 0.0, r, LRELU_SLOPE * r)
        o_ref[...] = r.astype(o_ref.dtype)


def pallas_matmul_nk(a, w_nk, scale_n, bias_n, *, out_dtype=jnp.bfloat16):
    """act((a @ w_nk.T) * scale + bias); w_nk is (N, K) native layout."""
    M, K = a.shape
    N, K2 = w_nk.shape
    assert K == K2

    Mp = _round_up(M, 16)
    Kp = _round_up(K, 128)              # lane dim of A; 128 is enough
    Np = _round_up(N, 128)

    tm = min(Mp, 1024)                  # full-M tile at these sizes
    Mp = _round_up(Mp, tm)
    tk = min(Kp, 1024)                  # 1-8 k-steps; DMA hidden by pipelining
    Kp = _round_up(Kp, tk)
    tn = Np if Np < 256 else Np // 2    # give v7x a >=2 parallel axis

    a_p = jnp.pad(a, ((0, Mp - M), (0, Kp - K))).astype(jnp.bfloat16)
    w_p = jnp.pad(w_nk, ((0, Np - N), (0, Kp - K))).astype(jnp.bfloat16)
    scale_row = jnp.pad(scale_n, (0, Np - N)).reshape(1, Np).astype(jnp.float32)
    bias_row = jnp.pad(bias_n, (0, Np - N)).reshape(1, Np).astype(jnp.float32)

    grid = (Mp // tm, Np // tn, Kp // tk)

    cost = pl.CostEstimate(
        flops=2 * Mp * Kp * Np,
        transcendentals=0,
        bytes_accessed=Mp * Kp * 2 + Np * Kp * 2 + 2 * Np * 4 + Mp * Np * 2,
    )

    out = pl.pallas_call(
        _matmul_nk_lrelu_kernel,
        out_shape=jax.ShapeDtypeStruct((Mp, Np), out_dtype),
        grid_spec=pltpu.PrefetchScalarGridSpec(
            num_scalar_prefetch=0,
            grid=grid,
            in_specs=[
                pl.BlockSpec((tm, tk), lambda i, j, k: (i, k)),
                pl.BlockSpec((tn, tk), lambda i, j, k: (j, k)),
                pl.BlockSpec((1, tn), lambda i, j, k: (0, j)),
                pl.BlockSpec((1, tn), lambda i, j, k: (0, j)),
            ],
            out_specs=pl.BlockSpec((tm, tn), lambda i, j, k: (i, j)),
            scratch_shapes=[pltpu.VMEM((tm, tn), jnp.float32)],
        ),
        compiler_params=pltpu.CompilerParams(
            dimension_semantics=("parallel", "parallel", "arbitrary"),
            vmem_limit_bytes=VMEM_LIMIT),
        cost_estimate=cost,
    )(a_p, w_p, scale_row, bias_row)
    return out[:M, :N]


# ----------------------------------------------------------------------------
# Kernel 2: fc Linear(8192->128) + LeakyReLU + BOTH heads fused.
#   After the last k-step, h is in VMEM; the heads' raw weights (rows:
#   0 = output head, 1..10 = ac head, rest zero) padded to (128,128) bf16 are
#   applied in the same epilogue with a per-column inv_sigma scale + bias,
#   then masked softmax over the ac columns.  Output col 0 = critic logit,
#   cols 1..10 = class probabilities.
# ----------------------------------------------------------------------------
def _fc_heads_kernel(a_ref, wfc_ref, sfc_ref, bfc_ref,
                     wh_ref, sh_ref, bh_ref, o_ref, acc_ref, *, n_classes):
    k = pl.program_id(0)

    @pl.when(k == 0)
    def _():
        acc_ref[...] = jnp.zeros_like(acc_ref)

    acc_ref[...] += lax.dot_general(
        a_ref[...], wfc_ref[...], (((1,), (1,)), ((), ())),
        preferred_element_type=jnp.float32)

    @pl.when(k == pl.num_programs(0) - 1)
    def _():
        # fc epilogue: spectral-norm fold + bias + LeakyReLU (f32, in VMEM).
        h = acc_ref[...] * sfc_ref[...] + bfc_ref[...]
        h = jnp.where(h >= 0.0, h, LRELU_SLOPE * h)
        # Heads: (tm,128) x (128,128) contracted on dim 1 of both.
        r = lax.dot_general(
            h.astype(jnp.bfloat16), wh_ref[...], (((1,), (1,)), ((), ())),
            preferred_element_type=jnp.float32)
        r = r * sh_ref[...] + bh_ref[...]
        col = lax.broadcasted_iota(jnp.int32, r.shape, 1)
        # Masked softmax over the ac columns [1, 1+n_classes).
        ac_mask = (col >= 1) & (col < 1 + n_classes)
        z = jnp.where(ac_mask, r, -jnp.inf)
        z = z - jnp.max(z, axis=1, keepdims=True)
        e = jnp.exp(z)
        p = e / jnp.sum(e, axis=1, keepdims=True)
        # col 0 keeps the raw critic logit; everything else is the softmax.
        o_ref[...] = jnp.where(col == 0, r, p)


def pallas_fc_with_heads(feat, w_fc, inv_s_fc, b_fc, w_heads, scale_h, bias_h):
    """Returns (critic logit (M,1) f32, class probs (M, N_CLASSES) f32)."""
    M, K = feat.shape
    N, K2 = w_fc.shape
    assert K == K2 and N == 128

    Mp = _round_up(M, 16)
    Kp = _round_up(K, 128)
    tm = Mp
    tk = min(Kp, 1024)
    Kp = _round_up(Kp, tk)

    a_p = jnp.pad(feat, ((0, Mp - M), (0, Kp - K))).astype(jnp.bfloat16)
    w_p = jnp.pad(w_fc, ((0, 0), (0, Kp - K))).astype(jnp.bfloat16)
    scale_fc = jnp.full((1, N), inv_s_fc, jnp.float32)
    bias_fc = b_fc.reshape(1, N).astype(jnp.float32)
    wh = w_heads.astype(jnp.bfloat16)

    grid = (Kp // tk,)

    cost = pl.CostEstimate(
        flops=2 * Mp * Kp * N + 2 * Mp * N * N,
        transcendentals=Mp * N,
        bytes_accessed=Mp * Kp * 2 + N * Kp * 2 + N * N * 2 + Mp * N * 4,
    )

    out = pl.pallas_call(
        functools.partial(_fc_heads_kernel, n_classes=N_CLASSES),
        out_shape=jax.ShapeDtypeStruct((Mp, N), jnp.float32),
        grid_spec=pltpu.PrefetchScalarGridSpec(
            num_scalar_prefetch=0,
            grid=grid,
            in_specs=[
                pl.BlockSpec((tm, tk), lambda k: (0, k)),
                pl.BlockSpec((N, tk), lambda k: (0, k)),
                pl.BlockSpec((1, N), lambda k: (0, 0)),
                pl.BlockSpec((1, N), lambda k: (0, 0)),
                pl.BlockSpec((N, N), lambda k: (0, 0)),
                pl.BlockSpec((1, N), lambda k: (0, 0)),
                pl.BlockSpec((1, N), lambda k: (0, 0)),
            ],
            out_specs=pl.BlockSpec((tm, N), lambda k: (0, 0)),
            scratch_shapes=[pltpu.VMEM((tm, N), jnp.float32)],
        ),
        compiler_params=pltpu.CompilerParams(
            dimension_semantics=("arbitrary",),
            vmem_limit_bytes=VMEM_LIMIT),
        cost_estimate=cost,
    )(a_p, w_p, scale_fc, bias_fc, wh, scale_h, bias_h)
    return out[:M, 0:1], out[:M, 1:1 + N_CLASSES]


# ----------------------------------------------------------------------------
# Conv2d = im2col (JAX data movement, columns ordered (cin, ky, kx) so the
# weight stays in its native (Cout, Cin*k*k) layout) + Pallas matmul.
# TODO(synk): im2col could be folded into the kernel with (ky,kx) grid axes +
# Element index maps, but the strided window gather stays as JAX glue here.
# ----------------------------------------------------------------------------
def conv2d_lrelu(x_nhwc, w, b, inv_sigma, *, stride, padding):
    B, H, W_, Cin = x_nhwc.shape
    Cout, Cin_w, k, _ = w.shape
    assert Cin == Cin_w
    xp = jnp.pad(x_nhwc, ((0, 0), (padding, padding), (padding, padding), (0, 0)))
    Ho = (H + 2 * padding - k) // stride + 1
    Wo = (W_ + 2 * padding - k) // stride + 1
    patches = []
    for ky in range(k):
        for kx in range(k):
            patches.append(xp[:, ky:ky + (Ho - 1) * stride + 1:stride,
                              kx:kx + (Wo - 1) * stride + 1:stride, :])
    A = jnp.stack(patches, axis=3)                 # (B,Ho,Wo,k*k,Cin)
    A = jnp.transpose(A, (0, 1, 2, 4, 3))          # (B,Ho,Wo,Cin,k*k)
    A = A.reshape(B * Ho * Wo, Cin * k * k)
    w_nk = w.reshape(Cout, Cin * k * k)            # native (N, K) layout
    scale = jnp.full((Cout,), inv_sigma, jnp.float32)
    y = pallas_matmul_nk(A, w_nk, scale, b, out_dtype=jnp.bfloat16)
    return y.reshape(B, Ho, Wo, Cout)


# ----------------------------------------------------------------------------
# Spectral norm: one power iteration -> inv_sigma (scalar).  The weight is
# never materialized as w/sigma; the scale is folded into the kernel epilogue.
# TODO(synk): PyTorch updates the `u` buffer in training mode; single-forward
# numerics are identical, repeated calls would need the updated u returned.
# ----------------------------------------------------------------------------
def spectral_inv_sigma(w, u, n_power_iterations=1):
    w2d = w.reshape(w.shape[0], -1)
    v = None
    for _ in range(n_power_iterations):
        v = w2d.T @ u
        v = v / (jnp.linalg.norm(v) + SN_EPS)
        u = w2d @ v
        u = u / (jnp.linalg.norm(u) + SN_EPS)
    sigma = jnp.dot(u, w2d @ v)
    return 1.0 / sigma


# ----------------------------------------------------------------------------
# Parameters (deterministic synthetic init, matching module shapes)
# ----------------------------------------------------------------------------
def init_params(key):
    keys = iter(jax.random.split(key, 32))

    def conv(cout, cin, k):
        scale = 1.0 / jnp.sqrt(float(cin * k * k))
        w = scale * jax.random.normal(next(keys), (cout, cin, k, k), jnp.float32)
        b = 0.01 * jax.random.normal(next(keys), (cout,), jnp.float32)
        u = jax.random.normal(next(keys), (cout,), jnp.float32)
        return w, b, u / jnp.linalg.norm(u)

    def linear(cout, cin):
        scale = 1.0 / jnp.sqrt(float(cin))
        w = scale * jax.random.normal(next(keys), (cout, cin), jnp.float32)
        b = 0.01 * jax.random.normal(next(keys), (cout,), jnp.float32)
        u = jax.random.normal(next(keys), (cout,), jnp.float32)
        return w, b, u / jnp.linalg.norm(u)

    return {
        "c1": conv(128, CHANNELS, 4),
        "c2": conv(256, 128, 4),
        "c3": conv(512, 256, 4),
        "fc": linear(128, 512 * 4 * 4),
        "out": linear(1, 128),
        "ac": linear(N_CLASSES, 128),
    }


# ----------------------------------------------------------------------------
# Discriminator forward
# ----------------------------------------------------------------------------
def discriminator_forward(params, x_nchw):
    """x: (B, 3, 32, 32) NCHW f32 -> (critic logit (B,1), class probs (B,10))."""
    B = x_nchw.shape[0]
    x = jnp.transpose(x_nchw, (0, 2, 3, 1)).astype(jnp.bfloat16)   # NHWC bf16

    def sn(name):
        w, b, u = params[name]
        return w, b, spectral_inv_sigma(w, u)

    w, b, s = sn("c1")
    x = conv2d_lrelu(x, w, b, s, stride=2, padding=1)              # (B,16,16,128)
    w, b, s = sn("c2")
    x = conv2d_lrelu(x, w, b, s, stride=2, padding=1)              # (B, 8, 8,256)
    w, b, s = sn("c3")
    x = conv2d_lrelu(x, w, b, s, stride=2, padding=1)              # (B, 4, 4,512)

    # x.view(B, -1) in PyTorch flattens NCHW order (C, H, W):
    feat = jnp.transpose(x, (0, 3, 1, 2)).reshape(B, 512 * 4 * 4)

    w_fc, b_fc, u_fc = params["fc"]
    s_fc = spectral_inv_sigma(w_fc, u_fc)
    w_out, b_out, u_out = params["out"]
    s_out = spectral_inv_sigma(w_out, u_out)
    w_ac, b_ac, u_ac = params["ac"]
    s_ac = spectral_inv_sigma(w_ac, u_ac)

    # Pack both heads into one padded (128,128) weight block + per-column
    # inv_sigma / bias rows (col 0 = output head, cols 1..10 = ac head).
    NH = 128
    w_heads = jnp.zeros((NH, NH), jnp.float32)
    w_heads = w_heads.at[0, :].set(w_out[0]).at[1:1 + N_CLASSES, :].set(w_ac)
    scale_h = jnp.zeros((1, NH), jnp.float32)
    scale_h = scale_h.at[0, 0].set(s_out).at[0, 1:1 + N_CLASSES].set(s_ac)
    bias_h = jnp.zeros((1, NH), jnp.float32)
    bias_h = bias_h.at[0, 0].set(b_out[0]).at[0, 1:1 + N_CLASSES].set(b_ac)

    out_logit, ac_probs = pallas_fc_with_heads(
        feat, w_fc, s_fc, b_fc, w_heads, scale_h, bias_h)
    return out_logit, ac_probs


if __name__ == "__main__":
    key = jax.random.PRNGKey(0)
    kp, kx = jax.random.split(key)
    params = init_params(kp)

    B = 2
    x = jax.random.normal(kx, (B, CHANNELS, 32, 32), jnp.float32)

    out, ac = jax.jit(discriminator_forward)(params, x)
    out, ac = jax.block_until_ready((out, ac))

    assert out.shape == (B, 1), out.shape
    assert ac.shape == (B, N_CLASSES), ac.shape
    assert bool(jnp.all(jnp.isfinite(out))) and bool(jnp.all(jnp.isfinite(ac)))
    assert bool(jnp.all(jnp.abs(jnp.sum(ac, axis=1) - 1.0) < 1e-3))
    print("KERNEL_OK")
</pallas_src>

<mosaic_0001>
module attributes {stable_mosaic.version = 11 : i64} {
  func.func @_matmul_nk_lrelu_kernel(%arg0: i32, %arg1: i32, %arg2: i32, %arg3: memref<512x128xbf16, #tpu.memory_space<vmem>>, %arg4: memref<128x128xbf16, #tpu.memory_space<vmem>>, %arg5: memref<1x128xf32, #tpu.memory_space<vmem>>, %arg6: memref<1x128xf32, #tpu.memory_space<vmem>>, %arg7: memref<512x128xbf16, #tpu.memory_space<vmem>>, %arg8: memref<512x128xf32, #tpu.memory_space<vmem>>) attributes {dimension_semantics = [#tpu.dimension_semantics<parallel>, #tpu.dimension_semantics<parallel>, #tpu.dimension_semantics<arbitrary>], iteration_bounds = array<i64: 1, 1, 1>, scalar_prefetch = 0 : i64, scratch_operands = 1 : i64, tpu.core_type = #tpu.core_type<tc>, window_params = [{transform_indices = @transform_0, window_bounds = array<i64: 512, 128>}, {transform_indices = @transform_1, window_bounds = array<i64: 128, 128>}, {transform_indices = @transform_2, window_bounds = array<i64: 1, 128>}, {transform_indices = @transform_3, window_bounds = array<i64: 1, 128>}, {transform_indices = @transform_4, window_bounds = array<i64: 512, 128>}]} {
    %c0_i32 = arith.constant 0 : i32
    %0 = arith.cmpi eq, %arg2, %c0_i32 : i32
    %1 = arith.extui %0 : i1 to i32
    %c0_i32_0 = arith.constant 0 : i32
    %2 = arith.cmpi ne, %1, %c0_i32_0 : i32
    scf.if %2 {
      %cst_10 = arith.constant 0.000000e+00 : f32
      %12 = vector.broadcast %cst_10 : f32 to vector<512x128xf32>
      %c0_11 = arith.constant 0 : index
      %c0_12 = arith.constant 0 : index
      %13 = vector.load %arg8[%c0_11, %c0_12] : memref<512x128xf32, #tpu.memory_space<vmem>>, vector<512x128xf32>
      tpu.vector_store %arg8[%c0_11, %c0_12], %12 {strides = array<i32>} : memref<512x128xf32, #tpu.memory_space<vmem>>, vector<512x128xf32>,
    } else {
    }
    %c0 = arith.constant 0 : index
    %c0_1 = arith.constant 0 : index
    %3 = vector.load %arg8[%c0, %c0_1] : memref<512x128xf32, #tpu.memory_space<vmem>>, vector<512x128xf32>
    %c0_2 = arith.constant 0 : index
    %c0_3 = arith.constant 0 : index
    %4 = vector.load %arg3[%c0_2, %c0_3] : memref<512x128xbf16, #tpu.memory_space<vmem>>, vector<512x128xbf16>
    %c0_4 = arith.constant 0 : index
    %c0_5 = arith.constant 0 : index
    %5 = vector.load %arg4[%c0_4, %c0_5] : memref<128x128xbf16, #tpu.memory_space<vmem>>, vector<128x128xbf16>
    %cst = arith.constant dense<0.000000e+00> : vector<512x128xf32>
    %6 = tpu.matmul %4, %5, %cst {dimension_numbers = #tpu.dot_dimension_numbers<[1], [1], [0], [0], [0, 0, 1, 0], [], []>} : vector<512x128xbf16>, vector<128x128xbf16>, vector<512x128xf32> -> vector<512x128xf32>
    %7 = arith.addf %3, %6 : vector<512x128xf32>
    %c0_6 = arith.constant 0 : index
    %c0_7 = arith.constant 0 : index
    %8 = vector.load %arg8[%c0_6, %c0_7] : memref<512x128xf32, #tpu.memory_space<vmem>>, vector<512x128xf32>
    tpu.vector_store %arg8[%c0_6, %c0_7], %7 {strides = array<i32>} : memref<512x128xf32, #tpu.memory_space<vmem>>, vector<512x128xf32>,
    %c0_i32_8 = arith.constant 0 : i32
    %9 = arith.cmpi eq, %arg2, %c0_i32_8 : i32
    %10 = arith.extui %9 : i1 to i32
    %c0_i32_9 = arith.constant 0 : i32
    %11 = arith.cmpi ne, %10, %c0_i32_9 : i32
    scf.if %11 {
      %c0_10 = arith.constant 0 : index
      %c0_11 = arith.constant 0 : index
      %12 = vector.load %arg8[%c0_10, %c0_11] : memref<512x128xf32, #tpu.memory_space<vmem>>, vector<512x128xf32>
      %c0_12 = arith.constant 0 : index
      %c0_13 = arith.constant 0 : index
      %13 = vector.load %arg5[%c0_12, %c0_13] : memref<1x128xf32, #tpu.memory_space<vmem>>, vector<1x128xf32>
      %14 = vector.broadcast %13 : vector<1x128xf32> to vector<512x128xf32>
      %15 = arith.mulf %12, %14 : vector<512x128xf32>
      %c0_14 = arith.constant 0 : index
      %c0_15 = arith.constant 0 : index
      %16 = vector.load %arg6[%c0_14, %c0_15] : memref<1x128xf32, #tpu.memory_space<vmem>>, vector<1x128xf32>
      %17 = vector.broadcast %16 : vector<1x128xf32> to vector<512x128xf32>
      %18 = arith.addf %15, %17 : vector<512x128xf32>
      %cst_16 = arith.constant 0.000000e+00 : f32
      %19 = vector.broadcast %cst_16 : f32 to vector<512x128xf32>
      %20 = arith.cmpf oge, %18, %19 : vector<512x128xf32>
      %cst_17 = arith.constant 2.000000e-01 : f32
      %21 = vector.broadcast %cst_17 : f32 to vector<512x128xf32>
      %22 = arith.mulf %21, %18 : vector<512x128xf32>
      %23 = arith.select %20, %18, %22 : vector<512x128xi1>, vector<512x128xf32>
      %24 = arith.truncf %23 : vector<512x128xf32> to vector<512x128xbf16>
      %c0_18 = arith.constant 0 : index
      %c0_19 = arith.constant 0 : index
      %25 = vector.load %arg7[%c0_18, %c0_19] : memref<512x128xbf16, #tpu.memory_space<vmem>>, vector<512x128xbf16>
      tpu.vector_store %arg7[%c0_18, %c0_19], %24 {strides = array<i32>} : memref<512x128xbf16, #tpu.memory_space<vmem>>, vector<512x128xbf16>,
    } else {
    }
    return
  }
  func.func @transform_0(%arg0: i32, %arg1: i32, %arg2: i32) -> (i32, i32) {
    %c0_i32 = arith.constant 0 : i32
    return %arg0, %arg2 : i32, i32
  }
  func.func @transform_1(%arg0: i32, %arg1: i32, %arg2: i32) -> (i32, i32) {
    %c0_i32 = arith.constant 0 : i32
    return %arg1, %arg2 : i32, i32
  }
  func.func @transform_2(%arg0: i32, %arg1: i32, %arg2: i32) -> (i32, i32) {
    %c0_i32 = arith.constant 0 : i32
    %c0_i32_0 = arith.constant 0 : i32
    return %c0_i32, %arg1 : i32, i32
  }
  func.func @transform_3(%arg0: i32, %arg1: i32, %arg2: i32) -> (i32, i32) {
    %c0_i32 = arith.constant 0 : i32
    %c0_i32_0 = arith.constant 0 : i32
    return %c0_i32, %arg1 : i32, i32
  }
  func.func @transform_4(%arg0: i32, %arg1: i32, %arg2: i32) -> (i32, i32) {
    %c0_i32 = arith.constant 0 : i32
    return %arg0, %arg1 : i32, i32
  }
}

module attributes {stable_mosaic.version = 11 : i64} {
  func.func @_matmul_nk_lrelu_kernel(%arg0: i32, %arg1: i32, %arg2: i32, %arg3: memref<128x1024xbf16, #tpu.memory_space<vmem>>, %arg4: memref<128x1024xbf16, #tpu.memory_space<vmem>>, %arg5: memref<1x128xf32, #tpu.memory_space<vmem>>, %arg6: memref<1x128xf32, #tpu.memory_space<vmem>>, %arg7: memref<128x128xbf16, #tpu.memory_space<vmem>>, %arg8: memref<128x128xf32, #tpu.memory_space<vmem>>) attributes {dimension_semantics = [#tpu.dimension_semantics<parallel>, #tpu.dimension_semantics<parallel>, #tpu.dimension_semantics<arbitrary>], iteration_bounds = array<i64: 1, 2, 2>, scalar_prefetch = 0 : i64, scratch_operands = 1 : i64, tpu.core_type = #tpu.core_type<tc>, window_params = [{transform_indices = @transform_0, window_bounds = array<i64: 128, 1024>}, {transform_indices = @transform_1, window_bounds = array<i64: 128, 1024>}, {transform_indices = @transform_2, window_bounds = array<i64: 1, 128>}, {transform_indices = @transform_3, window_bounds = array<i64: 1, 128>}, {transform_indices = @transform_4, window_bounds = array<i64: 128, 128>}]} {
    %c0_i32 = arith.constant 0 : i32
    %0 = arith.cmpi eq, %arg2, %c0_i32 : i32
    %1 = arith.extui %0 : i1 to i32
    %c0_i32_0 = arith.constant 0 : i32
    %2 = arith.cmpi ne, %1, %c0_i32_0 : i32
    scf.if %2 {
      %cst_9 = arith.constant 0.000000e+00 : f32
      %12 = vector.broadcast %cst_9 : f32 to vector<128x128xf32>
      %c0_10 = arith.constant 0 : index
      %c0_11 = arith.constant 0 : index
      %13 = vector.load %arg8[%c0_10, %c0_11] : memref<128x128xf32, #tpu.memory_space<vmem>>, vector<128x128xf32>
      tpu.vector_store %arg8[%c0_10, %c0_11], %12 {strides = array<i32>} : memref<128x128xf32, #tpu.memory_space<vmem>>, vector<128x128xf32>,
    } else {
    }
    %c0 = arith.constant 0 : index
    %c0_1 = arith.constant 0 : index
    %3 = vector.load %arg8[%c0, %c0_1] : memref<128x128xf32, #tpu.memory_space<vmem>>, vector<128x128xf32>
    %c0_2 = arith.constant 0 : index
    %c0_3 = arith.constant 0 : index
    %4 = vector.load %arg3[%c0_2, %c0_3] : memref<128x1024xbf16, #tpu.memory_space<vmem>>, vector<128x1024xbf16>
    %c0_4 = arith.constant 0 : index
    %c0_5 = arith.constant 0 : index
    %5 = vector.load %arg4[%c0_4, %c0_5] : memref<128x1024xbf16, #tpu.memory_space<vmem>>, vector<128x1024xbf16>
    %cst = arith.constant dense<0.000000e+00> : vector<128x128xf32>
    %6 = tpu.matmul %4, %5, %cst {dimension_numbers = #tpu.dot_dimension_numbers<[1], [1], [0], [0], [0, 0, 1, 0], [], []>} : vector<128x1024xbf16>, vector<128x1024xbf16>, vector<128x128xf32> -> vector<128x128xf32>
    %7 = arith.addf %3, %6 : vector<128x128xf32>
    %c0_6 = arith.constant 0 : index
    %c0_7 = arith.constant 0 : index
    %8 = vector.load %arg8[%c0_6, %c0_7] : memref<128x128xf32, #tpu.memory_space<vmem>>, vector<128x128xf32>
    tpu.vector_store %arg8[%c0_6, %c0_7], %7 {strides = array<i32>} : memref<128x128xf32, #tpu.memory_space<vmem>>, vector<128x128xf32>,
    %c1_i32 = arith.constant 1 : i32
    %9 = arith.cmpi eq, %arg2, %c1_i32 : i32
    %10 = arith.extui %9 : i1 to i32
    %c0_i32_8 = arith.constant 0 : i32
    %11 = arith.cmpi ne, %10, %c0_i32_8 : i32
    scf.if %11 {
      %c0_9 = arith.constant 0 : index
      %c0_10 = arith.constant 0 : index
      %12 = vector.load %arg8[%c0_9, %c0_10] : memref<128x128xf32, #tpu.memory_space<vmem>>, vector<128x128xf32>
      %c0_11 = arith.constant 0 : index
      %c0_12 = arith.constant 0 : index
      %13 = vector.load %arg5[%c0_11, %c0_12] : memref<1x128xf32, #tpu.memory_space<vmem>>, vector<1x128xf32>
      %14 = vector.broadcast %13 : vector<1x128xf32> to vector<128x128xf32>
      %15 = arith.mulf %12, %14 : vector<128x128xf32>
      %c0_13 = arith.constant 0 : index
      %c0_14 = arith.constant 0 : index
      %16 = vector.load %arg6[%c0_13, %c0_14] : memref<1x128xf32, #tpu.memory_space<vmem>>, vector<1x128xf32>
      %17 = vector.broadcast %16 : vector<1x128xf32> to vector<128x128xf32>
      %18 = arith.addf %15, %17 : vector<128x128xf32>
      %cst_15 = arith.constant 0.000000e+00 : f32
      %19 = vector.broadcast %cst_15 : f32 to vector<128x128xf32>
      %20 = arith.cmpf oge, %18, %19 : vector<128x128xf32>
      %cst_16 = arith.constant 2.000000e-01 : f32
      %21 = vector.broadcast %cst_16 : f32 to vector<128x128xf32>
      %22 = arith.mulf %21, %18 : vector<128x128xf32>
      %23 = arith.select %20, %18, %22 : vector<128x128xi1>, vector<128x128xf32>
      %24 = arith.truncf %23 : vector<128x128xf32> to vector<128x128xbf16>
      %c0_17 = arith.constant 0 : index
      %c0_18 = arith.constant 0 : index
      %25 = vector.load %arg7[%c0_17, %c0_18] : memref<128x128xbf16, #tpu.memory_space<vmem>>, vector<128x128xbf16>
      tpu.vector_store %arg7[%c0_17, %c0_18], %24 {strides = array<i32>} : memref<128x128xbf16, #tpu.memory_space<vmem>>, vector<128x128xbf16>,
    } else {
    }
    return
  }
  func.func @transform_0(%arg0: i32, %arg1: i32, %arg2: i32) -> (i32, i32) {
    %c0_i32 = arith.constant 0 : i32
    return %arg0, %arg2 : i32, i32
  }
  func.func @transform_1(%arg0: i32, %arg1: i32, %arg2: i32) -> (i32, i32) {
    %c0_i32 = arith.constant 0 : i32
    return %arg1, %arg2 : i32, i32
  }
  func.func @transform_2(%arg0: i32, %arg1: i32, %arg2: i32) -> (i32, i32) {
    %c0_i32 = arith.constant 0 : i32
    %c0_i32_0 = arith.constant 0 : i32
    return %c0_i32, %arg1 : i32, i32
  }
  func.func @transform_3(%arg0: i32, %arg1: i32, %arg2: i32) -> (i32, i32) {
    %c0_i32 = arith.constant 0 : i32
    %c0_i32_0 = arith.constant 0 : i32
    return %c0_i32, %arg1 : i32, i32
  }
  func.func @transform_4(%arg0: i32, %arg1: i32, %arg2: i32) -> (i32, i32) {
    %c0_i32 = arith.constant 0 : i32
    return %arg0, %arg1 : i32, i32
  }
}

module attributes {stable_mosaic.version = 11 : i64} {
  func.func @_matmul_nk_lrelu_kernel(%arg0: i32, %arg1: i32, %arg2: i32, %arg3: memref<32x1024xbf16, #tpu.memory_space<vmem>>, %arg4: memref<256x1024xbf16, #tpu.memory_space<vmem>>, %arg5: memref<1x256xf32, #tpu.memory_space<vmem>>, %arg6: memref<1x256xf32, #tpu.memory_space<vmem>>, %arg7: memref<32x256xbf16, #tpu.memory_space<vmem>>, %arg8: memref<32x256xf32, #tpu.memory_space<vmem>>) attributes {dimension_semantics = [#tpu.dimension_semantics<parallel>, #tpu.dimension_semantics<parallel>, #tpu.dimension_semantics<arbitrary>], iteration_bounds = array<i64: 1, 2, 4>, scalar_prefetch = 0 : i64, scratch_operands = 1 : i64, tpu.core_type = #tpu.core_type<tc>, window_params = [{transform_indices = @transform_0, window_bounds = array<i64: 32, 1024>}, {transform_indices = @transform_1, window_bounds = array<i64: 256, 1024>}, {transform_indices = @transform_2, window_bounds = array<i64: 1, 256>}, {transform_indices = @transform_3, window_bounds = array<i64: 1, 256>}, {transform_indices = @transform_4, window_bounds = array<i64: 32, 256>}]} {
    %c0_i32 = arith.constant 0 : i32
    %0 = arith.cmpi eq, %arg2, %c0_i32 : i32
    %1 = arith.extui %0 : i1 to i32
    %c0_i32_0 = arith.constant 0 : i32
    %2 = arith.cmpi ne, %1, %c0_i32_0 : i32
    scf.if %2 {
      %cst_9 = arith.constant 0.000000e+00 : f32
      %12 = vector.broadcast %cst_9 : f32 to vector<32x256xf32>
      %c0_10 = arith.constant 0 : index
      %c0_11 = arith.constant 0 : index
      %13 = vector.load %arg8[%c0_10, %c0_11] : memref<32x256xf32, #tpu.memory_space<vmem>>, vector<32x256xf32>
      tpu.vector_store %arg8[%c0_10, %c0_11], %12 {strides = array<i32>} : memref<32x256xf32, #tpu.memory_space<vmem>>, vector<32x256xf32>,
    } else {
    }
    %c0 = arith.constant 0 : index
    %c0_1 = arith.constant 0 : index
    %3 = vector.load %arg8[%c0, %c0_1] : memref<32x256xf32, #tpu.memory_space<vmem>>, vector<32x256xf32>
    %c0_2 = arith.constant 0 : index
    %c0_3 = arith.constant 0 : index
    %4 = vector.load %arg3[%c0_2, %c0_3] : memref<32x1024xbf16, #tpu.memory_space<vmem>>, vector<32x1024xbf16>
    %c0_4 = arith.constant 0 : index
    %c0_5 = arith.constant 0 : index
    %5 = vector.load %arg4[%c0_4, %c0_5] : memref<256x1024xbf16, #tpu.memory_space<vmem>>, vector<256x1024xbf16>
    %cst = arith.constant dense<0.000000e+00> : vector<32x256xf32>
    %6 = tpu.matmul %4, %5, %cst {dimension_numbers = #tpu.dot_dimension_numbers<[1], [1], [0], [0], [0, 0, 1, 0], [], []>} : vector<32x1024xbf16>, vector<256x1024xbf16>, vector<32x256xf32> -> vector<32x256xf32>
    %7 = arith.addf %3, %6 : vector<32x256xf32>
    %c0_6 = arith.constant 0 : index
    %c0_7 = arith.constant 0 : index
    %8 = vector.load %arg8[%c0_6, %c0_7] : memref<32x256xf32, #tpu.memory_space<vmem>>, vector<32x256xf32>
    tpu.vector_store %arg8[%c0_6, %c0_7], %7 {strides = array<i32>} : memref<32x256xf32, #tpu.memory_space<vmem>>, vector<32x256xf32>,
    %c3_i32 = arith.constant 3 : i32
    %9 = arith.cmpi eq, %arg2, %c3_i32 : i32
    %10 = arith.extui %9 : i1 to i32
    %c0_i32_8 = arith.constant 0 : i32
    %11 = arith.cmpi ne, %10, %c0_i32_8 : i32
    scf.if %11 {
      %c0_9 = arith.constant 0 : index
      %c0_10 = arith.constant 0 : index
      %12 = vector.load %arg8[%c0_9, %c0_10] : memref<32x256xf32, #tpu.memory_space<vmem>>, vector<32x256xf32>
      %c0_11 = arith.constant 0 : index
      %c0_12 = arith.constant 0 : index
      %13 = vector.load %arg5[%c0_11, %c0_12] : memref<1x256xf32, #tpu.memory_space<vmem>>, vector<1x256xf32>
      %14 = vector.broadcast %13 : vector<1x256xf32> to vector<32x256xf32>
      %15 = arith.mulf %12, %14 : vector<32x256xf32>
      %c0_13 = arith.constant 0 : index
      %c0_14 = arith.constant 0 : index
      %16 = vector.load %arg6[%c0_13, %c0_14] : memref<1x256xf32, #tpu.memory_space<vmem>>, vector<1x256xf32>
      %17 = vector.broadcast %16 : vector<1x256xf32> to vector<32x256xf32>
      %18 = arith.addf %15, %17 : vector<32x256xf32>
      %cst_15 = arith.constant 0.000000e+00 : f32
      %19 = vector.broadcast %cst_15 : f32 to vector<32x256xf32>
      %20 = arith.cmpf oge, %18, %19 : vector<32x256xf32>
      %cst_16 = arith.constant 2.000000e-01 : f32
      %21 = vector.broadcast %cst_16 : f32 to vector<32x256xf32>
      %22 = arith.mulf %21, %18 : vector<32x256xf32>
      %23 = arith.select %20, %18, %22 : vector<32x256xi1>, vector<32x256xf32>
      %24 = arith.truncf %23 : vector<32x256xf32> to vector<32x256xbf16>
      %c0_17 = arith.constant 0 : index
      %c0_18 = arith.constant 0 : index
      %25 = vector.load %arg7[%c0_17, %c0_18] : memref<32x256xbf16, #tpu.memory_space<vmem>>, vector<32x256xbf16>
      tpu.vector_store %arg7[%c0_17, %c0_18], %24 {strides = array<i32>} : memref<32x256xbf16, #tpu.memory_space<vmem>>, vector<32x256xbf16>,
    } else {
    }
    return
  }
  func.func @transform_0(%arg0: i32, %arg1: i32, %arg2: i32) -> (i32, i32) {
    %c0_i32 = arith.constant 0 : i32
    return %arg0, %arg2 : i32, i32
  }
  func.func @transform_1(%arg0: i32, %arg1: i32, %arg2: i32) -> (i32, i32) {
    %c0_i32 = arith.constant 0 : i32
    return %arg1, %arg2 : i32, i32
  }
  func.func @transform_2(%arg0: i32, %arg1: i32, %arg2: i32) -> (i32, i32) {
    %c0_i32 = arith.constant 0 : i32
    %c0_i32_0 = arith.constant 0 : i32
    return %c0_i32, %arg1 : i32, i32
  }
  func.func @transform_3(%arg0: i32, %arg1: i32, %arg2: i32) -> (i32, i32) {
    %c0_i32 = arith.constant 0 : i32
    %c0_i32_0 = arith.constant 0 : i32
    return %c0_i32, %arg1 : i32, i32
  }
  func.func @transform_4(%arg0: i32, %arg1: i32, %arg2: i32) -> (i32, i32) {
    %c0_i32 = arith.constant 0 : i32
    return %arg0, %arg1 : i32, i32
  }
}

module attributes {stable_mosaic.version = 11 : i64} {
  func.func @_fc_heads_kernel(%arg0: i32, %arg1: memref<16x1024xbf16, #tpu.memory_space<vmem>>, %arg2: memref<128x1024xbf16, #tpu.memory_space<vmem>>, %arg3: memref<1x128xf32, #tpu.memory_space<vmem>>, %arg4: memref<1x128xf32, #tpu.memory_space<vmem>>, %arg5: memref<128x128xbf16, #tpu.memory_space<vmem>>, %arg6: memref<1x128xf32, #tpu.memory_space<vmem>>, %arg7: memref<1x128xf32, #tpu.memory_space<vmem>>, %arg8: memref<16x128xf32, #tpu.memory_space<vmem>>, %arg9: memref<16x128xf32, #tpu.memory_space<vmem>>) attributes {dimension_semantics = [#tpu.dimension_semantics<arbitrary>], iteration_bounds = array<i64: 8>, scalar_prefetch = 0 : i64, scratch_operands = 1 : i64, tpu.core_type = #tpu.core_type<tc>, window_params = [{transform_indices = @transform_0, window_bounds = array<i64: 16, 1024>}, {transform_indices = @transform_1, window_bounds = array<i64: 128, 1024>}, {pipeline_mode = #tpu.pipeline_mode<synchronous>, transform_indices = @transform_2, window_bounds = array<i64: 1, 128>}, {pipeline_mode = #tpu.pipeline_mode<synchronous>, transform_indices = @transform_3, window_bounds = array<i64: 1, 128>}, {pipeline_mode = #tpu.pipeline_mode<synchronous>, transform_indices = @transform_4, window_bounds = array<i64: 128, 128>}, {pipeline_mode = #tpu.pipeline_mode<synchronous>, transform_indices = @transform_5, window_bounds = array<i64: 1, 128>}, {pipeline_mode = #tpu.pipeline_mode<synchronous>, transform_indices = @transform_6, window_bounds = array<i64: 1, 128>}, {pipeline_mode = #tpu.pipeline_mode<synchronous>, transform_indices = @transform_7, window_bounds = array<i64: 16, 128>}]} {
    %c0_i32 = arith.constant 0 : i32
    %0 = arith.cmpi eq, %arg0, %c0_i32 : i32
    %1 = arith.extui %0 : i1 to i32
    %c0_i32_0 = arith.constant 0 : i32
    %2 = arith.cmpi ne, %1, %c0_i32_0 : i32
    scf.if %2 {
      %cst_9 = arith.constant 0.000000e+00 : f32
      %12 = vector.broadcast %cst_9 : f32 to vector<16x128xf32>
      %c0_10 = arith.constant 0 : index
      %c0_11 = arith.constant 0 : index
      %13 = vector.load %arg9[%c0_10, %c0_11] : memref<16x128xf32, #tpu.memory_space<vmem>>, vector<16x128xf32>
      tpu.vector_store %arg9[%c0_10, %c0_11], %12 {strides = array<i32>} : memref<16x128xf32, #tpu.memory_space<vmem>>, vector<16x128xf32>,
    } else {
    }
    %c0 = arith.constant 0 : index
    %c0_1 = arith.constant 0 : index
    %3 = vector.load %arg9[%c0, %c0_1] : memref<16x128xf32, #tpu.memory_space<vmem>>, vector<16x128xf32>
    %c0_2 = arith.constant 0 : index
    %c0_3 = arith.constant 0 : index
    %4 = vector.load %arg1[%c0_2, %c0_3] : memref<16x1024xbf16, #tpu.memory_space<vmem>>, vector<16x1024xbf16>
    %c0_4 = arith.constant 0 : index
    %c0_5 = arith.constant 0 : index
    %5 = vector.load %arg2[%c0_4, %c0_5] : memref<128x1024xbf16, #tpu.memory_space<vmem>>, vector<128x1024xbf16>
    %cst = arith.constant dense<0.000000e+00> : vector<16x128xf32>
    %6 = tpu.matmul %4, %5, %cst {dimension_numbers = #tpu.dot_dimension_numbers<[1], [1], [0], [0], [0, 0, 1, 0], [], []>} : vector<16x1024xbf16>, vector<128x1024xbf16>, vector<16x128xf32> -> vector<16x128xf32>
    %7 = arith.addf %3, %6 : vector<16x128xf32>
    %c0_6 = arith.constant 0 : index
    %c0_7 = arith.constant 0 : index
    %8 = vector.load %arg9[%c0_6, %c0_7] : memref<16x128xf32, #tpu.memory_space<vmem>>, vector<16x128xf32>
    tpu.vector_store %arg9[%c0_6, %c0_7], %7 {strides = array<i32>} : memref<16x128xf32, #tpu.memory_space<vmem>>, vector<16x128xf32>,
    %c7_i32 = arith.constant 7 : i32
    %9 = arith.cmpi eq, %arg0, %c7_i32 : i32
    %10 = arith.extui %9 : i1 to i32
    %c0_i32_8 = arith.constant 0 : i32
    %11 = arith.cmpi ne, %10, %c0_i32_8 : i32
    scf.if %11 {
      %c0_9 = arith.constant 0 : index
      %c0_10 = arith.constant 0 : index
      %12 = vector.load %arg9[%c0_9, %c0_10] : memref<16x128xf32, #tpu.memory_space<vmem>>, vector<16x128xf32>
      %c0_11 = arith.constant 0 : index
      %c0_12 = arith.constant 0 : index
      %13 = vector.load %arg3[%c0_11, %c0_12] : memref<1x128xf32, #tpu.memory_space<vmem>>, vector<1x128xf32>
      %14 = vector.broadcast %13 : vector<1x128xf32> to vector<16x128xf32>
      %15 = arith.mulf %12, %14 : vector<16x128xf32>
      %c0_13 = arith.constant 0 : index
      %c0_14 = arith.constant 0 : index
      %16 = vector.load %arg4[%c0_13, %c0_14] : memref<1x128xf32, #tpu.memory_space<vmem>>, vector<1x128xf32>
      %17 = vector.broadcast %16 : vector<1x128xf32> to vector<16x128xf32>
      %18 = arith.addf %15, %17 : vector<16x128xf32>
      %cst_15 = arith.constant 0.000000e+00 : f32
      %19 = vector.broadcast %cst_15 : f32 to vector<16x128xf32>
      %20 = arith.cmpf oge, %18, %19 : vector<16x128xf32>
      %cst_16 = arith.constant 2.000000e-01 : f32
      %21 = vector.broadcast %cst_16 : f32 to vector<16x128xf32>
      %22 = arith.mulf %21, %18 : vector<16x128xf32>
      %23 = arith.select %20, %18, %22 : vector<16x128xi1>, vector<16x128xf32>
      %24 = arith.truncf %23 : vector<16x128xf32> to vector<16x128xbf16>
      %c0_17 = arith.constant 0 : index
      %c0_18 = arith.constant 0 : index
      %25 = vector.load %arg5[%c0_17, %c0_18] : memref<128x128xbf16, #tpu.memory_space<vmem>>, vector<128x128xbf16>
      %cst_19 = arith.constant dense<0.000000e+00> : vector<16x128xf32>
      %26 = tpu.matmul %24, %25, %cst_19 {dimension_numbers = #tpu.dot_dimension_numbers<[1], [1], [0], [0], [0, 0, 1, 0], [], []>} : vector<16x128xbf16>, vector<128x128xbf16>, vector<16x128xf32> -> vector<16x128xf32>
      %c0_20 = arith.constant 0 : index
      %c0_21 = arith.constant 0 : index
      %27 = vector.load %arg6[%c0_20, %c0_21] : memref<1x128xf32, #tpu.memory_space<vmem>>, vector<1x128xf32>
      %28 = vector.broadcast %27 : vector<1x128xf32> to vector<16x128xf32>
      %29 = arith.mulf %26, %28 : vector<16x128xf32>
      %c0_22 = arith.constant 0 : index
      %c0_23 = arith.constant 0 : index
      %30 = vector.load %arg7[%c0_22, %c0_23] : memref<1x128xf32, #tpu.memory_space<vmem>>, vector<1x128xf32>
      %31 = vector.broadcast %30 : vector<1x128xf32> to vector<16x128xf32>
      %32 = arith.addf %29, %31 : vector<16x128xf32>
      %33 = tpu.iota {dimensions = array<i32: 1>} : vector<16x128xi32>
      %c1_i32 = arith.constant 1 : i32
      %34 = vector.broadcast %c1_i32 : i32 to vector<16x128xi32>
      %35 = arith.cmpi sge, %33, %34 : vector<16x128xi32>
      %c11_i32 = arith.constant 11 : i32
      %36 = vector.broadcast %c11_i32 : i32 to vector<16x128xi32>
      %37 = arith.cmpi slt, %33, %36 : vector<16x128xi32>
      %38 = arith.andi %35, %37 : vector<16x128xi1>
      %cst_24 = arith.constant 0xFF800000 : f32
      %39 = vector.broadcast %cst_24 : f32 to vector<16x128xf32>
      %40 = arith.select %38, %32, %39 : vector<16x128xi1>, vector<16x128xf32>
      %cst_25 = arith.constant dense<0xFF800000> : vector<16xf32>
      %41 = vector.multi_reduction <maximumf>, %40, %cst_25 [1] : vector<16x128xf32> to vector<16xf32>
      %42 = vector.shape_cast %41 : vector<16xf32> to vector<16x1xf32>
      %43 = vector.broadcast %42 : vector<16x1xf32> to vector<16x128xf32>
      %44 = arith.subf %40, %43 : vector<16x128xf32>
      %45 = math.exp %44 : vector<16x128xf32>
      %cst_26 = arith.constant dense<0.000000e+00> : vector<16xf32>
      %46 = vector.multi_reduction <add>, %45, %cst_26 [1] : vector<16x128xf32> to vector<16xf32>
      %47 = vector.shape_cast %46 : vector<16xf32> to vector<16x1xf32>
      %48 = vector.broadcast %47 : vector<16x1xf32> to vector<16x128xf32>
      %49 = arith.divf %45, %48 : vector<16x128xf32>
      %c0_i32_27 = arith.constant 0 : i32
      %50 = vector.broadcast %c0_i32_27 : i32 to vector<16x128xi32>
      %51 = arith.cmpi eq, %33, %50 : vector<16x128xi32>
      %52 = arith.select %51, %32, %49 : vector<16x128xi1>, vector<16x128xf32>
      %c0_28 = arith.constant 0 : index
      %c0_29 = arith.constant 0 : index
      %53 = vector.load %arg8[%c0_28, %c0_29] : memref<16x128xf32, #tpu.memory_space<vmem>>, vector<16x128xf32>
      tpu.vector_store %arg8[%c0_28, %c0_29], %52 {strides = array<i32>} : memref<16x128xf32, #tpu.memory_space<vmem>>, vector<16x128xf32>,
    } else {
    }
    return
  }
  func.func @transform_0(%arg0: i32) -> (i32, i32) {
    %c0_i32 = arith.constant 0 : i32
    %c0_i32_0 = arith.constant 0 : i32
    return %c0_i32, %arg0 : i32, i32
  }
  func.func @transform_1(%arg0: i32) -> (i32, i32) {
    %c0_i32 = arith.constant 0 : i32
    %c0_i32_0 = arith.constant 0 : i32
    return %c0_i32, %arg0 : i32, i32
  }
  func.func @transform_2(%arg0: i32) -> (i32, i32) {
    %c0_i32 = arith.constant 0 : i32
    %c0_i32_0 = arith.constant 0 : i32
    %c0_i32_1 = arith.constant 0 : i32
    return %c0_i32, %c0_i32_0 : i32, i32
  }
  func.func @transform_3(%arg0: i32) -> (i32, i32) {
    %c0_i32 = arith.constant 0 : i32
    %c0_i32_0 = arith.constant 0 : i32
    %c0_i32_1 = arith.constant 0 : i32
    return %c0_i32, %c0_i32_0 : i32, i32
  }
  func.func @transform_4(%arg0: i32) -> (i32, i32) {
    %c0_i32 = arith.constant 0 : i32
    %c0_i32_0 = arith.constant 0 : i32
    %c0_i32_1 = arith.constant 0 : i32
    return %c0_i32, %c0_i32_0 : i32, i32
  }
  func.func @transform_5(%arg0: i32) -> (i32, i32) {
    %c0_i32 = arith.constant 0 : i32
    %c0_i32_0 = arith.constant 0 : i32
    %c0_i32_1 = arith.constant 0 : i32
    return %c0_i32, %c0_i32_0 : i32, i32
  }
  func.func @transform_6(%arg0: i32) -> (i32, i32) {
    %c0_i32 = arith.constant 0 : i32
    %c0_i32_0 = arith.constant 0 : i32
    %c0_i32_1 = arith.constant 0 : i32
    return %c0_i32, %c0_i32_0 : i32, i32
  }
  func.func @transform_7(%arg0: i32) -> (i32, i32) {
    %c0_i32 = arith.constant 0 : i32
    %c0_i32_0 = arith.constant 0 : i32
    %c0_i32_1 = arith.constant 0 : i32
    return %c0_i32, %c0_i32_0 : i32, i32
  }
}

</mosaic_0001>

<llo_original>
// kernel: discriminator_forward.4
$region0: #{discriminator_forward.4}
  #allocation0 [shape = 'u32[]', space=smem, size = 0x4, offset = 0x4, fixed_abs, tag = 'smem constant byte address 0x4 - core index']
  #allocation1 [shape = 'u32[144,128]{1,0:T(1,128)}', space=vmem, size = 0x12000, scoped, tag = 'internal scratch']
  #allocation2 [shape = 'f32[512,128]{1,0:T(8,128)}', space=vmem, size = 0x40000, scoped, tag = 'scratch operand']
  %s0 = inlined_call_operand.vmem [shape: bf16[512,128], index: 0, kind: input, shape index: {}]
  %s1 = inlined_call_operand.vmem [shape: bf16[128,128], index: 1, kind: input, shape index: {}]
  %s2 = inlined_call_operand.vmem [shape: f32[1,128], index: 2, kind: input, shape index: {}]
  %s3 = inlined_call_operand.hbm [shape: f32[1,128], index: 3, kind: input, shape index: {}]
  %s4 = inlined_call_operand.vmem [shape: bf16[512,128], index: 4, kind: output, shape index: {}]
  %s5 = sld [smem:[#allocation0]]
  $region38: #{discriminator_forward.4} parent=0
    _
  %s7 = ssub.s32 1, %s5
  %s8 = scalar_select 0, %s7, %s5
  $region1: #{discriminator_forward.4} parent=0
    #allocation3 [shape = 'u8[512]{0}', space=vmem, size = 0x400, scoped, tag = 'input window, operand 3, single buffered']
    #allocation4 [shape = 's32[1]{0}', space=sflag, size = 0x4, scoped, tag = 'scoped memory for discriminator_forward.4']
    %9 = vsyncpa [#allocation4], 0
    // Predicated region
    $region2: #{discriminator_forward.4} parent=1 // pred_check
      _
    $region3: #{discriminator_forward.4} parent=1 // pred_check_branch
      %11 = sbr.rel (0) target = $region5
    $region4: #{discriminator_forward.4} parent=1 // pred_region
      _
    $region5: #{discriminator_forward.4} parent=1 // pred_fallthru
      _
    // Predicated region
    $region6: #{discriminator_forward.4} parent=1 // pred_check
      _
    $region7: #{discriminator_forward.4} parent=1 // pred_check_branch
      %13 = sbr.rel (0) target = $region9
    $region8: #{discriminator_forward.4} parent=1 // pred_region
      _
    $region9: #{discriminator_forward.4} parent=1 // pred_fallthru
      _
    // Predicated region
    $region10: #{discriminator_forward.4} parent=1 // pred_check
      _
    $region11: #{discriminator_forward.4} parent=1 // pred_check_branch
      %15 = sbr.rel (0) target = $region13
    $region12: #{discriminator_forward.4} parent=1 // pred_region
      _
    $region13: #{discriminator_forward.4} parent=1 // pred_fallthru
      _
    // Predicated region
    $region14: #{discriminator_forward.4} parent=1 // pred_check
      _
    $region15: #{discriminator_forward.4} parent=1 // pred_check_branch
      %17 = sbr.rel (0) target = $region17
    $region16: #{discriminator_forward.4} parent=1 // pred_region
      %s19 = ssub.s32 16, 16
      %20 = vsyncadd [#allocation4], %s19
      %s22 = sshll.u32 [#allocation3], 4
      %s23 = int_to_ptr.vmem [resolvable:$true] %s22
      %25 = dma.hbm_to_vmem [thread:$0]  %s3, 16, %s23, [#allocation4]
    $region17: #{discriminator_forward.4} parent=1 // pred_fallthru
      _
    // Predicated region
    $region18: #{discriminator_forward.4} parent=1 // pred_check
      _
    $region19: #{discriminator_forward.4} parent=1 // pred_check_branch
      %27 = sbr.rel (0) target = $region21
    $region20: #{discriminator_forward.4} parent=1 // pred_region
      %28 = dma.done [#allocation4], 16
    $region21: #{discriminator_forward.4} parent=1 // pred_fallthru
      _
    %p30 = scmp.eq.s32.totalorder 0, 0
    // Predicated region
    $region22: #{discriminator_forward.4} parent=1 // pred_check
      %p31 = pneg %p30
    $region23: #{discriminator_forward.4} parent=1 // pred_check_branch
      %33 = sbr.rel (%p31) target = $region25
    $region24: #{discriminator_forward.4} parent=1 // pred_region
      %34 = vst [vmem:[#allocation2] sm:$0xff] 0.0
      %35 = vst [vmem:[#allocation2 + $0x8] sm:$0xff] 0.0
      %36 = vst [vmem:[#allocation2 + $0x10] sm:$0xff] 0.0
      %37 = vst [vmem:[#allocation2 + $0x18] sm:$0xff] 0.0
      %38 = vst [vmem:[#allocation2 + $0x20] sm:$0xff] 0.0
      %39 = vst [vmem:[#allocation2 + $0x28] sm:$0xff] 0.0
      %40 = vst [vmem:[#allocation2 + $0x30] sm:$0xff] 0.0
      %41 = vst [vmem:[#allocation2 + $0x38] sm:$0xff] 0.0
      %42 = vst [vmem:[#allocation2 + $0x40] sm:$0xff] 0.0
      %43 = vst [vmem:[#allocation2 + $0x48] sm:$0xff] 0.0
      %44 = vst [vmem:[#allocation2 + $0x50] sm:$0xff] 0.0
      %45 = vst [vmem:[#allocation2 + $0x58] sm:$0xff] 0.0
      %46 = vst [vmem:[#allocation2 + $0x60] sm:$0xff] 0.0
      %47 = vst [vmem:[#allocation2 + $0x68] sm:$0xff] 0.0
      %48 = vst [vmem:[#allocation2 + $0x70] sm:$0xff] 0.0
      %49 = vst [vmem:[#allocation2 + $0x78] sm:$0xff] 0.0
      %50 = vst [vmem:[#allocation2 + $0x80] sm:$0xff] 0.0
      %51 = vst [vmem:[#allocation2 + $0x88] sm:$0xff] 0.0
      %52 = vst [vmem:[#allocation2 + $0x90] sm:$0xff] 0.0
      %53 = vst [vmem:[#allocation2 + $0x98] sm:$0xff] 0.0
      %54 = vst [vmem:[#allocation2 + $0xa0] sm:$0xff] 0.0
      %55 = vst [vmem:[#allocation2 + $0xa8] sm:$0xff] 0.0
      %56 = vst [vmem:[#allocation2 + $0xb0] sm:$0xff] 0.0
      %57 = vst [vmem:[#allocation2 + $0xb8] sm:$0xff] 0.0
      %58 = vst [vmem:[#allocation2 + $0xc0] sm:$0xff] 0.0
      %59 = vst [vmem:[#allocation2 + $0xc8] sm:$0xff] 0.0
      %60 = vst [vmem:[#allocation2 + $0xd0] sm:$0xff] 0.0
      %61 = vst [vmem:[#allocation2 + $0xd8] sm:$0xff] 0.0
      %62 = vst [vmem:[#allocation2 + $0xe0] sm:$0xff] 0.0
      %63 = vst [vmem:[#allocation2 + $0xe8] sm:$0xff] 0.0
      %64 = vst [vmem:[#allocation2 + $0xf0] sm:$0xff] 0.0
      %65 = vst [vmem:[#allocation2 + $0xf8] sm:$0xff] 0.0
      %66 = vst [vmem:[#allocation2 + $0x100] sm:$0xff] 0.0
      %67 = vst [vmem:[#allocation2 + $0x108] sm:$0xff] 0.0
      %68 = vst [vmem:[#allocation2 + $0x110] sm:$0xff] 0.0
      %69 = vst [vmem:[#allocation2 + $0x118] sm:$0xff] 0.0
      %70 = vst [vmem:[#allocation2 + $0x120] sm:$0xff] 0.0
      %71 = vst [vmem:[#allocation2 + $0x128] sm:$0xff] 0.0
      %72 = vst [vmem:[#allocation2 + $0x130] sm:$0xff] 0.0
      %73 = vst [vmem:[#allocation2 + $0x138] sm:$0xff] 0.0
      %74 = vst [vmem:[#allocation2 + $0x140] sm:$0xff] 0.0
      %75 = vst [vmem:[#allocation2 + $0x148] sm:$0xff] 0.0
      %76 = vst [vmem:[#allocation2 + $0x150] sm:$0xff] 0.0
      %77 = vst [vmem:[#allocation2 + $0x158] sm:$0xff] 0.0
      %78 = vst [vmem:[#allocation2 + $0x160] sm:$0xff] 0.0
      %79 = vst [vmem:[#allocation2 + $0x168] sm:$0xff] 0.0
      %80 = vst [vmem:[#allocation2 + $0x170] sm:$0xff] 0.0
      %81 = vst [vmem:[#allocation2 + $0x178] sm:$0xff] 0.0
      %82 = vst [vmem:[#allocation2 + $0x180] sm:$0xff] 0.0
      %83 = vst [vmem:[#allocation2 + $0x188] sm:$0xff] 0.0
      %84 = vst [vmem:[#allocation2 + $0x190] sm:$0xff] 0.0
      %85 = vst [vmem:[#allocation2 + $0x198] sm:$0xff] 0.0
      %86 = vst [vmem:[#allocation2 + $0x1a0] sm:$0xff] 0.0
      %87 = vst [vmem:[#allocation2 + $0x1a8] sm:$0xff] 0.0
      %88 = vst [vmem:[#allocation2 + $0x1b0] sm:$0xff] 0.0
      %89 = vst [vmem:[#allocation2 + $0x1b8] sm:$0xff] 0.0
      %90 = vst [vmem:[#allocation2 + $0x1c0] sm:$0xff] 0.0
      %91 = vst [vmem:[#allocation2 + $0x1c8] sm:$0xff] 0.0
      %92 = vst [vmem:[#allocation2 + $0x1d0] sm:$0xff] 0.0
      %93 = vst [vmem:[#allocation2 + $0x1d8] sm:$0xff] 0.0
      %94 = vst [vmem:[#allocation2 + $0x1e0] sm:$0xff] 0.0
      %95 = vst [vmem:[#allocation2 + $0x1e8] sm:$0xff] 0.0
      %96 = vst [vmem:[#allocation2 + $0x1f0] sm:$0xff] 0.0
      %97 = vst [vmem:[#allocation2 + $0x1f8] sm:$0xff] 0.0
    $region25: #{discriminator_forward.4} parent=1 // pred_fallthru
      _
    %v98 = vld [vmem:[#allocation2] sm:$0xff]
    %v99 = vld [vmem:[#allocation2 + $0x8] sm:$0xff]
    %v100 = vld [vmem:[#allocation2 + $0x10] sm:$0xff]
    %v101 = vld [vmem:[#allocation2 + $0x18] sm:$0xff]
    %v102 = vld [vmem:[#allocation2 + $0x20] sm:$0xff]
    %v103 = vld [vmem:[#allocation2 + $0x28] sm:$0xff]
    %v104 = vld [vmem:[#allocation2 + $0x30] sm:$0xff]
    %v105 = vld [vmem:[#allocation2 + $0x38] sm:$0xff]
    %v106 = vld [vmem:[#allocation2 + $0x40] sm:$0xff]
    %v107 = vld [vmem:[#allocation2 + $0x48] sm:$0xff]
    %v108 = vld [vmem:[#allocation2 + $0x50] sm:$0xff]
    %v109 = vld [vmem:[#allocation2 + $0x58] sm:$0xff]
    %v110 = vld [vmem:[#allocation2 + $0x60] sm:$0xff]
    %v111 = vld [vmem:[#allocation2 + $0x68] sm:$0xff]
    %v112 = vld [vmem:[#allocation2 + $0x70] sm:$0xff]
    %v113 = vld [vmem:[#allocation2 + $0x78] sm:$0xff]
    %v114 = vld [vmem:[#allocation2 + $0x80] sm:$0xff]
    %v115 = vld [vmem:[#allocation2 + $0x88] sm:$0xff]
    %v116 = vld [vmem:[#allocation2 + $0x90] sm:$0xff]
    %v117 = vld [vmem:[#allocation2 + $0x98] sm:$0xff]
    %v118 = vld [vmem:[#allocation2 + $0xa0] sm:$0xff]
    %v119 = vld [vmem:[#allocation2 + $0xa8] sm:$0xff]
    %v120 = vld [vmem:[#allocation2 + $0xb0] sm:$0xff]
    %v121 = vld [vmem:[#allocation2 + $0xb8] sm:$0xff]
    %v122 = vld [vmem:[#allocation2 + $0xc0] sm:$0xff]
    %v123 = vld [vmem:[#allocation2 + $0xc8] sm:$0xff]
    %v124 = vld [vmem:[#allocation2 + $0xd0] sm:$0xff]
    %v125 = vld [vmem:[#allocation2 + $0xd8] sm:$0xff]
    %v126 = vld [vmem:[#allocation2 + $0xe0] sm:$0xff]
    %v127 = vld [vmem:[#allocation2 + $0xe8] sm:$0xff]
    %v128 = vld [vmem:[#allocation2 + $0xf0] sm:$0xff]
    %v129 = vld [vmem:[#allocation2 + $0xf8] sm:$0xff]
    %v130 = vld [vmem:[#allocation2 + $0x100] sm:$0xff]
    %v131 = vld [vmem:[#allocation2 + $0x108] sm:$0xff]
    %v132 = vld [vmem:[#allocation2 + $0x110] sm:$0xff]
    %v133 = vld [vmem:[#allocation2 + $0x118] sm:$0xff]
    %v134 = vld [vmem:[#allocation2 + $0x120] sm:$0xff]
    %v135 = vld [vmem:[#allocation2 + $0x128] sm:$0xff]
    %v136 = vld [vmem:[#allocation2 + $0x130] sm:$0xff]
    %v137 = vld [vmem:[#allocation2 + $0x138] sm:$0xff]
    %v138 = vld [vmem:[#allocation2 + $0x140] sm:$0xff]
    %v139 = vld [vmem:[#allocation2 + $0x148] sm:$0xff]
    %v140 = vld [vmem:[#allocation2 + $0x150] sm:$0xff]
    %v141 = vld [vmem:[#allocation2 + $0x158] sm:$0xff]
    %v142 = vld [vmem:[#allocation2 + $0x160] sm:$0xff]
    %v143 = vld [vmem:[#allocation2 + $0x168] sm:$0xff]
    %v144 = vld [vmem:[#allocation2 + $0x170] sm:$0xff]
    %v145 = vld [vmem:[#allocation2 + $0x178] sm:$0xff]
    %v146 = vld [vmem:[#allocation2 + $0x180] sm:$0xff]
    %v147 = vld [vmem:[#allocation2 + $0x188] sm:$0xff]
    %v148 = vld [vmem:[#allocation2 + $0x190] sm:$0xff]
    %v149 = vld [vmem:[#allocation2 + $0x198] sm:$0xff]
    %v150 = vld [vmem:[#allocation2 + $0x1a0] sm:$0xff]
    %v151 = vld [vmem:[#allocation2 + $0x1a8] sm:$0xff]
    %v152 = vld [vmem:[#allocation2 + $0x1b0] sm:$0xff]
    %v153 = vld [vmem:[#allocation2 + $0x1b8] sm:$0xff]
    %v154 = vld [vmem:[#allocation2 + $0x1c0] sm:$0xff]
    %v155 = vld [vmem:[#allocation2 + $0x1c8] sm:$0xff]
    %v156 = vld [vmem:[#allocation2 + $0x1d0] sm:$0xff]
    %v157 = vld [vmem:[#allocation2 + $0x1d8] sm:$0xff]
    %v158 = vld [vmem:[#allocation2 + $0x1e0] sm:$0xff]
    %v159 = vld [vmem:[#allocation2 + $0x1e8] sm:$0xff]
    %v160 = vld [vmem:[#allocation2 + $0x1f0] sm:$0xff]
    %v161 = vld [vmem:[#allocation2 + $0x1f8] sm:$0xff]
    %v162 = vld [vmem:[%s0] sm:$0xf]
    %v163 = vld [vmem:[%s0 + $0x4] sm:$0xf]
    %v164 = vld [vmem:[%s0 + $0x8] sm:$0xf]
    %v165 = vld [vmem:[%s0 + $0xc] sm:$0xf]
    %v166 = vld [vmem:[%s0 + $0x10] sm:$0xf]
    %v167 = vld [vmem:[%s0 + $0x14] sm:$0xf]
    %v168 = vld [vmem:[%s0 + $0x18] sm:$0xf]
    %v169 = vld [vmem:[%s0 + $0x1c] sm:$0xf]
    %v170 = vld [vmem:[%s0 + $0x20] sm:$0xf]
    %v171 = vld [vmem:[%s0 + $0x24] sm:$0xf]
    %v172 = vld [vmem:[%s0 + $0x28] sm:$0xf]
    %v173 = vld [vmem:[%s0 + $0x2c] sm:$0xf]
    %v174 = vld [vmem:[%s0 + $0x30] sm:$0xf]
    %v175 = vld [vmem:[%s0 + $0x34] sm:$0xf]
    %v176 = vld [vmem:[%s0 + $0x38] sm:$0xf]
    %v177 = vld [vmem:[%s0 + $0x3c] sm:$0xf]
    %v178 = vld [vmem:[%s0 + $0x40] sm:$0xf]
    %v179 = vld [vmem:[%s0 + $0x44] sm:$0xf]
    %v180 = vld [vmem:[%s0 + $0x48] sm:$0xf]
    %v181 = vld [vmem:[%s0 + $0x4c] sm:$0xf]
    %v182 = vld [vmem:[%s0 + $0x50] sm:$0xf]
    %v183 = vld [vmem:[%s0 + $0x54] sm:$0xf]
    %v184 = vld [vmem:[%s0 + $0x58] sm:$0xf]
    %v185 = vld [vmem:[%s0 + $0x5c] sm:$0xf]
    %v186 = vld [vmem:[%s0 + $0x60] sm:$0xf]
    %v187 = vld [vmem:[%s0 + $0x64] sm:$0xf]
    %v188 = vld [vmem:[%s0 + $0x68] sm:$0xf]
    %v189 = vld [vmem:[%s0 + $0x6c] sm:$0xf]
    %v190 = vld [vmem:[%s0 + $0x70] sm:$0xf]
    %v191 = vld [vmem:[%s0 + $0x74] sm:$0xf]
    %v192 = vld [vmem:[%s0 + $0x78] sm:$0xf]
    %v193 = vld [vmem:[%s0 + $0x7c] sm:$0xf]
    %v194 = vld [vmem:[%s0 + $0x80] sm:$0xf]
    %v195 = vld [vmem:[%s0 + $0x84] sm:$0xf]
    %v196 = vld [vmem:[%s0 + $0x88] sm:$0xf]
    %v197 = vld [vmem:[%s0 + $0x8c] sm:$0xf]
    %v198 = vld [vmem:[%s0 + $0x90] sm:$0xf]
    %v199 = vld [vmem:[%s0 + $0x94] sm:$0xf]
    %v200 = vld [vmem:[%s0 + $0x98] sm:$0xf]
    %v201 = vld [vmem:[%s0 + $0x9c] sm:$0xf]
    %v202 = vld [vmem:[%s0 + $0xa0] sm:$0xf]
    %v203 = vld [vmem:[%s0 + $0xa4] sm:$0xf]
    %v204 = vld [vmem:[%s0 + $0xa8] sm:$0xf]
    %v205 = vld [vmem:[%s0 + $0xac] sm:$0xf]
    %v206 = vld [vmem:[%s0 + $0xb0] sm:$0xf]
    %v207 = vld [vmem:[%s0 + $0xb4] sm:$0xf]
    %v208 = vld [vmem:[%s0 + $0xb8] sm:$0xf]
    %v209 = vld [vmem:[%s0 + $0xbc] sm:$0xf]
    %v210 = vld [vmem:[%s0 + $0xc0] sm:$0xf]
    %v211 = vld [vmem:[%s0 + $0xc4] sm:$0xf]
    %v212 = vld [vmem:[%s0 + $0xc8] sm:$0xf]
    %v213 = vld [vmem:[%s0 + $0xcc] sm:$0xf]
    %v214 = vld [vmem:[%s0 + $0xd0] sm:$0xf]
    %v215 = vld [vmem:[%s0 + $0xd4] sm:$0xf]
    %v216 = vld [vmem:[%s0 + $0xd8] sm:$0xf]
    %v217 = vld [vmem:[%s0 + $0xdc] sm:$0xf]
    %v218 = vld [vmem:[%s0 + $0xe0] sm:$0xf]
    %v219 = vld [vmem:[%s0 + $0xe4] sm:$0xf]
    %v220 = vld [vmem:[%s0 + $0xe8] sm:$0xf]
    %v221 = vld [vmem:[%s0 + $0xec] sm:$0xf]
    %v222 = vld [vmem:[%s0 + $0xf0] sm:$0xf]
    %v223 = vld [vmem:[%s0 + $0xf4] sm:$0xf]
    %v224 = vld [vmem:[%s0 + $0xf8] sm:$0xf]
    %v225 = vld [vmem:[%s0 + $0xfc] sm:$0xf]
    %v226 = vld [vmem:[%s1] sm:$0xf]
    %v227 = vld [vmem:[%s1 + $0x4] sm:$0xf]
    %v228 = vld [vmem:[%s1 + $0x8] sm:$0xf]
    %v229 = vld [vmem:[%s1 + $0xc] sm:$0xf]
    %v230 = vld [vmem:[%s1 + $0x10] sm:$0xf]
    %v231 = vld [vmem:[%s1 + $0x14] sm:$0xf]
    %v232 = vld [vmem:[%s1 + $0x18] sm:$0xf]
    %v233 = vld [vmem:[%s1 + $0x1c] sm:$0xf]
    %v234 = vld [vmem:[%s1 + $0x20] sm:$0xf]
    %v235 = vld [vmem:[%s1 + $0x24] sm:$0xf]
    %v236 = vld [vmem:[%s1 + $0x28] sm:$0xf]
    %v237 = vld [vmem:[%s1 + $0x2c] sm:$0xf]
    %v238 = vld [vmem:[%s1 + $0x30] sm:$0xf]
    %v239 = vld [vmem:[%s1 + $0x34] sm:$0xf]
    %v240 = vld [vmem:[%s1 + $0x38] sm:$0xf]
    %v241 = vld [vmem:[%s1 + $0x3c] sm:$0xf]
    %v306 = vunpack.c.l.b16 %v162
    %v307 = vunpack.c.l.b16 %v163
    %v308 = vunpack.c.l.b16 %v164
    %v309 = vunpack.c.l.b16 %v165
    %v310 = vunpack.c.l.b16 %v166
    %v311 = vunpack.c.l.b16 %v167
    %v312 = vunpack.c.l.b16 %v168
    %v313 = vunpack.c.l.b16 %v169
    %v314 = vunpack.c.l.b16 %v170
    %v315 = vunpack.c.l.b16 %v171
    %v316 = vunpack.c.l.b16 %v172
    %v317 = vunpack.c.l.b16 %v173
    %v318 = vunpack.c.l.b16 %v174
    %v319 = vunpack.c.l.b16 %v175
    %v320 = vunpack.c.l.b16 %v176
    %v321 = vunpack.c.l.b16 %v177
    %v322 = vunpack.c.l.b16 %v178
    %v323 = vunpack.c.l.b16 %v179
    %v324 = vunpack.c.l.b16 %v180
    %v325 = vunpack.c.l.b16 %v181
    %v326 = vunpack.c.l.b16 %v182
    %v327 = vunpack.c.l.b16 %v183
    %v328 = vunpack.c.l.b16 %v184
    %v329 = vunpack.c.l.b16 %v185
    %v330 = vunpack.c.l.b16 %v186
    %v331 = vunpack.c.l.b16 %v187
    %v332 = vunpack.c.l.b16 %v188
    %v333 = vunpack.c.l.b16 %v189
    %v334 = vunpack.c.l.b16 %v190
    %v335 = vunpack.c.l.b16 %v191
    %v336 = vunpack.c.l.b16 %v192
    %v337 = vunpack.c.l.b16 %v193
    %v338 = vunpack.c.l.b16 %v194
    %v339 = vunpack.c.l.b16 %v195
    %v340 = vunpack.c.l.b16 %v196
    %v341 = vunpack.c.l.b16 %v197
    %v342 = vunpack.c.l.b16 %v198
    %v343 = vunpack.c.l.b16 %v199
    %v344 = vunpack.c.l.b16 %v200
    %v345 = vunpack.c.l.b16 %v201
    %v346 = vunpack.c.l.b16 %v202
    %v347 = vunpack.c.l.b16 %v203
    %v348 = vunpack.c.l.b16 %v204
    %v349 = vunpack.c.l.b16 %v205
    %v350 = vunpack.c.l.b16 %v206
    %v351 = vunpack.c.l.b16 %v207
    %v352 = vunpack.c.l.b16 %v208
    %v353 = vunpack.c.l.b16 %v209
    %v354 = vunpack.c.l.b16 %v210
    %v355 = vunpack.c.l.b16 %v211
    %v356 = vunpack.c.l.b16 %v212
    %v357 = vunpack.c.l.b16 %v213
    %v358 = vunpack.c.l.b16 %v214
    %v359 = vunpack.c.l.b16 %v215
    %v360 = vunpack.c.l.b16 %v216
    %v361 = vunpack.c.l.b16 %v217
    %v362 = vunpack.c.l.b16 %v218
    %v363 = vunpack.c.l.b16 %v219
    %v364 = vunpack.c.l.b16 %v220
    %v365 = vunpack.c.l.b16 %v221
    %v366 = vunpack.c.l.b16 %v222
    %v367 = vunpack.c.l.b16 %v223
    %v368 = vunpack.c.l.b16 %v224
    %v369 = vunpack.c.l.b16 %v225
    %v370 = vpack.c.b16 %v307, %v306
    %v371 = vpack.c.b16 %v309, %v308
    %v372 = vpack.c.b16 %v311, %v310
    %v373 = vpack.c.b16 %v313, %v312
    %v374 = vpack.c.b16 %v315, %v314
    %v375 = vpack.c.b16 %v317, %v316
    %v376 = vpack.c.b16 %v319, %v318
    %v377 = vpack.c.b16 %v321, %v320
    %v378 = vpack.c.b16 %v323, %v322
    %v379 = vpack.c.b16 %v325, %v324
    %v380 = vpack.c.b16 %v327, %v326
    %v381 = vpack.c.b16 %v329, %v328
    %v382 = vpack.c.b16 %v331, %v330
    %v383 = vpack.c.b16 %v333, %v332
    %v384 = vpack.c.b16 %v335, %v334
    %v385 = vpack.c.b16 %v337, %v336
    %v386 = vpack.c.b16 %v339, %v338
    %v387 = vpack.c.b16 %v341, %v340
    %v388 = vpack.c.b16 %v343, %v342
    %v389 = vpack.c.b16 %v345, %v344
    %v390 = vpack.c.b16 %v347, %v346
    %v391 = vpack.c.b16 %v349, %v348
    %v392 = vpack.c.b16 %v351, %v350
    %v393 = vpack.c.b16 %v353, %v352
    %v394 = vpack.c.b16 %v355, %v354
    %v395 = vpack.c.b16 %v357, %v356
    %v396 = vpack.c.b16 %v359, %v358
    %v397 = vpack.c.b16 %v361, %v360
    %v398 = vpack.c.b16 %v363, %v362
    %v399 = vpack.c.b16 %v365, %v364
    %v400 = vpack.c.b16 %v367, %v366
    %v401 = vpack.c.b16 %v369, %v368
    %v450 = vunpack.c.l.b16 %v226
    %v451 = vunpack.c.l.b16 %v227
    %v452 = vunpack.c.l.b16 %v228
    %v453 = vunpack.c.l.b16 %v229
    %v454 = vunpack.c.l.b16 %v230
    %v455 = vunpack.c.l.b16 %v231
    %v456 = vunpack.c.l.b16 %v232
    %v457 = vunpack.c.l.b16 %v233
    %v458 = vunpack.c.l.b16 %v234
    %v459 = vunpack.c.l.b16 %v235
    %v460 = vunpack.c.l.b16 %v236
    %v461 = vunpack.c.l.b16 %v237
    %v462 = vunpack.c.l.b16 %v238
    %v463 = vunpack.c.l.b16 %v239
    %v464 = vunpack.c.l.b16 %v240
    %v465 = vunpack.c.l.b16 %v241
    %v466 = vpack.c.b16 %v451, %v450
    %v467 = vpack.c.b16 %v453, %v452
    %v468 = vpack.c.b16 %v455, %v454
    %v469 = vpack.c.b16 %v457, %v456
    %v470 = vpack.c.b16 %v459, %v458
    %v471 = vpack.c.b16 %v461, %v460
    %v472 = vpack.c.b16 %v463, %v462
    %v473 = vpack.c.b16 %v465, %v464
    %482 = vmatprep.subr.bf16.mxu0 0
    %483 = vmatpush1.bf16.xpose.msra.mxu0 %v466
    %484 = vmatprep.subr.bf16.mxu0 0
    %485 = vmatpush1.bf16.xpose.msra.mxu0 %v467
    %486 = vmatprep.subr.bf16.mxu0 0
    %487 = vmatpush1.bf16.xpose.msra.mxu0 %v468
    %488 = vmatprep.subr.bf16.mxu0 0
    %489 = vmatpush1.bf16.xpose.msra.mxu0 %v469
    %490 = vmatprep.subr.bf16.mxu0 0
    %491 = vmatpush1.bf16.xpose.msra.mxu0 %v470
    %492 = vmatprep.subr.bf16.mxu0 0
    %493 = vmatpush1.bf16.xpose.msra.mxu0 %v471
    %494 = vmatprep.subr.bf16.mxu0 0
    %495 = vmatpush1.bf16.xpose.msra.mxu0 %v472
    %496 = vmatprep.subr.bf16.mxu0 0
    %497 = vmatpush1.bf16.xpose.msra.mxu0 %v473
    %498 = vmatprep.subr.bf16.mxu0 0
    %499 = vmatpush1.bf16.xpose.msra.mxu0 0
    %500 = vmatprep.subr.bf16.mxu0 0
    %501 = vmatpush1.bf16.xpose.msra.mxu0 0
    %502 = vmatprep.subr.bf16.mxu0 0
    %503 = vmatpush1.bf16.xpose.msra.mxu0 0
    %504 = vmatprep.subr.bf16.mxu0 0
    %505 = vmatpush1.bf16.xpose.msra.mxu0 0
    %506 = vmatprep.subr.bf16.mxu0 0
    %507 = vmatpush1.bf16.xpose.msra.mxu0 0
    %508 = vmatprep.subr.bf16.mxu0 0
    %509 = vmatpush1.bf16.xpose.msra.mxu0 0
    %510 = vmatprep.subr.bf16.mxu0 0
    %511 = vmatpush1.bf16.xpose.msra.mxu0 0
    %512 = vmatprep.subr.bf16.mxu0 0
    %513 = vmatpush1.bf16.xpose.msra.mxu0 0
    %514 = vmatprep.mubr.bf16.mxu0 0
    %515 = vmatmul.mubr.bf16.gmra.mrb[0].mxu0 %v370
    %v516 = vpop.f32.mrb[0].mxu0
    %v517 = vadd.f32 0.0, %v516
    %v518 = vpop.f32.mrb[0].mxu0
    %v519 = vpop.f32.mrb[0].mxu0
    %v520 = vadd.f32 0.0, %v519
    %v521 = vpop.f32.mrb[0].mxu0
    %522 = vmatprep.mubr.bf16.mxu0 0
    %523 = vmatmul.mubr.bf16.gmra.mrb[0].mxu0 %v371
    %v524 = vpop.f32.mrb[0].mxu0
    %v525 = vadd.f32 0.0, %v524
    %v526 = vpop.f32.mrb[0].mxu0
    %v527 = vpop.f32.mrb[0].mxu0
    %v528 = vadd.f32 0.0, %v527
    %v529 = vpop.f32.mrb[0].mxu0
    %530 = vmatprep.mubr.bf16.mxu0 0
    %531 = vmatmul.mubr.bf16.gmra.mrb[0].mxu0 %v372
    %v532 = vpop.f32.mrb[0].mxu0
    %v533 = vadd.f32 0.0, %v532
    %v534 = vpop.f32.mrb[0].mxu0
    %v535 = vpop.f32.mrb[0].mxu0
    %v536 = vadd.f32 0.0, %v535
    %v537 = vpop.f32.mrb[0].mxu0
    %538 = vmatprep.mubr.bf16.mxu0 0
    %539 = vmatmul.mubr.bf16.gmra.mrb[0].mxu0 %v373
    %v540 = vpop.f32.mrb[0].mxu0
    %v541 = vadd.f32 0.0, %v540
    %v542 = vpop.f32.mrb[0].mxu0
    %v543 = vpop.f32.mrb[0].mxu0
    %v544 = vadd.f32 0.0, %v543
    %v545 = vpop.f32.mrb[0].mxu0
    %546 = vmatprep.mubr.bf16.mxu0 0
    %547 = vmatmul.mubr.bf16.gmra.mrb[0].mxu0 %v374
    %v548 = vpop.f32.mrb[0].mxu0
    %v549 = vadd.f32 0.0, %v548
    %v550 = vpop.f32.mrb[0].mxu0
    %v551 = vpop.f32.mrb[0].mxu0
    %v552 = vadd.f32 0.0, %v551
    %v553 = vpop.f32.mrb[0].mxu0
    %554 = vmatprep.mubr.bf16.mxu0 0
    %555 = vmatmul.mubr.bf16.gmra.mrb[0].mxu0 %v375
    %v556 = vpop.f32.mrb[0].mxu0
    %v557 = vadd.f32 0.0, %v556
    %v558 = vpop.f32.mrb[0].mxu0
    %v559 = vpop.f32.mrb[0].mxu0
    %v560 = vadd.f32 0.0, %v559
    %v561 = vpop.f32.mrb[0].mxu0
    %562 = vmatprep.mubr.bf16.mxu0 0
    %563 = vmatmul.mubr.bf16.gmra.mrb[0].mxu0 %v376
    %v564 = vpop.f32.mrb[0].mxu0
    %v565 = vadd.f32 0.0, %v564
    %v566 = vpop.f32.mrb[0].mxu0
    %v567 = vpop.f32.mrb[0].mxu0
    %v568 = vadd.f32 0.0, %v567
    %v569 = vpop.f32.mrb[0].mxu0
    %570 = vmatprep.mubr.bf16.mxu0 0
    %571 = vmatmul.mubr.bf16.gmra.mrb[0].mxu0 %v377
    %v572 = vpop.f32.mrb[0].mxu0
    %v573 = vadd.f32 0.0, %v572
    %v574 = vpop.f32.mrb[0].mxu0
    %v575 = vpop.f32.mrb[0].mxu0
    %v576 = vadd.f32 0.0, %v575
    %v577 = vpop.f32.mrb[0].mxu0
    %578 = vmatprep.mubr.bf16.mxu0 0
    %579 = vmatmul.mubr.bf16.gmra.mrb[0].mxu0 %v378
    %v580 = vpop.f32.mrb[0].mxu0
    %v581 = vadd.f32 0.0, %v580
    %v582 = vpop.f32.mrb[0].mxu0
    %v583 = vpop.f32.mrb[0].mxu0
    %v584 = vadd.f32 0.0, %v583
    %v585 = vpop.f32.mrb[0].mxu0
    %586 = vmatprep.mubr.bf16.mxu0 0
    %587 = vmatmul.mubr.bf16.gmra.mrb[0].mxu0 %v379
    %v588 = vpop.f32.mrb[0].mxu0
    %v589 = vadd.f32 0.0, %v588
    %v590 = vpop.f32.mrb[0].mxu0
    %v591 = vpop.f32.mrb[0].mxu0
    %v592 = vadd.f32 0.0, %v591
    %v593 = vpop.f32.mrb[0].mxu0
    %594 = vmatprep.mubr.bf16.mxu0 0
    %595 = vmatmul.mubr.bf16.gmra.mrb[0].mxu0 %v380
    %v596 = vpop.f32.mrb[0].mxu0
    %v597 = vadd.f32 0.0, %v596
    %v598 = vpop.f32.mrb[0].mxu0
    %v599 = vpop.f32.mrb[0].mxu0
    %v600 = vadd.f32 0.0, %v599
    %v601 = vpop.f32.mrb[0].mxu0
    %602 = vmatprep.mubr.bf16.mxu0 0
    %603 = vmatmul.mubr.bf16.gmra.mrb[0].mxu0 %v381
    %v604 = vpop.f32.mrb[0].mxu0
    %v605 = vadd.f32 0.0, %v604
    %v606 = vpop.f32.mrb[0].mxu0
    %v607 = vpop.f32.mrb[0].mxu0
    %v608 = vadd.f32 0.0, %v607
    %v609 = vpop.f32.mrb[0].mxu0
    %610 = vmatprep.mubr.bf16.mxu0 0
    %611 = vmatmul.mubr.bf16.gmra.mrb[0].mxu0 %v382
    %v612 = vpop.f32.mrb[0].mxu0
    %v613 = vadd.f32 0.0, %v612
    %v614 = vpop.f32.mrb[0].mxu0
    %v615 = vpop.f32.mrb[0].mxu0
    %v616 = vadd.f32 0.0, %v615
    %v617 = vpop.f32.mrb[0].mxu0
    %618 = vmatprep.mubr.bf16.mxu0 0
    %619 = vmatmul.mubr.bf16.gmra.mrb[0].mxu0 %v383
    %v620 = vpop.f32.mrb[0].mxu0
    %v621 = vadd.f32 0.0, %v620
    %v622 = vpop.f32.mrb[0].mxu0
    %v623 = vpop.f32.mrb[0].mxu0
    %v624 = vadd.f32 0.0, %v623
    %v625 = vpop.f32.mrb[0].mxu0
    %626 = vmatprep.mubr.bf16.mxu0 0
    %627 = vmatmul.mubr.bf16.gmra.mrb[0].mxu0 %v384
    %v628 = vpop.f32.mrb[0].mxu0
    %v629 = vadd.f32 0.0, %v628
    %v630 = vpop.f32.mrb[0].mxu0
    %v631 = vpop.f32.mrb[0].mxu0
    %v632 = vadd.f32 0.0, %v631
    %v633 = vpop.f32.mrb[0].mxu0
    %634 = vmatprep.mubr.bf16.mxu0 0
    %635 = vmatmul.mubr.bf16.gmra.mrb[0].mxu0 %v385
    %v636 = vpop.f32.mrb[0].mxu0
    %v637 = vadd.f32 0.0, %v636
    %v638 = vpop.f32.mrb[0].mxu0
    %v639 = vpop.f32.mrb[0].mxu0
    %v640 = vadd.f32 0.0, %v639
    %v641 = vpop.f32.mrb[0].mxu0
    %642 = vmatprep.mubr.bf16.mxu0 0
    %643 = vmatmul.mubr.bf16.gmra.mrb[0].mxu0 %v386
    %v644 = vpop.f32.mrb[0].mxu0
    %v645 = vadd.f32 0.0, %v644
    %v646 = vpop.f32.mrb[0].mxu0
    %v647 = vpop.f32.mrb[0].mxu0
    %v648 = vadd.f32 0.0, %v647
    %v649 = vpop.f32.mrb[0].mxu0
    %650 = vmatprep.mubr.bf16.mxu0 0
    %651 = vmatmul.mubr.bf16.gmra.mrb[0].mxu0 %v387
    %v652 = vpop.f32.mrb[0].mxu0
    %v653 = vadd.f32 0.0, %v652
    %v654 = vpop.f32.mrb[0].mxu0
    %v655 = vpop.f32.mrb[0].mxu0
    %v656 = vadd.f32 0.0, %v655
    %v657 = vpop.f32.mrb[0].mxu0
    %658 = vmatprep.mubr.bf16.mxu0 0
    %659 = vmatmul.mubr.bf16.gmra.mrb[0].mxu0 %v388
    %v660 = vpop.f32.mrb[0].mxu0
    %v661 = vadd.f32 0.0, %v660
    %v662 = vpop.f32.mrb[0].mxu0
    %v663 = vpop.f32.mrb[0].mxu0
    %v664 = vadd.f32 0.0, %v663
    %v665 = vpop.f32.mrb[0].mxu0
    %666 = vmatprep.mubr.bf16.mxu0 0
    %667 = vmatmul.mubr.bf16.gmra.mrb[0].mxu0 %v389
    %v668 = vpop.f32.mrb[0].mxu0
    %v669 = vadd.f32 0.0, %v668
    %v670 = vpop.f32.mrb[0].mxu0
    %v671 = vpop.f32.mrb[0].mxu0
    %v672 = vadd.f32 0.0, %v671
    %v673 = vpop.f32.mrb[0].mxu0
    %674 = vmatprep.mubr.bf16.mxu0 0
    %675 = vmatmul.mubr.bf16.gmra.mrb[0].mxu0 %v390
    %v676 = vpop.f32.mrb[0].mxu0
    %v677 = vadd.f32 0.0, %v676
    %v678 = vpop.f32.mrb[0].mxu0
    %v679 = vpop.f32.mrb[0].mxu0
    %v680 = vadd.f32 0.0, %v679
    %v681 = vpop.f32.mrb[0].mxu0
    %682 = vmatprep.mubr.bf16.mxu0 0
    %683 = vmatmul.mubr.bf16.gmra.mrb[0].mxu0 %v391
    %v684 = vpop.f32.mrb[0].mxu0
    %v685 = vadd.f32 0.0, %v684
    %v686 = vpop.f32.mrb[0].mxu0
    %v687 = vpop.f32.mrb[0].mxu0
    %v688 = vadd.f32 0.0, %v687
    %v689 = vpop.f32.mrb[0].mxu0
    %690 = vmatprep.mubr.bf16.mxu0 0
    %691 = vmatmul.mubr.bf16.gmra.mrb[0].mxu0 %v392
    %v692 = vpop.f32.mrb[0].mxu0
    %v693 = vadd.f32 0.0, %v692
    %v694 = vpop.f32.mrb[0].mxu0
    %v695 = vpop.f32.mrb[0].mxu0
    %v696 = vadd.f32 0.0, %v695
    %v697 = vpop.f32.mrb[0].mxu0
    %698 = vmatprep.mubr.bf16.mxu0 0
    %699 = vmatmul.mubr.bf16.gmra.mrb[0].mxu0 %v393
    %v700 = vpop.f32.mrb[0].mxu0
    %v701 = vadd.f32 0.0, %v700
    %v702 = vpop.f32.mrb[0].mxu0
    %v703 = vpop.f32.mrb[0].mxu0
    %v704 = vadd.f32 0.0, %v703
    %v705 = vpop.f32.mrb[0].mxu0
    %706 = vmatprep.mubr.bf16.mxu0 0
    %707 = vmatmul.mubr.bf16.gmra.mrb[0].mxu0 %v394
    %v708 = vpop.f32.mrb[0].mxu0
    %v709 = vadd.f32 0.0, %v708
    %v710 = vpop.f32.mrb[0].mxu0
    %v711 = vpop.f32.mrb[0].mxu0
    %v712 = vadd.f32 0.0, %v711
    %v713 = vpop.f32.mrb[0].mxu0
    %714 = vmatprep.mubr.bf16.mxu0 0
    %715 = vmatmul.mubr.bf16.gmra.mrb[0].mxu0 %v395
    %v716 = vpop.f32.mrb[0].mxu0
    %v717 = vadd.f32 0.0, %v716
    %v718 = vpop.f32.mrb[0].mxu0
    %v719 = vpop.f32.mrb[0].mxu0
    %v720 = vadd.f32 0.0, %v719
    %v721 = vpop.f32.mrb[0].mxu0
    %722 = vmatprep.mubr.bf16.mxu0 0
    %723 = vmatmul.mubr.bf16.gmra.mrb[0].mxu0 %v396
    %v724 = vpop.f32.mrb[0].mxu0
    %v725 = vadd.f32 0.0, %v724
    %v726 = vpop.f32.mrb[0].mxu0
    %v727 = vpop.f32.mrb[0].mxu0
    %v728 = vadd.f32 0.0, %v727
    %v729 = vpop.f32.mrb[0].mxu0
    %730 = vmatprep.mubr.bf16.mxu0 0
    %731 = vmatmul.mubr.bf16.gmra.mrb[0].mxu0 %v397
    %v732 = vpop.f32.mrb[0].mxu0
    %v733 = vadd.f32 0.0, %v732
    %v734 = vpop.f32.mrb[0].mxu0
    %v735 = vpop.f32.mrb[0].mxu0
    %v736 = vadd.f32 0.0, %v735
    %v737 = vpop.f32.mrb[0].mxu0
    %738 = vmatprep.mubr.bf16.mxu0 0
    %739 = vmatmul.mubr.bf16.gmra.mrb[0].mxu0 %v398
    %v740 = vpop.f32.mrb[0].mxu0
    %v741 = vadd.f32 0.0, %v740
    %v742 = vpop.f32.mrb[0].mxu0
    %v743 = vpop.f32.mrb[0].mxu0
    %v744 = vadd.f32 0.0, %v743
    %v745 = vpop.f32.mrb[0].mxu0
    %746 = vmatprep.mubr.bf16.mxu0 0
    %747 = vmatmul.mubr.bf16.gmra.mrb[0].mxu0 %v399
    %v748 = vpop.f32.mrb[0].mxu0
    %v749 = vadd.f32 0.0, %v748
    %v750 = vpop.f32.mrb[0].mxu0
    %v751 = vpop.f32.mrb[0].mxu0
    %v752 = vadd.f32 0.0, %v751
    %v753 = vpop.f32.mrb[0].mxu0
    %754 = vmatprep.mubr.bf16.mxu0 0
    %755 = vmatmul.mubr.bf16.gmra.mrb[0].mxu0 %v400
    %v756 = vpop.f32.mrb[0].mxu0
    %v757 = vadd.f32 0.0, %v756
    %v758 = vpop.f32.mrb[0].mxu0
    %v759 = vpop.f32.mrb[0].mxu0
    %v760 = vadd.f32 0.0, %v759
    %v761 = vpop.f32.mrb[0].mxu0
    %762 = vmatprep.mubr.bf16.mxu0 0
    %763 = vmatmul.mubr.bf16.gmra.mrb[0].mxu0 %v401
    %v764 = vpop.f32.mrb[0].mxu0
    %v765 = vadd.f32 0.0, %v764
    %v766 = vpop.f32.mrb[0].mxu0
    %v767 = vpop.f32.mrb[0].mxu0
    %v768 = vadd.f32 0.0, %v767
    %v769 = vpop.f32.mrb[0].mxu0
    %770 = vdwg.mxu0
    %v771 = vadd.f32 %v98, %v517
    %v772 = vadd.f32 %v99, %v520
    %v773 = vadd.f32 %v100, %v525
    %v774 = vadd.f32 %v101, %v528
    %v775 = vadd.f32 %v102, %v533
    %v776 = vadd.f32 %v103, %v536
    %v777 = vadd.f32 %v104, %v541
    %v778 = vadd.f32 %v105, %v544
    %v779 = vadd.f32 %v106, %v549
    %v780 = vadd.f32 %v107, %v552
    %v781 = vadd.f32 %v108, %v557
    %v782 = vadd.f32 %v109, %v560
    %v783 = vadd.f32 %v110, %v565
    %v784 = vadd.f32 %v111, %v568
    %v785 = vadd.f32 %v112, %v573
    %v786 = vadd.f32 %v113, %v576
    %v787 = vadd.f32 %v114, %v581
    %v788 = vadd.f32 %v115, %v584
    %v789 = vadd.f32 %v116, %v589
    %v790 = vadd.f32 %v117, %v592
    %v791 = vadd.f32 %v118, %v597
    %v792 = vadd.f32 %v119, %v600
    %v793 = vadd.f32 %v120, %v605
    %v794 = vadd.f32 %v121, %v608
    %v795 = vadd.f32 %v122, %v613
    %v796 = vadd.f32 %v123, %v616
    %v797 = vadd.f32 %v124, %v621
    %v798 = vadd.f32 %v125, %v624
    %v799 = vadd.f32 %v126, %v629
    %v800 = vadd.f32 %v127, %v632
    %v801 = vadd.f32 %v128, %v637
    %v802 = vadd.f32 %v129, %v640
    %v803 = vadd.f32 %v130, %v645
    %v804 = vadd.f32 %v131, %v648
    %v805 = vadd.f32 %v132, %v653
    %v806 = vadd.f32 %v133, %v656
    %v807 = vadd.f32 %v134, %v661
    %v808 = vadd.f32 %v135, %v664
    %v809 = vadd.f32 %v136, %v669
    %v810 = vadd.f32 %v137, %v672
    %v811 = vadd.f32 %v138, %v677
    %v812 = vadd.f32 %v139, %v680
    %v813 = vadd.f32 %v140, %v685
    %v814 = vadd.f32 %v141, %v688
    %v815 = vadd.f32 %v142, %v693
    %v816 = vadd.f32 %v143, %v696
    %v817 = vadd.f32 %v144, %v701
    %v818 = vadd.f32 %v145, %v704
    %v819 = vadd.f32 %v146, %v709
    %v820 = vadd.f32 %v147, %v712
    %v821 = vadd.f32 %v148, %v717
    %v822 = vadd.f32 %v149, %v720
    %v823 = vadd.f32 %v150, %v725
    %v824 = vadd.f32 %v151, %v728
    %v825 = vadd.f32 %v152, %v733
    %v826 = vadd.f32 %v153, %v736
    %v827 = vadd.f32 %v154, %v741
    %v828 = vadd.f32 %v155, %v744
    %v829 = vadd.f32 %v156, %v749
    %v830 = vadd.f32 %v157, %v752
    %v831 = vadd.f32 %v158, %v757
    %v832 = vadd.f32 %v159, %v760
    %v833 = vadd.f32 %v160, %v765
    %v834 = vadd.f32 %v161, %v768
    %835 = vst [vmem:[#allocation2] sm:$0xff] %v771
    %836 = vst [vmem:[#allocation2 + $0x8] sm:$0xff] %v772
    %837 = vst [vmem:[#allocation2 + $0x10] sm:$0xff] %v773
    %838 = vst [vmem:[#allocation2 + $0x18] sm:$0xff] %v774
    %839 = vst [vmem:[#allocation2 + $0x20] sm:$0xff] %v775
    %840 = vst [vmem:[#allocation2 + $0x28] sm:$0xff] %v776
    %841 = vst [vmem:[#allocation2 + $0x30] sm:$0xff] %v777
    %842 = vst [vmem:[#allocation2 + $0x38] sm:$0xff] %v778
    %843 = vst [vmem:[#allocation2 + $0x40] sm:$0xff] %v779
    %844 = vst [vmem:[#allocation2 + $0x48] sm:$0xff] %v780
    %845 = vst [vmem:[#allocation2 + $0x50] sm:$0xff] %v781
    %846 = vst [vmem:[#allocation2 + $0x58] sm:$0xff] %v782
    %847 = vst [vmem:[#allocation2 + $0x60] sm:$0xff] %v783
    %848 = vst [vmem:[#allocation2 + $0x68] sm:$0xff] %v784
    %849 = vst [vmem:[#allocation2 + $0x70] sm:$0xff] %v785
    %850 = vst [vmem:[#allocation2 + $0x78] sm:$0xff] %v786
    %851 = vst [vmem:[#allocation2 + $0x80] sm:$0xff] %v787
    %852 = vst [vmem:[#allocation2 + $0x88] sm:$0xff] %v788
    %853 = vst [vmem:[#allocation2 + $0x90] sm:$0xff] %v789
    %854 = vst [vmem:[#allocation2 + $0x98] sm:$0xff] %v790
    %855 = vst [vmem:[#allocation2 + $0xa0] sm:$0xff] %v791
    %856 = vst [vmem:[#allocation2 + $0xa8] sm:$0xff] %v792
    %857 = vst [vmem:[#allocation2 + $0xb0] sm:$0xff] %v793
    %858 = vst [vmem:[#allocation2 + $0xb8] sm:$0xff] %v794
    %859 = vst [vmem:[#allocation2 + $0xc0] sm:$0xff] %v795
    %860 = vst [vmem:[#allocation2 + $0xc8] sm:$0xff] %v796
    %861 = vst [vmem:[#allocation2 + $0xd0] sm:$0xff] %v797
    %862 = vst [vmem:[#allocation2 + $0xd8] sm:$0xff] %v798
    %863 = vst [vmem:[#allocation2 + $0xe0] sm:$0xff] %v799
    %864 = vst [vmem:[#allocation2 + $0xe8] sm:$0xff] %v800
    %865 = vst [vmem:[#allocation2 + $0xf0] sm:$0xff] %v801
    %866 = vst [vmem:[#allocation2 + $0xf8] sm:$0xff] %v802
    %867 = vst [vmem:[#allocation2 + $0x100] sm:$0xff] %v803
    %868 = vst [vmem:[#allocation2 + $0x108] sm:$0xff] %v804
    %869 = vst [vmem:[#allocation2 + $0x110] sm:$0xff] %v805
    %870 = vst [vmem:[#allocation2 + $0x118] sm:$0xff] %v806
    %871 = vst [vmem:[#allocation2 + $0x120] sm:$0xff] %v807
    %872 = vst [vmem:[#allocation2 + $0x128] sm:$0xff] %v808
    %873 = vst [vmem:[#allocation2 + $0x130] sm:$0xff] %v809
    %874 = vst [vmem:[#allocation2 + $0x138] sm:$0xff] %v810
    %875 = vst [vmem:[#allocation2 + $0x140] sm:$0xff] %v811
    %876 = vst [vmem:[#allocation2 + $0x148] sm:$0xff] %v812
    %877 = vst [vmem:[#allocation2 + $0x150] sm:$0xff] %v813
    %878 = vst [vmem:[#allocation2 + $0x158] sm:$0xff] %v814
    %879 = vst [vmem:[#allocation2 + $0x160] sm:$0xff] %v815
    %880 = vst [vmem:[#allocation2 + $0x168] sm:$0xff] %v816
    %881 = vst [vmem:[#allocation2 + $0x170] sm:$0xff] %v817
    %882 = vst [vmem:[#allocation2 + $0x178] sm:$0xff] %v818
    %883 = vst [vmem:[#allocation2 + $0x180] sm:$0xff] %v819
    %884 = vst [vmem:[#allocation2 + $0x188] sm:$0xff] %v820
    %885 = vst [vmem:[#allocation2 + $0x190] sm:$0xff] %v821
    %886 = vst [vmem:[#allocation2 + $0x198] sm:$0xff] %v822
    %887 = vst [vmem:[#allocation2 + $0x1a0] sm:$0xff] %v823
    %888 = vst [vmem:[#allocation2 + $0x1a8] sm:$0xff] %v824
    %889 = vst [vmem:[#allocation2 + $0x1b0] sm:$0xff] %v825
    %890 = vst [vmem:[#allocation2 + $0x1b8] sm:$0xff] %v826
    %891 = vst [vmem:[#allocation2 + $0x1c0] sm:$0xff] %v827
    %892 = vst [vmem:[#allocation2 + $0x1c8] sm:$0xff] %v828
    %893 = vst [vmem:[#allocation2 + $0x1d0] sm:$0xff] %v829
    %894 = vst [vmem:[#allocation2 + $0x1d8] sm:$0xff] %v830
    %895 = vst [vmem:[#allocation2 + $0x1e0] sm:$0xff] %v831
    %896 = vst [vmem:[#allocation2 + $0x1e8] sm:$0xff] %v832
    %897 = vst [vmem:[#allocation2 + $0x1f0] sm:$0xff] %v833
    %898 = vst [vmem:[#allocation2 + $0x1f8] sm:$0xff] %v834
    // Predicated region
    $region26: #{discriminator_forward.4} parent=1 // pred_check
      %p899 = pneg %p30
    $region27: #{discriminator_forward.4} parent=1 // pred_check_branch
      %901 = sbr.rel (%p899) target = $region29
    $region28: #{discriminator_forward.4} parent=1 // pred_region
      %v902 = vld [vmem:[#allocation2] sm:$0xff]
      %v903 = vld [vmem:[#allocation2 + $0x8] sm:$0xff]
      %v904 = vld [vmem:[#allocation2 + $0x10] sm:$0xff]
      %v905 = vld [vmem:[#allocation2 + $0x18] sm:$0xff]
      %v906 = vld [vmem:[#allocation2 + $0x20] sm:$0xff]
      %v907 = vld [vmem:[#allocation2 + $0x28] sm:$0xff]
      %v908 = vld [vmem:[#allocation2 + $0x30] sm:$0xff]
      %v909 = vld [vmem:[#allocation2 + $0x38] sm:$0xff]
      %v910 = vld [vmem:[#allocation2 + $0x40] sm:$0xff]
      %v911 = vld [vmem:[#allocation2 + $0x48] sm:$0xff]
      %v912 = vld [vmem:[#allocation2 + $0x50] sm:$0xff]
      %v913 = vld [vmem:[#allocation2 + $0x58] sm:$0xff]
      %v914 = vld [vmem:[#allocation2 + $0x60] sm:$0xff]
      %v915 = vld [vmem:[#allocation2 + $0x68] sm:$0xff]
      %v916 = vld [vmem:[#allocation2 + $0x70] sm:$0xff]
      %v917 = vld [vmem:[#allocation2 + $0x78] sm:$0xff]
      %v918 = vld [vmem:[#allocation2 + $0x80] sm:$0xff]
      %v919 = vld [vmem:[#allocation2 + $0x88] sm:$0xff]
      %v920 = vld [vmem:[#allocation2 + $0x90] sm:$0xff]
      %v921 = vld [vmem:[#allocation2 + $0x98] sm:$0xff]
      %v922 = vld [vmem:[#allocation2 + $0xa0] sm:$0xff]
      %v923 = vld [vmem:[#allocation2 + $0xa8] sm:$0xff]
      %v924 = vld [vmem:[#allocation2 + $0xb0] sm:$0xff]
      %v925 = vld [vmem:[#allocation2 + $0xb8] sm:$0xff]
      %v926 = vld [vmem:[#allocation2 + $0xc0] sm:$0xff]
      %v927 = vld [vmem:[#allocation2 + $0xc8] sm:$0xff]
      %v928 = vld [vmem:[#allocation2 + $0xd0] sm:$0xff]
      %v929 = vld [vmem:[#allocation2 + $0xd8] sm:$0xff]
      %v930 = vld [vmem:[#allocation2 + $0xe0] sm:$0xff]
      %v931 = vld [vmem:[#allocation2 + $0xe8] sm:$0xff]
      %v932 = vld [vmem:[#allocation2 + $0xf0] sm:$0xff]
      %v933 = vld [vmem:[#allocation2 + $0xf8] sm:$0xff]
      %v934 = vld [vmem:[#allocation2 + $0x100] sm:$0xff]
      %v935 = vld [vmem:[#allocation2 + $0x108] sm:$0xff]
      %v936 = vld [vmem:[#allocation2 + $0x110] sm:$0xff]
      %v937 = vld [vmem:[#allocation2 + $0x118] sm:$0xff]
      %v938 = vld [vmem:[#allocation2 + $0x120] sm:$0xff]
      %v939 = vld [vmem:[#allocation2 + $0x128] sm:$0xff]
      %v940 = vld [vmem:[#allocation2 + $0x130] sm:$0xff]
      %v941 = vld [vmem:[#allocation2 + $0x138] sm:$0xff]
      %v942 = vld [vmem:[#allocation2 + $0x140] sm:$0xff]
      %v943 = vld [vmem:[#allocation2 + $0x148] sm:$0xff]
      %v944 = vld [vmem:[#allocation2 + $0x150] sm:$0xff]
      %v945 = vld [vmem:[#allocation2 + $0x158] sm:$0xff]
      %v946 = vld [vmem:[#allocation2 + $0x160] sm:$0xff]
      %v947 = vld [vmem:[#allocation2 + $0x168] sm:$0xff]
      %v948 = vld [vmem:[#allocation2 + $0x170] sm:$0xff]
      %v949 = vld [vmem:[#allocation2 + $0x178] sm:$0xff]
      %v950 = vld [vmem:[#allocation2 + $0x180] sm:$0xff]
      %v951 = vld [vmem:[#allocation2 + $0x188] sm:$0xff]
      %v952 = vld [vmem:[#allocation2 + $0x190] sm:$0xff]
      %v953 = vld [vmem:[#allocation2 + $0x198] sm:$0xff]
      %v954 = vld [vmem:[#allocation2 + $0x1a0] sm:$0xff]
      %v955 = vld [vmem:[#allocation2 + $0x1a8] sm:$0xff]
      %v956 = vld [vmem:[#allocation2 + $0x1b0] sm:$0xff]
      %v957 = vld [vmem:[#allocation2 + $0x1b8] sm:$0xff]
      %v958 = vld [vmem:[#allocation2 + $0x1c0] sm:$0xff]
      %v959 = vld [vmem:[#allocation2 + $0x1c8] sm:$0xff]
      %v960 = vld [vmem:[#allocation2 + $0x1d0] sm:$0xff]
      %v961 = vld [vmem:[#allocation2 + $0x1d8] sm:$0xff]
      %v962 = vld [vmem:[#allocation2 + $0x1e0] sm:$0xff]
      %v963 = vld [vmem:[#allocation2 + $0x1e8] sm:$0xff]
      %v964 = vld [vmem:[#allocation2 + $0x1f0] sm:$0xff]
      %v965 = vld [vmem:[#allocation2 + $0x1f8] sm:$0xff]
      %v966 = vld [vmem:[%s2] sm:$0x1]
      %v968 = vlaneseq
      %v969 = vshrl.u32 %v968, 7
      %v970 = vsub.s32 0, %v969
      %v971 = vrot.slane %v966, %v970
      %v973 = vmul.f32 %v902, %v971
      %v974 = vmul.f32 %v903, %v971
      %v975 = vmul.f32 %v904, %v971
      %v976 = vmul.f32 %v905, %v971
      %v977 = vmul.f32 %v906, %v971
      %v978 = vmul.f32 %v907, %v971
      %v979 = vmul.f32 %v908, %v971
      %v980 = vmul.f32 %v909, %v971
      %v981 = vmul.f32 %v910, %v971
      %v982 = vmul.f32 %v911, %v971
      %v983 = vmul.f32 %v912, %v971
      %v984 = vmul.f32 %v913, %v971
      %v985 = vmul.f32 %v914, %v971
      %v986 = vmul.f32 %v915, %v971
      %v987 = vmul.f32 %v916, %v971
      %v988 = vmul.f32 %v917, %v971
      %v989 = vmul.f32 %v918, %v971
      %v990 = vmul.f32 %v919, %v971
      %v991 = vmul.f32 %v920, %v971
      %v992 = vmul.f32 %v921, %v971
      %v993 = vmul.f32 %v922, %v971
      %v994 = vmul.f32 %v923, %v971
      %v995 = vmul.f32 %v924, %v971
      %v996 = vmul.f32 %v925, %v971
      %v997 = vmul.f32 %v926, %v971
      %v998 = vmul.f32 %v927, %v971
      %v999 = vmul.f32 %v928, %v971
      %v1000 = vmul.f32 %v929, %v971
      %v1001 = vmul.f32 %v930, %v971
      %v1002 = vmul.f32 %v931, %v971
      %v1003 = vmul.f32 %v932, %v971
      %v1004 = vmul.f32 %v933, %v971
      %v1005 = vmul.f32 %v934, %v971
      %v1006 = vmul.f32 %v935, %v971
      %v1007 = vmul.f32 %v936, %v971
      %v1008 = vmul.f32 %v937, %v971
      %v1009 = vmul.f32 %v938, %v971
      %v1010 = vmul.f32 %v939, %v971
      %v1011 = vmul.f32 %v940, %v971
      %v1012 = vmul.f32 %v941, %v971
      %v1013 = vmul.f32 %v942, %v971
      %v1014 = vmul.f32 %v943, %v971
      %v1015 = vmul.f32 %v944, %v971
      %v1016 = vmul.f32 %v945, %v971
      %v1017 = vmul.f32 %v946, %v971
      %v1018 = vmul.f32 %v947, %v971
      %v1019 = vmul.f32 %v948, %v971
      %v1020 = vmul.f32 %v949, %v971
      %v1021 = vmul.f32 %v950, %v971
      %v1022 = vmul.f32 %v951, %v971
      %v1023 = vmul.f32 %v952, %v971
      %v1024 = vmul.f32 %v953, %v971
      %v1025 = vmul.f32 %v954, %v971
      %v1026 = vmul.f32 %v955, %v971
      %v1027 = vmul.f32 %v956, %v971
      %v1028 = vmul.f32 %v957, %v971
      %v1029 = vmul.f32 %v958, %v971
      %v1030 = vmul.f32 %v959, %v971
      %v1031 = vmul.f32 %v960, %v971
      %v1032 = vmul.f32 %v961, %v971
      %v1033 = vmul.f32 %v962, %v971
      %v1034 = vmul.f32 %v963, %v971
      %v1035 = vmul.f32 %v964, %v971
      %v1036 = vmul.f32 %v965, %v971
      %v1037 = vld [vmem:[#allocation3] sm:$0x1]
      %v1039 = vlaneseq
      %v1040 = vshrl.u32 %v1039, 7
      %v1041 = vsub.s32 0, %v1040
      %v1042 = vrot.slane %v1037, %v1041
      %v1044 = vadd.f32 %v973, %v1042
      %v1045 = vadd.f32 %v974, %v1042
      %v1046 = vadd.f32 %v975, %v1042
      %v1047 = vadd.f32 %v976, %v1042
      %v1048 = vadd.f32 %v977, %v1042
      %v1049 = vadd.f32 %v978, %v1042
      %v1050 = vadd.f32 %v979, %v1042
      %v1051 = vadd.f32 %v980, %v1042
      %v1052 = vadd.f32 %v981, %v1042
      %v1053 = vadd.f32 %v982, %v1042
      %v1054 = vadd.f32 %v983, %v1042
      %v1055 = vadd.f32 %v984, %v1042
      %v1056 = vadd.f32 %v985, %v1042
      %v1057 = vadd.f32 %v986, %v1042
      %v1058 = vadd.f32 %v987, %v1042
      %v1059 = vadd.f32 %v988, %v1042
      %v1060 = vadd.f32 %v989, %v1042
      %v1061 = vadd.f32 %v990, %v1042
      %v1062 = vadd.f32 %v991, %v1042
      %v1063 = vadd.f32 %v992, %v1042
      %v1064 = vadd.f32 %v993, %v1042
      %v1065 = vadd.f32 %v994, %v1042
      %v1066 = vadd.f32 %v995, %v1042
      %v1067 = vadd.f32 %v996, %v1042
      %v1068 = vadd.f32 %v997, %v1042
      %v1069 = vadd.f32 %v998, %v1042
      %v1070 = vadd.f32 %v999, %v1042
      %v1071 = vadd.f32 %v1000, %v1042
      %v1072 = vadd.f32 %v1001, %v1042
      %v1073 = vadd.f32 %v1002, %v1042
      %v1074 = vadd.f32 %v1003, %v1042
      %v1075 = vadd.f32 %v1004, %v1042
      %v1076 = vadd.f32 %v1005, %v1042
      %v1077 = vadd.f32 %v1006, %v1042
      %v1078 = vadd.f32 %v1007, %v1042
      %v1079 = vadd.f32 %v1008, %v1042
      %v1080 = vadd.f32 %v1009, %v1042
      %v1081 = vadd.f32 %v1010, %v1042
      %v1082 = vadd.f32 %v1011, %v1042
      %v1083 = vadd.f32 %v1012, %v1042
      %v1084 = vadd.f32 %v1013, %v1042
      %v1085 = vadd.f32 %v1014, %v1042
      %v1086 = vadd.f32 %v1015, %v1042
      %v1087 = vadd.f32 %v1016, %v1042
      %v1088 = vadd.f32 %v1017, %v1042
      %v1089 = vadd.f32 %v1018, %v1042
      %v1090 = vadd.f32 %v1019, %v1042
      %v1091 = vadd.f32 %v1020, %v1042
      %v1092 = vadd.f32 %v1021, %v1042
      %v1093 = vadd.f32 %v1022, %v1042
      %v1094 = vadd.f32 %v1023, %v1042
      %v1095 = vadd.f32 %v1024, %v1042
      %v1096 = vadd.f32 %v1025, %v1042
      %v1097 = vadd.f32 %v1026, %v1042
      %v1098 = vadd.f32 %v1027, %v1042
      %v1099 = vadd.f32 %v1028, %v1042
      %v1100 = vadd.f32 %v1029, %v1042
      %v1101 = vadd.f32 %v1030, %v1042
      %v1102 = vadd.f32 %v1031, %v1042
      %v1103 = vadd.f32 %v1032, %v1042
      %v1104 = vadd.f32 %v1033, %v1042
      %v1105 = vadd.f32 %v1034, %v1042
      %v1106 = vadd.f32 %v1035, %v1042
      %v1107 = vadd.f32 %v1036, %v1042
      %vm1108 = vcmp.ge.f32.partialorder %v1044, 0.0
      %vm1109 = vcmp.ge.f32.partialorder %v1045, 0.0
      %vm1110 = vcmp.ge.f32.partialorder %v1046, 0.0
      %vm1111 = vcmp.ge.f32.partialorder %v1047, 0.0
      %vm1112 = vcmp.ge.f32.partialorder %v1048, 0.0
      %vm1113 = vcmp.ge.f32.partialorder %v1049, 0.0
      %vm1114 = vcmp.ge.f32.partialorder %v1050, 0.0
      %vm1115 = vcmp.ge.f32.partialorder %v1051, 0.0
      %vm1116 = vcmp.ge.f32.partialorder %v1052, 0.0
      %vm1117 = vcmp.ge.f32.partialorder %v1053, 0.0
      %vm1118 = vcmp.ge.f32.partialorder %v1054, 0.0
      %vm1119 = vcmp.ge.f32.partialorder %v1055, 0.0
      %vm1120 = vcmp.ge.f32.partialorder %v1056, 0.0
      %vm1121 = vcmp.ge.f32.partialorder %v1057, 0.0
      %vm1122 = vcmp.ge.f32.partialorder %v1058, 0.0
      %vm1123 = vcmp.ge.f32.partialorder %v1059, 0.0
      %vm1124 = vcmp.ge.f32.partialorder %v1060, 0.0
      %vm1125 = vcmp.ge.f32.partialorder %v1061, 0.0
      %vm1126 = vcmp.ge.f32.partialorder %v1062, 0.0
      %vm1127 = vcmp.ge.f32.partialorder %v1063, 0.0
      %vm1128 = vcmp.ge.f32.partialorder %v1064, 0.0
      %vm1129 = vcmp.ge.f32.partialorder %v1065, 0.0
      %vm1130 = vcmp.ge.f32.partialorder %v1066, 0.0
      %vm1131 = vcmp.ge.f32.partialorder %v1067, 0.0
      %vm1132 = vcmp.ge.f32.partialorder %v1068, 0.0
      %vm1133 = vcmp.ge.f32.partialorder %v1069, 0.0
      %vm1134 = vcmp.ge.f32.partialorder %v1070, 0.0
      %vm1135 = vcmp.ge.f32.partialorder %v1071, 0.0
      %vm1136 = vcmp.ge.f32.partialorder %v1072, 0.0
      %vm1137 = vcmp.ge.f32.partialorder %v1073, 0.0
      %vm1138 = vcmp.ge.f32.partialorder %v1074, 0.0
      %vm1139 = vcmp.ge.f32.partialorder %v1075, 0.0
      %vm1140 = vcmp.ge.f32.partialorder %v1076, 0.0
      %vm1141 = vcmp.ge.f32.partialorder %v1077, 0.0
      %vm1142 = vcmp.ge.f32.partialorder %v1078, 0.0
      %vm1143 = vcmp.ge.f32.partialorder %v1079, 0.0
      %vm1144 = vcmp.ge.f32.partialorder %v1080, 0.0
      %vm1145 = vcmp.ge.f32.partialorder %v1081, 0.0
      %vm1146 = vcmp.ge.f32.partialorder %v1082, 0.0
      %vm1147 = vcmp.ge.f32.partialorder %v1083, 0.0
      %vm1148 = vcmp.ge.f32.partialorder %v1084, 0.0
      %vm1149 = vcmp.ge.f32.partialorder %v1085, 0.0
      %vm1150 = vcmp.ge.f32.partialorder %v1086, 0.0
      %vm1151 = vcmp.ge.f32.partialorder %v1087, 0.0
      %vm1152 = vcmp.ge.f32.partialorder %v1088, 0.0
      %vm1153 = vcmp.ge.f32.partialorder %v1089, 0.0
      %vm1154 = vcmp.ge.f32.partialorder %v1090, 0.0
      %vm1155 = vcmp.ge.f32.partialorder %v1091, 0.0
      %vm1156 = vcmp.ge.f32.partialorder %v1092, 0.0
      %vm1157 = vcmp.ge.f32.partialorder %v1093, 0.0
      %vm1158 = vcmp.ge.f32.partialorder %v1094, 0.0
      %vm1159 = vcmp.ge.f32.partialorder %v1095, 0.0
      %vm1160 = vcmp.ge.f32.partialorder %v1096, 0.0
      %vm1161 = vcmp.ge.f32.partialorder %v1097, 0.0
      %vm1162 = vcmp.ge.f32.partialorder %v1098, 0.0
      %vm1163 = vcmp.ge.f32.partialorder %v1099, 0.0
      %vm1164 = vcmp.ge.f32.partialorder %v1100, 0.0
      %vm1165 = vcmp.ge.f32.partialorder %v1101, 0.0
      %vm1166 = vcmp.ge.f32.partialorder %v1102, 0.0
      %vm1167 = vcmp.ge.f32.partialorder %v1103, 0.0
      %vm1168 = vcmp.ge.f32.partialorder %v1104, 0.0
      %vm1169 = vcmp.ge.f32.partialorder %v1105, 0.0
      %vm1170 = vcmp.ge.f32.partialorder %v1106, 0.0
      %vm1171 = vcmp.ge.f32.partialorder %v1107, 0.0
      %v1172 = vmul.f32 %v1044, 0.2
      %v1173 = vmul.f32 %v1045, 0.2
      %v1174 = vmul.f32 %v1046, 0.2
      %v1175 = vmul.f32 %v1047, 0.2
      %v1176 = vmul.f32 %v1048, 0.2
      %v1177 = vmul.f32 %v1049, 0.2
      %v1178 = vmul.f32 %v1050, 0.2
      %v1179 = vmul.f32 %v1051, 0.2
      %v1180 = vmul.f32 %v1052, 0.2
      %v1181 = vmul.f32 %v1053, 0.2
      %v1182 = vmul.f32 %v1054, 0.2
      %v1183 = vmul.f32 %v1055, 0.2
      %v1184 = vmul.f32 %v1056, 0.2
      %v1185 = vmul.f32 %v1057, 0.2
      %v1186 = vmul.f32 %v1058, 0.2
      %v1187 = vmul.f32 %v1059, 0.2
      %v1188 = vmul.f32 %v1060, 0.2
      %v1189 = vmul.f32 %v1061, 0.2
      %v1190 = vmul.f32 %v1062, 0.2
      %v1191 = vmul.f32 %v1063, 0.2
      %v1192 = vmul.f32 %v1064, 0.2
      %v1193 = vmul.f32 %v1065, 0.2
      %v1194 = vmul.f32 %v1066, 0.2
      %v1195 = vmul.f32 %v1067, 0.2
      %v1196 = vmul.f32 %v1068, 0.2
      %v1197 = vmul.f32 %v1069, 0.2
      %v1198 = vmul.f32 %v1070, 0.2
      %v1199 = vmul.f32 %v1071, 0.2
      %v1200 = vmul.f32 %v1072, 0.2
      %v1201 = vmul.f32 %v1073, 0.2
      %v1202 = vmul.f32 %v1074, 0.2
      %v1203 = vmul.f32 %v1075, 0.2
      %v1204 = vmul.f32 %v1076, 0.2
      %v1205 = vmul.f32 %v1077, 0.2
      %v1206 = vmul.f32 %v1078, 0.2
      %v1207 = vmul.f32 %v1079, 0.2
      %v1208 = vmul.f32 %v1080, 0.2
      %v1209 = vmul.f32 %v1081, 0.2
      %v1210 = vmul.f32 %v1082, 0.2
      %v1211 = vmul.f32 %v1083, 0.2
      %v1212 = vmul.f32 %v1084, 0.2
      %v1213 = vmul.f32 %v1085, 0.2
      %v1214 = vmul.f32 %v1086, 0.2
      %v1215 = vmul.f32 %v1087, 0.2
      %v1216 = vmul.f32 %v1088, 0.2
      %v1217 = vmul.f32 %v1089, 0.2
      %v1218 = vmul.f32 %v1090, 0.2
      %v1219 = vmul.f32 %v1091, 0.2
      %v1220 = vmul.f32 %v1092, 0.2
      %v1221 = vmul.f32 %v1093, 0.2
      %v1222 = vmul.f32 %v1094, 0.2
      %v1223 = vmul.f32 %v1095, 0.2
      %v1224 = vmul.f32 %v1096, 0.2
      %v1225 = vmul.f32 %v1097, 0.2
      %v1226 = vmul.f32 %v1098, 0.2
      %v1227 = vmul.f32 %v1099, 0.2
      %v1228 = vmul.f32 %v1100, 0.2
      %v1229 = vmul.f32 %v1101, 0.2
      %v1230 = vmul.f32 %v1102, 0.2
      %v1231 = vmul.f32 %v1103, 0.2
      %v1232 = vmul.f32 %v1104, 0.2
      %v1233 = vmul.f32 %v1105, 0.2
      %v1234 = vmul.f32 %v1106, 0.2
      %v1235 = vmul.f32 %v1107, 0.2
      %v1236 = vsel %vm1108, %v1044, %v1172
      %v1237 = vsel %vm1109, %v1045, %v1173
      %v1238 = vsel %vm1110, %v1046, %v1174
      %v1239 = vsel %vm1111, %v1047, %v1175
      %v1240 = vsel %vm1112, %v1048, %v1176
      %v1241 = vsel %vm1113, %v1049, %v1177
      %v1242 = vsel %vm1114, %v1050, %v1178
      %v1243 = vsel %vm1115, %v1051, %v1179
      %v1244 = vsel %vm1116, %v1052, %v1180
      %v1245 = vsel %vm1117, %v1053, %v1181
      %v1246 = vsel %vm1118, %v1054, %v1182
      %v1247 = vsel %vm1119, %v1055, %v1183
      %v1248 = vsel %vm1120, %v1056, %v1184
      %v1249 = vsel %vm1121, %v1057, %v1185
      %v1250 = vsel %vm1122, %v1058, %v1186
      %v1251 = vsel %vm1123, %v1059, %v1187
      %v1252 = vsel %vm1124, %v1060, %v1188
      %v1253 = vsel %vm1125, %v1061, %v1189
      %v1254 = vsel %vm1126, %v1062, %v1190
      %v1255 = vsel %vm1127, %v1063, %v1191
      %v1256 = vsel %vm1128, %v1064, %v1192
      %v1257 = vsel %vm1129, %v1065, %v1193
      %v1258 = vsel %vm1130, %v1066, %v1194
      %v1259 = vsel %vm1131, %v1067, %v1195
      %v1260 = vsel %vm1132, %v1068, %v1196
      %v1261 = vsel %vm1133, %v1069, %v1197
      %v1262 = vsel %vm1134, %v1070, %v1198
      %v1263 = vsel %vm1135, %v1071, %v1199
      %v1264 = vsel %vm1136, %v1072, %v1200
      %v1265 = vsel %vm1137, %v1073, %v1201
      %v1266 = vsel %vm1138, %v1074, %v1202
      %v1267 = vsel %vm1139, %v1075, %v1203
      %v1268 = vsel %vm1140, %v1076, %v1204
      %v1269 = vsel %vm1141, %v1077, %v1205
      %v1270 = vsel %vm1142, %v1078, %v1206
      %v1271 = vsel %vm1143, %v1079, %v1207
      %v1272 = vsel %vm1144, %v1080, %v1208
      %v1273 = vsel %vm1145, %v1081, %v1209
      %v1274 = vsel %vm1146, %v1082, %v1210
      %v1275 = vsel %vm1147, %v1083, %v1211
      %v1276 = vsel %vm1148, %v1084, %v1212
      %v1277 = vsel %vm1149, %v1085, %v1213
      %v1278 = vsel %vm1150, %v1086, %v1214
      %v1279 = vsel %vm1151, %v1087, %v1215
      %v1280 = vsel %vm1152, %v1088, %v1216
      %v1281 = vsel %vm1153, %v1089, %v1217
      %v1282 = vsel %vm1154, %v1090, %v1218
      %v1283 = vsel %vm1155, %v1091, %v1219
      %v1284 = vsel %vm1156, %v1092, %v1220
      %v1285 = vsel %vm1157, %v1093, %v1221
      %v1286 = vsel %vm1158, %v1094, %v1222
      %v1287 = vsel %vm1159, %v1095, %v1223
      %v1288 = vsel %vm1160, %v1096, %v1224
      %v1289 = vsel %vm1161, %v1097, %v1225
      %v1290 = vsel %vm1162, %v1098, %v1226
      %v1291 = vsel %vm1163, %v1099, %v1227
      %v1292 = vsel %vm1164, %v1100, %v1228
      %v1293 = vsel %vm1165, %v1101, %v1229
      %v1294 = vsel %vm1166, %v1102, %v1230
      %v1295 = vsel %vm1167, %v1103, %v1231
      %v1296 = vsel %vm1168, %v1104, %v1232
      %v1297 = vsel %vm1169, %v1105, %v1233
      %v1298 = vsel %vm1170, %v1106, %v1234
      %v1299 = vsel %vm1171, %v1107, %v1235
      %v1300 = vpack.c.bf16 %v1237, %v1236
      %v1301 = vpack.c.bf16 %v1239, %v1238
      %v1302 = vpack.c.bf16 %v1241, %v1240
      %v1303 = vpack.c.bf16 %v1243, %v1242
      %v1304 = vpack.c.bf16 %v1245, %v1244
      %v1305 = vpack.c.bf16 %v1247, %v1246
      %v1306 = vpack.c.bf16 %v1249, %v1248
      %v1307 = vpack.c.bf16 %v1251, %v1250
      %v1308 = vpack.c.bf16 %v1253, %v1252
      %v1309 = vpack.c.bf16 %v1255, %v1254
      %v1310 = vpack.c.bf16 %v1257, %v1256
      %v1311 = vpack.c.bf16 %v1259, %v1258
      %v1312 = vpack.c.bf16 %v1261, %v1260
      %v1313 = vpack.c.bf16 %v1263, %v1262
      %v1314 = vpack.c.bf16 %v1265, %v1264
      %v1315 = vpack.c.bf16 %v1267, %v1266
      %v1316 = vpack.c.bf16 %v1269, %v1268
      %v1317 = vpack.c.bf16 %v1271, %v1270
      %v1318 = vpack.c.bf16 %v1273, %v1272
      %v1319 = vpack.c.bf16 %v1275, %v1274
      %v1320 = vpack.c.bf16 %v1277, %v1276
      %v1321 = vpack.c.bf16 %v1279, %v1278
      %v1322 = vpack.c.bf16 %v1281, %v1280
      %v1323 = vpack.c.bf16 %v1283, %v1282
      %v1324 = vpack.c.bf16 %v1285, %v1284
      %v1325 = vpack.c.bf16 %v1287, %v1286
      %v1326 = vpack.c.bf16 %v1289, %v1288
      %v1327 = vpack.c.bf16 %v1291, %v1290
      %v1328 = vpack.c.bf16 %v1293, %v1292
      %v1329 = vpack.c.bf16 %v1295, %v1294
      %v1330 = vpack.c.bf16 %v1297, %v1296
      %v1331 = vpack.c.bf16 %v1299, %v1298
      %v1364 = vunpack.c.l.b16 %v1300
      %v1365 = vunpack.c.h.b16 %v1300
      %v1366 = vunpack.c.l.b16 %v1301
      %v1367 = vunpack.c.h.b16 %v1301
      %v1368 = vunpack.c.l.b16 %v1302
      %v1369 = vunpack.c.h.b16 %v1302
      %v1370 = vunpack.c.l.b16 %v1303
      %v1371 = vunpack.c.h.b16 %v1303
      %v1372 = vunpack.c.l.b16 %v1304
      %v1373 = vunpack.c.h.b16 %v1304
      %v1374 = vunpack.c.l.b16 %v1305
      %v1375 = vunpack.c.h.b16 %v1305
      %v1376 = vunpack.c.l.b16 %v1306
      %v1377 = vunpack.c.h.b16 %v1306
      %v1378 = vunpack.c.l.b16 %v1307
      %v1379 = vunpack.c.h.b16 %v1307
      %v1380 = vunpack.c.l.b16 %v1308
      %v1381 = vunpack.c.h.b16 %v1308
      %v1382 = vunpack.c.l.b16 %v1309
      %v1383 = vunpack.c.h.b16 %v1309
      %v1384 = vunpack.c.l.b16 %v1310
      %v1385 = vunpack.c.h.b16 %v1310
      %v1386 = vunpack.c.l.b16 %v1311
      %v1387 = vunpack.c.h.b16 %v1311
      %v1388 = vunpack.c.l.b16 %v1312
      %v1389 = vunpack.c.h.b16 %v1312
      %v1390 = vunpack.c.l.b16 %v1313
      %v1391 = vunpack.c.h.b16 %v1313
      %v1392 = vunpack.c.l.b16 %v1314
      %v1393 = vunpack.c.h.b16 %v1314
      %v1394 = vunpack.c.l.b16 %v1315
      %v1395 = vunpack.c.h.b16 %v1315
      %v1396 = vunpack.c.l.b16 %v1316
      %v1397 = vunpack.c.h.b16 %v1316
      %v1398 = vunpack.c.l.b16 %v1317
      %v1399 = vunpack.c.h.b16 %v1317
      %v1400 = vunpack.c.l.b16 %v1318
      %v1401 = vunpack.c.h.b16 %v1318
      %v1402 = vunpack.c.l.b16 %v1319
      %v1403 = vunpack.c.h.b16 %v1319
      %v1404 = vunpack.c.l.b16 %v1320
      %v1405 = vunpack.c.h.b16 %v1320
      %v1406 = vunpack.c.l.b16 %v1321
      %v1407 = vunpack.c.h.b16 %v1321
      %v1408 = vunpack.c.l.b16 %v1322
      %v1409 = vunpack.c.h.b16 %v1322
      %v1410 = vunpack.c.l.b16 %v1323
      %v1411 = vunpack.c.h.b16 %v1323
      %v1412 = vunpack.c.l.b16 %v1324
      %v1413 = vunpack.c.h.b16 %v1324
      %v1414 = vunpack.c.l.b16 %v1325
      %v1415 = vunpack.c.h.b16 %v1325
      %v1416 = vunpack.c.l.b16 %v1326
      %v1417 = vunpack.c.h.b16 %v1326
      %v1418 = vunpack.c.l.b16 %v1327
      %v1419 = vunpack.c.h.b16 %v1327
      %v1420 = vunpack.c.l.b16 %v1328
      %v1421 = vunpack.c.h.b16 %v1328
      %v1422 = vunpack.c.l.b16 %v1329
      %v1423 = vunpack.c.h.b16 %v1329
      %v1424 = vunpack.c.l.b16 %v1330
      %v1425 = vunpack.c.h.b16 %v1330
      %v1426 = vunpack.c.l.b16 %v1331
      %v1427 = vunpack.c.h.b16 %v1331
      %v1428 = vpack.c.b16 %v1364, %v1364
      %v1429 = vpack.c.b16 %v1365, %v1365
      %v1430 = vpack.c.b16 %v1366, %v1366
      %v1431 = vpack.c.b16 %v1367, %v1367
      %v1432 = vpack.c.b16 %v1368, %v1368
      %v1433 = vpack.c.b16 %v1369, %v1369
      %v1434 = vpack.c.b16 %v1370, %v1370
      %v1435 = vpack.c.b16 %v1371, %v1371
      %v1436 = vpack.c.b16 %v1372, %v1372
      %v1437 = vpack.c.b16 %v1373, %v1373
      %v1438 = vpack.c.b16 %v1374, %v1374
      %v1439 = vpack.c.b16 %v1375, %v1375
      %v1440 = vpack.c.b16 %v1376, %v1376
      %v1441 = vpack.c.b16 %v1377, %v1377
      %v1442 = vpack.c.b16 %v1378, %v1378
      %v1443 = vpack.c.b16 %v1379, %v1379
      %v1444 = vpack.c.b16 %v1380, %v1380
      %v1445 = vpack.c.b16 %v1381, %v1381
      %v1446 = vpack.c.b16 %v1382, %v1382
      %v1447 = vpack.c.b16 %v1383, %v1383
      %v1448 = vpack.c.b16 %v1384, %v1384
      %v1449 = vpack.c.b16 %v1385, %v1385
      %v1450 = vpack.c.b16 %v1386, %v1386
      %v1451 = vpack.c.b16 %v1387, %v1387
      %v1452 = vpack.c.b16 %v1388, %v1388
      %v1453 = vpack.c.b16 %v1389, %v1389
      %v1454 = vpack.c.b16 %v1390, %v1390
      %v1455 = vpack.c.b16 %v1391, %v1391
      %v1456 = vpack.c.b16 %v1392, %v1392
      %v1457 = vpack.c.b16 %v1393, %v1393
      %v1458 = vpack.c.b16 %v1394, %v1394
      %v1459 = vpack.c.b16 %v1395, %v1395
      %v1460 = vpack.c.b16 %v1396, %v1396
      %v1461 = vpack.c.b16 %v1397, %v1397
      %v1462 = vpack.c.b16 %v1398, %v1398
      %v1463 = vpack.c.b16 %v1399, %v1399
      %v1464 = vpack.c.b16 %v1400, %v1400
      %v1465 = vpack.c.b16 %v1401, %v1401
      %v1466 = vpack.c.b16 %v1402, %v1402
      %v1467 = vpack.c.b16 %v1403, %v1403
      %v1468 = vpack.c.b16 %v1404, %v1404
      %v1469 = vpack.c.b16 %v1405, %v1405
      %v1470 = vpack.c.b16 %v1406, %v1406
      %v1471 = vpack.c.b16 %v1407, %v1407
      %v1472 = vpack.c.b16 %v1408, %v1408
      %v1473 = vpack.c.b16 %v1409, %v1409
      %v1474 = vpack.c.b16 %v1410, %v1410
      %v1475 = vpack.c.b16 %v1411, %v1411
      %v1476 = vpack.c.b16 %v1412, %v1412
      %v1477 = vpack.c.b16 %v1413, %v1413
      %v1478 = vpack.c.b16 %v1414, %v1414
      %v1479 = vpack.c.b16 %v1415, %v1415
      %v1480 = vpack.c.b16 %v1416, %v1416
      %v1481 = vpack.c.b16 %v1417, %v1417
      %v1482 = vpack.c.b16 %v1418, %v1418
      %v1483 = vpack.c.b16 %v1419, %v1419
      %v1484 = vpack.c.b16 %v1420, %v1420
      %v1485 = vpack.c.b16 %v1421, %v1421
      %v1486 = vpack.c.b16 %v1422, %v1422
      %v1487 = vpack.c.b16 %v1423, %v1423
      %v1488 = vpack.c.b16 %v1424, %v1424
      %v1489 = vpack.c.b16 %v1425, %v1425
      %v1490 = vpack.c.b16 %v1426, %v1426
      %v1491 = vpack.c.b16 %v1427, %v1427
      %1556 = vst [vmem:[%s4] sm:$0xf] %v1428
      %1557 = vst [vmem:[%s4 + $0x4] sm:$0xf] %v1429
      %1558 = vst [vmem:[%s4 + $0x8] sm:$0xf] %v1430
      %1559 = vst [vmem:[%s4 + $0xc] sm:$0xf] %v1431
      %1560 = vst [vmem:[%s4 + $0x10] sm:$0xf] %v1432
      %1561 = vst [vmem:[%s4 + $0x14] sm:$0xf] %v1433
      %1562 = vst [vmem:[%s4 + $0x18] sm:$0xf] %v1434
      %1563 = vst [vmem:[%s4 + $0x1c] sm:$0xf] %v1435
      %1564 = vst [vmem:[%s4 + $0x20] sm:$0xf] %v1436
      %1565 = vst [vmem:[%s4 + $0x24] sm:$0xf] %v1437
      %1566 = vst [vmem:[%s4 + $0x28] sm:$0xf] %v1438
      %1567 = vst [vmem:[%s4 + $0x2c] sm:$0xf] %v1439
      %1568 = vst [vmem:[%s4 + $0x30] sm:$0xf] %v1440
      %1569 = vst [vmem:[%s4 + $0x34] sm:$0xf] %v1441
      %1570 = vst [vmem:[%s4 + $0x38] sm:$0xf] %v1442
      %1571 = vst [vmem:[%s4 + $0x3c] sm:$0xf] %v1443
      %1572 = vst [vmem:[%s4 + $0x40] sm:$0xf] %v1444
      %1573 = vst [vmem:[%s4 + $0x44] sm:$0xf] %v1445
      %1574 = vst [vmem:[%s4 + $0x48] sm:$0xf] %v1446
      %1575 = vst [vmem:[%s4 + $0x4c] sm:$0xf] %v1447
      %1576 = vst [vmem:[%s4 + $0x50] sm:$0xf] %v1448
      %1577 = vst [vmem:[%s4 + $0x54] sm:$0xf] %v1449
      %1578 = vst [vmem:[%s4 + $0x58] sm:$0xf] %v1450
      %1579 = vst [vmem:[%s4 + $0x5c] sm:$0xf] %v1451
      %1580 = vst [vmem:[%s4 + $0x60] sm:$0xf] %v1452
      %1581 = vst [vmem:[%s4 + $0x64] sm:$0xf] %v1453
      %1582 = vst [vmem:[%s4 + $0x68] sm:$0xf] %v1454
      %1583 = vst [vmem:[%s4 + $0x6c] sm:$0xf] %v1455
      %1584 = vst [vmem:[%s4 + $0x70] sm:$0xf] %v1456
      %1585 = vst [vmem:[%s4 + $0x74] sm:$0xf] %v1457
      %1586 = vst [vmem:[%s4 + $0x78] sm:$0xf] %v1458
      %1587 = vst [vmem:[%s4 + $0x7c] sm:$0xf] %v1459
      %1588 = vst [vmem:[%s4 + $0x80] sm:$0xf] %v1460
      %1589 = vst [vmem:[%s4 + $0x84] sm:$0xf] %v1461
      %1590 = vst [vmem:[%s4 + $0x88] sm:$0xf] %v1462
      %1591 = vst [vmem:[%s4 + $0x8c] sm:$0xf] %v1463
      %1592 = vst [vmem:[%s4 + $0x90] sm:$0xf] %v1464
      %1593 = vst [vmem:[%s4 + $0x94] sm:$0xf] %v1465
      %1594 = vst [vmem:[%s4 + $0x98] sm:$0xf] %v1466
      %1595 = vst [vmem:[%s4 + $0x9c] sm:$0xf] %v1467
      %1596 = vst [vmem:[%s4 + $0xa0] sm:$0xf] %v1468
      %1597 = vst [vmem:[%s4 + $0xa4] sm:$0xf] %v1469
      %1598 = vst [vmem:[%s4 + $0xa8] sm:$0xf] %v1470
      %1599 = vst [vmem:[%s4 + $0xac] sm:$0xf] %v1471
      %1600 = vst [vmem:[%s4 + $0xb0] sm:$0xf] %v1472
      %1601 = vst [vmem:[%s4 + $0xb4] sm:$0xf] %v1473
      %1602 = vst [vmem:[%s4 + $0xb8] sm:$0xf] %v1474
      %1603 = vst [vmem:[%s4 + $0xbc] sm:$0xf] %v1475
      %1604 = vst [vmem:[%s4 + $0xc0] sm:$0xf] %v1476
      %1605 = vst [vmem:[%s4 + $0xc4] sm:$0xf] %v1477
      %1606 = vst [vmem:[%s4 + $0xc8] sm:$0xf] %v1478
      %1607 = vst [vmem:[%s4 + $0xcc] sm:$0xf] %v1479
      %1608 = vst [vmem:[%s4 + $0xd0] sm:$0xf] %v1480
      %1609 = vst [vmem:[%s4 + $0xd4] sm:$0xf] %v1481
      %1610 = vst [vmem:[%s4 + $0xd8] sm:$0xf] %v1482
      %1611 = vst [vmem:[%s4 + $0xdc] sm:$0xf] %v1483
      %1612 = vst [vmem:[%s4 + $0xe0] sm:$0xf] %v1484
      %1613 = vst [vmem:[%s4 + $0xe4] sm:$0xf] %v1485
      %1614 = vst [vmem:[%s4 + $0xe8] sm:$0xf] %v1486
      %1615 = vst [vmem:[%s4 + $0xec] sm:$0xf] %v1487
      %1616 = vst [vmem:[%s4 + $0xf0] sm:$0xf] %v1488
      %1617 = vst [vmem:[%s4 + $0xf4] sm:$0xf] %v1489
      %1618 = vst [vmem:[%s4 + $0xf8] sm:$0xf] %v1490
      %1619 = vst [vmem:[%s4 + $0xfc] sm:$0xf] %v1491
    $region29: #{discriminator_forward.4} parent=1 // pred_fallthru
      _
    // Predicated region
    $region30: #{discriminator_forward.4} parent=1 // pred_check
      _
    $region31: #{discriminator_forward.4} parent=1 // pred_check_branch
      %1621 = sbr.rel (0) target = $region33
    $region32: #{discriminator_forward.4} parent=1 // pred_region
      _
    $region33: #{discriminator_forward.4} parent=1 // pred_fallthru
      _
    // Predicated region
    $region34: #{discriminator_forward.4} parent=1 // pred_check
      _
    $region35: #{discriminator_forward.4} parent=1 // pred_check_branch
      %1623 = sbr.rel (0) target = $region37
    $region36: #{discriminator_forward.4} parent=1 // pred_region
      _
    $region37: #{discriminator_forward.4} parent=1 // pred_fallthru
      _
    %1624 = vsyncpa [#allocation4], 1

// kernel: discriminator_forward.5
$region0: #{discriminator_forward.5}
  #allocation0 [shape = 'u32[]', space=smem, size = 0x4, offset = 0x4, fixed_abs, tag = 'smem constant byte address 0x4 - core index']
  #allocation1 [shape = 'u32[144,128]{1,0:T(1,128)}', space=vmem, size = 0x12000, scoped, tag = 'internal scratch']
  #allocation2 [shape = 'f32[128,128]{1,0:T(8,128)}', space=vmem, size = 0x10000, scoped, tag = 'scratch operand']
  %s0 = inlined_call_operand.vmem [shape: bf16[128,2048], index: 0, kind: input, shape index: {}]
  %s1 = inlined_call_operand.vmem [shape: bf16[256,2048], index: 1, kind: input, shape index: {}]
  %s2 = inlined_call_operand.vmem [shape: f32[1,256], index: 2, kind: input, shape index: {}]
  %s3 = inlined_call_operand.vmem [shape: f32[1,256], index: 3, kind: input, shape index: {}]
  %s4 = inlined_call_operand.vmem [shape: bf16[128,256], index: 4, kind: output, shape index: {}]
  %s5 = sld [smem:[#allocation0]]
  $region140: #{discriminator_forward.5} parent=0
    _
  %s7 = ssub.s32 1, %s5
  %s8 = scalar_select 0, %s7, %s5
  $region1: #{discriminator_forward.5} parent=0
    #allocation3 [shape = 'u8[524288]{0}', space=vmem, size = 0x80000, scoped, tag = 'input window, operand 0']
    #allocation4 [shape = 'u8[524288]{0}', space=vmem, size = 0x80000, scoped, tag = 'input window, operand 1']
    #allocation5 [shape = 'u8[65536]{0}', space=vmem, size = 0x10000, scoped, tag = 'output window, operand 0']
    loop: start=0, step=1, limit=6
    $region2: #{discriminator_forward.5} parent=1 // loop_pre_header
      _
    $region3: #{discriminator_forward.5} parent=1 // loop_header
      %s10 = sphi 0, %s14
      %p11 = scmp.ge.s32.totalorder %s10, 6
      %s17 = sphi 0, %s36
      %s18 = sphi 0, %s32
      %s19 = sphi 0, %s28
      %s20 = sphi 0, %s17
      %s21 = sphi 0, %s18
      %s22 = sphi 0, %s19
      %s23 = sphi 0, %s20
      %s24 = sphi 0, %s21
      %s25 = sphi 0, %s22
      %s41 = sphi 0, %s43
      %s44 = sphi 0, %s41
      %s45 = sphi 0, %s44
      %s61 = sphi 0, %s45
      %s69 = sphi 0, %s71
      %s72 = sphi 0, %s69
      %s73 = sphi 0, %s72
      %s89 = sphi 0, %s73
      %s95 = sphi 0, %s97
      %s98 = sphi 0, %s95
      %s99 = sphi 0, %s98
      %s115 = sphi 0, %s99
      %s121 = sphi 0, %s123
      %s124 = sphi 0, %s121
      %s125 = sphi 0, %s124
      %s141 = sphi 0, %s125
      %s149 = sphi 0, %s151
      %s152 = sphi 0, %s149
      %s153 = sphi 0, %s152
      %s169 = sphi 0, %s153
    $region4: #{discriminator_forward.5} parent=1 // loop_header_branch
      %13 = sbr.rel (%p11) target = $region8
    $region5: #{discriminator_forward.5} parent=1 // loop_body
      %s15 = ssub.s32 %s10, 1
      %s16 = ssub.s32 %s10, 2
      %s26 = sadd.s32 1, %s19
      %p27 = scmp.ge.s32.totalorder %s26, 2
      %s28 = scalar_select %p27, 0, %s26
      %s29 = sadd.s32 1, %s18
      %s30 = scalar_select %p27, %s29, %s18
      %p31 = scmp.ge.s32.totalorder %s30, 2
      %s32 = scalar_select %p31, 0, %s30
      %s33 = sadd.s32 1, %s17
      %s34 = scalar_select %p31, %s33, %s17
      %p35 = scmp.ge.s32.totalorder %s34, 1
      %s36 = scalar_select %p35, 0, %s34
      %s37 = ssub.s32 %s17, %s36
      %s38 = ssub.s32 %s19, %s28
      %s39 = sor.u32 %s37, %s38
      %p40 = scmp.eq.s32.totalorder %s39, 0
      %s42 = sadd.s32 %s41, 1
      %s43 = scalar_select %p40, %s41, %s42
      %p46 = pneg %p40
      %p47 = scmp.eq.s32.totalorder %s10, 3
      %p48 = por %p46, %p47
      %p49 = scmp.ne.s32.totalorder %s41, %s44
      %p50 = scmp.eq.s32.totalorder %s10, 0
      %p51 = por %p49, %p50
      %p52 = scmp.ne.s32.totalorder %s41, %s44
      %p53 = scmp.eq.s32.totalorder %s15, 3
      %p54 = por %p52, %p53
      %p55 = scmp.ne.s32.totalorder %s44, %s45
      %p56 = scmp.eq.s32.totalorder %s15, 0
      %p57 = por %p55, %p56
      %p58 = scmp.ne.s32.totalorder %s44, %s45
      %p59 = scmp.eq.s32.totalorder %s16, 3
      %p60 = por %p58, %p59
      %p62 = scmp.ne.s32.totalorder %s45, %s61
      %p63 = scmp.eq.s32.totalorder %s16, 0
      %p64 = por %p62, %p63
      %s65 = ssub.s32 %s18, %s32
      %s66 = ssub.s32 %s19, %s28
      %s67 = sor.u32 %s65, %s66
      %p68 = scmp.eq.s32.totalorder %s67, 0
      %s70 = sadd.s32 %s69, 1
      %s71 = scalar_select %p68, %s69, %s70
      %p74 = pneg %p68
      %p75 = scmp.eq.s32.totalorder %s10, 3
      %p76 = por %p74, %p75
      %p77 = scmp.ne.s32.totalorder %s69, %s72
      %p78 = scmp.eq.s32.totalorder %s10, 0
      %p79 = por %p77, %p78
      %p80 = scmp.ne.s32.totalorder %s69, %s72
      %p81 = scmp.eq.s32.totalorder %s15, 3
      %p82 = por %p80, %p81
      %p83 = scmp.ne.s32.totalorder %s72, %s73
      %p84 = scmp.eq.s32.totalorder %s15, 0
      %p85 = por %p83, %p84
      %p86 = scmp.ne.s32.totalorder %s72, %s73
      %p87 = scmp.eq.s32.totalorder %s16, 3
      %p88 = por %p86, %p87
      %p90 = scmp.ne.s32.totalorder %s73, %s89
      %p91 = scmp.eq.s32.totalorder %s16, 0
      %p92 = por %p90, %p91
      %s93 = ssub.s32 %s18, %s32
      %p94 = scmp.eq.s32.totalorder %s93, 0
      %s96 = sadd.s32 %s95, 1
      %s97 = scalar_select %p94, %s95, %s96
      %p100 = pneg %p94
      %p101 = scmp.eq.s32.totalorder %s10, 3
      %p102 = por %p100, %p101
      %p103 = scmp.ne.s32.totalorder %s95, %s98
      %p104 = scmp.eq.s32.totalorder %s10, 0
      %p105 = por %p103, %p104
      %p106 = scmp.ne.s32.totalorder %s95, %s98
      %p107 = scmp.eq.s32.totalorder %s15, 3
      %p108 = por %p106, %p107
      %p109 = scmp.ne.s32.totalorder %s98, %s99
      %p110 = scmp.eq.s32.totalorder %s15, 0
      %p111 = por %p109, %p110
      %p112 = scmp.ne.s32.totalorder %s98, %s99
      %p113 = scmp.eq.s32.totalorder %s16, 3
      %p114 = por %p112, %p113
      %p116 = scmp.ne.s32.totalorder %s99, %s115
      %p117 = scmp.eq.s32.totalorder %s16, 0
      %p118 = por %p116, %p117
      %s119 = ssub.s32 %s18, %s32
      %p120 = scmp.eq.s32.totalorder %s119, 0
      %s122 = sadd.s32 %s121, 1
      %s123 = scalar_select %p120, %s121, %s122
      %p126 = pneg %p120
      %p127 = scmp.eq.s32.totalorder %s10, 3
      %p128 = por %p126, %p127
      %p129 = scmp.ne.s32.totalorder %s121, %s124
      %p130 = scmp.eq.s32.totalorder %s10, 0
      %p131 = por %p129, %p130
      %p132 = scmp.ne.s32.totalorder %s121, %s124
      %p133 = scmp.eq.s32.totalorder %s15, 3
      %p134 = por %p132, %p133
      %p135 = scmp.ne.s32.totalorder %s124, %s125
      %p136 = scmp.eq.s32.totalorder %s15, 0
      %p137 = por %p135, %p136
      %p138 = scmp.ne.s32.totalorder %s124, %s125
      %p139 = scmp.eq.s32.totalorder %s16, 3
      %p140 = por %p138, %p139
      %p142 = scmp.ne.s32.totalorder %s125, %s141
      %p143 = scmp.eq.s32.totalorder %s16, 0
      %p144 = por %p142, %p143
      %s145 = ssub.s32 %s17, %s36
      %s146 = ssub.s32 %s18, %s32
      %s147 = sor.u32 %s145, %s146
      %p148 = scmp.eq.s32.totalorder %s147, 0
      %s150 = sadd.s32 %s149, 1
      %s151 = scalar_select %p148, %s149, %s150
      %p154 = pneg %p148
      %p155 = scmp.eq.s32.totalorder %s10, 3
      %p156 = por %p154, %p155
      %p157 = scmp.ne.s32.totalorder %s149, %s152
      %p158 = scmp.eq.s32.totalorder %s10, 0
      %p159 = por %p157, %p158
      %p160 = scmp.ne.s32.totalorder %s149, %s152
      %p161 = scmp.eq.s32.totalorder %s15, 3
      %p162 = por %p160, %p161
      %p163 = scmp.ne.s32.totalorder %s152, %s153
      %p164 = scmp.eq.s32.totalorder %s15, 0
      %p165 = por %p163, %p164
      %p166 = scmp.ne.s32.totalorder %s152, %s153
      %p167 = scmp.eq.s32.totalorder %s16, 3
      %p168 = por %p166, %p167
      %p170 = scmp.ne.s32.totalorder %s153, %s169
      %p171 = scmp.eq.s32.totalorder %s16, 0
      %p172 = por %p170, %p171
      %p173 = scmp.le.s32.totalorder 1, %s10
      %p174 = scmp.lt.s32.totalorder %s10, 5
      %p175 = pnand %p173, %p174
      %p176 = pneg %p175
      // Predicated region
      $region9: #{discriminator_forward.5} parent=5 // pred_check
        _
      $region10: #{discriminator_forward.5} parent=5 // pred_check_branch
        %178 = sbr.rel (%p175) target = $region12
      $region11: #{discriminator_forward.5} parent=5 // pred_region
        %s179 = ssub.s32 %s10, 1
      $region12: #{discriminator_forward.5} parent=5 // pred_fallthru
        _
      %p180 = scmp.lt.s32.totalorder %s10, 4
      // Predicated region
      $region13: #{discriminator_forward.5} parent=5 // pred_check
        %p181 = pneg %p180
      $region14: #{discriminator_forward.5} parent=5 // pred_check_branch
        %183 = sbr.rel (%p181) target = $region16
      $region15: #{discriminator_forward.5} parent=5 // pred_region
        // Predicated region
        $region17: #{discriminator_forward.5} parent=15 // pred_check
          %p184 = pneg %p51
        $region18: #{discriminator_forward.5} parent=15 // pred_check_branch
          %186 = sbr.rel (%p184) target = $region20
        $region19: #{discriminator_forward.5} parent=15 // pred_region
          %s187 = sand.u32 %s41, 1
          %s188 = sand.u32 %s41, 1
          %s189 = smul.addr %s188, 512
          %s190 = scalar_lea.vmem [#allocation3], %s189
          %s191 = smul.u32 16, %s17
          %s192 = smul.u32 8, %s19
          %s193 = smul.addr %s191, 16
          %s194 = sadd.s32 %s192, %s193
          %s195 = smul.addr %s194, 4
          %s196 = scalar_lea.vmem %s0, %s195
          // Predicated region
          $region21: #{discriminator_forward.5} parent=19 // pred_check
            _
          $region22: #{discriminator_forward.5} parent=19 // pred_check_branch
            %198 = sbr.rel (0) target = $region24
          $region23: #{discriminator_forward.5} parent=19 // pred_region
            // Predicated region
            $region25: #{discriminator_forward.5} parent=23 // pred_check
              _
            $region26: #{discriminator_forward.5} parent=23 // pred_check_branch
              %200 = sbr.rel (0) target = $region28
            $region27: #{discriminator_forward.5} parent=23 // pred_region
              loop: start=0, step=1, limit=1
              $region29: #{discriminator_forward.5} parent=27 // loop_pre_header
                _
              $region30: #{discriminator_forward.5} parent=27 // loop_header
                %s202 = sphi 0, %s206
                %p203 = scmp.ge.s32.totalorder %s202, 1
                %s207 = sphi %s196, %s196
                %s208 = sphi %s190, %s190
              $region31: #{discriminator_forward.5} parent=27 // loop_header_branch
                %205 = sbr.rel (%p203) target = $region35
              $region32: #{discriminator_forward.5} parent=27 // loop_body
                %v209 = vld [vmem:[%s207] sm:$0xff]
                %210 = vst [vmem:[%s208] sm:$0xff] %v209
                %v211 = vld [vmem:[%s207 + $0x8] sm:$0xff]
                %212 = vst [vmem:[%s208 + $0x8] sm:$0xff] %v211
                %v213 = vld [vmem:[%s207 + $0x10] sm:$0xff]
                %214 = vst [vmem:[%s208 + $0x10] sm:$0xff] %v213
                %v215 = vld [vmem:[%s207 + $0x18] sm:$0xff]
                %216 = vst [vmem:[%s208 + $0x18] sm:$0xff] %v215
                %v217 = vld [vmem:[%s207 + $0x40] sm:$0xff]
                %218 = vst [vmem:[%s208 + $0x20] sm:$0xff] %v217
                %v219 = vld [vmem:[%s207 + $0x48] sm:$0xff]
                %220 = vst [vmem:[%s208 + $0x28] sm:$0xff] %v219
                %v221 = vld [vmem:[%s207 + $0x50] sm:$0xff]
                %222 = vst [vmem:[%s208 + $0x30] sm:$0xff] %v221
                %v223 = vld [vmem:[%s207 + $0x58] sm:$0xff]
                %224 = vst [vmem:[%s208 + $0x38] sm:$0xff] %v223
                %v225 = vld [vmem:[%s207 + $0x80] sm:$0xff]
                %226 = vst [vmem:[%s208 + $0x40] sm:$0xff] %v225
                %v227 = vld [vmem:[%s207 + $0x88] sm:$0xff]
                %228 = vst [vmem:[%s208 + $0x48] sm:$0xff] %v227
                %v229 = vld [vmem:[%s207 + $0x90] sm:$0xff]
                %230 = vst [vmem:[%s208 + $0x50] sm:$0xff] %v229
                %v231 = vld [vmem:[%s207 + $0x98] sm:$0xff]
                %232 = vst [vmem:[%s208 + $0x58] sm:$0xff] %v231
                %v233 = vld [vmem:[%s207 + $0xc0] sm:$0xff]
                %234 = vst [vmem:[%s208 + $0x60] sm:$0xff] %v233
                %v235 = vld [vmem:[%s207 + $0xc8] sm:$0xff]
                %236 = vst [vmem:[%s208 + $0x68] sm:$0xff] %v235
                %v237 = vld [vmem:[%s207 + $0xd0] sm:$0xff]
                %238 = vst [vmem:[%s208 + $0x70] sm:$0xff] %v237
                %v239 = vld [vmem:[%s207 + $0xd8] sm:$0xff]
                %240 = vst [vmem:[%s208 + $0x78] sm:$0xff] %v239
                %v241 = vld [vmem:[%s207 + $0x100] sm:$0xff]
                %242 = vst [vmem:[%s208 + $0x80] sm:$0xff] %v241
                %v243 = vld [vmem:[%s207 + $0x108] sm:$0xff]
                %244 = vst [vmem:[%s208 + $0x88] sm:$0xff] %v243
                %v245 = vld [vmem:[%s207 + $0x110] sm:$0xff]
                %246 = vst [vmem:[%s208 + $0x90] sm:$0xff] %v245
                %v247 = vld [vmem:[%s207 + $0x118] sm:$0xff]
                %248 = vst [vmem:[%s208 + $0x98] sm:$0xff] %v247
                %v249 = vld [vmem:[%s207 + $0x140] sm:$0xff]
                %250 = vst [vmem:[%s208 + $0xa0] sm:$0xff] %v249
                %v251 = vld [vmem:[%s207 + $0x148] sm:$0xff]
                %252 = vst [vmem:[%s208 + $0xa8] sm:$0xff] %v251
                %v253 = vld [vmem:[%s207 + $0x150] sm:$0xff]
                %254 = vst [vmem:[%s208 + $0xb0] sm:$0xff] %v253
                %v255 = vld [vmem:[%s207 + $0x158] sm:$0xff]
                %256 = vst [vmem:[%s208 + $0xb8] sm:$0xff] %v255
                %v257 = vld [vmem:[%s207 + $0x180] sm:$0xff]
                %258 = vst [vmem:[%s208 + $0xc0] sm:$0xff] %v257
                %v259 = vld [vmem:[%s207 + $0x188] sm:$0xff]
                %260 = vst [vmem:[%s208 + $0xc8] sm:$0xff] %v259
                %v261 = vld [vmem:[%s207 + $0x190] sm:$0xff]
                %262 = vst [vmem:[%s208 + $0xd0] sm:$0xff] %v261
                %v263 = vld [vmem:[%s207 + $0x198] sm:$0xff]
                %264 = vst [vmem:[%s208 + $0xd8] sm:$0xff] %v263
                %v265 = vld [vmem:[%s207 + $0x1c0] sm:$0xff]
                %266 = vst [vmem:[%s208 + $0xe0] sm:$0xff] %v265
                %v267 = vld [vmem:[%s207 + $0x1c8] sm:$0xff]
                %268 = vst [vmem:[%s208 + $0xe8] sm:$0xff] %v267
                %v269 = vld [vmem:[%s207 + $0x1d0] sm:$0xff]
                %270 = vst [vmem:[%s208 + $0xf0] sm:$0xff] %v269
                %v271 = vld [vmem:[%s207 + $0x1d8] sm:$0xff]
                %272 = vst [vmem:[%s208 + $0xf8] sm:$0xff] %v271
                %v273 = vld [vmem:[%s207 + $0x200] sm:$0xff]
                %274 = vst [vmem:[%s208 + $0x100] sm:$0xff] %v273
                %v275 = vld [vmem:[%s207 + $0x208] sm:$0xff]
                %276 = vst [vmem:[%s208 + $0x108] sm:$0xff] %v275
                %v277 = vld [vmem:[%s207 + $0x210] sm:$0xff]
                %278 = vst [vmem:[%s208 + $0x110] sm:$0xff] %v277
                %v279 = vld [vmem:[%s207 + $0x218] sm:$0xff]
                %280 = vst [vmem:[%s208 + $0x118] sm:$0xff] %v279
                %v281 = vld [vmem:[%s207 + $0x240] sm:$0xff]
                %282 = vst [vmem:[%s208 + $0x120] sm:$0xff] %v281
                %v283 = vld [vmem:[%s207 + $0x248] sm:$0xff]
                %284 = vst [vmem:[%s208 + $0x128] sm:$0xff] %v283
                %v285 = vld [vmem:[%s207 + $0x250] sm:$0xff]
                %286 = vst [vmem:[%s208 + $0x130] sm:$0xff] %v285
                %v287 = vld [vmem:[%s207 + $0x258] sm:$0xff]
                %288 = vst [vmem:[%s208 + $0x138] sm:$0xff] %v287
                %v289 = vld [vmem:[%s207 + $0x280] sm:$0xff]
                %290 = vst [vmem:[%s208 + $0x140] sm:$0xff] %v289
                %v291 = vld [vmem:[%s207 + $0x288] sm:$0xff]
                %292 = vst [vmem:[%s208 + $0x148] sm:$0xff] %v291
                %v293 = vld [vmem:[%s207 + $0x290] sm:$0xff]
                %294 = vst [vmem:[%s208 + $0x150] sm:$0xff] %v293
                %v295 = vld [vmem:[%s207 + $0x298] sm:$0xff]
                %296 = vst [vmem:[%s208 + $0x158] sm:$0xff] %v295
                %v297 = vld [vmem:[%s207 + $0x2c0] sm:$0xff]
                %298 = vst [vmem:[%s208 + $0x160] sm:$0xff] %v297
                %v299 = vld [vmem:[%s207 + $0x2c8] sm:$0xff]
                %300 = vst [vmem:[%s208 + $0x168] sm:$0xff] %v299
                %v301 = vld [vmem:[%s207 + $0x2d0] sm:$0xff]
                %302 = vst [vmem:[%s208 + $0x170] sm:$0xff] %v301
                %v303 = vld [vmem:[%s207 + $0x2d8] sm:$0xff]
                %304 = vst [vmem:[%s208 + $0x178] sm:$0xff] %v303
                %v305 = vld [vmem:[%s207 + $0x300] sm:$0xff]
                %306 = vst [vmem:[%s208 + $0x180] sm:$0xff] %v305
                %v307 = vld [vmem:[%s207 + $0x308] sm:$0xff]
                %308 = vst [vmem:[%s208 + $0x188] sm:$0xff] %v307
                %v309 = vld [vmem:[%s207 + $0x310] sm:$0xff]
                %310 = vst [vmem:[%s208 + $0x190] sm:$0xff] %v309
                %v311 = vld [vmem:[%s207 + $0x318] sm:$0xff]
                %312 = vst [vmem:[%s208 + $0x198] sm:$0xff] %v311
                %v313 = vld [vmem:[%s207 + $0x340] sm:$0xff]
                %314 = vst [vmem:[%s208 + $0x1a0] sm:$0xff] %v313
                %v315 = vld [vmem:[%s207 + $0x348] sm:$0xff]
                %316 = vst [vmem:[%s208 + $0x1a8] sm:$0xff] %v315
                %v317 = vld [vmem:[%s207 + $0x350] sm:$0xff]
                %318 = vst [vmem:[%s208 + $0x1b0] sm:$0xff] %v317
                %v319 = vld [vmem:[%s207 + $0x358] sm:$0xff]
                %320 = vst [vmem:[%s208 + $0x1b8] sm:$0xff] %v319
                %v321 = vld [vmem:[%s207 + $0x380] sm:$0xff]
                %322 = vst [vmem:[%s208 + $0x1c0] sm:$0xff] %v321
                %v323 = vld [vmem:[%s207 + $0x388] sm:$0xff]
                %324 = vst [vmem:[%s208 + $0x1c8] sm:$0xff] %v323
                %v325 = vld [vmem:[%s207 + $0x390] sm:$0xff]
                %326 = vst [vmem:[%s208 + $0x1d0] sm:$0xff] %v325
                %v327 = vld [vmem:[%s207 + $0x398] sm:$0xff]
                %328 = vst [vmem:[%s208 + $0x1d8] sm:$0xff] %v327
                %v329 = vld [vmem:[%s207 + $0x3c0] sm:$0xff]
                %330 = vst [vmem:[%s208 + $0x1e0] sm:$0xff] %v329
                %v331 = vld [vmem:[%s207 + $0x3c8] sm:$0xff]
                %332 = vst [vmem:[%s208 + $0x1e8] sm:$0xff] %v331
                %v333 = vld [vmem:[%s207 + $0x3d0] sm:$0xff]
                %334 = vst [vmem:[%s208 + $0x1f0] sm:$0xff] %v333
                %v335 = vld [vmem:[%s207 + $0x3d8] sm:$0xff]
                %336 = vst [vmem:[%s208 + $0x1f8] sm:$0xff] %v335
              $region33: #{discriminator_forward.5} parent=27 // loop_footer
                %s206 = sadd.s32 1, %s202
              $region34: #{discriminator_forward.5} parent=27 // loop_footer_branch
                %201 = sbr.rel target = $region30
              $region35: #{discriminator_forward.5} parent=27 // loop_exit
                _
            $region28: #{discriminator_forward.5} parent=23 // pred_fallthru
              _
            // Predicated region
            $region36: #{discriminator_forward.5} parent=23 // pred_check
              _
            $region37: #{discriminator_forward.5} parent=23 // pred_check_branch
              %338 = sbr.rel target = $region39
            $region38: #{discriminator_forward.5} parent=23 // pred_region
              _
            $region39: #{discriminator_forward.5} parent=23 // pred_fallthru
              _
          $region24: #{discriminator_forward.5} parent=19 // pred_fallthru
            _
          %339 = vnop
        $region20: #{discriminator_forward.5} parent=15 // pred_fallthru
          _
        // Predicated region
        $region40: #{discriminator_forward.5} parent=15 // pred_check
          %p340 = pneg %p79
        $region41: #{discriminator_forward.5} parent=15 // pred_check_branch
          %342 = sbr.rel (%p340) target = $region43
        $region42: #{discriminator_forward.5} parent=15 // pred_region
          %s343 = sand.u32 %s69, 1
          %s344 = sand.u32 %s69, 1
          %s345 = smul.addr %s344, 512
          %s346 = scalar_lea.vmem [#allocation4], %s345
          %s347 = smul.u32 16, %s18
          %s348 = smul.u32 8, %s19
          %s349 = smul.addr %s347, 16
          %s350 = sadd.s32 %s348, %s349
          %s351 = smul.addr %s350, 4
          %s352 = scalar_lea.vmem %s1, %s351
          // Predicated region
          $region44: #{discriminator_forward.5} parent=42 // pred_check
            _
          $region45: #{discriminator_forward.5} parent=42 // pred_check_branch
            %354 = sbr.rel (0) target = $region47
          $region46: #{discriminator_forward.5} parent=42 // pred_region
            // Predicated region
            $region48: #{discriminator_forward.5} parent=46 // pred_check
              _
            $region49: #{discriminator_forward.5} parent=46 // pred_check_branch
              %356 = sbr.rel (0) target = $region51
            $region50: #{discriminator_forward.5} parent=46 // pred_region
              loop: start=0, step=1, limit=1
              $region52: #{discriminator_forward.5} parent=50 // loop_pre_header
                _
              $region53: #{discriminator_forward.5} parent=50 // loop_header
                %s358 = sphi 0, %s362
                %p359 = scmp.ge.s32.totalorder %s358, 1
                %s363 = sphi %s352, %s352
                %s364 = sphi %s346, %s346
              $region54: #{discriminator_forward.5} parent=50 // loop_header_branch
                %361 = sbr.rel (%p359) target = $region58
              $region55: #{discriminator_forward.5} parent=50 // loop_body
                %v365 = vld [vmem:[%s363] sm:$0xff]
                %366 = vst [vmem:[%s364] sm:$0xff] %v365
                %v367 = vld [vmem:[%s363 + $0x8] sm:$0xff]
                %368 = vst [vmem:[%s364 + $0x8] sm:$0xff] %v367
                %v369 = vld [vmem:[%s363 + $0x10] sm:$0xff]
                %370 = vst [vmem:[%s364 + $0x10] sm:$0xff] %v369
                %v371 = vld [vmem:[%s363 + $0x18] sm:$0xff]
                %372 = vst [vmem:[%s364 + $0x18] sm:$0xff] %v371
                %v373 = vld [vmem:[%s363 + $0x40] sm:$0xff]
                %374 = vst [vmem:[%s364 + $0x20] sm:$0xff] %v373
                %v375 = vld [vmem:[%s363 + $0x48] sm:$0xff]
                %376 = vst [vmem:[%s364 + $0x28] sm:$0xff] %v375
                %v377 = vld [vmem:[%s363 + $0x50] sm:$0xff]
                %378 = vst [vmem:[%s364 + $0x30] sm:$0xff] %v377
                %v379 = vld [vmem:[%s363 + $0x58] sm:$0xff]
                %380 = vst [vmem:[%s364 + $0x38] sm:$0xff] %v379
                %v381 = vld [vmem:[%s363 + $0x80] sm:$0xff]
                %382 = vst [vmem:[%s364 + $0x40] sm:$0xff] %v381
                %v383 = vld [vmem:[%s363 + $0x88] sm:$0xff]
                %384 = vst [vmem:[%s364 + $0x48] sm:$0xff] %v383
                %v385 = vld [vmem:[%s363 + $0x90] sm:$0xff]
                %386 = vst [vmem:[%s364 + $0x50] sm:$0xff] %v385
                %v387 = vld [vmem:[%s363 + $0x98] sm:$0xff]
                %388 = vst [vmem:[%s364 + $0x58] sm:$0xff] %v387
                %v389 = vld [vmem:[%s363 + $0xc0] sm:$0xff]
                %390 = vst [vmem:[%s364 + $0x60] sm:$0xff] %v389
                %v391 = vld [vmem:[%s363 + $0xc8] sm:$0xff]
                %392 = vst [vmem:[%s364 + $0x68] sm:$0xff] %v391
                %v393 = vld [vmem:[%s363 + $0xd0] sm:$0xff]
                %394 = vst [vmem:[%s364 + $0x70] sm:$0xff] %v393
                %v395 = vld [vmem:[%s363 + $0xd8] sm:$0xff]
                %396 = vst [vmem:[%s364 + $0x78] sm:$0xff] %v395
                %v397 = vld [vmem:[%s363 + $0x100] sm:$0xff]
                %398 = vst [vmem:[%s364 + $0x80] sm:$0xff] %v397
                %v399 = vld [vmem:[%s363 + $0x108] sm:$0xff]
                %400 = vst [vmem:[%s364 + $0x88] sm:$0xff] %v399
                %v401 = vld [vmem:[%s363 + $0x110] sm:$0xff]
                %402 = vst [vmem:[%s364 + $0x90] sm:$0xff] %v401
                %v403 = vld [vmem:[%s363 + $0x118] sm:$0xff]
                %404 = vst [vmem:[%s364 + $0x98] sm:$0xff] %v403
                %v405 = vld [vmem:[%s363 + $0x140] sm:$0xff]
                %406 = vst [vmem:[%s364 + $0xa0] sm:$0xff] %v405
                %v407 = vld [vmem:[%s363 + $0x148] sm:$0xff]
                %408 = vst [vmem:[%s364 + $0xa8] sm:$0xff] %v407
                %v409 = vld [vmem:[%s363 + $0x150] sm:$0xff]
                %410 = vst [vmem:[%s364 + $0xb0] sm:$0xff] %v409
                %v411 = vld [vmem:[%s363 + $0x158] sm:$0xff]
                %412 = vst [vmem:[%s364 + $0xb8] sm:$0xff] %v411
                %v413 = vld [vmem:[%s363 + $0x180] sm:$0xff]
                %414 = vst [vmem:[%s364 + $0xc0] sm:$0xff] %v413
                %v415 = vld [vmem:[%s363 + $0x188] sm:$0xff]
                %416 = vst [vmem:[%s364 + $0xc8] sm:$0xff] %v415
                %v417 = vld [vmem:[%s363 + $0x190] sm:$0xff]
                %418 = vst [vmem:[%s364 + $0xd0] sm:$0xff] %v417
                %v419 = vld [vmem:[%s363 + $0x198] sm:$0xff]
                %420 = vst [vmem:[%s364 + $0xd8] sm:$0xff] %v419
                %v421 = vld [vmem:[%s363 + $0x1c0] sm:$0xff]
                %422 = vst [vmem:[%s364 + $0xe0] sm:$0xff] %v421
                %v423 = vld [vmem:[%s363 + $0x1c8] sm:$0xff]
                %424 = vst [vmem:[%s364 + $0xe8] sm:$0xff] %v423
                %v425 = vld [vmem:[%s363 + $0x1d0] sm:$0xff]
                %426 = vst [vmem:[%s364 + $0xf0] sm:$0xff] %v425
                %v427 = vld [vmem:[%s363 + $0x1d8] sm:$0xff]
                %428 = vst [vmem:[%s364 + $0xf8] sm:$0xff] %v427
                %v429 = vld [vmem:[%s363 + $0x200] sm:$0xff]
                %430 = vst [vmem:[%s364 + $0x100] sm:$0xff] %v429
                %v431 = vld [vmem:[%s363 + $0x208] sm:$0xff]
                %432 = vst [vmem:[%s364 + $0x108] sm:$0xff] %v431
                %v433 = vld [vmem:[%s363 + $0x210] sm:$0xff]
                %434 = vst [vmem:[%s364 + $0x110] sm:$0xff] %v433
                %v435 = vld [vmem:[%s363 + $0x218] sm:$0xff]
                %436 = vst [vmem:[%s364 + $0x118] sm:$0xff] %v435
                %v437 = vld [vmem:[%s363 + $0x240] sm:$0xff]
                %438 = vst [vmem:[%s364 + $0x120] sm:$0xff] %v437
                %v439 = vld [vmem:[%s363 + $0x248] sm:$0xff]
                %440 = vst [vmem:[%s364 + $0x128] sm:$0xff] %v439
                %v441 = vld [vmem:[%s363 + $0x250] sm:$0xff]
                %442 = vst [vmem:[%s364 + $0x130] sm:$0xff] %v441
                %v443 = vld [vmem:[%s363 + $0x258] sm:$0xff]
                %444 = vst [vmem:[%s364 + $0x138] sm:$0xff] %v443
                %v445 = vld [vmem:[%s363 + $0x280] sm:$0xff]
                %446 = vst [vmem:[%s364 + $0x140] sm:$0xff] %v445
                %v447 = vld [vmem:[%s363 + $0x288] sm:$0xff]
                %448 = vst [vmem:[%s364 + $0x148] sm:$0xff] %v447
                %v449 = vld [vmem:[%s363 + $0x290] sm:$0xff]
                %450 = vst [vmem:[%s364 + $0x150] sm:$0xff] %v449
                %v451 = vld [vmem:[%s363 + $0x298] sm:$0xff]
                %452 = vst [vmem:[%s364 + $0x158] sm:$0xff] %v451
                %v453 = vld [vmem:[%s363 + $0x2c0] sm:$0xff]
                %454 = vst [vmem:[%s364 + $0x160] sm:$0xff] %v453
                %v455 = vld [vmem:[%s363 + $0x2c8] sm:$0xff]
                %456 = vst [vmem:[%s364 + $0x168] sm:$0xff] %v455
                %v457 = vld [vmem:[%s363 + $0x2d0] sm:$0xff]
                %458 = vst [vmem:[%s364 + $0x170] sm:$0xff] %v457
                %v459 = vld [vmem:[%s363 + $0x2d8] sm:$0xff]
                %460 = vst [vmem:[%s364 + $0x178] sm:$0xff] %v459
                %v461 = vld [vmem:[%s363 + $0x300] sm:$0xff]
                %462 = vst [vmem:[%s364 + $0x180] sm:$0xff] %v461
                %v463 = vld [vmem:[%s363 + $0x308] sm:$0xff]
                %464 = vst [vmem:[%s364 + $0x188] sm:$0xff] %v463
                %v465 = vld [vmem:[%s363 + $0x310] sm:$0xff]
                %466 = vst [vmem:[%s364 + $0x190] sm:$0xff] %v465
                %v467 = vld [vmem:[%s363 + $0x318] sm:$0xff]
                %468 = vst [vmem:[%s364 + $0x198] sm:$0xff] %v467
                %v469 = vld [vmem:[%s363 + $0x340] sm:$0xff]
                %470 = vst [vmem:[%s364 + $0x1a0] sm:$0xff] %v469
                %v471 = vld [vmem:[%s363 + $0x348] sm:$0xff]
                %472 = vst [vmem:[%s364 + $0x1a8] sm:$0xff] %v471
                %v473 = vld [vmem:[%s363 + $0x350] sm:$0xff]
                %474 = vst [vmem:[%s364 + $0x1b0] sm:$0xff] %v473
                %v475 = vld [vmem:[%s363 + $0x358] sm:$0xff]
                %476 = vst [vmem:[%s364 + $0x1b8] sm:$0xff] %v475
                %v477 = vld [vmem:[%s363 + $0x380] sm:$0xff]
                %478 = vst [vmem:[%s364 + $0x1c0] sm:$0xff] %v477
                %v479 = vld [vmem:[%s363 + $0x388] sm:$0xff]
                %480 = vst [vmem:[%s364 + $0x1c8] sm:$0xff] %v479
                %v481 = vld [vmem:[%s363 + $0x390] sm:$0xff]
                %482 = vst [vmem:[%s364 + $0x1d0] sm:$0xff] %v481
                %v483 = vld [vmem:[%s363 + $0x398] sm:$0xff]
                %484 = vst [vmem:[%s364 + $0x1d8] sm:$0xff] %v483
                %v485 = vld [vmem:[%s363 + $0x3c0] sm:$0xff]
                %486 = vst [vmem:[%s364 + $0x1e0] sm:$0xff] %v485
                %v487 = vld [vmem:[%s363 + $0x3c8] sm:$0xff]
                %488 = vst [vmem:[%s364 + $0x1e8] sm:$0xff] %v487
                %v489 = vld [vmem:[%s363 + $0x3d0] sm:$0xff]
                %490 = vst [vmem:[%s364 + $0x1f0] sm:$0xff] %v489
                %v491 = vld [vmem:[%s363 + $0x3d8] sm:$0xff]
                %492 = vst [vmem:[%s364 + $0x1f8] sm:$0xff] %v491
              $region56: #{discriminator_forward.5} parent=50 // loop_footer
                %s362 = sadd.s32 1, %s358
              $region57: #{discriminator_forward.5} parent=50 // loop_footer_branch
                %357 = sbr.rel target = $region53
              $region58: #{discriminator_forward.5} parent=50 // loop_exit
                _
            $region51: #{discriminator_forward.5} parent=46 // pred_fallthru
              _
            // Predicated region
            $region59: #{discriminator_forward.5} parent=46 // pred_check
              _
            $region60: #{discriminator_forward.5} parent=46 // pred_check_branch
              %494 = sbr.rel target = $region62
            $region61: #{discriminator_forward.5} parent=46 // pred_region
              _
            $region62: #{discriminator_forward.5} parent=46 // pred_fallthru
              _
          $region47: #{discriminator_forward.5} parent=42 // pred_fallthru
            _
          %495 = vnop
        $region43: #{discriminator_forward.5} parent=15 // pred_fallthru
          _
        // Predicated region
        $region63: #{discriminator_forward.5} parent=15 // pred_check
          %p496 = pneg %p105
        $region64: #{discriminator_forward.5} parent=15 // pred_check_branch
          %498 = sbr.rel (%p496) target = $region66
        $region65: #{discriminator_forward.5} parent=15 // pred_region
          %p499 = scmp.lt.s32.totalorder %s18, 1
          %s500 = scalar_select %p499, %s18, 1
          %s501 = scalar_lea.vmem %s2, %s500
        $region66: #{discriminator_forward.5} parent=15 // pred_fallthru
          _
        // Predicated region
        $region67: #{discriminator_forward.5} parent=15 // pred_check
          %p502 = pneg %p131
        $region68: #{discriminator_forward.5} parent=15 // pred_check_branch
          %504 = sbr.rel (%p502) target = $region70
        $region69: #{discriminator_forward.5} parent=15 // pred_region
          %p505 = scmp.lt.s32.totalorder %s18, 1
          %s506 = scalar_select %p505, %s18, 1
          %s507 = scalar_lea.vmem %s3, %s506
        $region70: #{discriminator_forward.5} parent=15 // pred_fallthru
          _
      $region16: #{discriminator_forward.5} parent=5 // pred_fallthru
        _
      %p508 = scmp.le.s32.totalorder 1, %s10
      %p509 = scmp.lt.s32.totalorder %s10, 5
      %p510 = pnand %p508, %p509
      %p511 = pneg %p510
      // Predicated region
      $region71: #{discriminator_forward.5} parent=5 // pred_check
        _
      $region72: #{discriminator_forward.5} parent=5 // pred_check_branch
        %513 = sbr.rel (%p510) target = $region74
      $region73: #{discriminator_forward.5} parent=5 // pred_region
        %s514 = ssub.s32 %s10, 1
        %s515 = sand.u32 %s44, 1
        %s516 = sand.u32 %s44, 1
        %s517 = smul.addr %s516, 512
        %s518 = scalar_lea.vmem [#allocation3], %s517
        // Predicated region
        $region75: #{discriminator_forward.5} parent=73 // pred_check
          %p519 = pneg %p57
        $region76: #{discriminator_forward.5} parent=73 // pred_check_branch
          %521 = sbr.rel (%p519) target = $region78
        $region77: #{discriminator_forward.5} parent=73 // pred_region
          _
        $region78: #{discriminator_forward.5} parent=73 // pred_fallthru
          _
        %s522 = sand.u32 %s72, 1
        %s523 = sand.u32 %s72, 1
        %s524 = smul.addr %s523, 512
        %s525 = scalar_lea.vmem [#allocation4], %s524
        // Predicated region
        $region79: #{discriminator_forward.5} parent=73 // pred_check
          %p526 = pneg %p85
        $region80: #{discriminator_forward.5} parent=73 // pred_check_branch
          %528 = sbr.rel (%p526) target = $region82
        $region81: #{discriminator_forward.5} parent=73 // pred_region
          _
        $region82: #{discriminator_forward.5} parent=73 // pred_fallthru
          _
        %s529 = sand.u32 %s44, 1
        %s530 = sand.u32 %s44, 1
        %s531 = smul.addr %s530, 512
        %s532 = scalar_lea.vmem [#allocation3], %s531
        %p533 = pneg %p57
        %p534 = pneg %p54
        %s535 = sand.u32 %s72, 1
        %s536 = sand.u32 %s72, 1
        %s537 = smul.addr %s536, 512
        %s538 = scalar_lea.vmem [#allocation4], %s537
        %p539 = pneg %p85
        %p540 = pneg %p82
        %p541 = scmp.lt.s32.totalorder %s21, 1
        %s542 = scalar_select %p541, %s21, 1
        %s543 = scalar_lea.vmem %s2, %s542
        %p544 = pneg %p111
        %p545 = pneg %p108
        %p546 = scmp.lt.s32.totalorder %s21, 1
        %s547 = scalar_select %p546, %s21, 1
        %s548 = scalar_lea.vmem %s3, %s547
        %p549 = pneg %p137
        %p550 = pneg %p134
        %p551 = pneg %p165
        %p552 = pneg %p162
        %s553 = sand.u32 %s152, 1
        %s554 = sand.u32 %s152, 1
        %s555 = smul.addr %s554, 64
        %s556 = scalar_lea.vmem [#allocation5], %s555
        %s557 = smul.u32 16, %s20
        %s558 = smul.u32 8, %s22
        %s559 = smul.u32 16, %s21
        %s560 = smul.u32 8, %s22
        %p561 = scmp.lt.s32.totalorder %s21, 1
        %s562 = scalar_select %p561, %s21, 1
        %s563 = scalar_lea.vmem %s2, %s562
        %p564 = scmp.lt.s32.totalorder %s21, 1
        %s565 = scalar_select %p564, %s21, 1
        %s566 = scalar_lea.vmem %s3, %s565
        %s567 = smul.u32 16, %s20
        %p569 = scmp.eq.s32.totalorder %s22, 0
        // Predicated region
        $region83: #{discriminator_forward.5} parent=73 // pred_check
          %p570 = pneg %p569
        $region84: #{discriminator_forward.5} parent=73 // pred_check_branch
          %572 = sbr.rel (%p570) target = $region86
        $region85: #{discriminator_forward.5} parent=73 // pred_region
          %573 = vst [vmem:[#allocation2] sm:$0xff] 0.0
          %574 = vst [vmem:[#allocation2 + $0x8] sm:$0xff] 0.0
          %575 = vst [vmem:[#allocation2 + $0x10] sm:$0xff] 0.0
          %576 = vst [vmem:[#allocation2 + $0x18] sm:$0xff] 0.0
          %577 = vst [vmem:[#allocation2 + $0x20] sm:$0xff] 0.0
          %578 = vst [vmem:[#allocation2 + $0x28] sm:$0xff] 0.0
          %579 = vst [vmem:[#allocation2 + $0x30] sm:$0xff] 0.0
          %580 = vst [vmem:[#allocation2 + $0x38] sm:$0xff] 0.0
          %581 = vst [vmem:[#allocation2 + $0x40] sm:$0xff] 0.0
          %582 = vst [vmem:[#allocation2 + $0x48] sm:$0xff] 0.0
          %583 = vst [vmem:[#allocation2 + $0x50] sm:$0xff] 0.0
          %584 = vst [vmem:[#allocation2 + $0x58] sm:$0xff] 0.0
          %585 = vst [vmem:[#allocation2 + $0x60] sm:$0xff] 0.0
          %586 = vst [vmem:[#allocation2 + $0x68] sm:$0xff] 0.0
          %587 = vst [vmem:[#allocation2 + $0x70] sm:$0xff] 0.0
          %588 = vst [vmem:[#allocation2 + $0x78] sm:$0xff] 0.0
        $region86: #{discriminator_forward.5} parent=73 // pred_fallthru
          _
        %v589 = vld [vmem:[#allocation2] sm:$0xff]
        %v590 = vld [vmem:[#allocation2 + $0x8] sm:$0xff]
        %v591 = vld [vmem:[#allocation2 + $0x10] sm:$0xff]
        %v592 = vld [vmem:[#allocation2 + $0x18] sm:$0xff]
        %v593 = vld [vmem:[#allocation2 + $0x20] sm:$0xff]
        %v594 = vld [vmem:[#allocation2 + $0x28] sm:$0xff]
        %v595 = vld [vmem:[#allocation2 + $0x30] sm:$0xff]
        %v596 = vld [vmem:[#allocation2 + $0x38] sm:$0xff]
        %v597 = vld [vmem:[#allocation2 + $0x40] sm:$0xff]
        %v598 = vld [vmem:[#allocation2 + $0x48] sm:$0xff]
        %v599 = vld [vmem:[#allocation2 + $0x50] sm:$0xff]
        %v600 = vld [vmem:[#allocation2 + $0x58] sm:$0xff]
        %v601 = vld [vmem:[#allocation2 + $0x60] sm:$0xff]
        %v602 = vld [vmem:[#allocation2 + $0x68] sm:$0xff]
        %v603 = vld [vmem:[#allocation2 + $0x70] sm:$0xff]
        %v604 = vld [vmem:[#allocation2 + $0x78] sm:$0xff]
        %v605 = vld [vmem:[%s518] sm:$0xff]
        %v606 = vld [vmem:[%s518 + $0x8] sm:$0xff]
        %v607 = vld [vmem:[%s518 + $0x10] sm:$0xff]
        %v608 = vld [vmem:[%s518 + $0x18] sm:$0xff]
        %v609 = vld [vmem:[%s518 + $0x20] sm:$0xff]
        %v610 = vld [vmem:[%s518 + $0x28] sm:$0xff]
        %v611 = vld [vmem:[%s518 + $0x30] sm:$0xff]
        %v612 = vld [vmem:[%s518 + $0x38] sm:$0xff]
        %v613 = vld [vmem:[%s518 + $0x40] sm:$0xff]
        %v614 = vld [vmem:[%s518 + $0x48] sm:$0xff]
        %v615 = vld [vmem:[%s518 + $0x50] sm:$0xff]
        %v616 = vld [vmem:[%s518 + $0x58] sm:$0xff]
        %v617 = vld [vmem:[%s518 + $0x60] sm:$0xff]
        %v618 = vld [vmem:[%s518 + $0x68] sm:$0xff]
        %v619 = vld [vmem:[%s518 + $0x70] sm:$0xff]
        %v620 = vld [vmem:[%s518 + $0x78] sm:$0xff]
        %v621 = vld [vmem:[%s518 + $0x80] sm:$0xff]
        %v622 = vld [vmem:[%s518 + $0x88] sm:$0xff]
        %v623 = vld [vmem:[%s518 + $0x90] sm:$0xff]
        %v624 = vld [vmem:[%s518 + $0x98] sm:$0xff]
        %v625 = vld [vmem:[%s518 + $0xa0] sm:$0xff]
        %v626 = vld [vmem:[%s518 + $0xa8] sm:$0xff]
        %v627 = vld [vmem:[%s518 + $0xb0] sm:$0xff]
        %v628 = vld [vmem:[%s518 + $0xb8] sm:$0xff]
        %v629 = vld [vmem:[%s518 + $0xc0] sm:$0xff]
        %v630 = vld [vmem:[%s518 + $0xc8] sm:$0xff]
        %v631 = vld [vmem:[%s518 + $0xd0] sm:$0xff]
        %v632 = vld [vmem:[%s518 + $0xd8] sm:$0xff]
        %v633 = vld [vmem:[%s518 + $0xe0] sm:$0xff]
        %v634 = vld [vmem:[%s518 + $0xe8] sm:$0xff]
        %v635 = vld [vmem:[%s518 + $0xf0] sm:$0xff]
        %v636 = vld [vmem:[%s518 + $0xf8] sm:$0xff]
        %v637 = vld [vmem:[%s518 + $0x100] sm:$0xff]
        %v638 = vld [vmem:[%s518 + $0x108] sm:$0xff]
        %v639 = vld [vmem:[%s518 + $0x110] sm:$0xff]
        %v640 = vld [vmem:[%s518 + $0x118] sm:$0xff]
        %v641 = vld [vmem:[%s518 + $0x120] sm:$0xff]
        %v642 = vld [vmem:[%s518 + $0x128] sm:$0xff]
        %v643 = vld [vmem:[%s518 + $0x130] sm:$0xff]
        %v644 = vld [vmem:[%s518 + $0x138] sm:$0xff]
        %v645 = vld [vmem:[%s518 + $0x140] sm:$0xff]
        %v646 = vld [vmem:[%s518 + $0x148] sm:$0xff]
        %v647 = vld [vmem:[%s518 + $0x150] sm:$0xff]
        %v648 = vld [vmem:[%s518 + $0x158] sm:$0xff]
        %v649 = vld [vmem:[%s518 + $0x160] sm:$0xff]
        %v650 = vld [vmem:[%s518 + $0x168] sm:$0xff]
        %v651 = vld [vmem:[%s518 + $0x170] sm:$0xff]
        %v652 = vld [vmem:[%s518 + $0x178] sm:$0xff]
        %v653 = vld [vmem:[%s518 + $0x180] sm:$0xff]
        %v654 = vld [vmem:[%s518 + $0x188] sm:$0xff]
        %v655 = vld [vmem:[%s518 + $0x190] sm:$0xff]
        %v656 = vld [vmem:[%s518 + $0x198] sm:$0xff]
        %v657 = vld [vmem:[%s518 + $0x1a0] sm:$0xff]
        %v658 = vld [vmem:[%s518 + $0x1a8] sm:$0xff]
        %v659 = vld [vmem:[%s518 + $0x1b0] sm:$0xff]
        %v660 = vld [vmem:[%s518 + $0x1b8] sm:$0xff]
        %v661 = vld [vmem:[%s518 + $0x1c0] sm:$0xff]
        %v662 = vld [vmem:[%s518 + $0x1c8] sm:$0xff]
        %v663 = vld [vmem:[%s518 + $0x1d0] sm:$0xff]
        %v664 = vld [vmem:[%s518 + $0x1d8] sm:$0xff]
        %v665 = vld [vmem:[%s518 + $0x1e0] sm:$0xff]
        %v666 = vld [vmem:[%s518 + $0x1e8] sm:$0xff]
        %v667 = vld [vmem:[%s518 + $0x1f0] sm:$0xff]
        %v668 = vld [vmem:[%s518 + $0x1f8] sm:$0xff]
        %v669 = vld [vmem:[%s525] sm:$0xff]
        %v670 = vld [vmem:[%s525 + $0x8] sm:$0xff]
        %v671 = vld [vmem:[%s525 + $0x10] sm:$0xff]
        %v672 = vld [vmem:[%s525 + $0x18] sm:$0xff]
        %v673 = vld [vmem:[%s525 + $0x20] sm:$0xff]
        %v674 = vld [vmem:[%s525 + $0x28] sm:$0xff]
        %v675 = vld [vmem:[%s525 + $0x30] sm:$0xff]
        %v676 = vld [vmem:[%s525 + $0x38] sm:$0xff]
        %v677 = vld [vmem:[%s525 + $0x40] sm:$0xff]
        %v678 = vld [vmem:[%s525 + $0x48] sm:$0xff]
        %v679 = vld [vmem:[%s525 + $0x50] sm:$0xff]
        %v680 = vld [vmem:[%s525 + $0x58] sm:$0xff]
        %v681 = vld [vmem:[%s525 + $0x60] sm:$0xff]
        %v682 = vld [vmem:[%s525 + $0x68] sm:$0xff]
        %v683 = vld [vmem:[%s525 + $0x70] sm:$0xff]
        %v684 = vld [vmem:[%s525 + $0x78] sm:$0xff]
        %v685 = vld [vmem:[%s525 + $0x80] sm:$0xff]
        %v686 = vld [vmem:[%s525 + $0x88] sm:$0xff]
        %v687 = vld [vmem:[%s525 + $0x90] sm:$0xff]
        %v688 = vld [vmem:[%s525 + $0x98] sm:$0xff]
        %v689 = vld [vmem:[%s525 + $0xa0] sm:$0xff]
        %v690 = vld [vmem:[%s525 + $0xa8] sm:$0xff]
        %v691 = vld [vmem:[%s525 + $0xb0] sm:$0xff]
        %v692 = vld [vmem:[%s525 + $0xb8] sm:$0xff]
        %v693 = vld [vmem:[%s525 + $0xc0] sm:$0xff]
        %v694 = vld [vmem:[%s525 + $0xc8] sm:$0xff]
        %v695 = vld [vmem:[%s525 + $0xd0] sm:$0xff]
        %v696 = vld [vmem:[%s525 + $0xd8] sm:$0xff]
        %v697 = vld [vmem:[%s525 + $0xe0] sm:$0xff]
        %v698 = vld [vmem:[%s525 + $0xe8] sm:$0xff]
        %v699 = vld [vmem:[%s525 + $0xf0] sm:$0xff]
        %v700 = vld [vmem:[%s525 + $0xf8] sm:$0xff]
        %v701 = vld [vmem:[%s525 + $0x100] sm:$0xff]
        %v702 = vld [vmem:[%s525 + $0x108] sm:$0xff]
        %v703 = vld [vmem:[%s525 + $0x110] sm:$0xff]
        %v704 = vld [vmem:[%s525 + $0x118] sm:$0xff]
        %v705 = vld [vmem:[%s525 + $0x120] sm:$0xff]
        %v706 = vld [vmem:[%s525 + $0x128] sm:$0xff]
        %v707 = vld [vmem:[%s525 + $0x130] sm:$0xff]
        %v708 = vld [vmem:[%s525 + $0x138] sm:$0xff]
        %v709 = vld [vmem:[%s525 + $0x140] sm:$0xff]
        %v710 = vld [vmem:[%s525 + $0x148] sm:$0xff]
        %v711 = vld [vmem:[%s525 + $0x150] sm:$0xff]
        %v712 = vld [vmem:[%s525 + $0x158] sm:$0xff]
        %v713 = vld [vmem:[%s525 + $0x160] sm:$0xff]
        %v714 = vld [vmem:[%s525 + $0x168] sm:$0xff]
        %v715 = vld [vmem:[%s525 + $0x170] sm:$0xff]
        %v716 = vld [vmem:[%s525 + $0x178] sm:$0xff]
        %v717 = vld [vmem:[%s525 + $0x180] sm:$0xff]
        %v718 = vld [vmem:[%s525 + $0x188] sm:$0xff]
        %v719 = vld [vmem:[%s525 + $0x190] sm:$0xff]
        %v720 = vld [vmem:[%s525 + $0x198] sm:$0xff]
        %v721 = vld [vmem:[%s525 + $0x1a0] sm:$0xff]
        %v722 = vld [vmem:[%s525 + $0x1a8] sm:$0xff]
        %v723 = vld [vmem:[%s525 + $0x1b0] sm:$0xff]
        %v724 = vld [vmem:[%s525 + $0x1b8] sm:$0xff]
        %v725 = vld [vmem:[%s525 + $0x1c0] sm:$0xff]
        %v726 = vld [vmem:[%s525 + $0x1c8] sm:$0xff]
        %v727 = vld [vmem:[%s525 + $0x1d0] sm:$0xff]
        %v728 = vld [vmem:[%s525 + $0x1d8] sm:$0xff]
        %v729 = vld [vmem:[%s525 + $0x1e0] sm:$0xff]
        %v730 = vld [vmem:[%s525 + $0x1e8] sm:$0xff]
        %v731 = vld [vmem:[%s525 + $0x1f0] sm:$0xff]
        %v732 = vld [vmem:[%s525 + $0x1f8] sm:$0xff]
        %v797 = vunpack.c.l.b16 %v605
        %v798 = vunpack.c.h.b16 %v605
        %v799 = vunpack.c.l.b16 %v606
        %v800 = vunpack.c.h.b16 %v606
        %v801 = vunpack.c.l.b16 %v607
        %v802 = vunpack.c.h.b16 %v607
        %v803 = vunpack.c.l.b16 %v608
        %v804 = vunpack.c.h.b16 %v608
        %v805 = vunpack.c.l.b16 %v609
        %v806 = vunpack.c.h.b16 %v609
        %v807 = vunpack.c.l.b16 %v610
        %v808 = vunpack.c.h.b16 %v610
        %v809 = vunpack.c.l.b16 %v611
        %v810 = vunpack.c.h.b16 %v611
        %v811 = vunpack.c.l.b16 %v612
        %v812 = vunpack.c.h.b16 %v612
        %v813 = vunpack.c.l.b16 %v613
        %v814 = vunpack.c.h.b16 %v613
        %v815 = vunpack.c.l.b16 %v614
        %v816 = vunpack.c.h.b16 %v614
        %v817 = vunpack.c.l.b16 %v615
        %v818 = vunpack.c.h.b16 %v615
        %v819 = vunpack.c.l.b16 %v616
        %v820 = vunpack.c.h.b16 %v616
        %v821 = vunpack.c.l.b16 %v617
        %v822 = vunpack.c.h.b16 %v617
        %v823 = vunpack.c.l.b16 %v618
        %v824 = vunpack.c.h.b16 %v618
        %v825 = vunpack.c.l.b16 %v619
        %v826 = vunpack.c.h.b16 %v619
        %v827 = vunpack.c.l.b16 %v620
        %v828 = vunpack.c.h.b16 %v620
        %v829 = vunpack.c.l.b16 %v621
        %v830 = vunpack.c.h.b16 %v621
        %v831 = vunpack.c.l.b16 %v622
        %v832 = vunpack.c.h.b16 %v622
        %v833 = vunpack.c.l.b16 %v623
        %v834 = vunpack.c.h.b16 %v623
        %v835 = vunpack.c.l.b16 %v624
        %v836 = vunpack.c.h.b16 %v624
        %v837 = vunpack.c.l.b16 %v625
        %v838 = vunpack.c.h.b16 %v625
        %v839 = vunpack.c.l.b16 %v626
        %v840 = vunpack.c.h.b16 %v626
        %v841 = vunpack.c.l.b16 %v627
        %v842 = vunpack.c.h.b16 %v627
        %v843 = vunpack.c.l.b16 %v628
        %v844 = vunpack.c.h.b16 %v628
        %v845 = vunpack.c.l.b16 %v629
        %v846 = vunpack.c.h.b16 %v629
        %v847 = vunpack.c.l.b16 %v630
        %v848 = vunpack.c.h.b16 %v630
        %v849 = vunpack.c.l.b16 %v631
        %v850 = vunpack.c.h.b16 %v631
        %v851 = vunpack.c.l.b16 %v632
        %v852 = vunpack.c.h.b16 %v632
        %v853 = vunpack.c.l.b16 %v633
        %v854 = vunpack.c.h.b16 %v633
        %v855 = vunpack.c.l.b16 %v634
        %v856 = vunpack.c.h.b16 %v634
        %v857 = vunpack.c.l.b16 %v635
        %v858 = vunpack.c.h.b16 %v635
        %v859 = vunpack.c.l.b16 %v636
        %v860 = vunpack.c.h.b16 %v636
        %v861 = vunpack.c.l.b16 %v637
        %v862 = vunpack.c.h.b16 %v637
        %v863 = vunpack.c.l.b16 %v638
        %v864 = vunpack.c.h.b16 %v638
        %v865 = vunpack.c.l.b16 %v639
        %v866 = vunpack.c.h.b16 %v639
        %v867 = vunpack.c.l.b16 %v640
        %v868 = vunpack.c.h.b16 %v640
        %v869 = vunpack.c.l.b16 %v641
        %v870 = vunpack.c.h.b16 %v641
        %v871 = vunpack.c.l.b16 %v642
        %v872 = vunpack.c.h.b16 %v642
        %v873 = vunpack.c.l.b16 %v643
        %v874 = vunpack.c.h.b16 %v643
        %v875 = vunpack.c.l.b16 %v644
        %v876 = vunpack.c.h.b16 %v644
        %v877 = vunpack.c.l.b16 %v645
        %v878 = vunpack.c.h.b16 %v645
        %v879 = vunpack.c.l.b16 %v646
        %v880 = vunpack.c.h.b16 %v646
        %v881 = vunpack.c.l.b16 %v647
        %v882 = vunpack.c.h.b16 %v647
        %v883 = vunpack.c.l.b16 %v648
        %v884 = vunpack.c.h.b16 %v648
        %v885 = vunpack.c.l.b16 %v649
        %v886 = vunpack.c.h.b16 %v649
        %v887 = vunpack.c.l.b16 %v650
        %v888 = vunpack.c.h.b16 %v650
        %v889 = vunpack.c.l.b16 %v651
        %v890 = vunpack.c.h.b16 %v651
        %v891 = vunpack.c.l.b16 %v652
        %v892 = vunpack.c.h.b16 %v652
        %v893 = vunpack.c.l.b16 %v653
        %v894 = vunpack.c.h.b16 %v653
        %v895 = vunpack.c.l.b16 %v654
        %v896 = vunpack.c.h.b16 %v654
        %v897 = vunpack.c.l.b16 %v655
        %v898 = vunpack.c.h.b16 %v655
        %v899 = vunpack.c.l.b16 %v656
        %v900 = vunpack.c.h.b16 %v656
        %v901 = vunpack.c.l.b16 %v657
        %v902 = vunpack.c.h.b16 %v657
        %v903 = vunpack.c.l.b16 %v658
        %v904 = vunpack.c.h.b16 %v658
        %v905 = vunpack.c.l.b16 %v659
        %v906 = vunpack.c.h.b16 %v659
        %v907 = vunpack.c.l.b16 %v660
        %v908 = vunpack.c.h.b16 %v660
        %v909 = vunpack.c.l.b16 %v661
        %v910 = vunpack.c.h.b16 %v661
        %v911 = vunpack.c.l.b16 %v662
        %v912 = vunpack.c.h.b16 %v662
        %v913 = vunpack.c.l.b16 %v663
        %v914 = vunpack.c.h.b16 %v663
        %v915 = vunpack.c.l.b16 %v664
        %v916 = vunpack.c.h.b16 %v664
        %v917 = vunpack.c.l.b16 %v665
        %v918 = vunpack.c.h.b16 %v665
        %v919 = vunpack.c.l.b16 %v666
        %v920 = vunpack.c.h.b16 %v666
        %v921 = vunpack.c.l.b16 %v667
        %v922 = vunpack.c.h.b16 %v667
        %v923 = vunpack.c.l.b16 %v668
        %v924 = vunpack.c.h.b16 %v668
        %v925 = vpack.c.b16 %v805, %v797
        %v926 = vpack.c.b16 %v806, %v798
        %v927 = vpack.c.b16 %v807, %v799
        %v928 = vpack.c.b16 %v808, %v800
        %v929 = vpack.c.b16 %v809, %v801
        %v930 = vpack.c.b16 %v810, %v802
        %v931 = vpack.c.b16 %v811, %v803
        %v932 = vpack.c.b16 %v812, %v804
        %v933 = vpack.c.b16 %v821, %v813
        %v934 = vpack.c.b16 %v822, %v814
        %v935 = vpack.c.b16 %v823, %v815
        %v936 = vpack.c.b16 %v824, %v816
        %v937 = vpack.c.b16 %v825, %v817
        %v938 = vpack.c.b16 %v826, %v818
        %v939 = vpack.c.b16 %v827, %v819
        %v940 = vpack.c.b16 %v828, %v820
        %v941 = vpack.c.b16 %v837, %v829
        %v942 = vpack.c.b16 %v838, %v830
        %v943 = vpack.c.b16 %v839, %v831
        %v944 = vpack.c.b16 %v840, %v832
        %v945 = vpack.c.b16 %v841, %v833
        %v946 = vpack.c.b16 %v842, %v834
        %v947 = vpack.c.b16 %v843, %v835
        %v948 = vpack.c.b16 %v844, %v836
        %v949 = vpack.c.b16 %v853, %v845
        %v950 = vpack.c.b16 %v854, %v846
        %v951 = vpack.c.b16 %v855, %v847
        %v952 = vpack.c.b16 %v856, %v848
        %v953 = vpack.c.b16 %v857, %v849
        %v954 = vpack.c.b16 %v858, %v850
        %v955 = vpack.c.b16 %v859, %v851
        %v956 = vpack.c.b16 %v860, %v852
        %v957 = vpack.c.b16 %v869, %v861
        %v958 = vpack.c.b16 %v870, %v862
        %v959 = vpack.c.b16 %v871, %v863
        %v960 = vpack.c.b16 %v872, %v864
        %v961 = vpack.c.b16 %v873, %v865
        %v962 = vpack.c.b16 %v874, %v866
        %v963 = vpack.c.b16 %v875, %v867
        %v964 = vpack.c.b16 %v876, %v868
        %v965 = vpack.c.b16 %v885, %v877
        %v966 = vpack.c.b16 %v886, %v878
        %v967 = vpack.c.b16 %v887, %v879
        %v968 = vpack.c.b16 %v888, %v880
        %v969 = vpack.c.b16 %v889, %v881
        %v970 = vpack.c.b16 %v890, %v882
        %v971 = vpack.c.b16 %v891, %v883
        %v972 = vpack.c.b16 %v892, %v884
        %v973 = vpack.c.b16 %v901, %v893
        %v974 = vpack.c.b16 %v902, %v894
        %v975 = vpack.c.b16 %v903, %v895
        %v976 = vpack.c.b16 %v904, %v896
        %v977 = vpack.c.b16 %v905, %v897
        %v978 = vpack.c.b16 %v906, %v898
        %v979 = vpack.c.b16 %v907, %v899
        %v980 = vpack.c.b16 %v908, %v900
        %v981 = vpack.c.b16 %v917, %v909
        %v982 = vpack.c.b16 %v918, %v910
        %v983 = vpack.c.b16 %v919, %v911
        %v984 = vpack.c.b16 %v920, %v912
        %v985 = vpack.c.b16 %v921, %v913
        %v986 = vpack.c.b16 %v922, %v914
        %v987 = vpack.c.b16 %v923, %v915
        %v988 = vpack.c.b16 %v924, %v916
        %v1117 = vunpack.c.l.b16 %v669
        %v1118 = vunpack.c.h.b16 %v669
        %v1119 = vunpack.c.l.b16 %v670
        %v1120 = vunpack.c.h.b16 %v670
        %v1121 = vunpack.c.l.b16 %v671
        %v1122 = vunpack.c.h.b16 %v671
        %v1123 = vunpack.c.l.b16 %v672
        %v1124 = vunpack.c.h.b16 %v672
        %v1125 = vunpack.c.l.b16 %v673
        %v1126 = vunpack.c.h.b16 %v673
        %v1127 = vunpack.c.l.b16 %v674
        %v1128 = vunpack.c.h.b16 %v674
        %v1129 = vunpack.c.l.b16 %v675
        %v1130 = vunpack.c.h.b16 %v675
        %v1131 = vunpack.c.l.b16 %v676
        %v1132 = vunpack.c.h.b16 %v676
        %v1133 = vunpack.c.l.b16 %v677
        %v1134 = vunpack.c.h.b16 %v677
        %v1135 = vunpack.c.l.b16 %v678
        %v1136 = vunpack.c.h.b16 %v678
        %v1137 = vunpack.c.l.b16 %v679
        %v1138 = vunpack.c.h.b16 %v679
        %v1139 = vunpack.c.l.b16 %v680
        %v1140 = vunpack.c.h.b16 %v680
        %v1141 = vunpack.c.l.b16 %v681
        %v1142 = vunpack.c.h.b16 %v681
        %v1143 = vunpack.c.l.b16 %v682
        %v1144 = vunpack.c.h.b16 %v682
        %v1145 = vunpack.c.l.b16 %v683
        %v1146 = vunpack.c.h.b16 %v683
        %v1147 = vunpack.c.l.b16 %v684
        %v1148 = vunpack.c.h.b16 %v684
        %v1149 = vunpack.c.l.b16 %v685
        %v1150 = vunpack.c.h.b16 %v685
        %v1151 = vunpack.c.l.b16 %v686
        %v1152 = vunpack.c.h.b16 %v686
        %v1153 = vunpack.c.l.b16 %v687
        %v1154 = vunpack.c.h.b16 %v687
        %v1155 = vunpack.c.l.b16 %v688
        %v1156 = vunpack.c.h.b16 %v688
        %v1157 = vunpack.c.l.b16 %v689
        %v1158 = vunpack.c.h.b16 %v689
        %v1159 = vunpack.c.l.b16 %v690
        %v1160 = vunpack.c.h.b16 %v690
        %v1161 = vunpack.c.l.b16 %v691
        %v1162 = vunpack.c.h.b16 %v691
        %v1163 = vunpack.c.l.b16 %v692
        %v1164 = vunpack.c.h.b16 %v692
        %v1165 = vunpack.c.l.b16 %v693
        %v1166 = vunpack.c.h.b16 %v693
        %v1167 = vunpack.c.l.b16 %v694
        %v1168 = vunpack.c.h.b16 %v694
        %v1169 = vunpack.c.l.b16 %v695
        %v1170 = vunpack.c.h.b16 %v695
        %v1171 = vunpack.c.l.b16 %v696
        %v1172 = vunpack.c.h.b16 %v696
        %v1173 = vunpack.c.l.b16 %v697
        %v1174 = vunpack.c.h.b16 %v697
        %v1175 = vunpack.c.l.b16 %v698
        %v1176 = vunpack.c.h.b16 %v698
        %v1177 = vunpack.c.l.b16 %v699
        %v1178 = vunpack.c.h.b16 %v699
        %v1179 = vunpack.c.l.b16 %v700
        %v1180 = vunpack.c.h.b16 %v700
        %v1181 = vunpack.c.l.b16 %v701
        %v1182 = vunpack.c.h.b16 %v701
        %v1183 = vunpack.c.l.b16 %v702
        %v1184 = vunpack.c.h.b16 %v702
        %v1185 = vunpack.c.l.b16 %v703
        %v1186 = vunpack.c.h.b16 %v703
        %v1187 = vunpack.c.l.b16 %v704
        %v1188 = vunpack.c.h.b16 %v704
        %v1189 = vunpack.c.l.b16 %v705
        %v1190 = vunpack.c.h.b16 %v705
        %v1191 = vunpack.c.l.b16 %v706
        %v1192 = vunpack.c.h.b16 %v706
        %v1193 = vunpack.c.l.b16 %v707
        %v1194 = vunpack.c.h.b16 %v707
        %v1195 = vunpack.c.l.b16 %v708
        %v1196 = vunpack.c.h.b16 %v708
        %v1197 = vunpack.c.l.b16 %v709
        %v1198 = vunpack.c.h.b16 %v709
        %v1199 = vunpack.c.l.b16 %v710
        %v1200 = vunpack.c.h.b16 %v710
        %v1201 = vunpack.c.l.b16 %v711
        %v1202 = vunpack.c.h.b16 %v711
        %v1203 = vunpack.c.l.b16 %v712
        %v1204 = vunpack.c.h.b16 %v712
        %v1205 = vunpack.c.l.b16 %v713
        %v1206 = vunpack.c.h.b16 %v713
        %v1207 = vunpack.c.l.b16 %v714
        %v1208 = vunpack.c.h.b16 %v714
        %v1209 = vunpack.c.l.b16 %v715
        %v1210 = vunpack.c.h.b16 %v715
        %v1211 = vunpack.c.l.b16 %v716
        %v1212 = vunpack.c.h.b16 %v716
        %v1213 = vunpack.c.l.b16 %v717
        %v1214 = vunpack.c.h.b16 %v717
        %v1215 = vunpack.c.l.b16 %v718
        %v1216 = vunpack.c.h.b16 %v718
        %v1217 = vunpack.c.l.b16 %v719
        %v1218 = vunpack.c.h.b16 %v719
        %v1219 = vunpack.c.l.b16 %v720
        %v1220 = vunpack.c.h.b16 %v720
        %v1221 = vunpack.c.l.b16 %v721
        %v1222 = vunpack.c.h.b16 %v721
        %v1223 = vunpack.c.l.b16 %v722
        %v1224 = vunpack.c.h.b16 %v722
        %v1225 = vunpack.c.l.b16 %v723
        %v1226 = vunpack.c.h.b16 %v723
        %v1227 = vunpack.c.l.b16 %v724
        %v1228 = vunpack.c.h.b16 %v724
        %v1229 = vunpack.c.l.b16 %v725
        %v1230 = vunpack.c.h.b16 %v725
        %v1231 = vunpack.c.l.b16 %v726
        %v1232 = vunpack.c.h.b16 %v726
        %v1233 = vunpack.c.l.b16 %v727
        %v1234 = vunpack.c.h.b16 %v727
        %v1235 = vunpack.c.l.b16 %v728
        %v1236 = vunpack.c.h.b16 %v728
        %v1237 = vunpack.c.l.b16 %v729
        %v1238 = vunpack.c.h.b16 %v729
        %v1239 = vunpack.c.l.b16 %v730
        %v1240 = vunpack.c.h.b16 %v730
        %v1241 = vunpack.c.l.b16 %v731
        %v1242 = vunpack.c.h.b16 %v731
        %v1243 = vunpack.c.l.b16 %v732
        %v1244 = vunpack.c.h.b16 %v732
        %v1245 = vpack.c.b16 %v1125, %v1117
        %v1246 = vpack.c.b16 %v1126, %v1118
        %v1247 = vpack.c.b16 %v1127, %v1119
        %v1248 = vpack.c.b16 %v1128, %v1120
        %v1249 = vpack.c.b16 %v1129, %v1121
        %v1250 = vpack.c.b16 %v1130, %v1122
        %v1251 = vpack.c.b16 %v1131, %v1123
        %v1252 = vpack.c.b16 %v1132, %v1124
        %v1253 = vpack.c.b16 %v1141, %v1133
        %v1254 = vpack.c.b16 %v1142, %v1134
        %v1255 = vpack.c.b16 %v1143, %v1135
        %v1256 = vpack.c.b16 %v1144, %v1136
        %v1257 = vpack.c.b16 %v1145, %v1137
        %v1258 = vpack.c.b16 %v1146, %v1138
        %v1259 = vpack.c.b16 %v1147, %v1139
        %v1260 = vpack.c.b16 %v1148, %v1140
        %v1261 = vpack.c.b16 %v1157, %v1149
        %v1262 = vpack.c.b16 %v1158, %v1150
        %v1263 = vpack.c.b16 %v1159, %v1151
        %v1264 = vpack.c.b16 %v1160, %v1152
        %v1265 = vpack.c.b16 %v1161, %v1153
        %v1266 = vpack.c.b16 %v1162, %v1154
        %v1267 = vpack.c.b16 %v1163, %v1155
        %v1268 = vpack.c.b16 %v1164, %v1156
        %v1269 = vpack.c.b16 %v1173, %v1165
        %v1270 = vpack.c.b16 %v1174, %v1166
        %v1271 = vpack.c.b16 %v1175, %v1167
        %v1272 = vpack.c.b16 %v1176, %v1168
        %v1273 = vpack.c.b16 %v1177, %v1169
        %v1274 = vpack.c.b16 %v1178, %v1170
        %v1275 = vpack.c.b16 %v1179, %v1171
        %v1276 = vpack.c.b16 %v1180, %v1172
        %v1277 = vpack.c.b16 %v1189, %v1181
        %v1278 = vpack.c.b16 %v1190, %v1182
        %v1279 = vpack.c.b16 %v1191, %v1183
        %v1280 = vpack.c.b16 %v1192, %v1184
        %v1281 = vpack.c.b16 %v1193, %v1185
        %v1282 = vpack.c.b16 %v1194, %v1186
        %v1283 = vpack.c.b16 %v1195, %v1187
        %v1284 = vpack.c.b16 %v1196, %v1188
        %v1285 = vpack.c.b16 %v1205, %v1197
        %v1286 = vpack.c.b16 %v1206, %v1198
        %v1287 = vpack.c.b16 %v1207, %v1199
        %v1288 = vpack.c.b16 %v1208, %v1200
        %v1289 = vpack.c.b16 %v1209, %v1201
        %v1290 = vpack.c.b16 %v1210, %v1202
        %v1291 = vpack.c.b16 %v1211, %v1203
        %v1292 = vpack.c.b16 %v1212, %v1204
        %v1293 = vpack.c.b16 %v1221, %v1213
        %v1294 = vpack.c.b16 %v1222, %v1214
        %v1295 = vpack.c.b16 %v1223, %v1215
        %v1296 = vpack.c.b16 %v1224, %v1216
        %v1297 = vpack.c.b16 %v1225, %v1217
        %v1298 = vpack.c.b16 %v1226, %v1218
        %v1299 = vpack.c.b16 %v1227, %v1219
        %v1300 = vpack.c.b16 %v1228, %v1220
        %v1301 = vpack.c.b16 %v1237, %v1229
        %v1302 = vpack.c.b16 %v1238, %v1230
        %v1303 = vpack.c.b16 %v1239, %v1231
        %v1304 = vpack.c.b16 %v1240, %v1232
        %v1305 = vpack.c.b16 %v1241, %v1233
        %v1306 = vpack.c.b16 %v1242, %v1234
        %v1307 = vpack.c.b16 %v1243, %v1235
        %v1308 = vpack.c.b16 %v1244, %v1236
        %1373 = vmatprep.subr.bf16.mxu0 %v1246
        %1374 = vmatpush1.bf16.xpose.msra.mxu0 %v1245
        %1375 = vmatprep.subr.bf16.mxu0 %v1254
        %1376 = vmatpush1.bf16.xpose.msra.mxu0 %v1253
        %1377 = vmatprep.subr.bf16.mxu0 %v1262
        %1378 = vmatpush1.bf16.xpose.msra.mxu0 %v1261
        %1379 = vmatprep.subr.bf16.mxu0 %v1270
        %1380 = vmatpush1.bf16.xpose.msra.mxu0 %v1269
        %1381 = vmatprep.subr.bf16.mxu0 %v1278
        %1382 = vmatpush1.bf16.xpose.msra.mxu0 %v1277
        %1383 = vmatprep.subr.bf16.mxu0 %v1286
        %1384 = vmatpush1.bf16.xpose.msra.mxu0 %v1285
        %1385 = vmatprep.subr.bf16.mxu0 %v1294
        %1386 = vmatpush1.bf16.xpose.msra.mxu0 %v1293
        %1387 = vmatprep.subr.bf16.mxu0 %v1302
        %1388 = vmatpush1.bf16.xpose.msra.mxu0 %v1301
        %1389 = vmatprep.subr.bf16.mxu0 0
        %1390 = vmatpush1.bf16.xpose.msra.mxu0 0
        %1391 = vmatprep.subr.bf16.mxu0 0
        %1392 = vmatpush1.bf16.xpose.msra.mxu0 0
        %1393 = vmatprep.subr.bf16.mxu0 0
        %1394 = vmatpush1.bf16.xpose.msra.mxu0 0
        %1395 = vmatprep.subr.bf16.mxu0 0
        %1396 = vmatpush1.bf16.xpose.msra.mxu0 0
        %1397 = vmatprep.subr.bf16.mxu0 0
        %1398 = vmatpush1.bf16.xpose.msra.mxu0 0
        %1399 = vmatprep.subr.bf16.mxu0 0
        %1400 = vmatpush1.bf16.xpose.msra.mxu0 0
        %1401 = vmatprep.subr.bf16.mxu0 0
        %1402 = vmatpush1.bf16.xpose.msra.mxu0 0
        %1403 = vmatprep.subr.bf16.mxu0 0
        %1404 = vmatpush1.bf16.xpose.msra.mxu0 0
        %1405 = vmatprep.mubr.bf16.mxu0 %v926
        %1406 = vmatmul.mubr.bf16.gmra.mrb[0].mxu0 %v925
        %v1407 = vpop.f32.mrb[0].mxu0
        %v1408 = vadd.f32 0.0, %v1407
        %v1409 = vpop.f32.mrb[0].mxu0
        %v1410 = vpop.f32.mrb[0].mxu0
        %v1411 = vadd.f32 0.0, %v1410
        %v1412 = vpop.f32.mrb[0].mxu0
        %1413 = vmatprep.mubr.bf16.mxu0 %v934
        %1414 = vmatmul.mubr.bf16.gmra.mrb[0].mxu0 %v933
        %v1415 = vpop.f32.mrb[0].mxu0
        %v1416 = vadd.f32 0.0, %v1415
        %v1417 = vpop.f32.mrb[0].mxu0
        %v1418 = vpop.f32.mrb[0].mxu0
        %v1419 = vadd.f32 0.0, %v1418
        %v1420 = vpop.f32.mrb[0].mxu0
        %1421 = vmatprep.mubr.bf16.mxu0 %v942
        %1422 = vmatmul.mubr.bf16.gmra.mrb[0].mxu0 %v941
        %v1423 = vpop.f32.mrb[0].mxu0
        %v1424 = vadd.f32 0.0, %v1423
        %v1425 = vpop.f32.mrb[0].mxu0
        %v1426 = vpop.f32.mrb[0].mxu0
        %v1427 = vadd.f32 0.0, %v1426
        %v1428 = vpop.f32.mrb[0].mxu0
        %1429 = vmatprep.mubr.bf16.mxu0 %v950
        %1430 = vmatmul.mubr.bf16.gmra.mrb[0].mxu0 %v949
        %v1431 = vpop.f32.mrb[0].mxu0
        %v1432 = vadd.f32 0.0, %v1431
        %v1433 = vpop.f32.mrb[0].mxu0
        %v1434 = vpop.f32.mrb[0].mxu0
        %v1435 = vadd.f32 0.0, %v1434
        %v1436 = vpop.f32.mrb[0].mxu0
        %1437 = vmatprep.mubr.bf16.mxu0 %v958
        %1438 = vmatmul.mubr.bf16.gmra.mrb[0].mxu0 %v957
        %v1439 = vpop.f32.mrb[0].mxu0
        %v1440 = vadd.f32 0.0, %v1439
        %v1441 = vpop.f32.mrb[0].mxu0
        %v1442 = vpop.f32.mrb[0].mxu0
        %v1443 = vadd.f32 0.0, %v1442
        %v1444 = vpop.f32.mrb[0].mxu0
        %1445 = vmatprep.mubr.bf16.mxu0 %v966
        %1446 = vmatmul.mubr.bf16.gmra.mrb[0].mxu0 %v965
        %v1447 = vpop.f32.mrb[0].mxu0
        %v1448 = vadd.f32 0.0, %v1447
        %v1449 = vpop.f32.mrb[0].mxu0
        %v1450 = vpop.f32.mrb[0].mxu0
        %v1451 = vadd.f32 0.0, %v1450
        %v1452 = vpop.f32.mrb[0].mxu0
        %1453 = vmatprep.mubr.bf16.mxu0 %v974
        %1454 = vmatmul.mubr.bf16.gmra.mrb[0].mxu0 %v973
        %v1455 = vpop.f32.mrb[0].mxu0
        %v1456 = vadd.f32 0.0, %v1455
        %v1457 = vpop.f32.mrb[0].mxu0
        %v1458 = vpop.f32.mrb[0].mxu0
        %v1459 = vadd.f32 0.0, %v1458
        %v1460 = vpop.f32.mrb[0].mxu0
        %1461 = vmatprep.mubr.bf16.mxu0 %v982
        %1462 = vmatmul.mubr.bf16.gmra.mrb[0].mxu0 %v981
        %v1463 = vpop.f32.mrb[0].mxu0
        %v1464 = vadd.f32 0.0, %v1463
        %v1465 = vpop.f32.mrb[0].mxu0
        %v1466 = vpop.f32.mrb[0].mxu0
        %v1467 = vadd.f32 0.0, %v1466
        %v1468 = vpop.f32.mrb[0].mxu0
        %1469 = vdwg.mxu0
        %1470 = vmatprep.subr.bf16.mxu0 %v1248
        %1471 = vmatpush1.bf16.xpose.msra.mxu0 %v1247
        %1472 = vmatprep.subr.bf16.mxu0 %v1256
        %1473 = vmatpush1.bf16.xpose.msra.mxu0 %v1255
        %1474 = vmatprep.subr.bf16.mxu0 %v1264
        %1475 = vmatpush1.bf16.xpose.msra.mxu0 %v1263
        %1476 = vmatprep.subr.bf16.mxu0 %v1272
        %1477 = vmatpush1.bf16.xpose.msra.mxu0 %v1271
        %1478 = vmatprep.subr.bf16.mxu0 %v1280
        %1479 = vmatpush1.bf16.xpose.msra.mxu0 %v1279
        %1480 = vmatprep.subr.bf16.mxu0 %v1288
        %1481 = vmatpush1.bf16.xpose.msra.mxu0 %v1287
        %1482 = vmatprep.subr.bf16.mxu0 %v1296
        %1483 = vmatpush1.bf16.xpose.msra.mxu0 %v1295
        %1484 = vmatprep.subr.bf16.mxu0 %v1304
        %1485 = vmatpush1.bf16.xpose.msra.mxu0 %v1303
        %1486 = vmatprep.subr.bf16.mxu0 0
        %1487 = vmatpush1.bf16.xpose.msra.mxu0 0
        %1488 = vmatprep.subr.bf16.mxu0 0
        %1489 = vmatpush1.bf16.xpose.msra.mxu0 0
        %1490 = vmatprep.subr.bf16.mxu0 0
        %1491 = vmatpush1.bf16.xpose.msra.mxu0 0
        %1492 = vmatprep.subr.bf16.mxu0 0
        %1493 = vmatpush1.bf16.xpose.msra.mxu0 0
        %1494 = vmatprep.subr.bf16.mxu0 0
        %1495 = vmatpush1.bf16.xpose.msra.mxu0 0
        %1496 = vmatprep.subr.bf16.mxu0 0
        %1497 = vmatpush1.bf16.xpose.msra.mxu0 0
        %1498 = vmatprep.subr.bf16.mxu0 0
        %1499 = vmatpush1.bf16.xpose.msra.mxu0 0
        %1500 = vmatprep.subr.bf16.mxu0 0
        %1501 = vmatpush1.bf16.xpose.msra.mxu0 0
        %1502 = vmatprep.mubr.bf16.mxu0 %v928
        %1503 = vmatmul.mubr.bf16.gmra.mrb[0].mxu0 %v927
        %v1504 = vpop.f32.mrb[0].mxu0
        %v1505 = vadd.f32 %v1408, %v1504
        %v1506 = vpop.f32.mrb[0].mxu0
        %v1507 = vpop.f32.mrb[0].mxu0
        %v1508 = vadd.f32 %v1411, %v1507
        %v1509 = vpop.f32.mrb[0].mxu0
        %1510 = vmatprep.mubr.bf16.mxu0 %v936
        %1511 = vmatmul.mubr.bf16.gmra.mrb[0].mxu0 %v935
        %v1512 = vpop.f32.mrb[0].mxu0
        %v1513 = vadd.f32 %v1416, %v1512
        %v1514 = vpop.f32.mrb[0].mxu0
        %v1515 = vpop.f32.mrb[0].mxu0
        %v1516 = vadd.f32 %v1419, %v1515
        %v1517 = vpop.f32.mrb[0].mxu0
        %1518 = vmatprep.mubr.bf16.mxu0 %v944
        %1519 = vmatmul.mubr.bf16.gmra.mrb[0].mxu0 %v943
        %v1520 = vpop.f32.mrb[0].mxu0
        %v1521 = vadd.f32 %v1424, %v1520
        %v1522 = vpop.f32.mrb[0].mxu0
        %v1523 = vpop.f32.mrb[0].mxu0
        %v1524 = vadd.f32 %v1427, %v1523
        %v1525 = vpop.f32.mrb[0].mxu0
        %1526 = vmatprep.mubr.bf16.mxu0 %v952
        %1527 = vmatmul.mubr.bf16.gmra.mrb[0].mxu0 %v951
        %v1528 = vpop.f32.mrb[0].mxu0
        %v1529 = vadd.f32 %v1432, %v1528
        %v1530 = vpop.f32.mrb[0].mxu0
        %v1531 = vpop.f32.mrb[0].mxu0
        %v1532 = vadd.f32 %v1435, %v1531
        %v1533 = vpop.f32.mrb[0].mxu0
        %1534 = vmatprep.mubr.bf16.mxu0 %v960
        %1535 = vmatmul.mubr.bf16.gmra.mrb[0].mxu0 %v959
        %v1536 = vpop.f32.mrb[0].mxu0
        %v1537 = vadd.f32 %v1440, %v1536
        %v1538 = vpop.f32.mrb[0].mxu0
        %v1539 = vpop.f32.mrb[0].mxu0
        %v1540 = vadd.f32 %v1443, %v1539
        %v1541 = vpop.f32.mrb[0].mxu0
        %1542 = vmatprep.mubr.bf16.mxu0 %v968
        %1543 = vmatmul.mubr.bf16.gmra.mrb[0].mxu0 %v967
        %v1544 = vpop.f32.mrb[0].mxu0
        %v1545 = vadd.f32 %v1448, %v1544
        %v1546 = vpop.f32.mrb[0].mxu0
        %v1547 = vpop.f32.mrb[0].mxu0
        %v1548 = vadd.f32 %v1451, %v1547
        %v1549 = vpop.f32.mrb[0].mxu0
        %1550 = vmatprep.mubr.bf16.mxu0 %v976
        %1551 = vmatmul.mubr.bf16.gmra.mrb[0].mxu0 %v975
        %v1552 = vpop.f32.mrb[0].mxu0
        %v1553 = vadd.f32 %v1456, %v1552
        %v1554 = vpop.f32.mrb[0].mxu0
        %v1555 = vpop.f32.mrb[0].mxu0
        %v1556 = vadd.f32 %v1459, %v1555
        %v1557 = vpop.f32.mrb[0].mxu0
        %1558 = vmatprep.mubr.bf16.mxu0 %v984
        %1559 = vmatmul.mubr.bf16.gmra.mrb[0].mxu0 %v983
        %v1560 = vpop.f32.mrb[0].mxu0
        %v1561 = vadd.f32 %v1464, %v1560
        %v1562 = vpop.f32.mrb[0].mxu0
        %v1563 = vpop.f32.mrb[0].mxu0
        %v1564 = vadd.f32 %v1467, %v1563
        %v1565 = vpop.f32.mrb[0].mxu0
        %1566 = vdwg.mxu0
        %1567 = vmatprep.subr.bf16.mxu0 %v1250
        %1568 = vmatpush1.bf16.xpose.msra.mxu0 %v1249
        %1569 = vmatprep.subr.bf16.mxu0 %v1258
        %1570 = vmatpush1.bf16.xpose.msra.mxu0 %v1257
        %1571 = vmatprep.subr.bf16.mxu0 %v1266
        %1572 = vmatpush1.bf16.xpose.msra.mxu0 %v1265
        %1573 = vmatprep.subr.bf16.mxu0 %v1274
        %1574 = vmatpush1.bf16.xpose.msra.mxu0 %v1273
        %1575 = vmatprep.subr.bf16.mxu0 %v1282
        %1576 = vmatpush1.bf16.xpose.msra.mxu0 %v1281
        %1577 = vmatprep.subr.bf16.mxu0 %v1290
        %1578 = vmatpush1.bf16.xpose.msra.mxu0 %v1289
        %1579 = vmatprep.subr.bf16.mxu0 %v1298
        %1580 = vmatpush1.bf16.xpose.msra.mxu0 %v1297
        %1581 = vmatprep.subr.bf16.mxu0 %v1306
        %1582 = vmatpush1.bf16.xpose.msra.mxu0 %v1305
        %1583 = vmatprep.subr.bf16.mxu0 0
        %1584 = vmatpush1.bf16.xpose.msra.mxu0 0
        %1585 = vmatprep.subr.bf16.mxu0 0
        %1586 = vmatpush1.bf16.xpose.msra.mxu0 0
        %1587 = vmatprep.subr.bf16.mxu0 0
        %1588 = vmatpush1.bf16.xpose.msra.mxu0 0
        %1589 = vmatprep.subr.bf16.mxu0 0
        %1590 = vmatpush1.bf16.xpose.msra.mxu0 0
        %1591 = vmatprep.subr.bf16.mxu0 0
        %1592 = vmatpush1.bf16.xpose.msra.mxu0 0
        %1593 = vmatprep.subr.bf16.mxu0 0
        %1594 = vmatpush1.bf16.xpose.msra.mxu0 0
        %1595 = vmatprep.subr.bf16.mxu0 0
        %1596 = vmatpush1.bf16.xpose.msra.mxu0 0
        %1597 = vmatprep.subr.bf16.mxu0 0
        %1598 = vmatpush1.bf16.xpose.msra.mxu0 0
        %1599 = vmatprep.mubr.bf16.mxu0 %v930
        %1600 = vmatmul.mubr.bf16.gmra.mrb[0].mxu0 %v929
        %v1601 = vpop.f32.mrb[0].mxu0
        %v1602 = vadd.f32 %v1505, %v1601
        %v1603 = vpop.f32.mrb[0].mxu0
        %v1604 = vpop.f32.mrb[0].mxu0
        %v1605 = vadd.f32 %v1508, %v1604
        %v1606 = vpop.f32.mrb[0].mxu0
        %1607 = vmatprep.mubr.bf16.mxu0 %v938
        %1608 = vmatmul.mubr.bf16.gmra.mrb[0].mxu0 %v937
        %v1609 = vpop.f32.mrb[0].mxu0
        %v1610 = vadd.f32 %v1513, %v1609
        %v1611 = vpop.f32.mrb[0].mxu0
        %v1612 = vpop.f32.mrb[0].mxu0
        %v1613 = vadd.f32 %v1516, %v1612
        %v1614 = vpop.f32.mrb[0].mxu0
        %1615 = vmatprep.mubr.bf16.mxu0 %v946
        %1616 = vmatmul.mubr.bf16.gmra.mrb[0].mxu0 %v945
        %v1617 = vpop.f32.mrb[0].mxu0
        %v1618 = vadd.f32 %v1521, %v1617
        %v1619 = vpop.f32.mrb[0].mxu0
        %v1620 = vpop.f32.mrb[0].mxu0
        %v1621 = vadd.f32 %v1524, %v1620
        %v1622 = vpop.f32.mrb[0].mxu0
        %1623 = vmatprep.mubr.bf16.mxu0 %v954
        %1624 = vmatmul.mubr.bf16.gmra.mrb[0].mxu0 %v953
        %v1625 = vpop.f32.mrb[0].mxu0
        %v1626 = vadd.f32 %v1529, %v1625
        %v1627 = vpop.f32.mrb[0].mxu0
        %v1628 = vpop.f32.mrb[0].mxu0
        %v1629 = vadd.f32 %v1532, %v1628
        %v1630 = vpop.f32.mrb[0].mxu0
        %1631 = vmatprep.mubr.bf16.mxu0 %v962
        %1632 = vmatmul.mubr.bf16.gmra.mrb[0].mxu0 %v961
        %v1633 = vpop.f32.mrb[0].mxu0
        %v1634 = vadd.f32 %v1537, %v1633
        %v1635 = vpop.f32.mrb[0].mxu0
        %v1636 = vpop.f32.mrb[0].mxu0
        %v1637 = vadd.f32 %v1540, %v1636
        %v1638 = vpop.f32.mrb[0].mxu0
        %1639 = vmatprep.mubr.bf16.mxu0 %v970
        %1640 = vmatmul.mubr.bf16.gmra.mrb[0].mxu0 %v969
        %v1641 = vpop.f32.mrb[0].mxu0
        %v1642 = vadd.f32 %v1545, %v1641
        %v1643 = vpop.f32.mrb[0].mxu0
        %v1644 = vpop.f32.mrb[0].mxu0
        %v1645 = vadd.f32 %v1548, %v1644
        %v1646 = vpop.f32.mrb[0].mxu0
        %1647 = vmatprep.mubr.bf16.mxu0 %v978
        %1648 = vmatmul.mubr.bf16.gmra.mrb[0].mxu0 %v977
        %v1649 = vpop.f32.mrb[0].mxu0
        %v1650 = vadd.f32 %v1553, %v1649
        %v1651 = vpop.f32.mrb[0].mxu0
        %v1652 = vpop.f32.mrb[0].mxu0
        %v1653 = vadd.f32 %v1556, %v1652
        %v1654 = vpop.f32.mrb[0].mxu0
        %1655 = vmatprep.mubr.bf16.mxu0 %v986
        %1656 = vmatmul.mubr.bf16.gmra.mrb[0].mxu0 %v985
        %v1657 = vpop.f32.mrb[0].mxu0
        %v1658 = vadd.f32 %v1561, %v1657
        %v1659 = vpop.f32.mrb[0].mxu0
        %v1660 = vpop.f32.mrb[0].mxu0
        %v1661 = vadd.f32 %v1564, %v1660
        %v1662 = vpop.f32.mrb[0].mxu0
        %1663 = vdwg.mxu0
        %1664 = vmatprep.subr.bf16.mxu0 %v1252
        %1665 = vmatpush1.bf16.xpose.msra.mxu0 %v1251
        %1666 = vmatprep.subr.bf16.mxu0 %v1260
        %1667 = vmatpush1.bf16.xpose.msra.mxu0 %v1259
        %1668 = vmatprep.subr.bf16.mxu0 %v1268
        %1669 = vmatpush1.bf16.xpose.msra.mxu0 %v1267
        %1670 = vmatprep.subr.bf16.mxu0 %v1276
        %1671 = vmatpush1.bf16.xpose.msra.mxu0 %v1275
        %1672 = vmatprep.subr.bf16.mxu0 %v1284
        %1673 = vmatpush1.bf16.xpose.msra.mxu0 %v1283
        %1674 = vmatprep.subr.bf16.mxu0 %v1292
        %1675 = vmatpush1.bf16.xpose.msra.mxu0 %v1291
        %1676 = vmatprep.subr.bf16.mxu0 %v1300
        %1677 = vmatpush1.bf16.xpose.msra.mxu0 %v1299
        %1678 = vmatprep.subr.bf16.mxu0 %v1308
        %1679 = vmatpush1.bf16.xpose.msra.mxu0 %v1307
        %1680 = vmatprep.subr.bf16.mxu0 0
        %1681 = vmatpush1.bf16.xpose.msra.mxu0 0
        %1682 = vmatprep.subr.bf16.mxu0 0
        %1683 = vmatpush1.bf16.xpose.msra.mxu0 0
        %1684 = vmatprep.subr.bf16.mxu0 0
        %1685 = vmatpush1.bf16.xpose.msra.mxu0 0
        %1686 = vmatprep.subr.bf16.mxu0 0
        %1687 = vmatpush1.bf16.xpose.msra.mxu0 0
        %1688 = vmatprep.subr.bf16.mxu0 0
        %1689 = vmatpush1.bf16.xpose.msra.mxu0 0
        %1690 = vmatprep.subr.bf16.mxu0 0
        %1691 = vmatpush1.bf16.xpose.msra.mxu0 0
        %1692 = vmatprep.subr.bf16.mxu0 0
        %1693 = vmatpush1.bf16.xpose.msra.mxu0 0
        %1694 = vmatprep.subr.bf16.mxu0 0
        %1695 = vmatpush1.bf16.xpose.msra.mxu0 0
        %1696 = vmatprep.mubr.bf16.mxu0 %v932
        %1697 = vmatmul.mubr.bf16.gmra.mrb[0].mxu0 %v931
        %v1698 = vpop.f32.mrb[0].mxu0
        %v1699 = vadd.f32 %v1602, %v1698
        %v1700 = vpop.f32.mrb[0].mxu0
        %v1701 = vpop.f32.mrb[0].mxu0
        %v1702 = vadd.f32 %v1605, %v1701
        %v1703 = vpop.f32.mrb[0].mxu0
        %1704 = vmatprep.mubr.bf16.mxu0 %v940
        %1705 = vmatmul.mubr.bf16.gmra.mrb[0].mxu0 %v939
        %v1706 = vpop.f32.mrb[0].mxu0
        %v1707 = vadd.f32 %v1610, %v1706
        %v1708 = vpop.f32.mrb[0].mxu0
        %v1709 = vpop.f32.mrb[0].mxu0
        %v1710 = vadd.f32 %v1613, %v1709
        %v1711 = vpop.f32.mrb[0].mxu0
        %1712 = vmatprep.mubr.bf16.mxu0 %v948
        %1713 = vmatmul.mubr.bf16.gmra.mrb[0].mxu0 %v947
        %v1714 = vpop.f32.mrb[0].mxu0
        %v1715 = vadd.f32 %v1618, %v1714
        %v1716 = vpop.f32.mrb[0].mxu0
        %v1717 = vpop.f32.mrb[0].mxu0
        %v1718 = vadd.f32 %v1621, %v1717
        %v1719 = vpop.f32.mrb[0].mxu0
        %1720 = vmatprep.mubr.bf16.mxu0 %v956
        %1721 = vmatmul.mubr.bf16.gmra.mrb[0].mxu0 %v955
        %v1722 = vpop.f32.mrb[0].mxu0
        %v1723 = vadd.f32 %v1626, %v1722
        %v1724 = vpop.f32.mrb[0].mxu0
        %v1725 = vpop.f32.mrb[0].mxu0
        %v1726 = vadd.f32 %v1629, %v1725
        %v1727 = vpop.f32.mrb[0].mxu0
        %1728 = vmatprep.mubr.bf16.mxu0 %v964
        %1729 = vmatmul.mubr.bf16.gmra.mrb[0].mxu0 %v963
        %v1730 = vpop.f32.mrb[0].mxu0
        %v1731 = vadd.f32 %v1634, %v1730
        %v1732 = vpop.f32.mrb[0].mxu0
        %v1733 = vpop.f32.mrb[0].mxu0
        %v1734 = vadd.f32 %v1637, %v1733
        %v1735 = vpop.f32.mrb[0].mxu0
        %1736 = vmatprep.mubr.bf16.mxu0 %v972
        %1737 = vmatmul.mubr.bf16.gmra.mrb[0].mxu0 %v971
        %v1738 = vpop.f32.mrb[0].mxu0
        %v1739 = vadd.f32 %v1642, %v1738
        %v1740 = vpop.f32.mrb[0].mxu0
        %v1741 = vpop.f32.mrb[0].mxu0
        %v1742 = vadd.f32 %v1645, %v1741
        %v1743 = vpop.f32.mrb[0].mxu0
        %1744 = vmatprep.mubr.bf16.mxu0 %v980
        %1745 = vmatmul.mubr.bf16.gmra.mrb[0].mxu0 %v979
        %v1746 = vpop.f32.mrb[0].mxu0
        %v1747 = vadd.f32 %v1650, %v1746
        %v1748 = vpop.f32.mrb[0].mxu0
        %v1749 = vpop.f32.mrb[0].mxu0
        %v1750 = vadd.f32 %v1653, %v1749
        %v1751 = vpop.f32.mrb[0].mxu0
        %1752 = vmatprep.mubr.bf16.mxu0 %v988
        %1753 = vmatmul.mubr.bf16.gmra.mrb[0].mxu0 %v987
        %v1754 = vpop.f32.mrb[0].mxu0
        %v1755 = vadd.f32 %v1658, %v1754
        %v1756 = vpop.f32.mrb[0].mxu0
        %v1757 = vpop.f32.mrb[0].mxu0
        %v1758 = vadd.f32 %v1661, %v1757
        %v1759 = vpop.f32.mrb[0].mxu0
        %1760 = vdwg.mxu0
        %v1761 = vadd.f32 %v589, %v1699
        %v1762 = vadd.f32 %v590, %v1702
        %v1763 = vadd.f32 %v591, %v1707
        %v1764 = vadd.f32 %v592, %v1710
        %v1765 = vadd.f32 %v593, %v1715
        %v1766 = vadd.f32 %v594, %v1718
        %v1767 = vadd.f32 %v595, %v1723
        %v1768 = vadd.f32 %v596, %v1726
        %v1769 = vadd.f32 %v597, %v1731
        %v1770 = vadd.f32 %v598, %v1734
        %v1771 = vadd.f32 %v599, %v1739
        %v1772 = vadd.f32 %v600, %v1742
        %v1773 = vadd.f32 %v601, %v1747
        %v1774 = vadd.f32 %v602, %v1750
        %v1775 = vadd.f32 %v603, %v1755
        %v1776 = vadd.f32 %v604, %v1758
        %1777 = vst [vmem:[#allocation2] sm:$0xff] %v1761
        %1778 = vst [vmem:[#allocation2 + $0x8] sm:$0xff] %v1762
        %1779 = vst [vmem:[#allocation2 + $0x10] sm:$0xff] %v1763
        %1780 = vst [vmem:[#allocation2 + $0x18] sm:$0xff] %v1764
        %1781 = vst [vmem:[#allocation2 + $0x20] sm:$0xff] %v1765
        %1782 = vst [vmem:[#allocation2 + $0x28] sm:$0xff] %v1766
        %1783 = vst [vmem:[#allocation2 + $0x30] sm:$0xff] %v1767
        %1784 = vst [vmem:[#allocation2 + $0x38] sm:$0xff] %v1768
        %1785 = vst [vmem:[#allocation2 + $0x40] sm:$0xff] %v1769
        %1786 = vst [vmem:[#allocation2 + $0x48] sm:$0xff] %v1770
        %1787 = vst [vmem:[#allocation2 + $0x50] sm:$0xff] %v1771
        %1788 = vst [vmem:[#allocation2 + $0x58] sm:$0xff] %v1772
        %1789 = vst [vmem:[#allocation2 + $0x60] sm:$0xff] %v1773
        %1790 = vst [vmem:[#allocation2 + $0x68] sm:$0xff] %v1774
        %1791 = vst [vmem:[#allocation2 + $0x70] sm:$0xff] %v1775
        %1792 = vst [vmem:[#allocation2 + $0x78] sm:$0xff] %v1776
        %p1793 = scmp.eq.s32.totalorder %s22, 1
        // Predicated region
        $region87: #{discriminator_forward.5} parent=73 // pred_check
          %p1794 = pneg %p1793
        $region88: #{discriminator_forward.5} parent=73 // pred_check_branch
          %1796 = sbr.rel (%p1794) target = $region90
        $region89: #{discriminator_forward.5} parent=73 // pred_region
          %v1797 = vld [vmem:[#allocation2] sm:$0xff]
          %v1798 = vld [vmem:[#allocation2 + $0x8] sm:$0xff]
          %v1799 = vld [vmem:[#allocation2 + $0x10] sm:$0xff]
          %v1800 = vld [vmem:[#allocation2 + $0x18] sm:$0xff]
          %v1801 = vld [vmem:[#allocation2 + $0x20] sm:$0xff]
          %v1802 = vld [vmem:[#allocation2 + $0x28] sm:$0xff]
          %v1803 = vld [vmem:[#allocation2 + $0x30] sm:$0xff]
          %v1804 = vld [vmem:[#allocation2 + $0x38] sm:$0xff]
          %v1805 = vld [vmem:[#allocation2 + $0x40] sm:$0xff]
          %v1806 = vld [vmem:[#allocation2 + $0x48] sm:$0xff]
          %v1807 = vld [vmem:[#allocation2 + $0x50] sm:$0xff]
          %v1808 = vld [vmem:[#allocation2 + $0x58] sm:$0xff]
          %v1809 = vld [vmem:[#allocation2 + $0x60] sm:$0xff]
          %v1810 = vld [vmem:[#allocation2 + $0x68] sm:$0xff]
          %v1811 = vld [vmem:[#allocation2 + $0x70] sm:$0xff]
          %v1812 = vld [vmem:[#allocation2 + $0x78] sm:$0xff]
          %v1813 = vld [vmem:[%s563] sm:$0x1]
          %v1815 = vlaneseq
          %v1816 = vshrl.u32 %v1815, 7
          %v1817 = vsub.s32 0, %v1816
          %v1818 = vrot.slane %v1813, %v1817
          %v1820 = vmul.f32 %v1797, %v1818
          %v1821 = vmul.f32 %v1798, %v1818
          %v1822 = vmul.f32 %v1799, %v1818
          %v1823 = vmul.f32 %v1800, %v1818
          %v1824 = vmul.f32 %v1801, %v1818
          %v1825 = vmul.f32 %v1802, %v1818
          %v1826 = vmul.f32 %v1803, %v1818
          %v1827 = vmul.f32 %v1804, %v1818
          %v1828 = vmul.f32 %v1805, %v1818
          %v1829 = vmul.f32 %v1806, %v1818
          %v1830 = vmul.f32 %v1807, %v1818
          %v1831 = vmul.f32 %v1808, %v1818
          %v1832 = vmul.f32 %v1809, %v1818
          %v1833 = vmul.f32 %v1810, %v1818
          %v1834 = vmul.f32 %v1811, %v1818
          %v1835 = vmul.f32 %v1812, %v1818
          %v1836 = vld [vmem:[%s566] sm:$0x1]
          %v1838 = vlaneseq
          %v1839 = vshrl.u32 %v1838, 7
          %v1840 = vsub.s32 0, %v1839
          %v1841 = vrot.slane %v1836, %v1840
          %v1843 = vadd.f32 %v1820, %v1841
          %v1844 = vadd.f32 %v1821, %v1841
          %v1845 = vadd.f32 %v1822, %v1841
          %v1846 = vadd.f32 %v1823, %v1841
          %v1847 = vadd.f32 %v1824, %v1841
          %v1848 = vadd.f32 %v1825, %v1841
          %v1849 = vadd.f32 %v1826, %v1841
          %v1850 = vadd.f32 %v1827, %v1841
          %v1851 = vadd.f32 %v1828, %v1841
          %v1852 = vadd.f32 %v1829, %v1841
          %v1853 = vadd.f32 %v1830, %v1841
          %v1854 = vadd.f32 %v1831, %v1841
          %v1855 = vadd.f32 %v1832, %v1841
          %v1856 = vadd.f32 %v1833, %v1841
          %v1857 = vadd.f32 %v1834, %v1841
          %v1858 = vadd.f32 %v1835, %v1841
          %vm1859 = vcmp.ge.f32.partialorder %v1843, 0.0
          %vm1860 = vcmp.ge.f32.partialorder %v1844, 0.0
          %vm1861 = vcmp.ge.f32.partialorder %v1845, 0.0
          %vm1862 = vcmp.ge.f32.partialorder %v1846, 0.0
          %vm1863 = vcmp.ge.f32.partialorder %v1847, 0.0
          %vm1864 = vcmp.ge.f32.partialorder %v1848, 0.0
          %vm1865 = vcmp.ge.f32.partialorder %v1849, 0.0
          %vm1866 = vcmp.ge.f32.partialorder %v1850, 0.0
          %vm1867 = vcmp.ge.f32.partialorder %v1851, 0.0
          %vm1868 = vcmp.ge.f32.partialorder %v1852, 0.0
          %vm1869 = vcmp.ge.f32.partialorder %v1853, 0.0
          %vm1870 = vcmp.ge.f32.partialorder %v1854, 0.0
          %vm1871 = vcmp.ge.f32.partialorder %v1855, 0.0
          %vm1872 = vcmp.ge.f32.partialorder %v1856, 0.0
          %vm1873 = vcmp.ge.f32.partialorder %v1857, 0.0
          %vm1874 = vcmp.ge.f32.partialorder %v1858, 0.0
          %v1875 = vmul.f32 %v1843, 0.2
          %v1876 = vmul.f32 %v1844, 0.2
          %v1877 = vmul.f32 %v1845, 0.2
          %v1878 = vmul.f32 %v1846, 0.2
          %v1879 = vmul.f32 %v1847, 0.2
          %v1880 = vmul.f32 %v1848, 0.2
          %v1881 = vmul.f32 %v1849, 0.2
          %v1882 = vmul.f32 %v1850, 0.2
          %v1883 = vmul.f32 %v1851, 0.2
          %v1884 = vmul.f32 %v1852, 0.2
          %v1885 = vmul.f32 %v1853, 0.2
          %v1886 = vmul.f32 %v1854, 0.2
          %v1887 = vmul.f32 %v1855, 0.2
          %v1888 = vmul.f32 %v1856, 0.2
          %v1889 = vmul.f32 %v1857, 0.2
          %v1890 = vmul.f32 %v1858, 0.2
          %v1891 = vsel %vm1859, %v1843, %v1875
          %v1892 = vsel %vm1860, %v1844, %v1876
          %v1893 = vsel %vm1861, %v1845, %v1877
          %v1894 = vsel %vm1862, %v1846, %v1878
          %v1895 = vsel %vm1863, %v1847, %v1879
          %v1896 = vsel %vm1864, %v1848, %v1880
          %v1897 = vsel %vm1865, %v1849, %v1881
          %v1898 = vsel %vm1866, %v1850, %v1882
          %v1899 = vsel %vm1867, %v1851, %v1883
          %v1900 = vsel %vm1868, %v1852, %v1884
          %v1901 = vsel %vm1869, %v1853, %v1885
          %v1902 = vsel %vm1870, %v1854, %v1886
          %v1903 = vsel %vm1871, %v1855, %v1887
          %v1904 = vsel %vm1872, %v1856, %v1888
          %v1905 = vsel %vm1873, %v1857, %v1889
          %v1906 = vsel %vm1874, %v1858, %v1890
          %v1907 = vpack.c.bf16 %v1892, %v1891
          %v1908 = vpack.c.bf16 %v1894, %v1893
          %v1909 = vpack.c.bf16 %v1896, %v1895
          %v1910 = vpack.c.bf16 %v1898, %v1897
          %v1911 = vpack.c.bf16 %v1900, %v1899
          %v1912 = vpack.c.bf16 %v1902, %v1901
          %v1913 = vpack.c.bf16 %v1904, %v1903
          %v1914 = vpack.c.bf16 %v1906, %v1905
          %v1923 = vunpack.c.l.b16 %v1907
          %v1924 = vunpack.c.h.b16 %v1907
          %v1925 = vunpack.c.l.b16 %v1908
          %v1926 = vunpack.c.h.b16 %v1908
          %v1927 = vunpack.c.l.b16 %v1909
          %v1928 = vunpack.c.h.b16 %v1909
          %v1929 = vunpack.c.l.b16 %v1910
          %v1930 = vunpack.c.h.b16 %v1910
          %v1931 = vunpack.c.l.b16 %v1911
          %v1932 = vunpack.c.h.b16 %v1911
          %v1933 = vunpack.c.l.b16 %v1912
          %v1934 = vunpack.c.h.b16 %v1912
          %v1935 = vunpack.c.l.b16 %v1913
          %v1936 = vunpack.c.h.b16 %v1913
          %v1937 = vunpack.c.l.b16 %v1914
          %v1938 = vunpack.c.h.b16 %v1914
          %v1939 = vpack.c.b16 %v1923, %v1923
          %v1940 = vpack.c.b16 %v1924, %v1924
          %v1941 = vpack.c.b16 %v1925, %v1925
          %v1942 = vpack.c.b16 %v1926, %v1926
          %v1943 = vpack.c.b16 %v1927, %v1927
          %v1944 = vpack.c.b16 %v1928, %v1928
          %v1945 = vpack.c.b16 %v1929, %v1929
          %v1946 = vpack.c.b16 %v1930, %v1930
          %v1947 = vpack.c.b16 %v1931, %v1931
          %v1948 = vpack.c.b16 %v1932, %v1932
          %v1949 = vpack.c.b16 %v1933, %v1933
          %v1950 = vpack.c.b16 %v1934, %v1934
          %v1951 = vpack.c.b16 %v1935, %v1935
          %v1952 = vpack.c.b16 %v1936, %v1936
          %v1953 = vpack.c.b16 %v1937, %v1937
          %v1954 = vpack.c.b16 %v1938, %v1938
          %1971 = vst [vmem:[%s556] sm:$0xf] %v1939
          %1972 = vst [vmem:[%s556 + $0x4] sm:$0xf] %v1940
          %1973 = vst [vmem:[%s556 + $0x8] sm:$0xf] %v1941
          %1974 = vst [vmem:[%s556 + $0xc] sm:$0xf] %v1942
          %1975 = vst [vmem:[%s556 + $0x10] sm:$0xf] %v1943
          %1976 = vst [vmem:[%s556 + $0x14] sm:$0xf] %v1944
          %1977 = vst [vmem:[%s556 + $0x18] sm:$0xf] %v1945
          %1978 = vst [vmem:[%s556 + $0x1c] sm:$0xf] %v1946
          %1979 = vst [vmem:[%s556 + $0x20] sm:$0xf] %v1947
          %1980 = vst [vmem:[%s556 + $0x24] sm:$0xf] %v1948
          %1981 = vst [vmem:[%s556 + $0x28] sm:$0xf] %v1949
          %1982 = vst [vmem:[%s556 + $0x2c] sm:$0xf] %v1950
          %1983 = vst [vmem:[%s556 + $0x30] sm:$0xf] %v1951
          %1984 = vst [vmem:[%s556 + $0x34] sm:$0xf] %v1952
          %1985 = vst [vmem:[%s556 + $0x38] sm:$0xf] %v1953
          %1986 = vst [vmem:[%s556 + $0x3c] sm:$0xf] %v1954
        $region90: #{discriminator_forward.5} parent=73 // pred_fallthru
          _
        %s1987 = sand.u32 %s152, 1
        %s1988 = sand.u32 %s152, 1
        %s1989 = smul.addr %s1988, 64
        %s1990 = scalar_lea.vmem [#allocation5], %s1989
        // Predicated region
        $region91: #{discriminator_forward.5} parent=73 // pred_check
          %p1991 = pneg %p162
        $region92: #{discriminator_forward.5} parent=73 // pred_check_branch
          %1993 = sbr.rel (%p1991) target = $region94
        $region93: #{discriminator_forward.5} parent=73 // pred_region
          %s1994 = smul.u32 16, %s20
          %s1995 = smul.addr %s1994, 2
          %s1996 = sadd.s32 %s21, %s1995
          %s1997 = smul.addr %s1996, 4
          %s1998 = scalar_lea.vmem %s4, %s1997
          // Predicated region
          $region95: #{discriminator_forward.5} parent=93 // pred_check
            _
          $region96: #{discriminator_forward.5} parent=93 // pred_check_branch
            %2000 = sbr.rel (0) target = $region98
          $region97: #{discriminator_forward.5} parent=93 // pred_region
            // Predicated region
            $region99: #{discriminator_forward.5} parent=97 // pred_check
              _
            $region100: #{discriminator_forward.5} parent=97 // pred_check_branch
              %2002 = sbr.rel target = $region102
            $region101: #{discriminator_forward.5} parent=97 // pred_region
              // Predicated region
              $region114: #{discriminator_forward.5} parent=101 // pred_check
                _
              $region115: #{discriminator_forward.5} parent=101 // pred_check_branch
                %2047 = sbr.rel (0) target = $region117
              $region116: #{discriminator_forward.5} parent=101 // pred_region
                loop: start=0, step=1, limit=1
                $region118: #{discriminator_forward.5} parent=116 // loop_pre_header
                  _
                $region119: #{discriminator_forward.5} parent=116 // loop_header
                  %s2049 = sphi 0, %s2053
                  %p2050 = scmp.ge.s32.totalorder %s2049, 1
                  %s2054 = sphi %s1990, %s1990
                  %s2055 = sphi %s1998, %s1998
                $region120: #{discriminator_forward.5} parent=116 // loop_header_branch
                  %2052 = sbr.rel (%p2050) target = $region124
                $region121: #{discriminator_forward.5} parent=116 // loop_body
                  _
                $region122: #{discriminator_forward.5} parent=116 // loop_footer
                  %s2053 = sadd.s32 1, %s2049
                $region123: #{discriminator_forward.5} parent=116 // loop_footer_branch
                  %2048 = sbr.rel target = $region119
                $region124: #{discriminator_forward.5} parent=116 // loop_exit
                  _
                loop: start=0, step=1, limit=1
                $region125: #{discriminator_forward.5} parent=116 // loop_pre_header
                  _
                $region126: #{discriminator_forward.5} parent=116 // loop_header
                  %s2058 = sphi 0, %s2062
                  %p2059 = scmp.ge.s32.totalorder %s2058, 1
                  %s2063 = sphi %s1990, %s1990
                  %s2064 = sphi %s1998, %s1998
                $region127: #{discriminator_forward.5} parent=116 // loop_header_branch
                  %2061 = sbr.rel (%p2059) target = $region131
                $region128: #{discriminator_forward.5} parent=116 // loop_body
                  %v2065 = vld [vmem:[%s2063] sm:$0xf]
                  %2066 = vst [vmem:[%s2064] sm:$0xf] %v2065
                  %v2067 = vld [vmem:[%s2063 + $0x4] sm:$0xf]
                  %2068 = vst [vmem:[%s2064 + $0x8] sm:$0xf] %v2067
                  %v2069 = vld [vmem:[%s2063 + $0x8] sm:$0xf]
                  %2070 = vst [vmem:[%s2064 + $0x10] sm:$0xf] %v2069
                  %v2071 = vld [vmem:[%s2063 + $0xc] sm:$0xf]
                  %2072 = vst [vmem:[%s2064 + $0x18] sm:$0xf] %v2071
                  %v2073 = vld [vmem:[%s2063 + $0x10] sm:$0xf]
                  %2074 = vst [vmem:[%s2064 + $0x20] sm:$0xf] %v2073
                  %v2075 = vld [vmem:[%s2063 + $0x14] sm:$0xf]
                  %2076 = vst [vmem:[%s2064 + $0x28] sm:$0xf] %v2075
                  %v2077 = vld [vmem:[%s2063 + $0x18] sm:$0xf]
                  %2078 = vst [vmem:[%s2064 + $0x30] sm:$0xf] %v2077
                  %v2079 = vld [vmem:[%s2063 + $0x1c] sm:$0xf]
                  %2080 = vst [vmem:[%s2064 + $0x38] sm:$0xf] %v2079
                  %v2081 = vld [vmem:[%s2063 + $0x20] sm:$0xf]
                  %2082 = vst [vmem:[%s2064 + $0x40] sm:$0xf] %v2081
                  %v2083 = vld [vmem:[%s2063 + $0x24] sm:$0xf]
                  %2084 = vst [vmem:[%s2064 + $0x48] sm:$0xf] %v2083
                  %v2085 = vld [vmem:[%s2063 + $0x28] sm:$0xf]
                  %2086 = vst [vmem:[%s2064 + $0x50] sm:$0xf] %v2085
                  %v2087 = vld [vmem:[%s2063 + $0x2c] sm:$0xf]
                  %2088 = vst [vmem:[%s2064 + $0x58] sm:$0xf] %v2087
                  %v2089 = vld [vmem:[%s2063 + $0x30] sm:$0xf]
                  %2090 = vst [vmem:[%s2064 + $0x60] sm:$0xf] %v2089
                  %v2091 = vld [vmem:[%s2063 + $0x34] sm:$0xf]
                  %2092 = vst [vmem:[%s2064 + $0x68] sm:$0xf] %v2091
                  %v2093 = vld [vmem:[%s2063 + $0x38] sm:$0xf]
                  %2094 = vst [vmem:[%s2064 + $0x70] sm:$0xf] %v2093
                  %v2095 = vld [vmem:[%s2063 + $0x3c] sm:$0xf]
                  %2096 = vst [vmem:[%s2064 + $0x78] sm:$0xf] %v2095
                $region129: #{discriminator_forward.5} parent=116 // loop_footer
                  %s2062 = sadd.s32 1, %s2058
                $region130: #{discriminator_forward.5} parent=116 // loop_footer_branch
                  %2057 = sbr.rel target = $region126
                $region131: #{discriminator_forward.5} parent=116 // loop_exit
                  _
              $region117: #{discriminator_forward.5} parent=101 // pred_fallthru
                _
            $region102: #{discriminator_forward.5} parent=97 // pred_fallthru
              _
            // Predicated region
            $region103: #{discriminator_forward.5} parent=97 // pred_check
              _
            $region104: #{discriminator_forward.5} parent=97 // pred_check_branch
              %2004 = sbr.rel (0) target = $region106
            $region105: #{discriminator_forward.5} parent=97 // pred_region
              loop: start=0, step=1, limit=1
              $region107: #{discriminator_forward.5} parent=105 // loop_pre_header
                _
              $region108: #{discriminator_forward.5} parent=105 // loop_header
                %s2007 = sphi 0, %s2011
                %p2008 = scmp.ge.s32.totalorder %s2007, 1
                %s2012 = sphi %s1990, %s1990
                %s2013 = sphi %s1998, %s1998
              $region109: #{discriminator_forward.5} parent=105 // loop_header_branch
                %2010 = sbr.rel (%p2008) target = $region113
              $region110: #{discriminator_forward.5} parent=105 // loop_body
                %v2014 = vld [vmem:[%s2012] sm:$0xf]
                %2015 = vst [vmem:[%s2013] sm:$0xf] %v2014
                %v2016 = vld [vmem:[%s2012 + $0x4] sm:$0xf]
                %2017 = vst [vmem:[%s2013 + $0x8] sm:$0xf] %v2016
                %v2018 = vld [vmem:[%s2012 + $0x8] sm:$0xf]
                %2019 = vst [vmem:[%s2013 + $0x10] sm:$0xf] %v2018
                %v2020 = vld [vmem:[%s2012 + $0xc] sm:$0xf]
                %2021 = vst [vmem:[%s2013 + $0x18] sm:$0xf] %v2020
                %v2022 = vld [vmem:[%s2012 + $0x10] sm:$0xf]
                %2023 = vst [vmem:[%s2013 + $0x20] sm:$0xf] %v2022
                %v2024 = vld [vmem:[%s2012 + $0x14] sm:$0xf]
                %2025 = vst [vmem:[%s2013 + $0x28] sm:$0xf] %v2024
                %v2026 = vld [vmem:[%s2012 + $0x18] sm:$0xf]
                %2027 = vst [vmem:[%s2013 + $0x30] sm:$0xf] %v2026
                %v2028 = vld [vmem:[%s2012 + $0x1c] sm:$0xf]
                %2029 = vst [vmem:[%s2013 + $0x38] sm:$0xf] %v2028
                %v2030 = vld [vmem:[%s2012 + $0x20] sm:$0xf]
                %2031 = vst [vmem:[%s2013 + $0x40] sm:$0xf] %v2030
                %v2032 = vld [vmem:[%s2012 + $0x24] sm:$0xf]
                %2033 = vst [vmem:[%s2013 + $0x48] sm:$0xf] %v2032
                %v2034 = vld [vmem:[%s2012 + $0x28] sm:$0xf]
                %2035 = vst [vmem:[%s2013 + $0x50] sm:$0xf] %v2034
                %v2036 = vld [vmem:[%s2012 + $0x2c] sm:$0xf]
                %2037 = vst [vmem:[%s2013 + $0x58] sm:$0xf] %v2036
                %v2038 = vld [vmem:[%s2012 + $0x30] sm:$0xf]
                %2039 = vst [vmem:[%s2013 + $0x60] sm:$0xf] %v2038
                %v2040 = vld [vmem:[%s2012 + $0x34] sm:$0xf]
                %2041 = vst [vmem:[%s2013 + $0x68] sm:$0xf] %v2040
                %v2042 = vld [vmem:[%s2012 + $0x38] sm:$0xf]
                %2043 = vst [vmem:[%s2013 + $0x70] sm:$0xf] %v2042
                %v2044 = vld [vmem:[%s2012 + $0x3c] sm:$0xf]
                %2045 = vst [vmem:[%s2013 + $0x78] sm:$0xf] %v2044
              $region111: #{discriminator_forward.5} parent=105 // loop_footer
                %s2011 = sadd.s32 1, %s2007
              $region112: #{discriminator_forward.5} parent=105 // loop_footer_branch
                %2006 = sbr.rel target = $region108
              $region113: #{discriminator_forward.5} parent=105 // loop_exit
                _
            $region106: #{discriminator_forward.5} parent=97 // pred_fallthru
              _
          $region98: #{discriminator_forward.5} parent=93 // pred_fallthru
            _
          %2097 = vnop
        $region94: #{discriminator_forward.5} parent=73 // pred_fallthru
          _
      $region74: #{discriminator_forward.5} parent=5 // pred_fallthru
        _
      %p2098 = scmp.le.s32.totalorder 2, %s10
      // Predicated region
      $region132: #{discriminator_forward.5} parent=5 // pred_check
        %p2099 = pneg %p2098
      $region133: #{discriminator_forward.5} parent=5 // pred_check_branch
        %2101 = sbr.rel (%p2099) target = $region135
      $region134: #{discriminator_forward.5} parent=5 // pred_region
        %s2102 = ssub.s32 %s10, 2
        // Predicated region
        $region136: #{discriminator_forward.5} parent=134 // pred_check
          %p2103 = pneg %p168
        $region137: #{discriminator_forward.5} parent=134 // pred_check_branch
          %2105 = sbr.rel (%p2103) target = $region139
        $region138: #{discriminator_forward.5} parent=134 // pred_region
          %s2106 = sand.u32 %s153, 1
          %s2107 = sand.u32 %s153, 1
          %s2108 = smul.addr %s2107, 64
          %s2109 = scalar_lea.vmem [#allocation5], %s2108
        $region139: #{discriminator_forward.5} parent=134 // pred_fallthru
          _
      $region135: #{discriminator_forward.5} parent=5 // pred_fallthru
        _
    $region6: #{discriminator_forward.5} parent=1 // loop_footer
      %s14 = sadd.s32 1, %s10
    $region7: #{discriminator_forward.5} parent=1 // loop_footer_branch
      %9 = sbr.rel target = $region3
    $region8: #{discriminator_forward.5} parent=1 // loop_exit
      _

// kernel: discriminator_forward.6
$region0: #{discriminator_forward.6}
  #allocation0 [shape = 'u32[]', space=smem, size = 0x4, offset = 0x4, fixed_abs, tag = 'smem constant byte address 0x4 - core index']
  #allocation1 [shape = 'u32[144,128]{1,0:T(1,128)}', space=vmem, size = 0x12000, scoped, tag = 'internal scratch']
  #allocation2 [shape = 'f32[32,256]{1,0:T(8,128)}', space=vmem, size = 0x8000, scoped, tag = 'scratch operand']
  %s0 = inlined_call_operand.vmem [shape: bf16[32,4096], index: 0, kind: input, shape index: {}]
  %s1 = inlined_call_operand.vmem [shape: bf16[512,4096], index: 1, kind: input, shape index: {}]
  %s2 = inlined_call_operand.vmem [shape: f32[1,512], index: 2, kind: input, shape index: {}]
  %s3 = inlined_call_operand.vmem [shape: f32[1,512], index: 3, kind: input, shape index: {}]
  %s4 = inlined_call_operand.vmem [shape: bf16[32,512], index: 4, kind: output, shape index: {}]
  %s5 = sld [smem:[#allocation0]]
  $region137: #{discriminator_forward.6} parent=0
    _
  %s7 = ssub.s32 1, %s5
  %s8 = scalar_select 0, %s7, %s5
  $region1: #{discriminator_forward.6} parent=0
    #allocation3 [shape = 'u8[131072]{0}', space=vmem, size = 0x20000, scoped, tag = 'input window, operand 0']
    #allocation4 [shape = 'u8[1048576]{0}', space=vmem, size = 0x100000, scoped, tag = 'input window, operand 1']
    #allocation5 [shape = 'u8[32768]{0}', space=vmem, size = 0x8000, scoped, tag = 'output window, operand 0']
    loop: start=0, step=1, limit=10
    $region2: #{discriminator_forward.6} parent=1 // loop_pre_header
      _
    $region3: #{discriminator_forward.6} parent=1 // loop_header
      %s10 = sphi 0, %s14
      %p11 = scmp.ge.s32.totalorder %s10, 10
      %s17 = sphi 0, %s36
      %s18 = sphi 0, %s32
      %s19 = sphi 0, %s28
      %s20 = sphi 0, %s17
      %s21 = sphi 0, %s18
      %s22 = sphi 0, %s19
      %s23 = sphi 0, %s20
      %s24 = sphi 0, %s21
      %s25 = sphi 0, %s22
      %s41 = sphi 0, %s43
      %s44 = sphi 0, %s41
      %s45 = sphi 0, %s44
      %s61 = sphi 0, %s45
      %s69 = sphi 0, %s71
      %s72 = sphi 0, %s69
      %s73 = sphi 0, %s72
      %s89 = sphi 0, %s73
      %s95 = sphi 0, %s97
      %s98 = sphi 0, %s95
      %s99 = sphi 0, %s98
      %s115 = sphi 0, %s99
      %s121 = sphi 0, %s123
      %s124 = sphi 0, %s121
      %s125 = sphi 0, %s124
      %s141 = sphi 0, %s125
      %s149 = sphi 0, %s151
      %s152 = sphi 0, %s149
      %s153 = sphi 0, %s152
      %s169 = sphi 0, %s153
    $region4: #{discriminator_forward.6} parent=1 // loop_header_branch
      %13 = sbr.rel (%p11) target = $region8
    $region5: #{discriminator_forward.6} parent=1 // loop_body
      %s15 = ssub.s32 %s10, 1
      %s16 = ssub.s32 %s10, 2
      %s26 = sadd.s32 1, %s19
      %p27 = scmp.ge.s32.totalorder %s26, 4
      %s28 = scalar_select %p27, 0, %s26
      %s29 = sadd.s32 1, %s18
      %s30 = scalar_select %p27, %s29, %s18
      %p31 = scmp.ge.s32.totalorder %s30, 2
      %s32 = scalar_select %p31, 0, %s30
      %s33 = sadd.s32 1, %s17
      %s34 = scalar_select %p31, %s33, %s17
      %p35 = scmp.ge.s32.totalorder %s34, 1
      %s36 = scalar_select %p35, 0, %s34
      %s37 = ssub.s32 %s17, %s36
      %s38 = ssub.s32 %s19, %s28
      %s39 = sor.u32 %s37, %s38
      %p40 = scmp.eq.s32.totalorder %s39, 0
      %s42 = sadd.s32 %s41, 1
      %s43 = scalar_select %p40, %s41, %s42
      %p46 = pneg %p40
      %p47 = scmp.eq.s32.totalorder %s10, 7
      %p48 = por %p46, %p47
      %p49 = scmp.ne.s32.totalorder %s41, %s44
      %p50 = scmp.eq.s32.totalorder %s10, 0
      %p51 = por %p49, %p50
      %p52 = scmp.ne.s32.totalorder %s41, %s44
      %p53 = scmp.eq.s32.totalorder %s15, 7
      %p54 = por %p52, %p53
      %p55 = scmp.ne.s32.totalorder %s44, %s45
      %p56 = scmp.eq.s32.totalorder %s15, 0
      %p57 = por %p55, %p56
      %p58 = scmp.ne.s32.totalorder %s44, %s45
      %p59 = scmp.eq.s32.totalorder %s16, 7
      %p60 = por %p58, %p59
      %p62 = scmp.ne.s32.totalorder %s45, %s61
      %p63 = scmp.eq.s32.totalorder %s16, 0
      %p64 = por %p62, %p63
      %s65 = ssub.s32 %s18, %s32
      %s66 = ssub.s32 %s19, %s28
      %s67 = sor.u32 %s65, %s66
      %p68 = scmp.eq.s32.totalorder %s67, 0
      %s70 = sadd.s32 %s69, 1
      %s71 = scalar_select %p68, %s69, %s70
      %p74 = pneg %p68
      %p75 = scmp.eq.s32.totalorder %s10, 7
      %p76 = por %p74, %p75
      %p77 = scmp.ne.s32.totalorder %s69, %s72
      %p78 = scmp.eq.s32.totalorder %s10, 0
      %p79 = por %p77, %p78
      %p80 = scmp.ne.s32.totalorder %s69, %s72
      %p81 = scmp.eq.s32.totalorder %s15, 7
      %p82 = por %p80, %p81
      %p83 = scmp.ne.s32.totalorder %s72, %s73
      %p84 = scmp.eq.s32.totalorder %s15, 0
      %p85 = por %p83, %p84
      %p86 = scmp.ne.s32.totalorder %s72, %s73
      %p87 = scmp.eq.s32.totalorder %s16, 7
      %p88 = por %p86, %p87
      %p90 = scmp.ne.s32.totalorder %s73, %s89
      %p91 = scmp.eq.s32.totalorder %s16, 0
      %p92 = por %p90, %p91
      %s93 = ssub.s32 %s18, %s32
      %p94 = scmp.eq.s32.totalorder %s93, 0
      %s96 = sadd.s32 %s95, 1
      %s97 = scalar_select %p94, %s95, %s96
      %p100 = pneg %p94
      %p101 = scmp.eq.s32.totalorder %s10, 7
      %p102 = por %p100, %p101
      %p103 = scmp.ne.s32.totalorder %s95, %s98
      %p104 = scmp.eq.s32.totalorder %s10, 0
      %p105 = por %p103, %p104
      %p106 = scmp.ne.s32.totalorder %s95, %s98
      %p107 = scmp.eq.s32.totalorder %s15, 7
      %p108 = por %p106, %p107
      %p109 = scmp.ne.s32.totalorder %s98, %s99
      %p110 = scmp.eq.s32.totalorder %s15, 0
      %p111 = por %p109, %p110
      %p112 = scmp.ne.s32.totalorder %s98, %s99
      %p113 = scmp.eq.s32.totalorder %s16, 7
      %p114 = por %p112, %p113
      %p116 = scmp.ne.s32.totalorder %s99, %s115
      %p117 = scmp.eq.s32.totalorder %s16, 0
      %p118 = por %p116, %p117
      %s119 = ssub.s32 %s18, %s32
      %p120 = scmp.eq.s32.totalorder %s119, 0
      %s122 = sadd.s32 %s121, 1
      %s123 = scalar_select %p120, %s121, %s122
      %p126 = pneg %p120
      %p127 = scmp.eq.s32.totalorder %s10, 7
      %p128 = por %p126, %p127
      %p129 = scmp.ne.s32.totalorder %s121, %s124
      %p130 = scmp.eq.s32.totalorder %s10, 0
      %p131 = por %p129, %p130
      %p132 = scmp.ne.s32.totalorder %s121, %s124
      %p133 = scmp.eq.s32.totalorder %s15, 7
      %p134 = por %p132, %p133
      %p135 = scmp.ne.s32.totalorder %s124, %s125
      %p136 = scmp.eq.s32.totalorder %s15, 0
      %p137 = por %p135, %p136
      %p138 = scmp.ne.s32.totalorder %s124, %s125
      %p139 = scmp.eq.s32.totalorder %s16, 7
      %p140 = por %p138, %p139
      %p142 = scmp.ne.s32.totalorder %s125, %s141
      %p143 = scmp.eq.s32.totalorder %s16, 0
      %p144 = por %p142, %p143
      %s145 = ssub.s32 %s17, %s36
      %s146 = ssub.s32 %s18, %s32
      %s147 = sor.u32 %s145, %s146
      %p148 = scmp.eq.s32.totalorder %s147, 0
      %s150 = sadd.s32 %s149, 1
      %s151 = scalar_select %p148, %s149, %s150
      %p154 = pneg %p148
      %p155 = scmp.eq.s32.totalorder %s10, 7
      %p156 = por %p154, %p155
      %p157 = scmp.ne.s32.totalorder %s149, %s152
      %p158 = scmp.eq.s32.totalorder %s10, 0
      %p159 = por %p157, %p158
      %p160 = scmp.ne.s32.totalorder %s149, %s152
      %p161 = scmp.eq.s32.totalorder %s15, 7
      %p162 = por %p160, %p161
      %p163 = scmp.ne.s32.totalorder %s152, %s153
      %p164 = scmp.eq.s32.totalorder %s15, 0
      %p165 = por %p163, %p164
      %p166 = scmp.ne.s32.totalorder %s152, %s153
      %p167 = scmp.eq.s32.totalorder %s16, 7
      %p168 = por %p166, %p167
      %p170 = scmp.ne.s32.totalorder %s153, %s169
      %p171 = scmp.eq.s32.totalorder %s16, 0
      %p172 = por %p170, %p171
      %p173 = scmp.le.s32.totalorder 1, %s10
      %p174 = scmp.lt.s32.totalorder %s10, 9
      %p175 = pnand %p173, %p174
      %p176 = pneg %p175
      // Predicated region
      $region9: #{discriminator_forward.6} parent=5 // pred_check
        _
      $region10: #{discriminator_forward.6} parent=5 // pred_check_branch
        %178 = sbr.rel (%p175) target = $region12
      $region11: #{discriminator_forward.6} parent=5 // pred_region
        %s179 = ssub.s32 %s10, 1
      $region12: #{discriminator_forward.6} parent=5 // pred_fallthru
        _
      %p180 = scmp.lt.s32.totalorder %s10, 8
      // Predicated region
      $region13: #{discriminator_forward.6} parent=5 // pred_check
        %p181 = pneg %p180
      $region14: #{discriminator_forward.6} parent=5 // pred_check_branch
        %183 = sbr.rel (%p181) target = $region16
      $region15: #{discriminator_forward.6} parent=5 // pred_region
        // Predicated region
        $region17: #{discriminator_forward.6} parent=15 // pred_check
          %p184 = pneg %p51
        $region18: #{discriminator_forward.6} parent=15 // pred_check_branch
          %186 = sbr.rel (%p184) target = $region20
        $region19: #{discriminator_forward.6} parent=15 // pred_region
          %s187 = sand.u32 %s41, 1
          %s188 = sand.u32 %s41, 1
          %s189 = smul.addr %s188, 128
          %s190 = scalar_lea.vmem [#allocation3], %s189
          %s191 = smul.u32 4, %s17
          %s192 = smul.u32 8, %s19
          %s193 = smul.addr %s191, 32
          %s194 = sadd.s32 %s192, %s193
          %s195 = smul.addr %s194, 4
          %s196 = scalar_lea.vmem %s0, %s195
          // Predicated region
          $region21: #{discriminator_forward.6} parent=19 // pred_check
            _
          $region22: #{discriminator_forward.6} parent=19 // pred_check_branch
            %198 = sbr.rel (0) target = $region24
          $region23: #{discriminator_forward.6} parent=19 // pred_region
            // Predicated region
            $region25: #{discriminator_forward.6} parent=23 // pred_check
              _
            $region26: #{discriminator_forward.6} parent=23 // pred_check_branch
              %200 = sbr.rel (0) target = $region28
            $region27: #{discriminator_forward.6} parent=23 // pred_region
              loop: start=0, step=1, limit=1
              $region29: #{discriminator_forward.6} parent=27 // loop_pre_header
                _
              $region30: #{discriminator_forward.6} parent=27 // loop_header
                %s202 = sphi 0, %s206
                %p203 = scmp.ge.s32.totalorder %s202, 1
                %s207 = sphi %s196, %s196
                %s208 = sphi %s190, %s190
              $region31: #{discriminator_forward.6} parent=27 // loop_header_branch
                %205 = sbr.rel (%p203) target = $region35
              $region32: #{discriminator_forward.6} parent=27 // loop_body
                %v209 = vld [vmem:[%s207] sm:$0xff]
                %210 = vst [vmem:[%s208] sm:$0xff] %v209
                %v211 = vld [vmem:[%s207 + $0x8] sm:$0xff]
                %212 = vst [vmem:[%s208 + $0x8] sm:$0xff] %v211
                %v213 = vld [vmem:[%s207 + $0x10] sm:$0xff]
                %214 = vst [vmem:[%s208 + $0x10] sm:$0xff] %v213
                %v215 = vld [vmem:[%s207 + $0x18] sm:$0xff]
                %216 = vst [vmem:[%s208 + $0x18] sm:$0xff] %v215
                %v217 = vld [vmem:[%s207 + $0x80] sm:$0xff]
                %218 = vst [vmem:[%s208 + $0x20] sm:$0xff] %v217
                %v219 = vld [vmem:[%s207 + $0x88] sm:$0xff]
                %220 = vst [vmem:[%s208 + $0x28] sm:$0xff] %v219
                %v221 = vld [vmem:[%s207 + $0x90] sm:$0xff]
                %222 = vst [vmem:[%s208 + $0x30] sm:$0xff] %v221
                %v223 = vld [vmem:[%s207 + $0x98] sm:$0xff]
                %224 = vst [vmem:[%s208 + $0x38] sm:$0xff] %v223
                %v225 = vld [vmem:[%s207 + $0x100] sm:$0xff]
                %226 = vst [vmem:[%s208 + $0x40] sm:$0xff] %v225
                %v227 = vld [vmem:[%s207 + $0x108] sm:$0xff]
                %228 = vst [vmem:[%s208 + $0x48] sm:$0xff] %v227
                %v229 = vld [vmem:[%s207 + $0x110] sm:$0xff]
                %230 = vst [vmem:[%s208 + $0x50] sm:$0xff] %v229
                %v231 = vld [vmem:[%s207 + $0x118] sm:$0xff]
                %232 = vst [vmem:[%s208 + $0x58] sm:$0xff] %v231
                %v233 = vld [vmem:[%s207 + $0x180] sm:$0xff]
                %234 = vst [vmem:[%s208 + $0x60] sm:$0xff] %v233
                %v235 = vld [vmem:[%s207 + $0x188] sm:$0xff]
                %236 = vst [vmem:[%s208 + $0x68] sm:$0xff] %v235
                %v237 = vld [vmem:[%s207 + $0x190] sm:$0xff]
                %238 = vst [vmem:[%s208 + $0x70] sm:$0xff] %v237
                %v239 = vld [vmem:[%s207 + $0x198] sm:$0xff]
                %240 = vst [vmem:[%s208 + $0x78] sm:$0xff] %v239
              $region33: #{discriminator_forward.6} parent=27 // loop_footer
                %s206 = sadd.s32 1, %s202
              $region34: #{discriminator_forward.6} parent=27 // loop_footer_branch
                %201 = sbr.rel target = $region30
              $region35: #{discriminator_forward.6} parent=27 // loop_exit
                _
            $region28: #{discriminator_forward.6} parent=23 // pred_fallthru
              _
            // Predicated region
            $region36: #{discriminator_forward.6} parent=23 // pred_check
              _
            $region37: #{discriminator_forward.6} parent=23 // pred_check_branch
              %242 = sbr.rel target = $region39
            $region38: #{discriminator_forward.6} parent=23 // pred_region
              _
            $region39: #{discriminator_forward.6} parent=23 // pred_fallthru
              _
          $region24: #{discriminator_forward.6} parent=19 // pred_fallthru
            _
          %243 = vnop
        $region20: #{discriminator_forward.6} parent=15 // pred_fallthru
          _
        // Predicated region
        $region40: #{discriminator_forward.6} parent=15 // pred_check
          %p244 = pneg %p79
        $region41: #{discriminator_forward.6} parent=15 // pred_check_branch
          %246 = sbr.rel (%p244) target = $region43
        $region42: #{discriminator_forward.6} parent=15 // pred_region
          %s247 = sand.u32 %s69, 1
          %s248 = sand.u32 %s69, 1
          %s249 = smul.addr %s248, 1024
          %s250 = scalar_lea.vmem [#allocation4], %s249
          %s251 = smul.u32 32, %s18
          %s252 = smul.u32 8, %s19
          %s253 = smul.addr %s251, 32
          %s254 = sadd.s32 %s252, %s253
          %s255 = smul.addr %s254, 4
          %s256 = scalar_lea.vmem %s1, %s255
          // Predicated region
          $region44: #{discriminator_forward.6} parent=42 // pred_check
            _
          $region45: #{discriminator_forward.6} parent=42 // pred_check_branch
            %258 = sbr.rel (0) target = $region47
          $region46: #{discriminator_forward.6} parent=42 // pred_region
            // Predicated region
            $region48: #{discriminator_forward.6} parent=46 // pred_check
              _
            $region49: #{discriminator_forward.6} parent=46 // pred_check_branch
              %260 = sbr.rel (0) target = $region51
            $region50: #{discriminator_forward.6} parent=46 // pred_region
              loop: start=0, step=1, limit=1
              $region52: #{discriminator_forward.6} parent=50 // loop_pre_header
                _
              $region53: #{discriminator_forward.6} parent=50 // loop_header
                %s262 = sphi 0, %s266
                %p263 = scmp.ge.s32.totalorder %s262, 1
                %s267 = sphi %s256, %s256
                %s268 = sphi %s250, %s250
              $region54: #{discriminator_forward.6} parent=50 // loop_header_branch
                %265 = sbr.rel (%p263) target = $region58
              $region55: #{discriminator_forward.6} parent=50 // loop_body
                %v269 = vld [vmem:[%s267] sm:$0xff]
                %270 = vst [vmem:[%s268] sm:$0xff] %v269
                %v271 = vld [vmem:[%s267 + $0x8] sm:$0xff]
                %272 = vst [vmem:[%s268 + $0x8] sm:$0xff] %v271
                %v273 = vld [vmem:[%s267 + $0x10] sm:$0xff]
                %274 = vst [vmem:[%s268 + $0x10] sm:$0xff] %v273
                %v275 = vld [vmem:[%s267 + $0x18] sm:$0xff]
                %276 = vst [vmem:[%s268 + $0x18] sm:$0xff] %v275
                %v277 = vld [vmem:[%s267 + $0x80] sm:$0xff]
                %278 = vst [vmem:[%s268 + $0x20] sm:$0xff] %v277
                %v279 = vld [vmem:[%s267 + $0x88] sm:$0xff]
                %280 = vst [vmem:[%s268 + $0x28] sm:$0xff] %v279
                %v281 = vld [vmem:[%s267 + $0x90] sm:$0xff]
                %282 = vst [vmem:[%s268 + $0x30] sm:$0xff] %v281
                %v283 = vld [vmem:[%s267 + $0x98] sm:$0xff]
                %284 = vst [vmem:[%s268 + $0x38] sm:$0xff] %v283
                %v285 = vld [vmem:[%s267 + $0x100] sm:$0xff]
                %286 = vst [vmem:[%s268 + $0x40] sm:$0xff] %v285
                %v287 = vld [vmem:[%s267 + $0x108] sm:$0xff]
                %288 = vst [vmem:[%s268 + $0x48] sm:$0xff] %v287
                %v289 = vld [vmem:[%s267 + $0x110] sm:$0xff]
                %290 = vst [vmem:[%s268 + $0x50] sm:$0xff] %v289
                %v291 = vld [vmem:[%s267 + $0x118] sm:$0xff]
                %292 = vst [vmem:[%s268 + $0x58] sm:$0xff] %v291
                %v293 = vld [vmem:[%s267 + $0x180] sm:$0xff]
                %294 = vst [vmem:[%s268 + $0x60] sm:$0xff] %v293
                %v295 = vld [vmem:[%s267 + $0x188] sm:$0xff]
                %296 = vst [vmem:[%s268 + $0x68] sm:$0xff] %v295
                %v297 = vld [vmem:[%s267 + $0x190] sm:$0xff]
                %298 = vst [vmem:[%s268 + $0x70] sm:$0xff] %v297
                %v299 = vld [vmem:[%s267 + $0x198] sm:$0xff]
                %300 = vst [vmem:[%s268 + $0x78] sm:$0xff] %v299
                %v301 = vld [vmem:[%s267 + $0x200] sm:$0xff]
                %302 = vst [vmem:[%s268 + $0x80] sm:$0xff] %v301
                %v303 = vld [vmem:[%s267 + $0x208] sm:$0xff]
                %304 = vst [vmem:[%s268 + $0x88] sm:$0xff] %v303
                %v305 = vld [vmem:[%s267 + $0x210] sm:$0xff]
                %306 = vst [vmem:[%s268 + $0x90] sm:$0xff] %v305
                %v307 = vld [vmem:[%s267 + $0x218] sm:$0xff]
                %308 = vst [vmem:[%s268 + $0x98] sm:$0xff] %v307
                %v309 = vld [vmem:[%s267 + $0x280] sm:$0xff]
                %310 = vst [vmem:[%s268 + $0xa0] sm:$0xff] %v309
                %v311 = vld [vmem:[%s267 + $0x288] sm:$0xff]
                %312 = vst [vmem:[%s268 + $0xa8] sm:$0xff] %v311
                %v313 = vld [vmem:[%s267 + $0x290] sm:$0xff]
                %314 = vst [vmem:[%s268 + $0xb0] sm:$0xff] %v313
                %v315 = vld [vmem:[%s267 + $0x298] sm:$0xff]
                %316 = vst [vmem:[%s268 + $0xb8] sm:$0xff] %v315
                %v317 = vld [vmem:[%s267 + $0x300] sm:$0xff]
                %318 = vst [vmem:[%s268 + $0xc0] sm:$0xff] %v317
                %v319 = vld [vmem:[%s267 + $0x308] sm:$0xff]
                %320 = vst [vmem:[%s268 + $0xc8] sm:$0xff] %v319
                %v321 = vld [vmem:[%s267 + $0x310] sm:$0xff]
                %322 = vst [vmem:[%s268 + $0xd0] sm:$0xff] %v321
                %v323 = vld [vmem:[%s267 + $0x318] sm:$0xff]
                %324 = vst [vmem:[%s268 + $0xd8] sm:$0xff] %v323
                %v325 = vld [vmem:[%s267 + $0x380] sm:$0xff]
                %326 = vst [vmem:[%s268 + $0xe0] sm:$0xff] %v325
                %v327 = vld [vmem:[%s267 + $0x388] sm:$0xff]
                %328 = vst [vmem:[%s268 + $0xe8] sm:$0xff] %v327
                %v329 = vld [vmem:[%s267 + $0x390] sm:$0xff]
                %330 = vst [vmem:[%s268 + $0xf0] sm:$0xff] %v329
                %v331 = vld [vmem:[%s267 + $0x398] sm:$0xff]
                %332 = vst [vmem:[%s268 + $0xf8] sm:$0xff] %v331
                %v333 = vld [vmem:[%s267 + $0x400] sm:$0xff]
                %334 = vst [vmem:[%s268 + $0x100] sm:$0xff] %v333
                %v335 = vld [vmem:[%s267 + $0x408] sm:$0xff]
                %336 = vst [vmem:[%s268 + $0x108] sm:$0xff] %v335
                %v337 = vld [vmem:[%s267 + $0x410] sm:$0xff]
                %338 = vst [vmem:[%s268 + $0x110] sm:$0xff] %v337
                %v339 = vld [vmem:[%s267 + $0x418] sm:$0xff]
                %340 = vst [vmem:[%s268 + $0x118] sm:$0xff] %v339
                %v341 = vld [vmem:[%s267 + $0x480] sm:$0xff]
                %342 = vst [vmem:[%s268 + $0x120] sm:$0xff] %v341
                %v343 = vld [vmem:[%s267 + $0x488] sm:$0xff]
                %344 = vst [vmem:[%s268 + $0x128] sm:$0xff] %v343
                %v345 = vld [vmem:[%s267 + $0x490] sm:$0xff]
                %346 = vst [vmem:[%s268 + $0x130] sm:$0xff] %v345
                %v347 = vld [vmem:[%s267 + $0x498] sm:$0xff]
                %348 = vst [vmem:[%s268 + $0x138] sm:$0xff] %v347
                %v349 = vld [vmem:[%s267 + $0x500] sm:$0xff]
                %350 = vst [vmem:[%s268 + $0x140] sm:$0xff] %v349
                %v351 = vld [vmem:[%s267 + $0x508] sm:$0xff]
                %352 = vst [vmem:[%s268 + $0x148] sm:$0xff] %v351
                %v353 = vld [vmem:[%s267 + $0x510] sm:$0xff]
                %354 = vst [vmem:[%s268 + $0x150] sm:$0xff] %v353
                %v355 = vld [vmem:[%s267 + $0x518] sm:$0xff]
                %356 = vst [vmem:[%s268 + $0x158] sm:$0xff] %v355
                %v357 = vld [vmem:[%s267 + $0x580] sm:$0xff]
                %358 = vst [vmem:[%s268 + $0x160] sm:$0xff] %v357
                %v359 = vld [vmem:[%s267 + $0x588] sm:$0xff]
                %360 = vst [vmem:[%s268 + $0x168] sm:$0xff] %v359
                %v361 = vld [vmem:[%s267 + $0x590] sm:$0xff]
                %362 = vst [vmem:[%s268 + $0x170] sm:$0xff] %v361
                %v363 = vld [vmem:[%s267 + $0x598] sm:$0xff]
                %364 = vst [vmem:[%s268 + $0x178] sm:$0xff] %v363
                %v365 = vld [vmem:[%s267 + $0x600] sm:$0xff]
                %366 = vst [vmem:[%s268 + $0x180] sm:$0xff] %v365
                %v367 = vld [vmem:[%s267 + $0x608] sm:$0xff]
                %368 = vst [vmem:[%s268 + $0x188] sm:$0xff] %v367
                %v369 = vld [vmem:[%s267 + $0x610] sm:$0xff]
                %370 = vst [vmem:[%s268 + $0x190] sm:$0xff] %v369
                %v371 = vld [vmem:[%s267 + $0x618] sm:$0xff]
                %372 = vst [vmem:[%s268 + $0x198] sm:$0xff] %v371
                %v373 = vld [vmem:[%s267 + $0x680] sm:$0xff]
                %374 = vst [vmem:[%s268 + $0x1a0] sm:$0xff] %v373
                %v375 = vld [vmem:[%s267 + $0x688] sm:$0xff]
                %376 = vst [vmem:[%s268 + $0x1a8] sm:$0xff] %v375
                %v377 = vld [vmem:[%s267 + $0x690] sm:$0xff]
                %378 = vst [vmem:[%s268 + $0x1b0] sm:$0xff] %v377
                %v379 = vld [vmem:[%s267 + $0x698] sm:$0xff]
                %380 = vst [vmem:[%s268 + $0x1b8] sm:$0xff] %v379
                %v381 = vld [vmem:[%s267 + $0x700] sm:$0xff]
                %382 = vst [vmem:[%s268 + $0x1c0] sm:$0xff] %v381
                %v383 = vld [vmem:[%s267 + $0x708] sm:$0xff]
                %384 = vst [vmem:[%s268 + $0x1c8] sm:$0xff] %v383
                %v385 = vld [vmem:[%s267 + $0x710] sm:$0xff]
                %386 = vst [vmem:[%s268 + $0x1d0] sm:$0xff] %v385
                %v387 = vld [vmem:[%s267 + $0x718] sm:$0xff]
                %388 = vst [vmem:[%s268 + $0x1d8] sm:$0xff] %v387
                %v389 = vld [vmem:[%s267 + $0x780] sm:$0xff]
                %390 = vst [vmem:[%s268 + $0x1e0] sm:$0xff] %v389
                %v391 = vld [vmem:[%s267 + $0x788] sm:$0xff]
                %392 = vst [vmem:[%s268 + $0x1e8] sm:$0xff] %v391
                %v393 = vld [vmem:[%s267 + $0x790] sm:$0xff]
                %394 = vst [vmem:[%s268 + $0x1f0] sm:$0xff] %v393
                %v395 = vld [vmem:[%s267 + $0x798] sm:$0xff]
                %396 = vst [vmem:[%s268 + $0x1f8] sm:$0xff] %v395
                %v397 = vld [vmem:[%s267 + $0x800] sm:$0xff]
                %398 = vst [vmem:[%s268 + $0x200] sm:$0xff] %v397
                %v399 = vld [vmem:[%s267 + $0x808] sm:$0xff]
                %400 = vst [vmem:[%s268 + $0x208] sm:$0xff] %v399
                %v401 = vld [vmem:[%s267 + $0x810] sm:$0xff]
                %402 = vst [vmem:[%s268 + $0x210] sm:$0xff] %v401
                %v403 = vld [vmem:[%s267 + $0x818] sm:$0xff]
                %404 = vst [vmem:[%s268 + $0x218] sm:$0xff] %v403
                %v405 = vld [vmem:[%s267 + $0x880] sm:$0xff]
                %406 = vst [vmem:[%s268 + $0x220] sm:$0xff] %v405
                %v407 = vld [vmem:[%s267 + $0x888] sm:$0xff]
                %408 = vst [vmem:[%s268 + $0x228] sm:$0xff] %v407
                %v409 = vld [vmem:[%s267 + $0x890] sm:$0xff]
                %410 = vst [vmem:[%s268 + $0x230] sm:$0xff] %v409
                %v411 = vld [vmem:[%s267 + $0x898] sm:$0xff]
                %412 = vst [vmem:[%s268 + $0x238] sm:$0xff] %v411
                %v413 = vld [vmem:[%s267 + $0x900] sm:$0xff]
                %414 = vst [vmem:[%s268 + $0x240] sm:$0xff] %v413
                %v415 = vld [vmem:[%s267 + $0x908] sm:$0xff]
                %416 = vst [vmem:[%s268 + $0x248] sm:$0xff] %v415
                %v417 = vld [vmem:[%s267 + $0x910] sm:$0xff]
                %418 = vst [vmem:[%s268 + $0x250] sm:$0xff] %v417
                %v419 = vld [vmem:[%s267 + $0x918] sm:$0xff]
                %420 = vst [vmem:[%s268 + $0x258] sm:$0xff] %v419
                %v421 = vld [vmem:[%s267 + $0x980] sm:$0xff]
                %422 = vst [vmem:[%s268 + $0x260] sm:$0xff] %v421
                %v423 = vld [vmem:[%s267 + $0x988] sm:$0xff]
                %424 = vst [vmem:[%s268 + $0x268] sm:$0xff] %v423
                %v425 = vld [vmem:[%s267 + $0x990] sm:$0xff]
                %426 = vst [vmem:[%s268 + $0x270] sm:$0xff] %v425
                %v427 = vld [vmem:[%s267 + $0x998] sm:$0xff]
                %428 = vst [vmem:[%s268 + $0x278] sm:$0xff] %v427
                %v429 = vld [vmem:[%s267 + $0xa00] sm:$0xff]
                %430 = vst [vmem:[%s268 + $0x280] sm:$0xff] %v429
                %v431 = vld [vmem:[%s267 + $0xa08] sm:$0xff]
                %432 = vst [vmem:[%s268 + $0x288] sm:$0xff] %v431
                %v433 = vld [vmem:[%s267 + $0xa10] sm:$0xff]
                %434 = vst [vmem:[%s268 + $0x290] sm:$0xff] %v433
                %v435 = vld [vmem:[%s267 + $0xa18] sm:$0xff]
                %436 = vst [vmem:[%s268 + $0x298] sm:$0xff] %v435
                %v437 = vld [vmem:[%s267 + $0xa80] sm:$0xff]
                %438 = vst [vmem:[%s268 + $0x2a0] sm:$0xff] %v437
                %v439 = vld [vmem:[%s267 + $0xa88] sm:$0xff]
                %440 = vst [vmem:[%s268 + $0x2a8] sm:$0xff] %v439
                %v441 = vld [vmem:[%s267 + $0xa90] sm:$0xff]
                %442 = vst [vmem:[%s268 + $0x2b0] sm:$0xff] %v441
                %v443 = vld [vmem:[%s267 + $0xa98] sm:$0xff]
                %444 = vst [vmem:[%s268 + $0x2b8] sm:$0xff] %v443
                %v445 = vld [vmem:[%s267 + $0xb00] sm:$0xff]
                %446 = vst [vmem:[%s268 + $0x2c0] sm:$0xff] %v445
                %v447 = vld [vmem:[%s267 + $0xb08] sm:$0xff]
                %448 = vst [vmem:[%s268 + $0x2c8] sm:$0xff] %v447
                %v449 = vld [vmem:[%s267 + $0xb10] sm:$0xff]
                %450 = vst [vmem:[%s268 + $0x2d0] sm:$0xff] %v449
                %v451 = vld [vmem:[%s267 + $0xb18] sm:$0xff]
                %452 = vst [vmem:[%s268 + $0x2d8] sm:$0xff] %v451
                %v453 = vld [vmem:[%s267 + $0xb80] sm:$0xff]
                %454 = vst [vmem:[%s268 + $0x2e0] sm:$0xff] %v453
                %v455 = vld [vmem:[%s267 + $0xb88] sm:$0xff]
                %456 = vst [vmem:[%s268 + $0x2e8] sm:$0xff] %v455
                %v457 = vld [vmem:[%s267 + $0xb90] sm:$0xff]
                %458 = vst [vmem:[%s268 + $0x2f0] sm:$0xff] %v457
                %v459 = vld [vmem:[%s267 + $0xb98] sm:$0xff]
                %460 = vst [vmem:[%s268 + $0x2f8] sm:$0xff] %v459
                %v461 = vld [vmem:[%s267 + $0xc00] sm:$0xff]
                %462 = vst [vmem:[%s268 + $0x300] sm:$0xff] %v461
                %v463 = vld [vmem:[%s267 + $0xc08] sm:$0xff]
                %464 = vst [vmem:[%s268 + $0x308] sm:$0xff] %v463
                %v465 = vld [vmem:[%s267 + $0xc10] sm:$0xff]
                %466 = vst [vmem:[%s268 + $0x310] sm:$0xff] %v465
                %v467 = vld [vmem:[%s267 + $0xc18] sm:$0xff]
                %468 = vst [vmem:[%s268 + $0x318] sm:$0xff] %v467
                %v469 = vld [vmem:[%s267 + $0xc80] sm:$0xff]
                %470 = vst [vmem:[%s268 + $0x320] sm:$0xff] %v469
                %v471 = vld [vmem:[%s267 + $0xc88] sm:$0xff]
                %472 = vst [vmem:[%s268 + $0x328] sm:$0xff] %v471
                %v473 = vld [vmem:[%s267 + $0xc90] sm:$0xff]
                %474 = vst [vmem:[%s268 + $0x330] sm:$0xff] %v473
                %v475 = vld [vmem:[%s267 + $0xc98] sm:$0xff]
                %476 = vst [vmem:[%s268 + $0x338] sm:$0xff] %v475
                %v477 = vld [vmem:[%s267 + $0xd00] sm:$0xff]
                %478 = vst [vmem:[%s268 + $0x340] sm:$0xff] %v477
                %v479 = vld [vmem:[%s267 + $0xd08] sm:$0xff]
                %480 = vst [vmem:[%s268 + $0x348] sm:$0xff] %v479
                %v481 = vld [vmem:[%s267 + $0xd10] sm:$0xff]
                %482 = vst [vmem:[%s268 + $0x350] sm:$0xff] %v481
                %v483 = vld [vmem:[%s267 + $0xd18] sm:$0xff]
                %484 = vst [vmem:[%s268 + $0x358] sm:$0xff] %v483
                %v485 = vld [vmem:[%s267 + $0xd80] sm:$0xff]
                %486 = vst [vmem:[%s268 + $0x360] sm:$0xff] %v485
                %v487 = vld [vmem:[%s267 + $0xd88] sm:$0xff]
                %488 = vst [vmem:[%s268 + $0x368] sm:$0xff] %v487
                %v489 = vld [vmem:[%s267 + $0xd90] sm:$0xff]
                %490 = vst [vmem:[%s268 + $0x370] sm:$0xff] %v489
                %v491 = vld [vmem:[%s267 + $0xd98] sm:$0xff]
                %492 = vst [vmem:[%s268 + $0x378] sm:$0xff] %v491
                %v493 = vld [vmem:[%s267 + $0xe00] sm:$0xff]
                %494 = vst [vmem:[%s268 + $0x380] sm:$0xff] %v493
                %v495 = vld [vmem:[%s267 + $0xe08] sm:$0xff]
                %496 = vst [vmem:[%s268 + $0x388] sm:$0xff] %v495
                %v497 = vld [vmem:[%s267 + $0xe10] sm:$0xff]
                %498 = vst [vmem:[%s268 + $0x390] sm:$0xff] %v497
                %v499 = vld [vmem:[%s267 + $0xe18] sm:$0xff]
                %500 = vst [vmem:[%s268 + $0x398] sm:$0xff] %v499
                %v501 = vld [vmem:[%s267 + $0xe80] sm:$0xff]
                %502 = vst [vmem:[%s268 + $0x3a0] sm:$0xff] %v501
                %v503 = vld [vmem:[%s267 + $0xe88] sm:$0xff]
                %504 = vst [vmem:[%s268 + $0x3a8] sm:$0xff] %v503
                %v505 = vld [vmem:[%s267 + $0xe90] sm:$0xff]
                %506 = vst [vmem:[%s268 + $0x3b0] sm:$0xff] %v505
                %v507 = vld [vmem:[%s267 + $0xe98] sm:$0xff]
                %508 = vst [vmem:[%s268 + $0x3b8] sm:$0xff] %v507
                %v509 = vld [vmem:[%s267 + $0xf00] sm:$0xff]
                %510 = vst [vmem:[%s268 + $0x3c0] sm:$0xff] %v509
                %v511 = vld [vmem:[%s267 + $0xf08] sm:$0xff]
                %512 = vst [vmem:[%s268 + $0x3c8] sm:$0xff] %v511
                %v513 = vld [vmem:[%s267 + $0xf10] sm:$0xff]
                %514 = vst [vmem:[%s268 + $0x3d0] sm:$0xff] %v513
                %v515 = vld [vmem:[%s267 + $0xf18] sm:$0xff]
                %516 = vst [vmem:[%s268 + $0x3d8] sm:$0xff] %v515
                %v517 = vld [vmem:[%s267 + $0xf80] sm:$0xff]
                %518 = vst [vmem:[%s268 + $0x3e0] sm:$0xff] %v517
                %v519 = vld [vmem:[%s267 + $0xf88] sm:$0xff]
                %520 = vst [vmem:[%s268 + $0x3e8] sm:$0xff] %v519
                %v521 = vld [vmem:[%s267 + $0xf90] sm:$0xff]
                %522 = vst [vmem:[%s268 + $0x3f0] sm:$0xff] %v521
                %v523 = vld [vmem:[%s267 + $0xf98] sm:$0xff]
                %524 = vst [vmem:[%s268 + $0x3f8] sm:$0xff] %v523
              $region56: #{discriminator_forward.6} parent=50 // loop_footer
                %s266 = sadd.s32 1, %s262
              $region57: #{discriminator_forward.6} parent=50 // loop_footer_branch
                %261 = sbr.rel target = $region53
              $region58: #{discriminator_forward.6} parent=50 // loop_exit
                _
            $region51: #{discriminator_forward.6} parent=46 // pred_fallthru
              _
            // Predicated region
            $region59: #{discriminator_forward.6} parent=46 // pred_check
              _
            $region60: #{discriminator_forward.6} parent=46 // pred_check_branch
              %526 = sbr.rel target = $region62
            $region61: #{discriminator_forward.6} parent=46 // pred_region
              _
            $region62: #{discriminator_forward.6} parent=46 // pred_fallthru
              _
          $region47: #{discriminator_forward.6} parent=42 // pred_fallthru
            _
          %527 = vnop
        $region43: #{discriminator_forward.6} parent=15 // pred_fallthru
          _
        // Predicated region
        $region63: #{discriminator_forward.6} parent=15 // pred_check
          %p528 = pneg %p105
        $region64: #{discriminator_forward.6} parent=15 // pred_check_branch
          %530 = sbr.rel (%p528) target = $region66
        $region65: #{discriminator_forward.6} parent=15 // pred_region
          %s531 = smul.u32 2, %s18
          %p532 = scmp.lt.s32.totalorder %s531, 3
          %s533 = scalar_select %p532, %s531, 3
          %s534 = scalar_lea.vmem %s2, %s533
          %s535 = smul.u32 2, %s18
        $region66: #{discriminator_forward.6} parent=15 // pred_fallthru
          _
        // Predicated region
        $region67: #{discriminator_forward.6} parent=15 // pred_check
          %p536 = pneg %p131
        $region68: #{discriminator_forward.6} parent=15 // pred_check_branch
          %538 = sbr.rel (%p536) target = $region70
        $region69: #{discriminator_forward.6} parent=15 // pred_region
          %s539 = smul.u32 2, %s18
          %p540 = scmp.lt.s32.totalorder %s539, 3
          %s541 = scalar_select %p540, %s539, 3
          %s542 = scalar_lea.vmem %s3, %s541
          %s543 = smul.u32 2, %s18
        $region70: #{discriminator_forward.6} parent=15 // pred_fallthru
          _
      $region16: #{discriminator_forward.6} parent=5 // pred_fallthru
        _
      %p544 = scmp.le.s32.totalorder 1, %s10
      %p545 = scmp.lt.s32.totalorder %s10, 9
      %p546 = pnand %p544, %p545
      %p547 = pneg %p546
      // Predicated region
      $region71: #{discriminator_forward.6} parent=5 // pred_check
        _
      $region72: #{discriminator_forward.6} parent=5 // pred_check_branch
        %549 = sbr.rel (%p546) target = $region74
      $region73: #{discriminator_forward.6} parent=5 // pred_region
        %s550 = ssub.s32 %s10, 1
        %s551 = sand.u32 %s44, 1
        %s552 = sand.u32 %s44, 1
        %s553 = smul.addr %s552, 128
        %s554 = scalar_lea.vmem [#allocation3], %s553
        // Predicated region
        $region75: #{discriminator_forward.6} parent=73 // pred_check
          %p555 = pneg %p57
        $region76: #{discriminator_forward.6} parent=73 // pred_check_branch
          %557 = sbr.rel (%p555) target = $region78
        $region77: #{discriminator_forward.6} parent=73 // pred_region
          _
        $region78: #{discriminator_forward.6} parent=73 // pred_fallthru
          _
        %s558 = sand.u32 %s72, 1
        %s559 = sand.u32 %s72, 1
        %s560 = smul.addr %s559, 1024
        %s561 = scalar_lea.vmem [#allocation4], %s560
        // Predicated region
        $region79: #{discriminator_forward.6} parent=73 // pred_check
          %p562 = pneg %p85
        $region80: #{discriminator_forward.6} parent=73 // pred_check_branch
          %564 = sbr.rel (%p562) target = $region82
        $region81: #{discriminator_forward.6} parent=73 // pred_region
          _
        $region82: #{discriminator_forward.6} parent=73 // pred_fallthru
          _
        %s565 = sand.u32 %s44, 1
        %s566 = sand.u32 %s44, 1
        %s567 = smul.addr %s566, 128
        %s568 = scalar_lea.vmem [#allocation3], %s567
        %p569 = pneg %p57
        %p570 = pneg %p54
        %s571 = sand.u32 %s72, 1
        %s572 = sand.u32 %s72, 1
        %s573 = smul.addr %s572, 1024
        %s574 = scalar_lea.vmem [#allocation4], %s573
        %p575 = pneg %p85
        %p576 = pneg %p82
        %s577 = smul.u32 2, %s21
        %p578 = scmp.lt.s32.totalorder %s577, 3
        %s579 = scalar_select %p578, %s577, 3
        %s580 = scalar_lea.vmem %s2, %s579
        %p581 = pneg %p111
        %p582 = pneg %p108
        %s583 = smul.u32 2, %s21
        %p584 = scmp.lt.s32.totalorder %s583, 3
        %s585 = scalar_select %p584, %s583, 3
        %s586 = scalar_lea.vmem %s3, %s585
        %p587 = pneg %p137
        %p588 = pneg %p134
        %p589 = pneg %p165
        %p590 = pneg %p162
        %s591 = sand.u32 %s152, 1
        %s592 = sand.u32 %s152, 1
        %s593 = smul.addr %s592, 32
        %s594 = scalar_lea.vmem [#allocation5], %s593
        %s595 = smul.u32 4, %s20
        %s596 = smul.u32 8, %s22
        %s597 = smul.u32 32, %s21
        %s598 = smul.u32 8, %s22
        %s599 = smul.u32 2, %s21
        %p600 = scmp.lt.s32.totalorder %s599, 3
        %s601 = scalar_select %p600, %s599, 3
        %s602 = scalar_lea.vmem %s2, %s601
        %s603 = smul.u32 2, %s21
        %s604 = smul.u32 2, %s21
        %p605 = scmp.lt.s32.totalorder %s604, 3
        %s606 = scalar_select %p605, %s604, 3
        %s607 = scalar_lea.vmem %s3, %s606
        %s608 = smul.u32 2, %s21
        %s609 = smul.u32 4, %s20
        %s610 = smul.u32 2, %s21
        %p611 = scmp.eq.s32.totalorder %s22, 0
        // Predicated region
        $region83: #{discriminator_forward.6} parent=73 // pred_check
          %p612 = pneg %p611
        $region84: #{discriminator_forward.6} parent=73 // pred_check_branch
          %614 = sbr.rel (%p612) target = $region86
        $region85: #{discriminator_forward.6} parent=73 // pred_region
          %615 = vst [vmem:[#allocation2] sm:$0xff] 0.0
          %616 = vst [vmem:[#allocation2 + $0x8] sm:$0xff] 0.0
          %617 = vst [vmem:[#allocation2 + $0x10] sm:$0xff] 0.0
          %618 = vst [vmem:[#allocation2 + $0x18] sm:$0xff] 0.0
          %619 = vst [vmem:[#allocation2 + $0x20] sm:$0xff] 0.0
          %620 = vst [vmem:[#allocation2 + $0x28] sm:$0xff] 0.0
          %621 = vst [vmem:[#allocation2 + $0x30] sm:$0xff] 0.0
          %622 = vst [vmem:[#allocation2 + $0x38] sm:$0xff] 0.0
        $region86: #{discriminator_forward.6} parent=73 // pred_fallthru
          _
        %v623 = vld [vmem:[#allocation2] sm:$0xff]
        %v624 = vld [vmem:[#allocation2 + $0x8] sm:$0xff]
        %v625 = vld [vmem:[#allocation2 + $0x10] sm:$0xff]
        %v626 = vld [vmem:[#allocation2 + $0x18] sm:$0xff]
        %v627 = vld [vmem:[#allocation2 + $0x20] sm:$0xff]
        %v628 = vld [vmem:[#allocation2 + $0x28] sm:$0xff]
        %v629 = vld [vmem:[#allocation2 + $0x30] sm:$0xff]
        %v630 = vld [vmem:[#allocation2 + $0x38] sm:$0xff]
        %v631 = vld [vmem:[%s554] sm:$0xff]
        %v632 = vld [vmem:[%s554 + $0x8] sm:$0xff]
        %v633 = vld [vmem:[%s554 + $0x10] sm:$0xff]
        %v634 = vld [vmem:[%s554 + $0x18] sm:$0xff]
        %v635 = vld [vmem:[%s554 + $0x20] sm:$0xff]
        %v636 = vld [vmem:[%s554 + $0x28] sm:$0xff]
        %v637 = vld [vmem:[%s554 + $0x30] sm:$0xff]
        %v638 = vld [vmem:[%s554 + $0x38] sm:$0xff]
        %v639 = vld [vmem:[%s554 + $0x40] sm:$0xff]
        %v640 = vld [vmem:[%s554 + $0x48] sm:$0xff]
        %v641 = vld [vmem:[%s554 + $0x50] sm:$0xff]
        %v642 = vld [vmem:[%s554 + $0x58] sm:$0xff]
        %v643 = vld [vmem:[%s554 + $0x60] sm:$0xff]
        %v644 = vld [vmem:[%s554 + $0x68] sm:$0xff]
        %v645 = vld [vmem:[%s554 + $0x70] sm:$0xff]
        %v646 = vld [vmem:[%s554 + $0x78] sm:$0xff]
        %v647 = vld [vmem:[%s561] sm:$0xff]
        %v648 = vld [vmem:[%s561 + $0x8] sm:$0xff]
        %v649 = vld [vmem:[%s561 + $0x10] sm:$0xff]
        %v650 = vld [vmem:[%s561 + $0x18] sm:$0xff]
        %v651 = vld [vmem:[%s561 + $0x20] sm:$0xff]
        %v652 = vld [vmem:[%s561 + $0x28] sm:$0xff]
        %v653 = vld [vmem:[%s561 + $0x30] sm:$0xff]
        %v654 = vld [vmem:[%s561 + $0x38] sm:$0xff]
        %v655 = vld [vmem:[%s561 + $0x40] sm:$0xff]
        %v656 = vld [vmem:[%s561 + $0x48] sm:$0xff]
        %v657 = vld [vmem:[%s561 + $0x50] sm:$0xff]
        %v658 = vld [vmem:[%s561 + $0x58] sm:$0xff]
        %v659 = vld [vmem:[%s561 + $0x60] sm:$0xff]
        %v660 = vld [vmem:[%s561 + $0x68] sm:$0xff]
        %v661 = vld [vmem:[%s561 + $0x70] sm:$0xff]
        %v662 = vld [vmem:[%s561 + $0x78] sm:$0xff]
        %v663 = vld [vmem:[%s561 + $0x80] sm:$0xff]
        %v664 = vld [vmem:[%s561 + $0x88] sm:$0xff]
        %v665 = vld [vmem:[%s561 + $0x90] sm:$0xff]
        %v666 = vld [vmem:[%s561 + $0x98] sm:$0xff]
        %v667 = vld [vmem:[%s561 + $0xa0] sm:$0xff]
        %v668 = vld [vmem:[%s561 + $0xa8] sm:$0xff]
        %v669 = vld [vmem:[%s561 + $0xb0] sm:$0xff]
        %v670 = vld [vmem:[%s561 + $0xb8] sm:$0xff]
        %v671 = vld [vmem:[%s561 + $0xc0] sm:$0xff]
        %v672 = vld [vmem:[%s561 + $0xc8] sm:$0xff]
        %v673 = vld [vmem:[%s561 + $0xd0] sm:$0xff]
        %v674 = vld [vmem:[%s561 + $0xd8] sm:$0xff]
        %v675 = vld [vmem:[%s561 + $0xe0] sm:$0xff]
        %v676 = vld [vmem:[%s561 + $0xe8] sm:$0xff]
        %v677 = vld [vmem:[%s561 + $0xf0] sm:$0xff]
        %v678 = vld [vmem:[%s561 + $0xf8] sm:$0xff]
        %v679 = vld [vmem:[%s561 + $0x100] sm:$0xff]
        %v680 = vld [vmem:[%s561 + $0x108] sm:$0xff]
        %v681 = vld [vmem:[%s561 + $0x110] sm:$0xff]
        %v682 = vld [vmem:[%s561 + $0x118] sm:$0xff]
        %v683 = vld [vmem:[%s561 + $0x120] sm:$0xff]
        %v684 = vld [vmem:[%s561 + $0x128] sm:$0xff]
        %v685 = vld [vmem:[%s561 + $0x130] sm:$0xff]
        %v686 = vld [vmem:[%s561 + $0x138] sm:$0xff]
        %v687 = vld [vmem:[%s561 + $0x140] sm:$0xff]
        %v688 = vld [vmem:[%s561 + $0x148] sm:$0xff]
        %v689 = vld [vmem:[%s561 + $0x150] sm:$0xff]
        %v690 = vld [vmem:[%s561 + $0x158] sm:$0xff]
        %v691 = vld [vmem:[%s561 + $0x160] sm:$0xff]
        %v692 = vld [vmem:[%s561 + $0x168] sm:$0xff]
        %v693 = vld [vmem:[%s561 + $0x170] sm:$0xff]
        %v694 = vld [vmem:[%s561 + $0x178] sm:$0xff]
        %v695 = vld [vmem:[%s561 + $0x180] sm:$0xff]
        %v696 = vld [vmem:[%s561 + $0x188] sm:$0xff]
        %v697 = vld [vmem:[%s561 + $0x190] sm:$0xff]
        %v698 = vld [vmem:[%s561 + $0x198] sm:$0xff]
        %v699 = vld [vmem:[%s561 + $0x1a0] sm:$0xff]
        %v700 = vld [vmem:[%s561 + $0x1a8] sm:$0xff]
        %v701 = vld [vmem:[%s561 + $0x1b0] sm:$0xff]
        %v702 = vld [vmem:[%s561 + $0x1b8] sm:$0xff]
        %v703 = vld [vmem:[%s561 + $0x1c0] sm:$0xff]
        %v704 = vld [vmem:[%s561 + $0x1c8] sm:$0xff]
        %v705 = vld [vmem:[%s561 + $0x1d0] sm:$0xff]
        %v706 = vld [vmem:[%s561 + $0x1d8] sm:$0xff]
        %v707 = vld [vmem:[%s561 + $0x1e0] sm:$0xff]
        %v708 = vld [vmem:[%s561 + $0x1e8] sm:$0xff]
        %v709 = vld [vmem:[%s561 + $0x1f0] sm:$0xff]
        %v710 = vld [vmem:[%s561 + $0x1f8] sm:$0xff]
        %v711 = vld [vmem:[%s561 + $0x200] sm:$0xff]
        %v712 = vld [vmem:[%s561 + $0x208] sm:$0xff]
        %v713 = vld [vmem:[%s561 + $0x210] sm:$0xff]
        %v714 = vld [vmem:[%s561 + $0x218] sm:$0xff]
        %v715 = vld [vmem:[%s561 + $0x220] sm:$0xff]
        %v716 = vld [vmem:[%s561 + $0x228] sm:$0xff]
        %v717 = vld [vmem:[%s561 + $0x230] sm:$0xff]
        %v718 = vld [vmem:[%s561 + $0x238] sm:$0xff]
        %v719 = vld [vmem:[%s561 + $0x240] sm:$0xff]
        %v720 = vld [vmem:[%s561 + $0x248] sm:$0xff]
        %v721 = vld [vmem:[%s561 + $0x250] sm:$0xff]
        %v722 = vld [vmem:[%s561 + $0x258] sm:$0xff]
        %v723 = vld [vmem:[%s561 + $0x260] sm:$0xff]
        %v724 = vld [vmem:[%s561 + $0x268] sm:$0xff]
        %v725 = vld [vmem:[%s561 + $0x270] sm:$0xff]
        %v726 = vld [vmem:[%s561 + $0x278] sm:$0xff]
        %v727 = vld [vmem:[%s561 + $0x280] sm:$0xff]
        %v728 = vld [vmem:[%s561 + $0x288] sm:$0xff]
        %v729 = vld [vmem:[%s561 + $0x290] sm:$0xff]
        %v730 = vld [vmem:[%s561 + $0x298] sm:$0xff]
        %v731 = vld [vmem:[%s561 + $0x2a0] sm:$0xff]
        %v732 = vld [vmem:[%s561 + $0x2a8] sm:$0xff]
        %v733 = vld [vmem:[%s561 + $0x2b0] sm:$0xff]
        %v734 = vld [vmem:[%s561 + $0x2b8] sm:$0xff]
        %v735 = vld [vmem:[%s561 + $0x2c0] sm:$0xff]
        %v736 = vld [vmem:[%s561 + $0x2c8] sm:$0xff]
        %v737 = vld [vmem:[%s561 + $0x2d0] sm:$0xff]
        %v738 = vld [vmem:[%s561 + $0x2d8] sm:$0xff]
        %v739 = vld [vmem:[%s561 + $0x2e0] sm:$0xff]
        %v740 = vld [vmem:[%s561 + $0x2e8] sm:$0xff]
        %v741 = vld [vmem:[%s561 + $0x2f0] sm:$0xff]
        %v742 = vld [vmem:[%s561 + $0x2f8] sm:$0xff]
        %v743 = vld [vmem:[%s561 + $0x300] sm:$0xff]
        %v744 = vld [vmem:[%s561 + $0x308] sm:$0xff]
        %v745 = vld [vmem:[%s561 + $0x310] sm:$0xff]
        %v746 = vld [vmem:[%s561 + $0x318] sm:$0xff]
        %v747 = vld [vmem:[%s561 + $0x320] sm:$0xff]
        %v748 = vld [vmem:[%s561 + $0x328] sm:$0xff]
        %v749 = vld [vmem:[%s561 + $0x330] sm:$0xff]
        %v750 = vld [vmem:[%s561 + $0x338] sm:$0xff]
        %v751 = vld [vmem:[%s561 + $0x340] sm:$0xff]
        %v752 = vld [vmem:[%s561 + $0x348] sm:$0xff]
        %v753 = vld [vmem:[%s561 + $0x350] sm:$0xff]
        %v754 = vld [vmem:[%s561 + $0x358] sm:$0xff]
        %v755 = vld [vmem:[%s561 + $0x360] sm:$0xff]
        %v756 = vld [vmem:[%s561 + $0x368] sm:$0xff]
        %v757 = vld [vmem:[%s561 + $0x370] sm:$0xff]
        %v758 = vld [vmem:[%s561 + $0x378] sm:$0xff]
        %v759 = vld [vmem:[%s561 + $0x380] sm:$0xff]
        %v760 = vld [vmem:[%s561 + $0x388] sm:$0xff]
        %v761 = vld [vmem:[%s561 + $0x390] sm:$0xff]
        %v762 = vld [vmem:[%s561 + $0x398] sm:$0xff]
        %v763 = vld [vmem:[%s561 + $0x3a0] sm:$0xff]
        %v764 = vld [vmem:[%s561 + $0x3a8] sm:$0xff]
        %v765 = vld [vmem:[%s561 + $0x3b0] sm:$0xff]
        %v766 = vld [vmem:[%s561 + $0x3b8] sm:$0xff]
        %v767 = vld [vmem:[%s561 + $0x3c0] sm:$0xff]
        %v768 = vld [vmem:[%s561 + $0x3c8] sm:$0xff]
        %v769 = vld [vmem:[%s561 + $0x3d0] sm:$0xff]
        %v770 = vld [vmem:[%s561 + $0x3d8] sm:$0xff]
        %v771 = vld [vmem:[%s561 + $0x3e0] sm:$0xff]
        %v772 = vld [vmem:[%s561 + $0x3e8] sm:$0xff]
        %v773 = vld [vmem:[%s561 + $0x3f0] sm:$0xff]
        %v774 = vld [vmem:[%s561 + $0x3f8] sm:$0xff]
        %v791 = vunpack.c.l.b16 %v631
        %v792 = vunpack.c.h.b16 %v631
        %v793 = vunpack.c.l.b16 %v632
        %v794 = vunpack.c.h.b16 %v632
        %v795 = vunpack.c.l.b16 %v633
        %v796 = vunpack.c.h.b16 %v633
        %v797 = vunpack.c.l.b16 %v634
        %v798 = vunpack.c.h.b16 %v634
        %v799 = vunpack.c.l.b16 %v635
        %v800 = vunpack.c.h.b16 %v635
        %v801 = vunpack.c.l.b16 %v636
        %v802 = vunpack.c.h.b16 %v636
        %v803 = vunpack.c.l.b16 %v637
        %v804 = vunpack.c.h.b16 %v637
        %v805 = vunpack.c.l.b16 %v638
        %v806 = vunpack.c.h.b16 %v638
        %v807 = vunpack.c.l.b16 %v639
        %v808 = vunpack.c.h.b16 %v639
        %v809 = vunpack.c.l.b16 %v640
        %v810 = vunpack.c.h.b16 %v640
        %v811 = vunpack.c.l.b16 %v641
        %v812 = vunpack.c.h.b16 %v641
        %v813 = vunpack.c.l.b16 %v642
        %v814 = vunpack.c.h.b16 %v642
        %v815 = vunpack.c.l.b16 %v643
        %v816 = vunpack.c.h.b16 %v643
        %v817 = vunpack.c.l.b16 %v644
        %v818 = vunpack.c.h.b16 %v644
        %v819 = vunpack.c.l.b16 %v645
        %v820 = vunpack.c.h.b16 %v645
        %v821 = vunpack.c.l.b16 %v646
        %v822 = vunpack.c.h.b16 %v646
        %v823 = vpack.c.b16 %v799, %v791
        %v824 = vpack.c.b16 %v800, %v792
        %v825 = vpack.c.b16 %v801, %v793
        %v826 = vpack.c.b16 %v802, %v794
        %v827 = vpack.c.b16 %v803, %v795
        %v828 = vpack.c.b16 %v804, %v796
        %v829 = vpack.c.b16 %v805, %v797
        %v830 = vpack.c.b16 %v806, %v798
        %v831 = vpack.c.b16 %v815, %v807
        %v832 = vpack.c.b16 %v816, %v808
        %v833 = vpack.c.b16 %v817, %v809
        %v834 = vpack.c.b16 %v818, %v810
        %v835 = vpack.c.b16 %v819, %v811
        %v836 = vpack.c.b16 %v820, %v812
        %v837 = vpack.c.b16 %v821, %v813
        %v838 = vpack.c.b16 %v822, %v814
        %v983 = vunpack.c.l.b16 %v647
        %v984 = vunpack.c.h.b16 %v647
        %v985 = vunpack.c.l.b16 %v648
        %v986 = vunpack.c.h.b16 %v648
        %v987 = vunpack.c.l.b16 %v649
        %v988 = vunpack.c.h.b16 %v649
        %v989 = vunpack.c.l.b16 %v650
        %v990 = vunpack.c.h.b16 %v650
        %v991 = vunpack.c.l.b16 %v651
        %v992 = vunpack.c.h.b16 %v651
        %v993 = vunpack.c.l.b16 %v652
        %v994 = vunpack.c.h.b16 %v652
        %v995 = vunpack.c.l.b16 %v653
        %v996 = vunpack.c.h.b16 %v653
        %v997 = vunpack.c.l.b16 %v654
        %v998 = vunpack.c.h.b16 %v654
        %v999 = vunpack.c.l.b16 %v655
        %v1000 = vunpack.c.h.b16 %v655
        %v1001 = vunpack.c.l.b16 %v656
        %v1002 = vunpack.c.h.b16 %v656
        %v1003 = vunpack.c.l.b16 %v657
        %v1004 = vunpack.c.h.b16 %v657
        %v1005 = vunpack.c.l.b16 %v658
        %v1006 = vunpack.c.h.b16 %v658
        %v1007 = vunpack.c.l.b16 %v659
        %v1008 = vunpack.c.h.b16 %v659
        %v1009 = vunpack.c.l.b16 %v660
        %v1010 = vunpack.c.h.b16 %v660
        %v1011 = vunpack.c.l.b16 %v661
        %v1012 = vunpack.c.h.b16 %v661
        %v1013 = vunpack.c.l.b16 %v662
        %v1014 = vunpack.c.h.b16 %v662
        %v1015 = vunpack.c.l.b16 %v663
        %v1016 = vunpack.c.h.b16 %v663
        %v1017 = vunpack.c.l.b16 %v664
        %v1018 = vunpack.c.h.b16 %v664
        %v1019 = vunpack.c.l.b16 %v665
        %v1020 = vunpack.c.h.b16 %v665
        %v1021 = vunpack.c.l.b16 %v666
        %v1022 = vunpack.c.h.b16 %v666
        %v1023 = vunpack.c.l.b16 %v667
        %v1024 = vunpack.c.h.b16 %v667
        %v1025 = vunpack.c.l.b16 %v668
        %v1026 = vunpack.c.h.b16 %v668
        %v1027 = vunpack.c.l.b16 %v669
        %v1028 = vunpack.c.h.b16 %v669
        %v1029 = vunpack.c.l.b16 %v670
        %v1030 = vunpack.c.h.b16 %v670
        %v1031 = vunpack.c.l.b16 %v671
        %v1032 = vunpack.c.h.b16 %v671
        %v1033 = vunpack.c.l.b16 %v672
        %v1034 = vunpack.c.h.b16 %v672
        %v1035 = vunpack.c.l.b16 %v673
        %v1036 = vunpack.c.h.b16 %v673
        %v1037 = vunpack.c.l.b16 %v674
        %v1038 = vunpack.c.h.b16 %v674
        %v1039 = vunpack.c.l.b16 %v675
        %v1040 = vunpack.c.h.b16 %v675
        %v1041 = vunpack.c.l.b16 %v676
        %v1042 = vunpack.c.h.b16 %v676
        %v1043 = vunpack.c.l.b16 %v677
        %v1044 = vunpack.c.h.b16 %v677
        %v1045 = vunpack.c.l.b16 %v678
        %v1046 = vunpack.c.h.b16 %v678
        %v1047 = vunpack.c.l.b16 %v679
        %v1048 = vunpack.c.h.b16 %v679
        %v1049 = vunpack.c.l.b16 %v680
        %v1050 = vunpack.c.h.b16 %v680
        %v1051 = vunpack.c.l.b16 %v681
        %v1052 = vunpack.c.h.b16 %v681
        %v1053 = vunpack.c.l.b16 %v682
        %v1054 = vunpack.c.h.b16 %v682
        %v1055 = vunpack.c.l.b16 %v683
        %v1056 = vunpack.c.h.b16 %v683
        %v1057 = vunpack.c.l.b16 %v684
        %v1058 = vunpack.c.h.b16 %v684
        %v1059 = vunpack.c.l.b16 %v685
        %v1060 = vunpack.c.h.b16 %v685
        %v1061 = vunpack.c.l.b16 %v686
        %v1062 = vunpack.c.h.b16 %v686
        %v1063 = vunpack.c.l.b16 %v687
        %v1064 = vunpack.c.h.b16 %v687
        %v1065 = vunpack.c.l.b16 %v688
        %v1066 = vunpack.c.h.b16 %v688
        %v1067 = vunpack.c.l.b16 %v689
        %v1068 = vunpack.c.h.b16 %v689
        %v1069 = vunpack.c.l.b16 %v690
        %v1070 = vunpack.c.h.b16 %v690
        %v1071 = vunpack.c.l.b16 %v691
        %v1072 = vunpack.c.h.b16 %v691
        %v1073 = vunpack.c.l.b16 %v692
        %v1074 = vunpack.c.h.b16 %v692
        %v1075 = vunpack.c.l.b16 %v693
        %v1076 = vunpack.c.h.b16 %v693
        %v1077 = vunpack.c.l.b16 %v694
        %v1078 = vunpack.c.h.b16 %v694
        %v1079 = vunpack.c.l.b16 %v695
        %v1080 = vunpack.c.h.b16 %v695
        %v1081 = vunpack.c.l.b16 %v696
        %v1082 = vunpack.c.h.b16 %v696
        %v1083 = vunpack.c.l.b16 %v697
        %v1084 = vunpack.c.h.b16 %v697
        %v1085 = vunpack.c.l.b16 %v698
        %v1086 = vunpack.c.h.b16 %v698
        %v1087 = vunpack.c.l.b16 %v699
        %v1088 = vunpack.c.h.b16 %v699
        %v1089 = vunpack.c.l.b16 %v700
        %v1090 = vunpack.c.h.b16 %v700
        %v1091 = vunpack.c.l.b16 %v701
        %v1092 = vunpack.c.h.b16 %v701
        %v1093 = vunpack.c.l.b16 %v702
        %v1094 = vunpack.c.h.b16 %v702
        %v1095 = vunpack.c.l.b16 %v703
        %v1096 = vunpack.c.h.b16 %v703
        %v1097 = vunpack.c.l.b16 %v704
        %v1098 = vunpack.c.h.b16 %v704
        %v1099 = vunpack.c.l.b16 %v705
        %v1100 = vunpack.c.h.b16 %v705
        %v1101 = vunpack.c.l.b16 %v706
        %v1102 = vunpack.c.h.b16 %v706
        %v1103 = vunpack.c.l.b16 %v707
        %v1104 = vunpack.c.h.b16 %v707
        %v1105 = vunpack.c.l.b16 %v708
        %v1106 = vunpack.c.h.b16 %v708
        %v1107 = vunpack.c.l.b16 %v709
        %v1108 = vunpack.c.h.b16 %v709
        %v1109 = vunpack.c.l.b16 %v710
        %v1110 = vunpack.c.h.b16 %v710
        %v1111 = vunpack.c.l.b16 %v711
        %v1112 = vunpack.c.h.b16 %v711
        %v1113 = vunpack.c.l.b16 %v712
        %v1114 = vunpack.c.h.b16 %v712
        %v1115 = vunpack.c.l.b16 %v713
        %v1116 = vunpack.c.h.b16 %v713
        %v1117 = vunpack.c.l.b16 %v714
        %v1118 = vunpack.c.h.b16 %v714
        %v1119 = vunpack.c.l.b16 %v715
        %v1120 = vunpack.c.h.b16 %v715
        %v1121 = vunpack.c.l.b16 %v716
        %v1122 = vunpack.c.h.b16 %v716
        %v1123 = vunpack.c.l.b16 %v717
        %v1124 = vunpack.c.h.b16 %v717
        %v1125 = vunpack.c.l.b16 %v718
        %v1126 = vunpack.c.h.b16 %v718
        %v1127 = vunpack.c.l.b16 %v719
        %v1128 = vunpack.c.h.b16 %v719
        %v1129 = vunpack.c.l.b16 %v720
        %v1130 = vunpack.c.h.b16 %v720
        %v1131 = vunpack.c.l.b16 %v721
        %v1132 = vunpack.c.h.b16 %v721
        %v1133 = vunpack.c.l.b16 %v722
        %v1134 = vunpack.c.h.b16 %v722
        %v1135 = vunpack.c.l.b16 %v723
        %v1136 = vunpack.c.h.b16 %v723
        %v1137 = vunpack.c.l.b16 %v724
        %v1138 = vunpack.c.h.b16 %v724
        %v1139 = vunpack.c.l.b16 %v725
        %v1140 = vunpack.c.h.b16 %v725
        %v1141 = vunpack.c.l.b16 %v726
        %v1142 = vunpack.c.h.b16 %v726
        %v1143 = vunpack.c.l.b16 %v727
        %v1144 = vunpack.c.h.b16 %v727
        %v1145 = vunpack.c.l.b16 %v728
        %v1146 = vunpack.c.h.b16 %v728
        %v1147 = vunpack.c.l.b16 %v729
        %v1148 = vunpack.c.h.b16 %v729
        %v1149 = vunpack.c.l.b16 %v730
        %v1150 = vunpack.c.h.b16 %v730
        %v1151 = vunpack.c.l.b16 %v731
        %v1152 = vunpack.c.h.b16 %v731
        %v1153 = vunpack.c.l.b16 %v732
        %v1154 = vunpack.c.h.b16 %v732
        %v1155 = vunpack.c.l.b16 %v733
        %v1156 = vunpack.c.h.b16 %v733
        %v1157 = vunpack.c.l.b16 %v734
        %v1158 = vunpack.c.h.b16 %v734
        %v1159 = vunpack.c.l.b16 %v735
        %v1160 = vunpack.c.h.b16 %v735
        %v1161 = vunpack.c.l.b16 %v736
        %v1162 = vunpack.c.h.b16 %v736
        %v1163 = vunpack.c.l.b16 %v737
        %v1164 = vunpack.c.h.b16 %v737
        %v1165 = vunpack.c.l.b16 %v738
        %v1166 = vunpack.c.h.b16 %v738
        %v1167 = vunpack.c.l.b16 %v739
        %v1168 = vunpack.c.h.b16 %v739
        %v1169 = vunpack.c.l.b16 %v740
        %v1170 = vunpack.c.h.b16 %v740
        %v1171 = vunpack.c.l.b16 %v741
        %v1172 = vunpack.c.h.b16 %v741
        %v1173 = vunpack.c.l.b16 %v742
        %v1174 = vunpack.c.h.b16 %v742
        %v1175 = vunpack.c.l.b16 %v743
        %v1176 = vunpack.c.h.b16 %v743
        %v1177 = vunpack.c.l.b16 %v744
        %v1178 = vunpack.c.h.b16 %v744
        %v1179 = vunpack.c.l.b16 %v745
        %v1180 = vunpack.c.h.b16 %v745
        %v1181 = vunpack.c.l.b16 %v746
        %v1182 = vunpack.c.h.b16 %v746
        %v1183 = vunpack.c.l.b16 %v747
        %v1184 = vunpack.c.h.b16 %v747
        %v1185 = vunpack.c.l.b16 %v748
        %v1186 = vunpack.c.h.b16 %v748
        %v1187 = vunpack.c.l.b16 %v749
        %v1188 = vunpack.c.h.b16 %v749
        %v1189 = vunpack.c.l.b16 %v750
        %v1190 = vunpack.c.h.b16 %v750
        %v1191 = vunpack.c.l.b16 %v751
        %v1192 = vunpack.c.h.b16 %v751
        %v1193 = vunpack.c.l.b16 %v752
        %v1194 = vunpack.c.h.b16 %v752
        %v1195 = vunpack.c.l.b16 %v753
        %v1196 = vunpack.c.h.b16 %v753
        %v1197 = vunpack.c.l.b16 %v754
        %v1198 = vunpack.c.h.b16 %v754
        %v1199 = vunpack.c.l.b16 %v755
        %v1200 = vunpack.c.h.b16 %v755
        %v1201 = vunpack.c.l.b16 %v756
        %v1202 = vunpack.c.h.b16 %v756
        %v1203 = vunpack.c.l.b16 %v757
        %v1204 = vunpack.c.h.b16 %v757
        %v1205 = vunpack.c.l.b16 %v758
        %v1206 = vunpack.c.h.b16 %v758
        %v1207 = vunpack.c.l.b16 %v759
        %v1208 = vunpack.c.h.b16 %v759
        %v1209 = vunpack.c.l.b16 %v760
        %v1210 = vunpack.c.h.b16 %v760
        %v1211 = vunpack.c.l.b16 %v761
        %v1212 = vunpack.c.h.b16 %v761
        %v1213 = vunpack.c.l.b16 %v762
        %v1214 = vunpack.c.h.b16 %v762
        %v1215 = vunpack.c.l.b16 %v763
        %v1216 = vunpack.c.h.b16 %v763
        %v1217 = vunpack.c.l.b16 %v764
        %v1218 = vunpack.c.h.b16 %v764
        %v1219 = vunpack.c.l.b16 %v765
        %v1220 = vunpack.c.h.b16 %v765
        %v1221 = vunpack.c.l.b16 %v766
        %v1222 = vunpack.c.h.b16 %v766
        %v1223 = vunpack.c.l.b16 %v767
        %v1224 = vunpack.c.h.b16 %v767
        %v1225 = vunpack.c.l.b16 %v768
        %v1226 = vunpack.c.h.b16 %v768
        %v1227 = vunpack.c.l.b16 %v769
        %v1228 = vunpack.c.h.b16 %v769
        %v1229 = vunpack.c.l.b16 %v770
        %v1230 = vunpack.c.h.b16 %v770
        %v1231 = vunpack.c.l.b16 %v771
        %v1232 = vunpack.c.h.b16 %v771
        %v1233 = vunpack.c.l.b16 %v772
        %v1234 = vunpack.c.h.b16 %v772
        %v1235 = vunpack.c.l.b16 %v773
        %v1236 = vunpack.c.h.b16 %v773
        %v1237 = vunpack.c.l.b16 %v774
        %v1238 = vunpack.c.h.b16 %v774
        %v1239 = vpack.c.b16 %v991, %v983
        %v1240 = vpack.c.b16 %v992, %v984
        %v1241 = vpack.c.b16 %v993, %v985
        %v1242 = vpack.c.b16 %v994, %v986
        %v1243 = vpack.c.b16 %v995, %v987
        %v1244 = vpack.c.b16 %v996, %v988
        %v1245 = vpack.c.b16 %v997, %v989
        %v1246 = vpack.c.b16 %v998, %v990
        %v1247 = vpack.c.b16 %v1007, %v999
        %v1248 = vpack.c.b16 %v1008, %v1000
        %v1249 = vpack.c.b16 %v1009, %v1001
        %v1250 = vpack.c.b16 %v1010, %v1002
        %v1251 = vpack.c.b16 %v1011, %v1003
        %v1252 = vpack.c.b16 %v1012, %v1004
        %v1253 = vpack.c.b16 %v1013, %v1005
        %v1254 = vpack.c.b16 %v1014, %v1006
        %v1255 = vpack.c.b16 %v1023, %v1015
        %v1256 = vpack.c.b16 %v1024, %v1016
        %v1257 = vpack.c.b16 %v1025, %v1017
        %v1258 = vpack.c.b16 %v1026, %v1018
        %v1259 = vpack.c.b16 %v1027, %v1019
        %v1260 = vpack.c.b16 %v1028, %v1020
        %v1261 = vpack.c.b16 %v1029, %v1021
        %v1262 = vpack.c.b16 %v1030, %v1022
        %v1263 = vpack.c.b16 %v1039, %v1031
        %v1264 = vpack.c.b16 %v1040, %v1032
        %v1265 = vpack.c.b16 %v1041, %v1033
        %v1266 = vpack.c.b16 %v1042, %v1034
        %v1267 = vpack.c.b16 %v1043, %v1035
        %v1268 = vpack.c.b16 %v1044, %v1036
        %v1269 = vpack.c.b16 %v1045, %v1037
        %v1270 = vpack.c.b16 %v1046, %v1038
        %v1271 = vpack.c.b16 %v1055, %v1047
        %v1272 = vpack.c.b16 %v1056, %v1048
        %v1273 = vpack.c.b16 %v1057, %v1049
        %v1274 = vpack.c.b16 %v1058, %v1050
        %v1275 = vpack.c.b16 %v1059, %v1051
        %v1276 = vpack.c.b16 %v1060, %v1052
        %v1277 = vpack.c.b16 %v1061, %v1053
        %v1278 = vpack.c.b16 %v1062, %v1054
        %v1279 = vpack.c.b16 %v1071, %v1063
        %v1280 = vpack.c.b16 %v1072, %v1064
        %v1281 = vpack.c.b16 %v1073, %v1065
        %v1282 = vpack.c.b16 %v1074, %v1066
        %v1283 = vpack.c.b16 %v1075, %v1067
        %v1284 = vpack.c.b16 %v1076, %v1068
        %v1285 = vpack.c.b16 %v1077, %v1069
        %v1286 = vpack.c.b16 %v1078, %v1070
        %v1287 = vpack.c.b16 %v1087, %v1079
        %v1288 = vpack.c.b16 %v1088, %v1080
        %v1289 = vpack.c.b16 %v1089, %v1081
        %v1290 = vpack.c.b16 %v1090, %v1082
        %v1291 = vpack.c.b16 %v1091, %v1083
        %v1292 = vpack.c.b16 %v1092, %v1084
        %v1293 = vpack.c.b16 %v1093, %v1085
        %v1294 = vpack.c.b16 %v1094, %v1086
        %v1295 = vpack.c.b16 %v1103, %v1095
        %v1296 = vpack.c.b16 %v1104, %v1096
        %v1297 = vpack.c.b16 %v1105, %v1097
        %v1298 = vpack.c.b16 %v1106, %v1098
        %v1299 = vpack.c.b16 %v1107, %v1099
        %v1300 = vpack.c.b16 %v1108, %v1100
        %v1301 = vpack.c.b16 %v1109, %v1101
        %v1302 = vpack.c.b16 %v1110, %v1102
        %v1303 = vpack.c.b16 %v1119, %v1111
        %v1304 = vpack.c.b16 %v1120, %v1112
        %v1305 = vpack.c.b16 %v1121, %v1113
        %v1306 = vpack.c.b16 %v1122, %v1114
        %v1307 = vpack.c.b16 %v1123, %v1115
        %v1308 = vpack.c.b16 %v1124, %v1116
        %v1309 = vpack.c.b16 %v1125, %v1117
        %v1310 = vpack.c.b16 %v1126, %v1118
        %v1311 = vpack.c.b16 %v1135, %v1127
        %v1312 = vpack.c.b16 %v1136, %v1128
        %v1313 = vpack.c.b16 %v1137, %v1129
        %v1314 = vpack.c.b16 %v1138, %v1130
        %v1315 = vpack.c.b16 %v1139, %v1131
        %v1316 = vpack.c.b16 %v1140, %v1132
        %v1317 = vpack.c.b16 %v1141, %v1133
        %v1318 = vpack.c.b16 %v1142, %v1134
        %v1319 = vpack.c.b16 %v1151, %v1143
        %v1320 = vpack.c.b16 %v1152, %v1144
        %v1321 = vpack.c.b16 %v1153, %v1145
        %v1322 = vpack.c.b16 %v1154, %v1146
        %v1323 = vpack.c.b16 %v1155, %v1147
        %v1324 = vpack.c.b16 %v1156, %v1148
        %v1325 = vpack.c.b16 %v1157, %v1149
        %v1326 = vpack.c.b16 %v1158, %v1150
        %v1327 = vpack.c.b16 %v1167, %v1159
        %v1328 = vpack.c.b16 %v1168, %v1160
        %v1329 = vpack.c.b16 %v1169, %v1161
        %v1330 = vpack.c.b16 %v1170, %v1162
        %v1331 = vpack.c.b16 %v1171, %v1163
        %v1332 = vpack.c.b16 %v1172, %v1164
        %v1333 = vpack.c.b16 %v1173, %v1165
        %v1334 = vpack.c.b16 %v1174, %v1166
        %v1335 = vpack.c.b16 %v1183, %v1175
        %v1336 = vpack.c.b16 %v1184, %v1176
        %v1337 = vpack.c.b16 %v1185, %v1177
        %v1338 = vpack.c.b16 %v1186, %v1178
        %v1339 = vpack.c.b16 %v1187, %v1179
        %v1340 = vpack.c.b16 %v1188, %v1180
        %v1341 = vpack.c.b16 %v1189, %v1181
        %v1342 = vpack.c.b16 %v1190, %v1182
        %v1343 = vpack.c.b16 %v1199, %v1191
        %v1344 = vpack.c.b16 %v1200, %v1192
        %v1345 = vpack.c.b16 %v1201, %v1193
        %v1346 = vpack.c.b16 %v1202, %v1194
        %v1347 = vpack.c.b16 %v1203, %v1195
        %v1348 = vpack.c.b16 %v1204, %v1196
        %v1349 = vpack.c.b16 %v1205, %v1197
        %v1350 = vpack.c.b16 %v1206, %v1198
        %v1351 = vpack.c.b16 %v1215, %v1207
        %v1352 = vpack.c.b16 %v1216, %v1208
        %v1353 = vpack.c.b16 %v1217, %v1209
        %v1354 = vpack.c.b16 %v1218, %v1210
        %v1355 = vpack.c.b16 %v1219, %v1211
        %v1356 = vpack.c.b16 %v1220, %v1212
        %v1357 = vpack.c.b16 %v1221, %v1213
        %v1358 = vpack.c.b16 %v1222, %v1214
        %v1359 = vpack.c.b16 %v1231, %v1223
        %v1360 = vpack.c.b16 %v1232, %v1224
        %v1361 = vpack.c.b16 %v1233, %v1225
        %v1362 = vpack.c.b16 %v1234, %v1226
        %v1363 = vpack.c.b16 %v1235, %v1227
        %v1364 = vpack.c.b16 %v1236, %v1228
        %v1365 = vpack.c.b16 %v1237, %v1229
        %v1366 = vpack.c.b16 %v1238, %v1230
        %1495 = vmatprep.subr.bf16.mxu0 %v1240
        %1496 = vmatpush1.bf16.xpose.msra.mxu0 %v1239
        %1497 = vmatprep.subr.bf16.mxu0 %v1248
        %1498 = vmatpush1.bf16.xpose.msra.mxu0 %v1247
        %1499 = vmatprep.subr.bf16.mxu0 %v1256
        %1500 = vmatpush1.bf16.xpose.msra.mxu0 %v1255
        %1501 = vmatprep.subr.bf16.mxu0 %v1264
        %1502 = vmatpush1.bf16.xpose.msra.mxu0 %v1263
        %1503 = vmatprep.subr.bf16.mxu0 %v1272
        %1504 = vmatpush1.bf16.xpose.msra.mxu0 %v1271
        %1505 = vmatprep.subr.bf16.mxu0 %v1280
        %1506 = vmatpush1.bf16.xpose.msra.mxu0 %v1279
        %1507 = vmatprep.subr.bf16.mxu0 %v1288
        %1508 = vmatpush1.bf16.xpose.msra.mxu0 %v1287
        %1509 = vmatprep.subr.bf16.mxu0 %v1296
        %1510 = vmatpush1.bf16.xpose.msra.mxu0 %v1295
        %1511 = vmatprep.subr.bf16.mxu0 %v1304
        %1512 = vmatpush1.bf16.xpose.msra.mxu0 %v1303
        %1513 = vmatprep.subr.bf16.mxu0 %v1312
        %1514 = vmatpush1.bf16.xpose.msra.mxu0 %v1311
        %1515 = vmatprep.subr.bf16.mxu0 %v1320
        %1516 = vmatpush1.bf16.xpose.msra.mxu0 %v1319
        %1517 = vmatprep.subr.bf16.mxu0 %v1328
        %1518 = vmatpush1.bf16.xpose.msra.mxu0 %v1327
        %1519 = vmatprep.subr.bf16.mxu0 %v1336
        %1520 = vmatpush1.bf16.xpose.msra.mxu0 %v1335
        %1521 = vmatprep.subr.bf16.mxu0 %v1344
        %1522 = vmatpush1.bf16.xpose.msra.mxu0 %v1343
        %1523 = vmatprep.subr.bf16.mxu0 %v1352
        %1524 = vmatpush1.bf16.xpose.msra.mxu0 %v1351
        %1525 = vmatprep.subr.bf16.mxu0 %v1360
        %1526 = vmatpush1.bf16.xpose.msra.mxu0 %v1359
        %1527 = vmatprep.mubr.bf16.mxu0 %v824
        %1528 = vmatmul.mubr.bf16.gmra.mrb[0].mxu0 %v823
        %v1529 = vpop.f32.mrb[0].mxu0
        %v1530 = vadd.f32 0.0, %v1529
        %v1531 = vpop.f32.mrb[0].mxu0
        %v1532 = vadd.f32 0.0, %v1531
        %v1533 = vpop.f32.mrb[0].mxu0
        %v1534 = vadd.f32 0.0, %v1533
        %v1535 = vpop.f32.mrb[0].mxu0
        %v1536 = vadd.f32 0.0, %v1535
        %1537 = vmatprep.mubr.bf16.mxu0 %v832
        %1538 = vmatmul.mubr.bf16.gmra.mrb[0].mxu0 %v831
        %v1539 = vpop.f32.mrb[0].mxu0
        %v1540 = vadd.f32 0.0, %v1539
        %v1541 = vpop.f32.mrb[0].mxu0
        %v1542 = vadd.f32 0.0, %v1541
        %v1543 = vpop.f32.mrb[0].mxu0
        %v1544 = vadd.f32 0.0, %v1543
        %v1545 = vpop.f32.mrb[0].mxu0
        %v1546 = vadd.f32 0.0, %v1545
        %1547 = vdwg.mxu0
        %1548 = vmatprep.subr.bf16.mxu0 %v1242
        %1549 = vmatpush1.bf16.xpose.msra.mxu0 %v1241
        %1550 = vmatprep.subr.bf16.mxu0 %v1250
        %1551 = vmatpush1.bf16.xpose.msra.mxu0 %v1249
        %1552 = vmatprep.subr.bf16.mxu0 %v1258
        %1553 = vmatpush1.bf16.xpose.msra.mxu0 %v1257
        %1554 = vmatprep.subr.bf16.mxu0 %v1266
        %1555 = vmatpush1.bf16.xpose.msra.mxu0 %v1265
        %1556 = vmatprep.subr.bf16.mxu0 %v1274
        %1557 = vmatpush1.bf16.xpose.msra.mxu0 %v1273
        %1558 = vmatprep.subr.bf16.mxu0 %v1282
        %1559 = vmatpush1.bf16.xpose.msra.mxu0 %v1281
        %1560 = vmatprep.subr.bf16.mxu0 %v1290
        %1561 = vmatpush1.bf16.xpose.msra.mxu0 %v1289
        %1562 = vmatprep.subr.bf16.mxu0 %v1298
        %1563 = vmatpush1.bf16.xpose.msra.mxu0 %v1297
        %1564 = vmatprep.subr.bf16.mxu0 %v1306
        %1565 = vmatpush1.bf16.xpose.msra.mxu0 %v1305
        %1566 = vmatprep.subr.bf16.mxu0 %v1314
        %1567 = vmatpush1.bf16.xpose.msra.mxu0 %v1313
        %1568 = vmatprep.subr.bf16.mxu0 %v1322
        %1569 = vmatpush1.bf16.xpose.msra.mxu0 %v1321
        %1570 = vmatprep.subr.bf16.mxu0 %v1330
        %1571 = vmatpush1.bf16.xpose.msra.mxu0 %v1329
        %1572 = vmatprep.subr.bf16.mxu0 %v1338
        %1573 = vmatpush1.bf16.xpose.msra.mxu0 %v1337
        %1574 = vmatprep.subr.bf16.mxu0 %v1346
        %1575 = vmatpush1.bf16.xpose.msra.mxu0 %v1345
        %1576 = vmatprep.subr.bf16.mxu0 %v1354
        %1577 = vmatpush1.bf16.xpose.msra.mxu0 %v1353
        %1578 = vmatprep.subr.bf16.mxu0 %v1362
        %1579 = vmatpush1.bf16.xpose.msra.mxu0 %v1361
        %1580 = vmatprep.mubr.bf16.mxu0 %v826
        %1581 = vmatmul.mubr.bf16.gmra.mrb[0].mxu0 %v825
        %v1582 = vpop.f32.mrb[0].mxu0
        %v1583 = vadd.f32 %v1530, %v1582
        %v1584 = vpop.f32.mrb[0].mxu0
        %v1585 = vadd.f32 %v1532, %v1584
        %v1586 = vpop.f32.mrb[0].mxu0
        %v1587 = vadd.f32 %v1534, %v1586
        %v1588 = vpop.f32.mrb[0].mxu0
        %v1589 = vadd.f32 %v1536, %v1588
        %1590 = vmatprep.mubr.bf16.mxu0 %v834
        %1591 = vmatmul.mubr.bf16.gmra.mrb[0].mxu0 %v833
        %v1592 = vpop.f32.mrb[0].mxu0
        %v1593 = vadd.f32 %v1540, %v1592
        %v1594 = vpop.f32.mrb[0].mxu0
        %v1595 = vadd.f32 %v1542, %v1594
        %v1596 = vpop.f32.mrb[0].mxu0
        %v1597 = vadd.f32 %v1544, %v1596
        %v1598 = vpop.f32.mrb[0].mxu0
        %v1599 = vadd.f32 %v1546, %v1598
        %1600 = vdwg.mxu0
        %1601 = vmatprep.subr.bf16.mxu0 %v1244
        %1602 = vmatpush1.bf16.xpose.msra.mxu0 %v1243
        %1603 = vmatprep.subr.bf16.mxu0 %v1252
        %1604 = vmatpush1.bf16.xpose.msra.mxu0 %v1251
        %1605 = vmatprep.subr.bf16.mxu0 %v1260
        %1606 = vmatpush1.bf16.xpose.msra.mxu0 %v1259
        %1607 = vmatprep.subr.bf16.mxu0 %v1268
        %1608 = vmatpush1.bf16.xpose.msra.mxu0 %v1267
        %1609 = vmatprep.subr.bf16.mxu0 %v1276
        %1610 = vmatpush1.bf16.xpose.msra.mxu0 %v1275
        %1611 = vmatprep.subr.bf16.mxu0 %v1284
        %1612 = vmatpush1.bf16.xpose.msra.mxu0 %v1283
        %1613 = vmatprep.subr.bf16.mxu0 %v1292
        %1614 = vmatpush1.bf16.xpose.msra.mxu0 %v1291
        %1615 = vmatprep.subr.bf16.mxu0 %v1300
        %1616 = vmatpush1.bf16.xpose.msra.mxu0 %v1299
        %1617 = vmatprep.subr.bf16.mxu0 %v1308
        %1618 = vmatpush1.bf16.xpose.msra.mxu0 %v1307
        %1619 = vmatprep.subr.bf16.mxu0 %v1316
        %1620 = vmatpush1.bf16.xpose.msra.mxu0 %v1315
        %1621 = vmatprep.subr.bf16.mxu0 %v1324
        %1622 = vmatpush1.bf16.xpose.msra.mxu0 %v1323
        %1623 = vmatprep.subr.bf16.mxu0 %v1332
        %1624 = vmatpush1.bf16.xpose.msra.mxu0 %v1331
        %1625 = vmatprep.subr.bf16.mxu0 %v1340
        %1626 = vmatpush1.bf16.xpose.msra.mxu0 %v1339
        %1627 = vmatprep.subr.bf16.mxu0 %v1348
        %1628 = vmatpush1.bf16.xpose.msra.mxu0 %v1347
        %1629 = vmatprep.subr.bf16.mxu0 %v1356
        %1630 = vmatpush1.bf16.xpose.msra.mxu0 %v1355
        %1631 = vmatprep.subr.bf16.mxu0 %v1364
        %1632 = vmatpush1.bf16.xpose.msra.mxu0 %v1363
        %1633 = vmatprep.mubr.bf16.mxu0 %v828
        %1634 = vmatmul.mubr.bf16.gmra.mrb[0].mxu0 %v827
        %v1635 = vpop.f32.mrb[0].mxu0
        %v1636 = vadd.f32 %v1583, %v1635
        %v1637 = vpop.f32.mrb[0].mxu0
        %v1638 = vadd.f32 %v1585, %v1637
        %v1639 = vpop.f32.mrb[0].mxu0
        %v1640 = vadd.f32 %v1587, %v1639
        %v1641 = vpop.f32.mrb[0].mxu0
        %v1642 = vadd.f32 %v1589, %v1641
        %1643 = vmatprep.mubr.bf16.mxu0 %v836
        %1644 = vmatmul.mubr.bf16.gmra.mrb[0].mxu0 %v835
        %v1645 = vpop.f32.mrb[0].mxu0
        %v1646 = vadd.f32 %v1593, %v1645
        %v1647 = vpop.f32.mrb[0].mxu0
        %v1648 = vadd.f32 %v1595, %v1647
        %v1649 = vpop.f32.mrb[0].mxu0
        %v1650 = vadd.f32 %v1597, %v1649
        %v1651 = vpop.f32.mrb[0].mxu0
        %v1652 = vadd.f32 %v1599, %v1651
        %1653 = vdwg.mxu0
        %1654 = vmatprep.subr.bf16.mxu0 %v1246
        %1655 = vmatpush1.bf16.xpose.msra.mxu0 %v1245
        %1656 = vmatprep.subr.bf16.mxu0 %v1254
        %1657 = vmatpush1.bf16.xpose.msra.mxu0 %v1253
        %1658 = vmatprep.subr.bf16.mxu0 %v1262
        %1659 = vmatpush1.bf16.xpose.msra.mxu0 %v1261
        %1660 = vmatprep.subr.bf16.mxu0 %v1270
        %1661 = vmatpush1.bf16.xpose.msra.mxu0 %v1269
        %1662 = vmatprep.subr.bf16.mxu0 %v1278
        %1663 = vmatpush1.bf16.xpose.msra.mxu0 %v1277
        %1664 = vmatprep.subr.bf16.mxu0 %v1286
        %1665 = vmatpush1.bf16.xpose.msra.mxu0 %v1285
        %1666 = vmatprep.subr.bf16.mxu0 %v1294
        %1667 = vmatpush1.bf16.xpose.msra.mxu0 %v1293
        %1668 = vmatprep.subr.bf16.mxu0 %v1302
        %1669 = vmatpush1.bf16.xpose.msra.mxu0 %v1301
        %1670 = vmatprep.subr.bf16.mxu0 %v1310
        %1671 = vmatpush1.bf16.xpose.msra.mxu0 %v1309
        %1672 = vmatprep.subr.bf16.mxu0 %v1318
        %1673 = vmatpush1.bf16.xpose.msra.mxu0 %v1317
        %1674 = vmatprep.subr.bf16.mxu0 %v1326
        %1675 = vmatpush1.bf16.xpose.msra.mxu0 %v1325
        %1676 = vmatprep.subr.bf16.mxu0 %v1334
        %1677 = vmatpush1.bf16.xpose.msra.mxu0 %v1333
        %1678 = vmatprep.subr.bf16.mxu0 %v1342
        %1679 = vmatpush1.bf16.xpose.msra.mxu0 %v1341
        %1680 = vmatprep.subr.bf16.mxu0 %v1350
        %1681 = vmatpush1.bf16.xpose.msra.mxu0 %v1349
        %1682 = vmatprep.subr.bf16.mxu0 %v1358
        %1683 = vmatpush1.bf16.xpose.msra.mxu0 %v1357
        %1684 = vmatprep.subr.bf16.mxu0 %v1366
        %1685 = vmatpush1.bf16.xpose.msra.mxu0 %v1365
        %1686 = vmatprep.mubr.bf16.mxu0 %v830
        %1687 = vmatmul.mubr.bf16.gmra.mrb[0].mxu0 %v829
        %v1688 = vpop.f32.mrb[0].mxu0
        %v1689 = vadd.f32 %v1636, %v1688
        %v1690 = vpop.f32.mrb[0].mxu0
        %v1691 = vadd.f32 %v1638, %v1690
        %v1692 = vpop.f32.mrb[0].mxu0
        %v1693 = vadd.f32 %v1640, %v1692
        %v1694 = vpop.f32.mrb[0].mxu0
        %v1695 = vadd.f32 %v1642, %v1694
        %1696 = vmatprep.mubr.bf16.mxu0 %v838
        %1697 = vmatmul.mubr.bf16.gmra.mrb[0].mxu0 %v837
        %v1698 = vpop.f32.mrb[0].mxu0
        %v1699 = vadd.f32 %v1646, %v1698
        %v1700 = vpop.f32.mrb[0].mxu0
        %v1701 = vadd.f32 %v1648, %v1700
        %v1702 = vpop.f32.mrb[0].mxu0
        %v1703 = vadd.f32 %v1650, %v1702
        %v1704 = vpop.f32.mrb[0].mxu0
        %v1705 = vadd.f32 %v1652, %v1704
        %1706 = vdwg.mxu0
        %v1707 = vadd.f32 %v623, %v1689
        %v1708 = vadd.f32 %v624, %v1691
        %v1709 = vadd.f32 %v625, %v1693
        %v1710 = vadd.f32 %v626, %v1695
        %v1711 = vadd.f32 %v627, %v1699
        %v1712 = vadd.f32 %v628, %v1701
        %v1713 = vadd.f32 %v629, %v1703
        %v1714 = vadd.f32 %v630, %v1705
        %1715 = vst [vmem:[#allocation2] sm:$0xff] %v1707
        %1716 = vst [vmem:[#allocation2 + $0x8] sm:$0xff] %v1708
        %1717 = vst [vmem:[#allocation2 + $0x10] sm:$0xff] %v1709
        %1718 = vst [vmem:[#allocation2 + $0x18] sm:$0xff] %v1710
        %1719 = vst [vmem:[#allocation2 + $0x20] sm:$0xff] %v1711
        %1720 = vst [vmem:[#allocation2 + $0x28] sm:$0xff] %v1712
        %1721 = vst [vmem:[#allocation2 + $0x30] sm:$0xff] %v1713
        %1722 = vst [vmem:[#allocation2 + $0x38] sm:$0xff] %v1714
        %p1723 = scmp.eq.s32.totalorder %s22, 3
        // Predicated region
        $region87: #{discriminator_forward.6} parent=73 // pred_check
          %p1724 = pneg %p1723
        $region88: #{discriminator_forward.6} parent=73 // pred_check_branch
          %1726 = sbr.rel (%p1724) target = $region90
        $region89: #{discriminator_forward.6} parent=73 // pred_region
          %v1727 = vld [vmem:[#allocation2] sm:$0xff]
          %v1728 = vld [vmem:[#allocation2 + $0x8] sm:$0xff]
          %v1729 = vld [vmem:[#allocation2 + $0x10] sm:$0xff]
          %v1730 = vld [vmem:[#allocation2 + $0x18] sm:$0xff]
          %v1731 = vld [vmem:[#allocation2 + $0x20] sm:$0xff]
          %v1732 = vld [vmem:[#allocation2 + $0x28] sm:$0xff]
          %v1733 = vld [vmem:[#allocation2 + $0x30] sm:$0xff]
          %v1734 = vld [vmem:[#allocation2 + $0x38] sm:$0xff]
          %v1735 = vld [vmem:[%s602] sm:$0x3]
          %v1737 = vlaneseq
          %v1738 = vshrl.u32 %v1737, 7
          %v1739 = vsub.s32 0, %v1738
          %v1740 = vrot.slane %v1735, %v1739
          %v1741 = vlaneseq
          %v1742 = vshrl.u32 %v1741, 7
          %v1743 = vsub.s32 1, %v1742
          %v1744 = vrot.slane %v1735, %v1743
          %v1747 = vmul.f32 %v1727, %v1740
          %v1748 = vmul.f32 %v1728, %v1744
          %v1749 = vmul.f32 %v1729, %v1740
          %v1750 = vmul.f32 %v1730, %v1744
          %v1751 = vmul.f32 %v1731, %v1740
          %v1752 = vmul.f32 %v1732, %v1744
          %v1753 = vmul.f32 %v1733, %v1740
          %v1754 = vmul.f32 %v1734, %v1744
          %v1755 = vld [vmem:[%s607] sm:$0x3]
          %v1757 = vlaneseq
          %v1758 = vshrl.u32 %v1757, 7
          %v1759 = vsub.s32 0, %v1758
          %v1760 = vrot.slane %v1755, %v1759
          %v1761 = vlaneseq
          %v1762 = vshrl.u32 %v1761, 7
          %v1763 = vsub.s32 1, %v1762
          %v1764 = vrot.slane %v1755, %v1763
          %v1767 = vadd.f32 %v1747, %v1760
          %v1768 = vadd.f32 %v1748, %v1764
          %v1769 = vadd.f32 %v1749, %v1760
          %v1770 = vadd.f32 %v1750, %v1764
          %v1771 = vadd.f32 %v1751, %v1760
          %v1772 = vadd.f32 %v1752, %v1764
          %v1773 = vadd.f32 %v1753, %v1760
          %v1774 = vadd.f32 %v1754, %v1764
          %vm1775 = vcmp.ge.f32.partialorder %v1767, 0.0
          %vm1776 = vcmp.ge.f32.partialorder %v1768, 0.0
          %vm1777 = vcmp.ge.f32.partialorder %v1769, 0.0
          %vm1778 = vcmp.ge.f32.partialorder %v1770, 0.0
          %vm1779 = vcmp.ge.f32.partialorder %v1771, 0.0
          %vm1780 = vcmp.ge.f32.partialorder %v1772, 0.0
          %vm1781 = vcmp.ge.f32.partialorder %v1773, 0.0
          %vm1782 = vcmp.ge.f32.partialorder %v1774, 0.0
          %v1783 = vmul.f32 %v1767, 0.2
          %v1784 = vmul.f32 %v1768, 0.2
          %v1785 = vmul.f32 %v1769, 0.2
          %v1786 = vmul.f32 %v1770, 0.2
          %v1787 = vmul.f32 %v1771, 0.2
          %v1788 = vmul.f32 %v1772, 0.2
          %v1789 = vmul.f32 %v1773, 0.2
          %v1790 = vmul.f32 %v1774, 0.2
          %v1791 = vsel %vm1775, %v1767, %v1783
          %v1792 = vsel %vm1776, %v1768, %v1784
          %v1793 = vsel %vm1777, %v1769, %v1785
          %v1794 = vsel %vm1778, %v1770, %v1786
          %v1795 = vsel %vm1779, %v1771, %v1787
          %v1796 = vsel %vm1780, %v1772, %v1788
          %v1797 = vsel %vm1781, %v1773, %v1789
          %v1798 = vsel %vm1782, %v1774, %v1790
          %v1799 = vpack.c.bf16 %v1793, %v1791
          %v1800 = vpack.c.bf16 %v1794, %v1792
          %v1801 = vpack.c.bf16 %v1797, %v1795
          %v1802 = vpack.c.bf16 %v1798, %v1796
          %v1807 = vunpack.c.l.b16 %v1799
          %v1808 = vunpack.c.l.b16 %v1800
          %v1809 = vunpack.c.h.b16 %v1799
          %v1810 = vunpack.c.h.b16 %v1800
          %v1811 = vunpack.c.l.b16 %v1801
          %v1812 = vunpack.c.l.b16 %v1802
          %v1813 = vunpack.c.h.b16 %v1801
          %v1814 = vunpack.c.h.b16 %v1802
          %v1815 = vpack.c.b16 %v1808, %v1807
          %v1816 = vpack.c.b16 %v1810, %v1809
          %v1817 = vpack.c.b16 %v1812, %v1811
          %v1818 = vpack.c.b16 %v1814, %v1813
          %1823 = vst [vmem:[%s594] sm:$0xff] %v1815
          %1824 = vst [vmem:[%s594 + $0x8] sm:$0xff] %v1816
          %1825 = vst [vmem:[%s594 + $0x10] sm:$0xff] %v1817
          %1826 = vst [vmem:[%s594 + $0x18] sm:$0xff] %v1818
        $region90: #{discriminator_forward.6} parent=73 // pred_fallthru
          _
        %s1827 = sand.u32 %s152, 1
        %s1828 = sand.u32 %s152, 1
        %s1829 = smul.addr %s1828, 32
        %s1830 = scalar_lea.vmem [#allocation5], %s1829
        // Predicated region
        $region91: #{discriminator_forward.6} parent=73 // pred_check
          %p1831 = pneg %p162
        $region92: #{discriminator_forward.6} parent=73 // pred_check_branch
          %1833 = sbr.rel (%p1831) target = $region94
        $region93: #{discriminator_forward.6} parent=73 // pred_region
          %s1834 = smul.u32 4, %s20
          %s1835 = smul.u32 2, %s21
          %s1836 = smul.addr %s1834, 4
          %s1837 = sadd.s32 %s1835, %s1836
          %s1838 = smul.addr %s1837, 4
          %s1839 = scalar_lea.vmem %s4, %s1838
          // Predicated region
          $region95: #{discriminator_forward.6} parent=93 // pred_check
            _
          $region96: #{discriminator_forward.6} parent=93 // pred_check_branch
            %1841 = sbr.rel (0) target = $region98
          $region97: #{discriminator_forward.6} parent=93 // pred_region
            // Predicated region
            $region99: #{discriminator_forward.6} parent=97 // pred_check
              _
            $region100: #{discriminator_forward.6} parent=97 // pred_check_branch
              %1843 = sbr.rel (0) target = $region102
            $region101: #{discriminator_forward.6} parent=97 // pred_region
              // Predicated region
              $region114: #{discriminator_forward.6} parent=101 // pred_check
                _
              $region115: #{discriminator_forward.6} parent=101 // pred_check_branch
                %1864 = sbr.rel (0) target = $region117
              $region116: #{discriminator_forward.6} parent=101 // pred_region
                loop: start=0, step=1, limit=1
                $region118: #{discriminator_forward.6} parent=116 // loop_pre_header
                  _
                $region119: #{discriminator_forward.6} parent=116 // loop_header
                  %s1866 = sphi 0, %s1870
                  %p1867 = scmp.ge.s32.totalorder %s1866, 1
                  %s1871 = sphi %s1830, %s1830
                  %s1872 = sphi %s1839, %s1839
                $region120: #{discriminator_forward.6} parent=116 // loop_header_branch
                  %1869 = sbr.rel (%p1867) target = $region124
                $region121: #{discriminator_forward.6} parent=116 // loop_body
                  %v1873 = vld [vmem:[%s1871] sm:$0xff]
                  %1874 = vst [vmem:[%s1872] sm:$0xff] %v1873
                  %v1875 = vld [vmem:[%s1871 + $0x8] sm:$0xff]
                  %1876 = vst [vmem:[%s1872 + $0x10] sm:$0xff] %v1875
                  %v1877 = vld [vmem:[%s1871 + $0x10] sm:$0xff]
                  %1878 = vst [vmem:[%s1872 + $0x20] sm:$0xff] %v1877
                  %v1879 = vld [vmem:[%s1871 + $0x18] sm:$0xff]
                  %1880 = vst [vmem:[%s1872 + $0x30] sm:$0xff] %v1879
                $region122: #{discriminator_forward.6} parent=116 // loop_footer
                  %s1870 = sadd.s32 1, %s1866
                $region123: #{discriminator_forward.6} parent=116 // loop_footer_branch
                  %1865 = sbr.rel target = $region119
                $region124: #{discriminator_forward.6} parent=116 // loop_exit
                  _
              $region117: #{discriminator_forward.6} parent=101 // pred_fallthru
                _
              // Predicated region
              $region125: #{discriminator_forward.6} parent=101 // pred_check
                _
              $region126: #{discriminator_forward.6} parent=101 // pred_check_branch
                %1882 = sbr.rel target = $region128
              $region127: #{discriminator_forward.6} parent=101 // pred_region
                _
              $region128: #{discriminator_forward.6} parent=101 // pred_fallthru
                _
            $region102: #{discriminator_forward.6} parent=97 // pred_fallthru
              _
            // Predicated region
            $region103: #{discriminator_forward.6} parent=97 // pred_check
              _
            $region104: #{discriminator_forward.6} parent=97 // pred_check_branch
              %1845 = sbr.rel target = $region106
            $region105: #{discriminator_forward.6} parent=97 // pred_region
              loop: start=0, step=1, limit=1
              $region107: #{discriminator_forward.6} parent=105 // loop_pre_header
                _
              $region108: #{discriminator_forward.6} parent=105 // loop_header
                %s1848 = sphi 0, %s1852
                %p1849 = scmp.ge.s32.totalorder %s1848, 1
                %s1853 = sphi %s1830, %s1830
                %s1854 = sphi %s1839, %s1839
              $region109: #{discriminator_forward.6} parent=105 // loop_header_branch
                %1851 = sbr.rel (%p1849) target = $region113
              $region110: #{discriminator_forward.6} parent=105 // loop_body
                %v1855 = vld [vmem:[%s1853] sm:$0xff]
                %1856 = vst [vmem:[%s1854] sm:$0xff] %v1855
                %v1857 = vld [vmem:[%s1853 + $0x8] sm:$0xff]
                %1858 = vst [vmem:[%s1854 + $0x10] sm:$0xff] %v1857
                %v1859 = vld [vmem:[%s1853 + $0x10] sm:$0xff]
                %1860 = vst [vmem:[%s1854 + $0x20] sm:$0xff] %v1859
                %v1861 = vld [vmem:[%s1853 + $0x18] sm:$0xff]
                %1862 = vst [vmem:[%s1854 + $0x30] sm:$0xff] %v1861
              $region111: #{discriminator_forward.6} parent=105 // loop_footer
                %s1852 = sadd.s32 1, %s1848
              $region112: #{discriminator_forward.6} parent=105 // loop_footer_branch
                %1847 = sbr.rel target = $region108
              $region113: #{discriminator_forward.6} parent=105 // loop_exit
                _
            $region106: #{discriminator_forward.6} parent=97 // pred_fallthru
              _
          $region98: #{discriminator_forward.6} parent=93 // pred_fallthru
            _
          %1883 = vnop
        $region94: #{discriminator_forward.6} parent=73 // pred_fallthru
          _
      $region74: #{discriminator_forward.6} parent=5 // pred_fallthru
        _
      %p1884 = scmp.le.s32.totalorder 2, %s10
      // Predicated region
      $region129: #{discriminator_forward.6} parent=5 // pred_check
        %p1885 = pneg %p1884
      $region130: #{discriminator_forward.6} parent=5 // pred_check_branch
        %1887 = sbr.rel (%p1885) target = $region132
      $region131: #{discriminator_forward.6} parent=5 // pred_region
        %s1888 = ssub.s32 %s10, 2
        // Predicated region
        $region133: #{discriminator_forward.6} parent=131 // pred_check
          %p1889 = pneg %p168
        $region134: #{discriminator_forward.6} parent=131 // pred_check_branch
          %1891 = sbr.rel (%p1889) target = $region136
        $region135: #{discriminator_forward.6} parent=131 // pred_region
          %s1892 = sand.u32 %s153, 1
          %s1893 = sand.u32 %s153, 1
          %s1894 = smul.addr %s1893, 32
          %s1895 = scalar_lea.vmem [#allocation5], %s1894
        $region136: #{discriminator_forward.6} parent=131 // pred_fallthru
          _
      $region132: #{discriminator_forward.6} parent=5 // pred_fallthru
        _
    $region6: #{discriminator_forward.6} parent=1 // loop_footer
      %s14 = sadd.s32 1, %s10
    $region7: #{discriminator_forward.6} parent=1 // loop_footer_branch
      %9 = sbr.rel target = $region3
    $region8: #{discriminator_forward.6} parent=1 // loop_exit
      _

// kernel: discriminator_forward.7
$region0: #{discriminator_forward.7}
  #allocation0 [shape = 'u32[]', space=smem, size = 0x4, offset = 0x4, fixed_abs, tag = 'smem constant byte address 0x4 - core index']
  #allocation1 [shape = 'u32[144,128]{1,0:T(1,128)}', space=vmem, size = 0x12000, scoped, tag = 'internal scratch']
  #allocation2 [shape = 'f32[16,128]{1,0:T(8,128)}', space=vmem, size = 0x2000, scoped, tag = 'scratch operand']
  %s0 = inlined_call_operand.vmem [shape: bf16[16,8192], index: 0, kind: input, shape index: {}]
  %s1 = inlined_call_operand.vmem [shape: bf16[128,8192], index: 1, kind: input, shape index: {}]
  %s2 = inlined_call_operand.vmem [shape: f32[1,128], index: 2, kind: input, shape index: {}]
  %s3 = inlined_call_operand.vmem [shape: f32[1,128], index: 3, kind: input, shape index: {}]
  %s4 = inlined_call_operand.vmem [shape: bf16[128,128], index: 4, kind: input, shape index: {}]
  %s5 = inlined_call_operand.vmem [shape: f32[1,128], index: 5, kind: input, shape index: {}]
  %s6 = inlined_call_operand.vmem [shape: f32[1,128], index: 6, kind: input, shape index: {}]
  %s7 = inlined_call_operand.vmem [shape: f32[16,128], index: 7, kind: output, shape index: {}]
  %s8 = sld [smem:[#allocation0]]
  $region115: #{discriminator_forward.7} parent=0
    _
  %s10 = ssub.s32 1, %s8
  %s11 = scalar_select 0, %s10, %s8
  $region1: #{discriminator_forward.7} parent=0
    #allocation3 [shape = 'u8[65536]{0}', space=vmem, size = 0x10000, scoped, tag = 'input window, operand 0']
    #allocation4 [shape = 'u8[524288]{0}', space=vmem, size = 0x80000, scoped, tag = 'input window, operand 1']
    loop: start=0, step=1, limit=10
    $region2: #{discriminator_forward.7} parent=1 // loop_pre_header
      _
    $region3: #{discriminator_forward.7} parent=1 // loop_header
      %s13 = sphi 0, %s17
      %p14 = scmp.ge.s32.totalorder %s13, 10
      %s23 = sphi 0, %s25
      %s26 = sphi 0, %s23
      %s27 = sphi 0, %s26
      %s43 = sphi 0, %s27
      %s49 = sphi 0, %s51
      %s52 = sphi 0, %s49
      %s53 = sphi 0, %s52
      %s69 = sphi 0, %s53
      %s73 = sphi 0, %s73
      %s75 = sphi 0, %s73
      %s76 = sphi 0, %s75
      %s90 = sphi 0, %s76
      %s94 = sphi 0, %s94
      %s96 = sphi 0, %s94
      %s97 = sphi 0, %s96
      %s111 = sphi 0, %s97
      %s115 = sphi 0, %s115
      %s117 = sphi 0, %s115
      %s118 = sphi 0, %s117
      %s132 = sphi 0, %s118
      %s136 = sphi 0, %s136
      %s138 = sphi 0, %s136
      %s139 = sphi 0, %s138
      %s153 = sphi 0, %s139
      %s157 = sphi 0, %s157
      %s159 = sphi 0, %s157
      %s160 = sphi 0, %s159
      %s174 = sphi 0, %s160
      %s178 = sphi 0, %s178
      %s180 = sphi 0, %s178
      %s181 = sphi 0, %s180
      %s195 = sphi 0, %s181
    $region4: #{discriminator_forward.7} parent=1 // loop_header_branch
      %16 = sbr.rel (%p14) target = $region8
    $region5: #{discriminator_forward.7} parent=1 // loop_body
      %s18 = ssub.s32 %s13, 1
      %s19 = ssub.s32 %s13, 2
      %s20 = sadd.s32 %s13, 1
      %s21 = ssub.s32 %s13, %s20
      %p22 = scmp.eq.s32.totalorder %s21, 0
      %s24 = sadd.s32 %s23, 1
      %s25 = scalar_select %p22, %s23, %s24
      %p28 = pneg %p22
      %p29 = scmp.eq.s32.totalorder %s13, 7
      %p30 = por %p28, %p29
      %p31 = scmp.ne.s32.totalorder %s23, %s26
      %p32 = scmp.eq.s32.totalorder %s13, 0
      %p33 = por %p31, %p32
      %p34 = scmp.ne.s32.totalorder %s23, %s26
      %p35 = scmp.eq.s32.totalorder %s18, 7
      %p36 = por %p34, %p35
      %p37 = scmp.ne.s32.totalorder %s26, %s27
      %p38 = scmp.eq.s32.totalorder %s18, 0
      %p39 = por %p37, %p38
      %p40 = scmp.ne.s32.totalorder %s26, %s27
      %p41 = scmp.eq.s32.totalorder %s19, 7
      %p42 = por %p40, %p41
      %p44 = scmp.ne.s32.totalorder %s27, %s43
      %p45 = scmp.eq.s32.totalorder %s19, 0
      %p46 = por %p44, %p45
      %s47 = ssub.s32 %s13, %s20
      %p48 = scmp.eq.s32.totalorder %s47, 0
      %s50 = sadd.s32 %s49, 1
      %s51 = scalar_select %p48, %s49, %s50
      %p54 = pneg %p48
      %p55 = scmp.eq.s32.totalorder %s13, 7
      %p56 = por %p54, %p55
      %p57 = scmp.ne.s32.totalorder %s49, %s52
      %p58 = scmp.eq.s32.totalorder %s13, 0
      %p59 = por %p57, %p58
      %p60 = scmp.ne.s32.totalorder %s49, %s52
      %p61 = scmp.eq.s32.totalorder %s18, 7
      %p62 = por %p60, %p61
      %p63 = scmp.ne.s32.totalorder %s52, %s53
      %p64 = scmp.eq.s32.totalorder %s18, 0
      %p65 = por %p63, %p64
      %p66 = scmp.ne.s32.totalorder %s52, %s53
      %p67 = scmp.eq.s32.totalorder %s19, 7
      %p68 = por %p66, %p67
      %p70 = scmp.ne.s32.totalorder %s53, %s69
      %p71 = scmp.eq.s32.totalorder %s19, 0
      %p72 = por %p70, %p71
      %s74 = sadd.s32 %s73, 1
      %p77 = scmp.eq.s32.totalorder %s13, 7
      %p78 = scmp.ne.s32.totalorder %s73, %s75
      %p79 = scmp.eq.s32.totalorder %s13, 0
      %p80 = por %p78, %p79
      %p81 = scmp.ne.s32.totalorder %s73, %s75
      %p82 = scmp.eq.s32.totalorder %s18, 7
      %p83 = por %p81, %p82
      %p84 = scmp.ne.s32.totalorder %s75, %s76
      %p85 = scmp.eq.s32.totalorder %s18, 0
      %p86 = por %p84, %p85
      %p87 = scmp.ne.s32.totalorder %s75, %s76
      %p88 = scmp.eq.s32.totalorder %s19, 7
      %p89 = por %p87, %p88
      %p91 = scmp.ne.s32.totalorder %s76, %s90
      %p92 = scmp.eq.s32.totalorder %s19, 0
      %p93 = por %p91, %p92
      %s95 = sadd.s32 %s94, 1
      %p98 = scmp.eq.s32.totalorder %s13, 7
      %p99 = scmp.ne.s32.totalorder %s94, %s96
      %p100 = scmp.eq.s32.totalorder %s13, 0
      %p101 = por %p99, %p100
      %p102 = scmp.ne.s32.totalorder %s94, %s96
      %p103 = scmp.eq.s32.totalorder %s18, 7
      %p104 = por %p102, %p103
      %p105 = scmp.ne.s32.totalorder %s96, %s97
      %p106 = scmp.eq.s32.totalorder %s18, 0
      %p107 = por %p105, %p106
      %p108 = scmp.ne.s32.totalorder %s96, %s97
      %p109 = scmp.eq.s32.totalorder %s19, 7
      %p110 = por %p108, %p109
      %p112 = scmp.ne.s32.totalorder %s97, %s111
      %p113 = scmp.eq.s32.totalorder %s19, 0
      %p114 = por %p112, %p113
      %s116 = sadd.s32 %s115, 1
      %p119 = scmp.eq.s32.totalorder %s13, 7
      %p120 = scmp.ne.s32.totalorder %s115, %s117
      %p121 = scmp.eq.s32.totalorder %s13, 0
      %p122 = por %p120, %p121
      %p123 = scmp.ne.s32.totalorder %s115, %s117
      %p124 = scmp.eq.s32.totalorder %s18, 7
      %p125 = por %p123, %p124
      %p126 = scmp.ne.s32.totalorder %s117, %s118
      %p127 = scmp.eq.s32.totalorder %s18, 0
      %p128 = por %p126, %p127
      %p129 = scmp.ne.s32.totalorder %s117, %s118
      %p130 = scmp.eq.s32.totalorder %s19, 7
      %p131 = por %p129, %p130
      %p133 = scmp.ne.s32.totalorder %s118, %s132
      %p134 = scmp.eq.s32.totalorder %s19, 0
      %p135 = por %p133, %p134
      %s137 = sadd.s32 %s136, 1
      %p140 = scmp.eq.s32.totalorder %s13, 7
      %p141 = scmp.ne.s32.totalorder %s136, %s138
      %p142 = scmp.eq.s32.totalorder %s13, 0
      %p143 = por %p141, %p142
      %p144 = scmp.ne.s32.totalorder %s136, %s138
      %p145 = scmp.eq.s32.totalorder %s18, 7
      %p146 = por %p144, %p145
      %p147 = scmp.ne.s32.totalorder %s138, %s139
      %p148 = scmp.eq.s32.totalorder %s18, 0
      %p149 = por %p147, %p148
      %p150 = scmp.ne.s32.totalorder %s138, %s139
      %p151 = scmp.eq.s32.totalorder %s19, 7
      %p152 = por %p150, %p151
      %p154 = scmp.ne.s32.totalorder %s139, %s153
      %p155 = scmp.eq.s32.totalorder %s19, 0
      %p156 = por %p154, %p155
      %s158 = sadd.s32 %s157, 1
      %p161 = scmp.eq.s32.totalorder %s13, 7
      %p162 = scmp.ne.s32.totalorder %s157, %s159
      %p163 = scmp.eq.s32.totalorder %s13, 0
      %p164 = por %p162, %p163
      %p165 = scmp.ne.s32.totalorder %s157, %s159
      %p166 = scmp.eq.s32.totalorder %s18, 7
      %p167 = por %p165, %p166
      %p168 = scmp.ne.s32.totalorder %s159, %s160
      %p169 = scmp.eq.s32.totalorder %s18, 0
      %p170 = por %p168, %p169
      %p171 = scmp.ne.s32.totalorder %s159, %s160
      %p172 = scmp.eq.s32.totalorder %s19, 7
      %p173 = por %p171, %p172
      %p175 = scmp.ne.s32.totalorder %s160, %s174
      %p176 = scmp.eq.s32.totalorder %s19, 0
      %p177 = por %p175, %p176
      %s179 = sadd.s32 %s178, 1
      %p182 = scmp.eq.s32.totalorder %s13, 7
      %p183 = scmp.ne.s32.totalorder %s178, %s180
      %p184 = scmp.eq.s32.totalorder %s13, 0
      %p185 = por %p183, %p184
      %p186 = scmp.ne.s32.totalorder %s178, %s180
      %p187 = scmp.eq.s32.totalorder %s18, 7
      %p188 = por %p186, %p187
      %p189 = scmp.ne.s32.totalorder %s180, %s181
      %p190 = scmp.eq.s32.totalorder %s18, 0
      %p191 = por %p189, %p190
      %p192 = scmp.ne.s32.totalorder %s180, %s181
      %p193 = scmp.eq.s32.totalorder %s19, 7
      %p194 = por %p192, %p193
      %p196 = scmp.ne.s32.totalorder %s181, %s195
      %p197 = scmp.eq.s32.totalorder %s19, 0
      %p198 = por %p196, %p197
      %p199 = scmp.le.s32.totalorder 1, %s13
      %p200 = scmp.lt.s32.totalorder %s13, 9
      %p201 = pnand %p199, %p200
      %p202 = pneg %p201
      // Predicated region
      $region9: #{discriminator_forward.7} parent=5 // pred_check
        _
      $region10: #{discriminator_forward.7} parent=5 // pred_check_branch
        %204 = sbr.rel (%p201) target = $region12
      $region11: #{discriminator_forward.7} parent=5 // pred_region
        %s205 = ssub.s32 %s13, 1
        // Predicated region
        $region13: #{discriminator_forward.7} parent=11 // pred_check
          %p206 = pneg %p86
        $region14: #{discriminator_forward.7} parent=11 // pred_check_branch
          %208 = sbr.rel (%p206) target = $region16
        $region15: #{discriminator_forward.7} parent=11 // pred_region
          _
        $region16: #{discriminator_forward.7} parent=11 // pred_fallthru
          _
        // Predicated region
        $region17: #{discriminator_forward.7} parent=11 // pred_check
          %p209 = pneg %p107
        $region18: #{discriminator_forward.7} parent=11 // pred_check_branch
          %211 = sbr.rel (%p209) target = $region20
        $region19: #{discriminator_forward.7} parent=11 // pred_region
          _
        $region20: #{discriminator_forward.7} parent=11 // pred_fallthru
          _
        // Predicated region
        $region21: #{discriminator_forward.7} parent=11 // pred_check
          %p212 = pneg %p128
        $region22: #{discriminator_forward.7} parent=11 // pred_check_branch
          %214 = sbr.rel (%p212) target = $region24
        $region23: #{discriminator_forward.7} parent=11 // pred_region
          _
        $region24: #{discriminator_forward.7} parent=11 // pred_fallthru
          _
        // Predicated region
        $region25: #{discriminator_forward.7} parent=11 // pred_check
          %p215 = pneg %p149
        $region26: #{discriminator_forward.7} parent=11 // pred_check_branch
          %217 = sbr.rel (%p215) target = $region28
        $region27: #{discriminator_forward.7} parent=11 // pred_region
          _
        $region28: #{discriminator_forward.7} parent=11 // pred_fallthru
          _
        // Predicated region
        $region29: #{discriminator_forward.7} parent=11 // pred_check
          %p218 = pneg %p170
        $region30: #{discriminator_forward.7} parent=11 // pred_check_branch
          %220 = sbr.rel (%p218) target = $region32
        $region31: #{discriminator_forward.7} parent=11 // pred_region
          _
        $region32: #{discriminator_forward.7} parent=11 // pred_fallthru
          _
      $region12: #{discriminator_forward.7} parent=5 // pred_fallthru
        _
      %p221 = scmp.lt.s32.totalorder %s13, 8
      // Predicated region
      $region33: #{discriminator_forward.7} parent=5 // pred_check
        %p222 = pneg %p221
      $region34: #{discriminator_forward.7} parent=5 // pred_check_branch
        %224 = sbr.rel (%p222) target = $region36
      $region35: #{discriminator_forward.7} parent=5 // pred_region
        // Predicated region
        $region37: #{discriminator_forward.7} parent=35 // pred_check
          %p225 = pneg %p33
        $region38: #{discriminator_forward.7} parent=35 // pred_check_branch
          %227 = sbr.rel (%p225) target = $region40
        $region39: #{discriminator_forward.7} parent=35 // pred_region
          %s228 = sand.u32 %s23, 1
          %s229 = sand.u32 %s23, 1
          %s230 = smul.addr %s229, 64
          %s231 = scalar_lea.vmem [#allocation3], %s230
          %s232 = smul.u32 8, %s13
          %s233 = smul.addr %s232, 4
          %s234 = scalar_lea.vmem %s0, %s233
          // Predicated region
          $region41: #{discriminator_forward.7} parent=39 // pred_check
            _
          $region42: #{discriminator_forward.7} parent=39 // pred_check_branch
            %236 = sbr.rel (0) target = $region44
          $region43: #{discriminator_forward.7} parent=39 // pred_region
            // Predicated region
            $region45: #{discriminator_forward.7} parent=43 // pred_check
              _
            $region46: #{discriminator_forward.7} parent=43 // pred_check_branch
              %238 = sbr.rel (0) target = $region48
            $region47: #{discriminator_forward.7} parent=43 // pred_region
              loop: start=0, step=1, limit=1
              $region49: #{discriminator_forward.7} parent=47 // loop_pre_header
                _
              $region50: #{discriminator_forward.7} parent=47 // loop_header
                %s240 = sphi 0, %s244
                %p241 = scmp.ge.s32.totalorder %s240, 1
                %s245 = sphi %s234, %s234
                %s246 = sphi %s231, %s231
              $region51: #{discriminator_forward.7} parent=47 // loop_header_branch
                %243 = sbr.rel (%p241) target = $region55
              $region52: #{discriminator_forward.7} parent=47 // loop_body
                %v247 = vld [vmem:[%s245] sm:$0xff]
                %248 = vst [vmem:[%s246] sm:$0xff] %v247
                %v249 = vld [vmem:[%s245 + $0x8] sm:$0xff]
                %250 = vst [vmem:[%s246 + $0x8] sm:$0xff] %v249
                %v251 = vld [vmem:[%s245 + $0x10] sm:$0xff]
                %252 = vst [vmem:[%s246 + $0x10] sm:$0xff] %v251
                %v253 = vld [vmem:[%s245 + $0x18] sm:$0xff]
                %254 = vst [vmem:[%s246 + $0x18] sm:$0xff] %v253
                %v255 = vld [vmem:[%s245 + $0x100] sm:$0xff]
                %256 = vst [vmem:[%s246 + $0x20] sm:$0xff] %v255
                %v257 = vld [vmem:[%s245 + $0x108] sm:$0xff]
                %258 = vst [vmem:[%s246 + $0x28] sm:$0xff] %v257
                %v259 = vld [vmem:[%s245 + $0x110] sm:$0xff]
                %260 = vst [vmem:[%s246 + $0x30] sm:$0xff] %v259
                %v261 = vld [vmem:[%s245 + $0x118] sm:$0xff]
                %262 = vst [vmem:[%s246 + $0x38] sm:$0xff] %v261
              $region53: #{discriminator_forward.7} parent=47 // loop_footer
                %s244 = sadd.s32 1, %s240
              $region54: #{discriminator_forward.7} parent=47 // loop_footer_branch
                %239 = sbr.rel target = $region50
              $region55: #{discriminator_forward.7} parent=47 // loop_exit
                _
            $region48: #{discriminator_forward.7} parent=43 // pred_fallthru
              _
            // Predicated region
            $region56: #{discriminator_forward.7} parent=43 // pred_check
              _
            $region57: #{discriminator_forward.7} parent=43 // pred_check_branch
              %264 = sbr.rel target = $region59
            $region58: #{discriminator_forward.7} parent=43 // pred_region
              _
            $region59: #{discriminator_forward.7} parent=43 // pred_fallthru
              _
          $region44: #{discriminator_forward.7} parent=39 // pred_fallthru
            _
          %265 = vnop
        $region40: #{discriminator_forward.7} parent=35 // pred_fallthru
          _
        // Predicated region
        $region60: #{discriminator_forward.7} parent=35 // pred_check
          %p266 = pneg %p59
        $region61: #{discriminator_forward.7} parent=35 // pred_check_branch
          %268 = sbr.rel (%p266) target = $region63
        $region62: #{discriminator_forward.7} parent=35 // pred_region
          %s269 = sand.u32 %s49, 1
          %s270 = sand.u32 %s49, 1
          %s271 = smul.addr %s270, 512
          %s272 = scalar_lea.vmem [#allocation4], %s271
          %s273 = smul.u32 8, %s13
          %s274 = smul.addr %s273, 4
          %s275 = scalar_lea.vmem %s1, %s274
          // Predicated region
          $region64: #{discriminator_forward.7} parent=62 // pred_check
            _
          $region65: #{discriminator_forward.7} parent=62 // pred_check_branch
            %277 = sbr.rel (0) target = $region67
          $region66: #{discriminator_forward.7} parent=62 // pred_region
            // Predicated region
            $region68: #{discriminator_forward.7} parent=66 // pred_check
              _
            $region69: #{discriminator_forward.7} parent=66 // pred_check_branch
              %279 = sbr.rel (0) target = $region71
            $region70: #{discriminator_forward.7} parent=66 // pred_region
              loop: start=0, step=1, limit=1
              $region72: #{discriminator_forward.7} parent=70 // loop_pre_header
                _
              $region73: #{discriminator_forward.7} parent=70 // loop_header
                %s281 = sphi 0, %s285
                %p282 = scmp.ge.s32.totalorder %s281, 1
                %s286 = sphi %s275, %s275
                %s287 = sphi %s272, %s272
              $region74: #{discriminator_forward.7} parent=70 // loop_header_branch
                %284 = sbr.rel (%p282) target = $region78
              $region75: #{discriminator_forward.7} parent=70 // loop_body
                %v288 = vld [vmem:[%s286] sm:$0xff]
                %289 = vst [vmem:[%s287] sm:$0xff] %v288
                %v290 = vld [vmem:[%s286 + $0x8] sm:$0xff]
                %291 = vst [vmem:[%s287 + $0x8] sm:$0xff] %v290
                %v292 = vld [vmem:[%s286 + $0x10] sm:$0xff]
                %293 = vst [vmem:[%s287 + $0x10] sm:$0xff] %v292
                %v294 = vld [vmem:[%s286 + $0x18] sm:$0xff]
                %295 = vst [vmem:[%s287 + $0x18] sm:$0xff] %v294
                %v296 = vld [vmem:[%s286 + $0x100] sm:$0xff]
                %297 = vst [vmem:[%s287 + $0x20] sm:$0xff] %v296
                %v298 = vld [vmem:[%s286 + $0x108] sm:$0xff]
                %299 = vst [vmem:[%s287 + $0x28] sm:$0xff] %v298
                %v300 = vld [vmem:[%s286 + $0x110] sm:$0xff]
                %301 = vst [vmem:[%s287 + $0x30] sm:$0xff] %v300
                %v302 = vld [vmem:[%s286 + $0x118] sm:$0xff]
                %303 = vst [vmem:[%s287 + $0x38] sm:$0xff] %v302
                %v304 = vld [vmem:[%s286 + $0x200] sm:$0xff]
                %305 = vst [vmem:[%s287 + $0x40] sm:$0xff] %v304
                %v306 = vld [vmem:[%s286 + $0x208] sm:$0xff]
                %307 = vst [vmem:[%s287 + $0x48] sm:$0xff] %v306
                %v308 = vld [vmem:[%s286 + $0x210] sm:$0xff]
                %309 = vst [vmem:[%s287 + $0x50] sm:$0xff] %v308
                %v310 = vld [vmem:[%s286 + $0x218] sm:$0xff]
                %311 = vst [vmem:[%s287 + $0x58] sm:$0xff] %v310
                %v312 = vld [vmem:[%s286 + $0x300] sm:$0xff]
                %313 = vst [vmem:[%s287 + $0x60] sm:$0xff] %v312
                %v314 = vld [vmem:[%s286 + $0x308] sm:$0xff]
                %315 = vst [vmem:[%s287 + $0x68] sm:$0xff] %v314
                %v316 = vld [vmem:[%s286 + $0x310] sm:$0xff]
                %317 = vst [vmem:[%s287 + $0x70] sm:$0xff] %v316
                %v318 = vld [vmem:[%s286 + $0x318] sm:$0xff]
                %319 = vst [vmem:[%s287 + $0x78] sm:$0xff] %v318
                %v320 = vld [vmem:[%s286 + $0x400] sm:$0xff]
                %321 = vst [vmem:[%s287 + $0x80] sm:$0xff] %v320
                %v322 = vld [vmem:[%s286 + $0x408] sm:$0xff]
                %323 = vst [vmem:[%s287 + $0x88] sm:$0xff] %v322
                %v324 = vld [vmem:[%s286 + $0x410] sm:$0xff]
                %325 = vst [vmem:[%s287 + $0x90] sm:$0xff] %v324
                %v326 = vld [vmem:[%s286 + $0x418] sm:$0xff]
                %327 = vst [vmem:[%s287 + $0x98] sm:$0xff] %v326
                %v328 = vld [vmem:[%s286 + $0x500] sm:$0xff]
                %329 = vst [vmem:[%s287 + $0xa0] sm:$0xff] %v328
                %v330 = vld [vmem:[%s286 + $0x508] sm:$0xff]
                %331 = vst [vmem:[%s287 + $0xa8] sm:$0xff] %v330
                %v332 = vld [vmem:[%s286 + $0x510] sm:$0xff]
                %333 = vst [vmem:[%s287 + $0xb0] sm:$0xff] %v332
                %v334 = vld [vmem:[%s286 + $0x518] sm:$0xff]
                %335 = vst [vmem:[%s287 + $0xb8] sm:$0xff] %v334
                %v336 = vld [vmem:[%s286 + $0x600] sm:$0xff]
                %337 = vst [vmem:[%s287 + $0xc0] sm:$0xff] %v336
                %v338 = vld [vmem:[%s286 + $0x608] sm:$0xff]
                %339 = vst [vmem:[%s287 + $0xc8] sm:$0xff] %v338
                %v340 = vld [vmem:[%s286 + $0x610] sm:$0xff]
                %341 = vst [vmem:[%s287 + $0xd0] sm:$0xff] %v340
                %v342 = vld [vmem:[%s286 + $0x618] sm:$0xff]
                %343 = vst [vmem:[%s287 + $0xd8] sm:$0xff] %v342
                %v344 = vld [vmem:[%s286 + $0x700] sm:$0xff]
                %345 = vst [vmem:[%s287 + $0xe0] sm:$0xff] %v344
                %v346 = vld [vmem:[%s286 + $0x708] sm:$0xff]
                %347 = vst [vmem:[%s287 + $0xe8] sm:$0xff] %v346
                %v348 = vld [vmem:[%s286 + $0x710] sm:$0xff]
                %349 = vst [vmem:[%s287 + $0xf0] sm:$0xff] %v348
                %v350 = vld [vmem:[%s286 + $0x718] sm:$0xff]
                %351 = vst [vmem:[%s287 + $0xf8] sm:$0xff] %v350
                %v352 = vld [vmem:[%s286 + $0x800] sm:$0xff]
                %353 = vst [vmem:[%s287 + $0x100] sm:$0xff] %v352
                %v354 = vld [vmem:[%s286 + $0x808] sm:$0xff]
                %355 = vst [vmem:[%s287 + $0x108] sm:$0xff] %v354
                %v356 = vld [vmem:[%s286 + $0x810] sm:$0xff]
                %357 = vst [vmem:[%s287 + $0x110] sm:$0xff] %v356
                %v358 = vld [vmem:[%s286 + $0x818] sm:$0xff]
                %359 = vst [vmem:[%s287 + $0x118] sm:$0xff] %v358
                %v360 = vld [vmem:[%s286 + $0x900] sm:$0xff]
                %361 = vst [vmem:[%s287 + $0x120] sm:$0xff] %v360
                %v362 = vld [vmem:[%s286 + $0x908] sm:$0xff]
                %363 = vst [vmem:[%s287 + $0x128] sm:$0xff] %v362
                %v364 = vld [vmem:[%s286 + $0x910] sm:$0xff]
                %365 = vst [vmem:[%s287 + $0x130] sm:$0xff] %v364
                %v366 = vld [vmem:[%s286 + $0x918] sm:$0xff]
                %367 = vst [vmem:[%s287 + $0x138] sm:$0xff] %v366
                %v368 = vld [vmem:[%s286 + $0xa00] sm:$0xff]
                %369 = vst [vmem:[%s287 + $0x140] sm:$0xff] %v368
                %v370 = vld [vmem:[%s286 + $0xa08] sm:$0xff]
                %371 = vst [vmem:[%s287 + $0x148] sm:$0xff] %v370
                %v372 = vld [vmem:[%s286 + $0xa10] sm:$0xff]
                %373 = vst [vmem:[%s287 + $0x150] sm:$0xff] %v372
                %v374 = vld [vmem:[%s286 + $0xa18] sm:$0xff]
                %375 = vst [vmem:[%s287 + $0x158] sm:$0xff] %v374
                %v376 = vld [vmem:[%s286 + $0xb00] sm:$0xff]
                %377 = vst [vmem:[%s287 + $0x160] sm:$0xff] %v376
                %v378 = vld [vmem:[%s286 + $0xb08] sm:$0xff]
                %379 = vst [vmem:[%s287 + $0x168] sm:$0xff] %v378
                %v380 = vld [vmem:[%s286 + $0xb10] sm:$0xff]
                %381 = vst [vmem:[%s287 + $0x170] sm:$0xff] %v380
                %v382 = vld [vmem:[%s286 + $0xb18] sm:$0xff]
                %383 = vst [vmem:[%s287 + $0x178] sm:$0xff] %v382
                %v384 = vld [vmem:[%s286 + $0xc00] sm:$0xff]
                %385 = vst [vmem:[%s287 + $0x180] sm:$0xff] %v384
                %v386 = vld [vmem:[%s286 + $0xc08] sm:$0xff]
                %387 = vst [vmem:[%s287 + $0x188] sm:$0xff] %v386
                %v388 = vld [vmem:[%s286 + $0xc10] sm:$0xff]
                %389 = vst [vmem:[%s287 + $0x190] sm:$0xff] %v388
                %v390 = vld [vmem:[%s286 + $0xc18] sm:$0xff]
                %391 = vst [vmem:[%s287 + $0x198] sm:$0xff] %v390
                %v392 = vld [vmem:[%s286 + $0xd00] sm:$0xff]
                %393 = vst [vmem:[%s287 + $0x1a0] sm:$0xff] %v392
                %v394 = vld [vmem:[%s286 + $0xd08] sm:$0xff]
                %395 = vst [vmem:[%s287 + $0x1a8] sm:$0xff] %v394
                %v396 = vld [vmem:[%s286 + $0xd10] sm:$0xff]
                %397 = vst [vmem:[%s287 + $0x1b0] sm:$0xff] %v396
                %v398 = vld [vmem:[%s286 + $0xd18] sm:$0xff]
                %399 = vst [vmem:[%s287 + $0x1b8] sm:$0xff] %v398
                %v400 = vld [vmem:[%s286 + $0xe00] sm:$0xff]
                %401 = vst [vmem:[%s287 + $0x1c0] sm:$0xff] %v400
                %v402 = vld [vmem:[%s286 + $0xe08] sm:$0xff]
                %403 = vst [vmem:[%s287 + $0x1c8] sm:$0xff] %v402
                %v404 = vld [vmem:[%s286 + $0xe10] sm:$0xff]
                %405 = vst [vmem:[%s287 + $0x1d0] sm:$0xff] %v404
                %v406 = vld [vmem:[%s286 + $0xe18] sm:$0xff]
                %407 = vst [vmem:[%s287 + $0x1d8] sm:$0xff] %v406
                %v408 = vld [vmem:[%s286 + $0xf00] sm:$0xff]
                %409 = vst [vmem:[%s287 + $0x1e0] sm:$0xff] %v408
                %v410 = vld [vmem:[%s286 + $0xf08] sm:$0xff]
                %411 = vst [vmem:[%s287 + $0x1e8] sm:$0xff] %v410
                %v412 = vld [vmem:[%s286 + $0xf10] sm:$0xff]
                %413 = vst [vmem:[%s287 + $0x1f0] sm:$0xff] %v412
                %v414 = vld [vmem:[%s286 + $0xf18] sm:$0xff]
                %415 = vst [vmem:[%s287 + $0x1f8] sm:$0xff] %v414
              $region76: #{discriminator_forward.7} parent=70 // loop_footer
                %s285 = sadd.s32 1, %s281
              $region77: #{discriminator_forward.7} parent=70 // loop_footer_branch
                %280 = sbr.rel target = $region73
              $region78: #{discriminator_forward.7} parent=70 // loop_exit
                _
            $region71: #{discriminator_forward.7} parent=66 // pred_fallthru
              _
            // Predicated region
            $region79: #{discriminator_forward.7} parent=66 // pred_check
              _
            $region80: #{discriminator_forward.7} parent=66 // pred_check_branch
              %417 = sbr.rel target = $region82
            $region81: #{discriminator_forward.7} parent=66 // pred_region
              _
            $region82: #{discriminator_forward.7} parent=66 // pred_fallthru
              _
          $region67: #{discriminator_forward.7} parent=62 // pred_fallthru
            _
          %418 = vnop
        $region63: #{discriminator_forward.7} parent=35 // pred_fallthru
          _
      $region36: #{discriminator_forward.7} parent=5 // pred_fallthru
        _
      %p419 = scmp.le.s32.totalorder 1, %s13
      %p420 = scmp.lt.s32.totalorder %s13, 9
      %p421 = pnand %p419, %p420
      %p422 = pneg %p421
      // Predicated region
      $region83: #{discriminator_forward.7} parent=5 // pred_check
        _
      $region84: #{discriminator_forward.7} parent=5 // pred_check_branch
        %424 = sbr.rel (%p421) target = $region86
      $region85: #{discriminator_forward.7} parent=5 // pred_region
        %s425 = ssub.s32 %s13, 1
        %s426 = sand.u32 %s26, 1
        %s427 = sand.u32 %s26, 1
        %s428 = smul.addr %s427, 64
        %s429 = scalar_lea.vmem [#allocation3], %s428
        // Predicated region
        $region87: #{discriminator_forward.7} parent=85 // pred_check
          %p430 = pneg %p39
        $region88: #{discriminator_forward.7} parent=85 // pred_check_branch
          %432 = sbr.rel (%p430) target = $region90
        $region89: #{discriminator_forward.7} parent=85 // pred_region
          _
        $region90: #{discriminator_forward.7} parent=85 // pred_fallthru
          _
        %s433 = sand.u32 %s52, 1
        %s434 = sand.u32 %s52, 1
        %s435 = smul.addr %s434, 512
        %s436 = scalar_lea.vmem [#allocation4], %s435
        // Predicated region
        $region91: #{discriminator_forward.7} parent=85 // pred_check
          %p437 = pneg %p65
        $region92: #{discriminator_forward.7} parent=85 // pred_check_branch
          %439 = sbr.rel (%p437) target = $region94
        $region93: #{discriminator_forward.7} parent=85 // pred_region
          _
        $region94: #{discriminator_forward.7} parent=85 // pred_fallthru
          _
        %s440 = sand.u32 %s26, 1
        %s441 = sand.u32 %s26, 1
        %s442 = smul.addr %s441, 64
        %s443 = scalar_lea.vmem [#allocation3], %s442
        %p444 = pneg %p39
        %p445 = pneg %p36
        %s446 = sand.u32 %s52, 1
        %s447 = sand.u32 %s52, 1
        %s448 = smul.addr %s447, 512
        %s449 = scalar_lea.vmem [#allocation4], %s448
        %p450 = pneg %p65
        %p451 = pneg %p62
        %p452 = pneg %p86
        %p453 = pneg %p83
        %p454 = pneg %p107
        %p455 = pneg %p104
        %p456 = pneg %p128
        %p457 = pneg %p125
        %p458 = pneg %p149
        %p459 = pneg %p146
        %p460 = pneg %p170
        %p461 = pneg %p167
        %p462 = pneg %p191
        %p463 = pneg %p188
        %s464 = smul.u32 8, %s18
        %s465 = smul.u32 8, %s18
        %p467 = scmp.eq.s32.totalorder %s18, 0
        // Predicated region
        $region95: #{discriminator_forward.7} parent=85 // pred_check
          %p468 = pneg %p467
        $region96: #{discriminator_forward.7} parent=85 // pred_check_branch
          %470 = sbr.rel (%p468) target = $region98
        $region97: #{discriminator_forward.7} parent=85 // pred_region
          %471 = vst [vmem:[#allocation2] sm:$0xff] 0.0
          %472 = vst [vmem:[#allocation2 + $0x8] sm:$0xff] 0.0
        $region98: #{discriminator_forward.7} parent=85 // pred_fallthru
          _
        %v473 = vld [vmem:[#allocation2] sm:$0xff]
        %v474 = vld [vmem:[#allocation2 + $0x8] sm:$0xff]
        %v475 = vld [vmem:[%s429] sm:$0xff]
        %v476 = vld [vmem:[%s429 + $0x8] sm:$0xff]
        %v477 = vld [vmem:[%s429 + $0x10] sm:$0xff]
        %v478 = vld [vmem:[%s429 + $0x18] sm:$0xff]
        %v479 = vld [vmem:[%s429 + $0x20] sm:$0xff]
        %v480 = vld [vmem:[%s429 + $0x28] sm:$0xff]
        %v481 = vld [vmem:[%s429 + $0x30] sm:$0xff]
        %v482 = vld [vmem:[%s429 + $0x38] sm:$0xff]
        %v483 = vld [vmem:[%s436] sm:$0xff]
        %v484 = vld [vmem:[%s436 + $0x8] sm:$0xff]
        %v485 = vld [vmem:[%s436 + $0x10] sm:$0xff]
        %v486 = vld [vmem:[%s436 + $0x18] sm:$0xff]
        %v487 = vld [vmem:[%s436 + $0x20] sm:$0xff]
        %v488 = vld [vmem:[%s436 + $0x28] sm:$0xff]
        %v489 = vld [vmem:[%s436 + $0x30] sm:$0xff]
        %v490 = vld [vmem:[%s436 + $0x38] sm:$0xff]
        %v491 = vld [vmem:[%s436 + $0x40] sm:$0xff]
        %v492 = vld [vmem:[%s436 + $0x48] sm:$0xff]
        %v493 = vld [vmem:[%s436 + $0x50] sm:$0xff]
        %v494 = vld [vmem:[%s436 + $0x58] sm:$0xff]
        %v495 = vld [vmem:[%s436 + $0x60] sm:$0xff]
        %v496 = vld [vmem:[%s436 + $0x68] sm:$0xff]
        %v497 = vld [vmem:[%s436 + $0x70] sm:$0xff]
        %v498 = vld [vmem:[%s436 + $0x78] sm:$0xff]
        %v499 = vld [vmem:[%s436 + $0x80] sm:$0xff]
        %v500 = vld [vmem:[%s436 + $0x88] sm:$0xff]
        %v501 = vld [vmem:[%s436 + $0x90] sm:$0xff]
        %v502 = vld [vmem:[%s436 + $0x98] sm:$0xff]
        %v503 = vld [vmem:[%s436 + $0xa0] sm:$0xff]
        %v504 = vld [vmem:[%s436 + $0xa8] sm:$0xff]
        %v505 = vld [vmem:[%s436 + $0xb0] sm:$0xff]
        %v506 = vld [vmem:[%s436 + $0xb8] sm:$0xff]
        %v507 = vld [vmem:[%s436 + $0xc0] sm:$0xff]
        %v508 = vld [vmem:[%s436 + $0xc8] sm:$0xff]
        %v509 = vld [vmem:[%s436 + $0xd0] sm:$0xff]
        %v510 = vld [vmem:[%s436 + $0xd8] sm:$0xff]
        %v511 = vld [vmem:[%s436 + $0xe0] sm:$0xff]
        %v512 = vld [vmem:[%s436 + $0xe8] sm:$0xff]
        %v513 = vld [vmem:[%s436 + $0xf0] sm:$0xff]
        %v514 = vld [vmem:[%s436 + $0xf8] sm:$0xff]
        %v515 = vld [vmem:[%s436 + $0x100] sm:$0xff]
        %v516 = vld [vmem:[%s436 + $0x108] sm:$0xff]
        %v517 = vld [vmem:[%s436 + $0x110] sm:$0xff]
        %v518 = vld [vmem:[%s436 + $0x118] sm:$0xff]
        %v519 = vld [vmem:[%s436 + $0x120] sm:$0xff]
        %v520 = vld [vmem:[%s436 + $0x128] sm:$0xff]
        %v521 = vld [vmem:[%s436 + $0x130] sm:$0xff]
        %v522 = vld [vmem:[%s436 + $0x138] sm:$0xff]
        %v523 = vld [vmem:[%s436 + $0x140] sm:$0xff]
        %v524 = vld [vmem:[%s436 + $0x148] sm:$0xff]
        %v525 = vld [vmem:[%s436 + $0x150] sm:$0xff]
        %v526 = vld [vmem:[%s436 + $0x158] sm:$0xff]
        %v527 = vld [vmem:[%s436 + $0x160] sm:$0xff]
        %v528 = vld [vmem:[%s436 + $0x168] sm:$0xff]
        %v529 = vld [vmem:[%s436 + $0x170] sm:$0xff]
        %v530 = vld [vmem:[%s436 + $0x178] sm:$0xff]
        %v531 = vld [vmem:[%s436 + $0x180] sm:$0xff]
        %v532 = vld [vmem:[%s436 + $0x188] sm:$0xff]
        %v533 = vld [vmem:[%s436 + $0x190] sm:$0xff]
        %v534 = vld [vmem:[%s436 + $0x198] sm:$0xff]
        %v535 = vld [vmem:[%s436 + $0x1a0] sm:$0xff]
        %v536 = vld [vmem:[%s436 + $0x1a8] sm:$0xff]
        %v537 = vld [vmem:[%s436 + $0x1b0] sm:$0xff]
        %v538 = vld [vmem:[%s436 + $0x1b8] sm:$0xff]
        %v539 = vld [vmem:[%s436 + $0x1c0] sm:$0xff]
        %v540 = vld [vmem:[%s436 + $0x1c8] sm:$0xff]
        %v541 = vld [vmem:[%s436 + $0x1d0] sm:$0xff]
        %v542 = vld [vmem:[%s436 + $0x1d8] sm:$0xff]
        %v543 = vld [vmem:[%s436 + $0x1e0] sm:$0xff]
        %v544 = vld [vmem:[%s436 + $0x1e8] sm:$0xff]
        %v545 = vld [vmem:[%s436 + $0x1f0] sm:$0xff]
        %v546 = vld [vmem:[%s436 + $0x1f8] sm:$0xff]
        %v555 = vunpack.c.l.b16 %v475
        %v556 = vunpack.c.h.b16 %v475
        %v557 = vunpack.c.l.b16 %v476
        %v558 = vunpack.c.h.b16 %v476
        %v559 = vunpack.c.l.b16 %v477
        %v560 = vunpack.c.h.b16 %v477
        %v561 = vunpack.c.l.b16 %v478
        %v562 = vunpack.c.h.b16 %v478
        %v563 = vunpack.c.l.b16 %v479
        %v564 = vunpack.c.h.b16 %v479
        %v565 = vunpack.c.l.b16 %v480
        %v566 = vunpack.c.h.b16 %v480
        %v567 = vunpack.c.l.b16 %v481
        %v568 = vunpack.c.h.b16 %v481
        %v569 = vunpack.c.l.b16 %v482
        %v570 = vunpack.c.h.b16 %v482
        %v571 = vpack.c.b16 %v563, %v555
        %v572 = vpack.c.b16 %v564, %v556
        %v573 = vpack.c.b16 %v565, %v557
        %v574 = vpack.c.b16 %v566, %v558
        %v575 = vpack.c.b16 %v567, %v559
        %v576 = vpack.c.b16 %v568, %v560
        %v577 = vpack.c.b16 %v569, %v561
        %v578 = vpack.c.b16 %v570, %v562
        %v651 = vunpack.c.l.b16 %v483
        %v652 = vunpack.c.h.b16 %v483
        %v653 = vunpack.c.l.b16 %v484
        %v654 = vunpack.c.h.b16 %v484
        %v655 = vunpack.c.l.b16 %v485
        %v656 = vunpack.c.h.b16 %v485
        %v657 = vunpack.c.l.b16 %v486
        %v658 = vunpack.c.h.b16 %v486
        %v659 = vunpack.c.l.b16 %v487
        %v660 = vunpack.c.h.b16 %v487
        %v661 = vunpack.c.l.b16 %v488
        %v662 = vunpack.c.h.b16 %v488
        %v663 = vunpack.c.l.b16 %v489
        %v664 = vunpack.c.h.b16 %v489
        %v665 = vunpack.c.l.b16 %v490
        %v666 = vunpack.c.h.b16 %v490
        %v667 = vunpack.c.l.b16 %v491
        %v668 = vunpack.c.h.b16 %v491
        %v669 = vunpack.c.l.b16 %v492
        %v670 = vunpack.c.h.b16 %v492
        %v671 = vunpack.c.l.b16 %v493
        %v672 = vunpack.c.h.b16 %v493
        %v673 = vunpack.c.l.b16 %v494
        %v674 = vunpack.c.h.b16 %v494
        %v675 = vunpack.c.l.b16 %v495
        %v676 = vunpack.c.h.b16 %v495
        %v677 = vunpack.c.l.b16 %v496
        %v678 = vunpack.c.h.b16 %v496
        %v679 = vunpack.c.l.b16 %v497
        %v680 = vunpack.c.h.b16 %v497
        %v681 = vunpack.c.l.b16 %v498
        %v682 = vunpack.c.h.b16 %v498
        %v683 = vunpack.c.l.b16 %v499
        %v684 = vunpack.c.h.b16 %v499
        %v685 = vunpack.c.l.b16 %v500
        %v686 = vunpack.c.h.b16 %v500
        %v687 = vunpack.c.l.b16 %v501
        %v688 = vunpack.c.h.b16 %v501
        %v689 = vunpack.c.l.b16 %v502
        %v690 = vunpack.c.h.b16 %v502
        %v691 = vunpack.c.l.b16 %v503
        %v692 = vunpack.c.h.b16 %v503
        %v693 = vunpack.c.l.b16 %v504
        %v694 = vunpack.c.h.b16 %v504
        %v695 = vunpack.c.l.b16 %v505
        %v696 = vunpack.c.h.b16 %v505
        %v697 = vunpack.c.l.b16 %v506
        %v698 = vunpack.c.h.b16 %v506
        %v699 = vunpack.c.l.b16 %v507
        %v700 = vunpack.c.h.b16 %v507
        %v701 = vunpack.c.l.b16 %v508
        %v702 = vunpack.c.h.b16 %v508
        %v703 = vunpack.c.l.b16 %v509
        %v704 = vunpack.c.h.b16 %v509
        %v705 = vunpack.c.l.b16 %v510
        %v706 = vunpack.c.h.b16 %v510
        %v707 = vunpack.c.l.b16 %v511
        %v708 = vunpack.c.h.b16 %v511
        %v709 = vunpack.c.l.b16 %v512
        %v710 = vunpack.c.h.b16 %v512
        %v711 = vunpack.c.l.b16 %v513
        %v712 = vunpack.c.h.b16 %v513
        %v713 = vunpack.c.l.b16 %v514
        %v714 = vunpack.c.h.b16 %v514
        %v715 = vunpack.c.l.b16 %v515
        %v716 = vunpack.c.h.b16 %v515
        %v717 = vunpack.c.l.b16 %v516
        %v718 = vunpack.c.h.b16 %v516
        %v719 = vunpack.c.l.b16 %v517
        %v720 = vunpack.c.h.b16 %v517
        %v721 = vunpack.c.l.b16 %v518
        %v722 = vunpack.c.h.b16 %v518
        %v723 = vunpack.c.l.b16 %v519
        %v724 = vunpack.c.h.b16 %v519
        %v725 = vunpack.c.l.b16 %v520
        %v726 = vunpack.c.h.b16 %v520
        %v727 = vunpack.c.l.b16 %v521
        %v728 = vunpack.c.h.b16 %v521
        %v729 = vunpack.c.l.b16 %v522
        %v730 = vunpack.c.h.b16 %v522
        %v731 = vunpack.c.l.b16 %v523
        %v732 = vunpack.c.h.b16 %v523
        %v733 = vunpack.c.l.b16 %v524
        %v734 = vunpack.c.h.b16 %v524
        %v735 = vunpack.c.l.b16 %v525
        %v736 = vunpack.c.h.b16 %v525
        %v737 = vunpack.c.l.b16 %v526
        %v738 = vunpack.c.h.b16 %v526
        %v739 = vunpack.c.l.b16 %v527
        %v740 = vunpack.c.h.b16 %v527
        %v741 = vunpack.c.l.b16 %v528
        %v742 = vunpack.c.h.b16 %v528
        %v743 = vunpack.c.l.b16 %v529
        %v744 = vunpack.c.h.b16 %v529
        %v745 = vunpack.c.l.b16 %v530
        %v746 = vunpack.c.h.b16 %v530
        %v747 = vunpack.c.l.b16 %v531
        %v748 = vunpack.c.h.b16 %v531
        %v749 = vunpack.c.l.b16 %v532
        %v750 = vunpack.c.h.b16 %v532
        %v751 = vunpack.c.l.b16 %v533
        %v752 = vunpack.c.h.b16 %v533
        %v753 = vunpack.c.l.b16 %v534
        %v754 = vunpack.c.h.b16 %v534
        %v755 = vunpack.c.l.b16 %v535
        %v756 = vunpack.c.h.b16 %v535
        %v757 = vunpack.c.l.b16 %v536
        %v758 = vunpack.c.h.b16 %v536
        %v759 = vunpack.c.l.b16 %v537
        %v760 = vunpack.c.h.b16 %v537
        %v761 = vunpack.c.l.b16 %v538
        %v762 = vunpack.c.h.b16 %v538
        %v763 = vunpack.c.l.b16 %v539
        %v764 = vunpack.c.h.b16 %v539
        %v765 = vunpack.c.l.b16 %v540
        %v766 = vunpack.c.h.b16 %v540
        %v767 = vunpack.c.l.b16 %v541
        %v768 = vunpack.c.h.b16 %v541
        %v769 = vunpack.c.l.b16 %v542
        %v770 = vunpack.c.h.b16 %v542
        %v771 = vunpack.c.l.b16 %v543
        %v772 = vunpack.c.h.b16 %v543
        %v773 = vunpack.c.l.b16 %v544
        %v774 = vunpack.c.h.b16 %v544
        %v775 = vunpack.c.l.b16 %v545
        %v776 = vunpack.c.h.b16 %v545
        %v777 = vunpack.c.l.b16 %v546
        %v778 = vunpack.c.h.b16 %v546
        %v779 = vpack.c.b16 %v659, %v651
        %v780 = vpack.c.b16 %v660, %v652
        %v781 = vpack.c.b16 %v661, %v653
        %v782 = vpack.c.b16 %v662, %v654
        %v783 = vpack.c.b16 %v663, %v655
        %v784 = vpack.c.b16 %v664, %v656
        %v785 = vpack.c.b16 %v665, %v657
        %v786 = vpack.c.b16 %v666, %v658
        %v787 = vpack.c.b16 %v675, %v667
        %v788 = vpack.c.b16 %v676, %v668
        %v789 = vpack.c.b16 %v677, %v669
        %v790 = vpack.c.b16 %v678, %v670
        %v791 = vpack.c.b16 %v679, %v671
        %v792 = vpack.c.b16 %v680, %v672
        %v793 = vpack.c.b16 %v681, %v673
        %v794 = vpack.c.b16 %v682, %v674
        %v795 = vpack.c.b16 %v691, %v683
        %v796 = vpack.c.b16 %v692, %v684
        %v797 = vpack.c.b16 %v693, %v685
        %v798 = vpack.c.b16 %v694, %v686
        %v799 = vpack.c.b16 %v695, %v687
        %v800 = vpack.c.b16 %v696, %v688
        %v801 = vpack.c.b16 %v697, %v689
        %v802 = vpack.c.b16 %v698, %v690
        %v803 = vpack.c.b16 %v707, %v699
        %v804 = vpack.c.b16 %v708, %v700
        %v805 = vpack.c.b16 %v709, %v701
        %v806 = vpack.c.b16 %v710, %v702
        %v807 = vpack.c.b16 %v711, %v703
        %v808 = vpack.c.b16 %v712, %v704
        %v809 = vpack.c.b16 %v713, %v705
        %v810 = vpack.c.b16 %v714, %v706
        %v811 = vpack.c.b16 %v723, %v715
        %v812 = vpack.c.b16 %v724, %v716
        %v813 = vpack.c.b16 %v725, %v717
        %v814 = vpack.c.b16 %v726, %v718
        %v815 = vpack.c.b16 %v727, %v719
        %v816 = vpack.c.b16 %v728, %v720
        %v817 = vpack.c.b16 %v729, %v721
        %v818 = vpack.c.b16 %v730, %v722
        %v819 = vpack.c.b16 %v739, %v731
        %v820 = vpack.c.b16 %v740, %v732
        %v821 = vpack.c.b16 %v741, %v733
        %v822 = vpack.c.b16 %v742, %v734
        %v823 = vpack.c.b16 %v743, %v735
        %v824 = vpack.c.b16 %v744, %v736
        %v825 = vpack.c.b16 %v745, %v737
        %v826 = vpack.c.b16 %v746, %v738
        %v827 = vpack.c.b16 %v755, %v747
        %v828 = vpack.c.b16 %v756, %v748
        %v829 = vpack.c.b16 %v757, %v749
        %v830 = vpack.c.b16 %v758, %v750
        %v831 = vpack.c.b16 %v759, %v751
        %v832 = vpack.c.b16 %v760, %v752
        %v833 = vpack.c.b16 %v761, %v753
        %v834 = vpack.c.b16 %v762, %v754
        %v835 = vpack.c.b16 %v771, %v763
        %v836 = vpack.c.b16 %v772, %v764
        %v837 = vpack.c.b16 %v773, %v765
        %v838 = vpack.c.b16 %v774, %v766
        %v839 = vpack.c.b16 %v775, %v767
        %v840 = vpack.c.b16 %v776, %v768
        %v841 = vpack.c.b16 %v777, %v769
        %v842 = vpack.c.b16 %v778, %v770
        %907 = vmatprep.subr.bf16.mxu0 %v780
        %908 = vmatpush1.bf16.xpose.msra.mxu0 %v779
        %909 = vmatprep.subr.bf16.mxu0 %v788
        %910 = vmatpush1.bf16.xpose.msra.mxu0 %v787
        %911 = vmatprep.subr.bf16.mxu0 %v796
        %912 = vmatpush1.bf16.xpose.msra.mxu0 %v795
        %913 = vmatprep.subr.bf16.mxu0 %v804
        %914 = vmatpush1.bf16.xpose.msra.mxu0 %v803
        %915 = vmatprep.subr.bf16.mxu0 %v812
        %916 = vmatpush1.bf16.xpose.msra.mxu0 %v811
        %917 = vmatprep.subr.bf16.mxu0 %v820
        %918 = vmatpush1.bf16.xpose.msra.mxu0 %v819
        %919 = vmatprep.subr.bf16.mxu0 %v828
        %920 = vmatpush1.bf16.xpose.msra.mxu0 %v827
        %921 = vmatprep.subr.bf16.mxu0 %v836
        %922 = vmatpush1.bf16.xpose.msra.mxu0 %v835
        %923 = vmatprep.subr.bf16.mxu0 0
        %924 = vmatpush1.bf16.xpose.msra.mxu0 0
        %925 = vmatprep.subr.bf16.mxu0 0
        %926 = vmatpush1.bf16.xpose.msra.mxu0 0
        %927 = vmatprep.subr.bf16.mxu0 0
        %928 = vmatpush1.bf16.xpose.msra.mxu0 0
        %929 = vmatprep.subr.bf16.mxu0 0
        %930 = vmatpush1.bf16.xpose.msra.mxu0 0
        %931 = vmatprep.subr.bf16.mxu0 0
        %932 = vmatpush1.bf16.xpose.msra.mxu0 0
        %933 = vmatprep.subr.bf16.mxu0 0
        %934 = vmatpush1.bf16.xpose.msra.mxu0 0
        %935 = vmatprep.subr.bf16.mxu0 0
        %936 = vmatpush1.bf16.xpose.msra.mxu0 0
        %937 = vmatprep.subr.bf16.mxu0 0
        %938 = vmatpush1.bf16.xpose.msra.mxu0 0
        %939 = vmatprep.mubr.bf16.mxu0 %v572
        %940 = vmatmul.mubr.bf16.gmra.mrb[0].mxu0 %v571
        %v941 = vpop.f32.mrb[0].mxu0
        %v942 = vadd.f32 0.0, %v941
        %v943 = vpop.f32.mrb[0].mxu0
        %v944 = vpop.f32.mrb[0].mxu0
        %v945 = vadd.f32 0.0, %v944
        %v946 = vpop.f32.mrb[0].mxu0
        %947 = vdwg.mxu0
        %948 = vmatprep.subr.bf16.mxu0 %v782
        %949 = vmatpush1.bf16.xpose.msra.mxu0 %v781
        %950 = vmatprep.subr.bf16.mxu0 %v790
        %951 = vmatpush1.bf16.xpose.msra.mxu0 %v789
        %952 = vmatprep.subr.bf16.mxu0 %v798
        %953 = vmatpush1.bf16.xpose.msra.mxu0 %v797
        %954 = vmatprep.subr.bf16.mxu0 %v806
        %955 = vmatpush1.bf16.xpose.msra.mxu0 %v805
        %956 = vmatprep.subr.bf16.mxu0 %v814
        %957 = vmatpush1.bf16.xpose.msra.mxu0 %v813
        %958 = vmatprep.subr.bf16.mxu0 %v822
        %959 = vmatpush1.bf16.xpose.msra.mxu0 %v821
        %960 = vmatprep.subr.bf16.mxu0 %v830
        %961 = vmatpush1.bf16.xpose.msra.mxu0 %v829
        %962 = vmatprep.subr.bf16.mxu0 %v838
        %963 = vmatpush1.bf16.xpose.msra.mxu0 %v837
        %964 = vmatprep.subr.bf16.mxu0 0
        %965 = vmatpush1.bf16.xpose.msra.mxu0 0
        %966 = vmatprep.subr.bf16.mxu0 0
        %967 = vmatpush1.bf16.xpose.msra.mxu0 0
        %968 = vmatprep.subr.bf16.mxu0 0
        %969 = vmatpush1.bf16.xpose.msra.mxu0 0
        %970 = vmatprep.subr.bf16.mxu0 0
        %971 = vmatpush1.bf16.xpose.msra.mxu0 0
        %972 = vmatprep.subr.bf16.mxu0 0
        %973 = vmatpush1.bf16.xpose.msra.mxu0 0
        %974 = vmatprep.subr.bf16.mxu0 0
        %975 = vmatpush1.bf16.xpose.msra.mxu0 0
        %976 = vmatprep.subr.bf16.mxu0 0
        %977 = vmatpush1.bf16.xpose.msra.mxu0 0
        %978 = vmatprep.subr.bf16.mxu0 0
        %979 = vmatpush1.bf16.xpose.msra.mxu0 0
        %980 = vmatprep.mubr.bf16.mxu0 %v574
        %981 = vmatmul.mubr.bf16.gmra.mrb[0].mxu0 %v573
        %v982 = vpop.f32.mrb[0].mxu0
        %v983 = vadd.f32 %v942, %v982
        %v984 = vpop.f32.mrb[0].mxu0
        %v985 = vpop.f32.mrb[0].mxu0
        %v986 = vadd.f32 %v945, %v985
        %v987 = vpop.f32.mrb[0].mxu0
        %988 = vdwg.mxu0
        %989 = vmatprep.subr.bf16.mxu0 %v784
        %990 = vmatpush1.bf16.xpose.msra.mxu0 %v783
        %991 = vmatprep.subr.bf16.mxu0 %v792
        %992 = vmatpush1.bf16.xpose.msra.mxu0 %v791
        %993 = vmatprep.subr.bf16.mxu0 %v800
        %994 = vmatpush1.bf16.xpose.msra.mxu0 %v799
        %995 = vmatprep.subr.bf16.mxu0 %v808
        %996 = vmatpush1.bf16.xpose.msra.mxu0 %v807
        %997 = vmatprep.subr.bf16.mxu0 %v816
        %998 = vmatpush1.bf16.xpose.msra.mxu0 %v815
        %999 = vmatprep.subr.bf16.mxu0 %v824
        %1000 = vmatpush1.bf16.xpose.msra.mxu0 %v823
        %1001 = vmatprep.subr.bf16.mxu0 %v832
        %1002 = vmatpush1.bf16.xpose.msra.mxu0 %v831
        %1003 = vmatprep.subr.bf16.mxu0 %v840
        %1004 = vmatpush1.bf16.xpose.msra.mxu0 %v839
        %1005 = vmatprep.subr.bf16.mxu0 0
        %1006 = vmatpush1.bf16.xpose.msra.mxu0 0
        %1007 = vmatprep.subr.bf16.mxu0 0
        %1008 = vmatpush1.bf16.xpose.msra.mxu0 0
        %1009 = vmatprep.subr.bf16.mxu0 0
        %1010 = vmatpush1.bf16.xpose.msra.mxu0 0
        %1011 = vmatprep.subr.bf16.mxu0 0
        %1012 = vmatpush1.bf16.xpose.msra.mxu0 0
        %1013 = vmatprep.subr.bf16.mxu0 0
        %1014 = vmatpush1.bf16.xpose.msra.mxu0 0
        %1015 = vmatprep.subr.bf16.mxu0 0
        %1016 = vmatpush1.bf16.xpose.msra.mxu0 0
        %1017 = vmatprep.subr.bf16.mxu0 0
        %1018 = vmatpush1.bf16.xpose.msra.mxu0 0
        %1019 = vmatprep.subr.bf16.mxu0 0
        %1020 = vmatpush1.bf16.xpose.msra.mxu0 0
        %1021 = vmatprep.mubr.bf16.mxu0 %v576
        %1022 = vmatmul.mubr.bf16.gmra.mrb[0].mxu0 %v575
        %v1023 = vpop.f32.mrb[0].mxu0
        %v1024 = vadd.f32 %v983, %v1023
        %v1025 = vpop.f32.mrb[0].mxu0
        %v1026 = vpop.f32.mrb[0].mxu0
        %v1027 = vadd.f32 %v986, %v1026
        %v1028 = vpop.f32.mrb[0].mxu0
        %1029 = vdwg.mxu0
        %1030 = vmatprep.subr.bf16.mxu0 %v786
        %1031 = vmatpush1.bf16.xpose.msra.mxu0 %v785
        %1032 = vmatprep.subr.bf16.mxu0 %v794
        %1033 = vmatpush1.bf16.xpose.msra.mxu0 %v793
        %1034 = vmatprep.subr.bf16.mxu0 %v802
        %1035 = vmatpush1.bf16.xpose.msra.mxu0 %v801
        %1036 = vmatprep.subr.bf16.mxu0 %v810
        %1037 = vmatpush1.bf16.xpose.msra.mxu0 %v809
        %1038 = vmatprep.subr.bf16.mxu0 %v818
        %1039 = vmatpush1.bf16.xpose.msra.mxu0 %v817
        %1040 = vmatprep.subr.bf16.mxu0 %v826
        %1041 = vmatpush1.bf16.xpose.msra.mxu0 %v825
        %1042 = vmatprep.subr.bf16.mxu0 %v834
        %1043 = vmatpush1.bf16.xpose.msra.mxu0 %v833
        %1044 = vmatprep.subr.bf16.mxu0 %v842
        %1045 = vmatpush1.bf16.xpose.msra.mxu0 %v841
        %1046 = vmatprep.subr.bf16.mxu0 0
        %1047 = vmatpush1.bf16.xpose.msra.mxu0 0
        %1048 = vmatprep.subr.bf16.mxu0 0
        %1049 = vmatpush1.bf16.xpose.msra.mxu0 0
        %1050 = vmatprep.subr.bf16.mxu0 0
        %1051 = vmatpush1.bf16.xpose.msra.mxu0 0
        %1052 = vmatprep.subr.bf16.mxu0 0
        %1053 = vmatpush1.bf16.xpose.msra.mxu0 0
        %1054 = vmatprep.subr.bf16.mxu0 0
        %1055 = vmatpush1.bf16.xpose.msra.mxu0 0
        %1056 = vmatprep.subr.bf16.mxu0 0
        %1057 = vmatpush1.bf16.xpose.msra.mxu0 0
        %1058 = vmatprep.subr.bf16.mxu0 0
        %1059 = vmatpush1.bf16.xpose.msra.mxu0 0
        %1060 = vmatprep.subr.bf16.mxu0 0
        %1061 = vmatpush1.bf16.xpose.msra.mxu0 0
        %1062 = vmatprep.mubr.bf16.mxu0 %v578
        %1063 = vmatmul.mubr.bf16.gmra.mrb[0].mxu0 %v577
        %v1064 = vpop.f32.mrb[0].mxu0
        %v1065 = vadd.f32 %v1024, %v1064
        %v1066 = vpop.f32.mrb[0].mxu0
        %v1067 = vpop.f32.mrb[0].mxu0
        %v1068 = vadd.f32 %v1027, %v1067
        %v1069 = vpop.f32.mrb[0].mxu0
        %1070 = vdwg.mxu0
        %v1071 = vadd.f32 %v473, %v1065
        %v1072 = vadd.f32 %v474, %v1068
        %1073 = vst [vmem:[#allocation2] sm:$0xff] %v1071
        %1074 = vst [vmem:[#allocation2 + $0x8] sm:$0xff] %v1072
        %p1075 = scmp.eq.s32.totalorder %s18, 7
        // Predicated region
        $region99: #{discriminator_forward.7} parent=85 // pred_check
          %p1076 = pneg %p1075
        $region100: #{discriminator_forward.7} parent=85 // pred_check_branch
          %1078 = sbr.rel (%p1076) target = $region102
        $region101: #{discriminator_forward.7} parent=85 // pred_region
          %v1079 = vld [vmem:[#allocation2] sm:$0xff]
          %v1080 = vld [vmem:[#allocation2 + $0x8] sm:$0xff]
          %v1081 = vld [vmem:[%s2] sm:$0x1]
          %v1083 = vlaneseq
          %v1084 = vshrl.u32 %v1083, 7
          %v1085 = vsub.s32 0, %v1084
          %v1086 = vrot.slane %v1081, %v1085
          %v1088 = vmul.f32 %v1079, %v1086
          %v1089 = vmul.f32 %v1080, %v1086
          %v1090 = vld [vmem:[%s3] sm:$0x1]
          %v1092 = vlaneseq
          %v1093 = vshrl.u32 %v1092, 7
          %v1094 = vsub.s32 0, %v1093
          %v1095 = vrot.slane %v1090, %v1094
          %v1097 = vadd.f32 %v1088, %v1095
          %v1098 = vadd.f32 %v1089, %v1095
          %vm1099 = vcmp.ge.f32.partialorder %v1097, 0.0
          %vm1100 = vcmp.ge.f32.partialorder %v1098, 0.0
          %v1101 = vmul.f32 %v1097, 0.2
          %v1102 = vmul.f32 %v1098, 0.2
          %v1103 = vsel %vm1099, %v1097, %v1101
          %v1104 = vsel %vm1100, %v1098, %v1102
          %v1105 = vpack.c.bf16 %v1104, %v1103
          %v1106 = vld [vmem:[%s4] sm:$0xf]
          %v1107 = vld [vmem:[%s4 + $0x4] sm:$0xf]
          %v1108 = vld [vmem:[%s4 + $0x8] sm:$0xf]
          %v1109 = vld [vmem:[%s4 + $0xc] sm:$0xf]
          %v1110 = vld [vmem:[%s4 + $0x10] sm:$0xf]
          %v1111 = vld [vmem:[%s4 + $0x14] sm:$0xf]
          %v1112 = vld [vmem:[%s4 + $0x18] sm:$0xf]
          %v1113 = vld [vmem:[%s4 + $0x1c] sm:$0xf]
          %v1114 = vld [vmem:[%s4 + $0x20] sm:$0xf]
          %v1115 = vld [vmem:[%s4 + $0x24] sm:$0xf]
          %v1116 = vld [vmem:[%s4 + $0x28] sm:$0xf]
          %v1117 = vld [vmem:[%s4 + $0x2c] sm:$0xf]
          %v1118 = vld [vmem:[%s4 + $0x30] sm:$0xf]
          %v1119 = vld [vmem:[%s4 + $0x34] sm:$0xf]
          %v1120 = vld [vmem:[%s4 + $0x38] sm:$0xf]
          %v1121 = vld [vmem:[%s4 + $0x3c] sm:$0xf]
          %v1138 = vunpack.c.l.b16 %v1106
          %v1139 = vunpack.c.l.b16 %v1107
          %v1140 = vunpack.c.l.b16 %v1108
          %v1141 = vunpack.c.l.b16 %v1109
          %v1142 = vunpack.c.l.b16 %v1110
          %v1143 = vunpack.c.l.b16 %v1111
          %v1144 = vunpack.c.l.b16 %v1112
          %v1145 = vunpack.c.l.b16 %v1113
          %v1146 = vunpack.c.l.b16 %v1114
          %v1147 = vunpack.c.l.b16 %v1115
          %v1148 = vunpack.c.l.b16 %v1116
          %v1149 = vunpack.c.l.b16 %v1117
          %v1150 = vunpack.c.l.b16 %v1118
          %v1151 = vunpack.c.l.b16 %v1119
          %v1152 = vunpack.c.l.b16 %v1120
          %v1153 = vunpack.c.l.b16 %v1121
          %v1154 = vpack.c.b16 %v1139, %v1138
          %v1155 = vpack.c.b16 %v1141, %v1140
          %v1156 = vpack.c.b16 %v1143, %v1142
          %v1157 = vpack.c.b16 %v1145, %v1144
          %v1158 = vpack.c.b16 %v1147, %v1146
          %v1159 = vpack.c.b16 %v1149, %v1148
          %v1160 = vpack.c.b16 %v1151, %v1150
          %v1161 = vpack.c.b16 %v1153, %v1152
          %1170 = vmatprep.subr.bf16.mxu0 0
          %1171 = vmatpush1.bf16.xpose.msra.mxu0 %v1154
          %1172 = vmatprep.subr.bf16.mxu0 0
          %1173 = vmatpush1.bf16.xpose.msra.mxu0 %v1155
          %1174 = vmatprep.subr.bf16.mxu0 0
          %1175 = vmatpush1.bf16.xpose.msra.mxu0 %v1156
          %1176 = vmatprep.subr.bf16.mxu0 0
          %1177 = vmatpush1.bf16.xpose.msra.mxu0 %v1157
          %1178 = vmatprep.subr.bf16.mxu0 0
          %1179 = vmatpush1.bf16.xpose.msra.mxu0 %v1158
          %1180 = vmatprep.subr.bf16.mxu0 0
          %1181 = vmatpush1.bf16.xpose.msra.mxu0 %v1159
          %1182 = vmatprep.subr.bf16.mxu0 0
          %1183 = vmatpush1.bf16.xpose.msra.mxu0 %v1160
          %1184 = vmatprep.subr.bf16.mxu0 0
          %1185 = vmatpush1.bf16.xpose.msra.mxu0 %v1161
          %1186 = vmatprep.subr.bf16.mxu0 0
          %1187 = vmatpush1.bf16.xpose.msra.mxu0 0
          %1188 = vmatprep.subr.bf16.mxu0 0
          %1189 = vmatpush1.bf16.xpose.msra.mxu0 0
          %1190 = vmatprep.subr.bf16.mxu0 0
          %1191 = vmatpush1.bf16.xpose.msra.mxu0 0
          %1192 = vmatprep.subr.bf16.mxu0 0
          %1193 = vmatpush1.bf16.xpose.msra.mxu0 0
          %1194 = vmatprep.subr.bf16.mxu0 0
          %1195 = vmatpush1.bf16.xpose.msra.mxu0 0
          %1196 = vmatprep.subr.bf16.mxu0 0
          %1197 = vmatpush1.bf16.xpose.msra.mxu0 0
          %1198 = vmatprep.subr.bf16.mxu0 0
          %1199 = vmatpush1.bf16.xpose.msra.mxu0 0
          %1200 = vmatprep.subr.bf16.mxu0 0
          %1201 = vmatpush1.bf16.xpose.msra.mxu0 0
          %1202 = vmatprep.mubr.bf16.mxu0 0
          %1203 = vmatmul.mubr.bf16.gmra.mrb[0].mxu0 %v1105
          %v1204 = vpop.f32.mrb[0].mxu0
          %v1205 = vadd.f32 0.0, %v1204
          %v1206 = vpop.f32.mrb[0].mxu0
          %v1207 = vpop.f32.mrb[0].mxu0
          %v1208 = vadd.f32 0.0, %v1207
          %v1209 = vpop.f32.mrb[0].mxu0
          %1210 = vdwg.mxu0
          %v1211 = vld [vmem:[%s5] sm:$0x1]
          %v1213 = vlaneseq
          %v1214 = vshrl.u32 %v1213, 7
          %v1215 = vsub.s32 0, %v1214
          %v1216 = vrot.slane %v1211, %v1215
          %v1218 = vmul.f32 %v1205, %v1216
          %v1219 = vmul.f32 %v1208, %v1216
          %v1220 = vld [vmem:[%s6] sm:$0x1]
          %v1222 = vlaneseq
          %v1223 = vshrl.u32 %v1222, 7
          %v1224 = vsub.s32 0, %v1223
          %v1225 = vrot.slane %v1220, %v1224
          %v1227 = vadd.f32 %v1218, %v1225
          %v1228 = vadd.f32 %v1219, %v1225
          %v1229 = vlaneseq
          %v1230 = vand.u32 %v1229, 127
          %vm1231 = vcmp.ge.s32.totalorder %v1230, 1
          %vm1232 = vcmp.lt.s32.totalorder %v1230, 11
          %vm1233 = vmand %vm1231, %vm1232
          %v1234 = vsel %vm1233, %v1227, -inf
          %v1235 = vsel %vm1233, %v1228, -inf
          %1236 = vmax.xlane.f32.xlu0 %v1234
          %v1237 = vpop.xlane.xlu0 %1236
          %1238 = vmax.xlane.f32.xlu0 %v1235
          %v1239 = vpop.xlane.xlu0 %1238
          %v1240 = vsub.f32 %v1234, %v1237
          %v1241 = vsub.f32 %v1235, %v1239
          %v1242 = vmul.f32 %v1240, 1.442695
          %v1243 = vpow.pop %v1242
          %v1244 = vmul.f32 %v1241, 1.442695
          %v1245 = vpow.pop %v1244
          %1246 = vadd.xlane.f32.xlu0 %v1243
          %v1247 = vpop.xlane.xlu0 %1246
          %1248 = vadd.xlane.f32.xlu0 %v1245
          %v1249 = vpop.xlane.xlu0 %1248
          %v1250 = vrcp.pop %v1247
          %v1251 = vmul.f32 %v1243, %v1250
          %v1252 = vrcp.pop %v1249
          %v1253 = vmul.f32 %v1245, %v1252
          %vm1254 = vcmp.eq.s32.totalorder %v1230, 0
          %v1255 = vsel %vm1254, %v1227, %v1251
          %v1256 = vsel %vm1254, %v1228, %v1253
          %1257 = vst [vmem:[%s7] sm:$0xff] %v1255
          %1258 = vst [vmem:[%s7 + $0x8] sm:$0xff] %v1256
        $region102: #{discriminator_forward.7} parent=85 // pred_fallthru
          _
        // Predicated region
        $region103: #{discriminator_forward.7} parent=85 // pred_check
          %p1259 = pneg %p188
        $region104: #{discriminator_forward.7} parent=85 // pred_check_branch
          %1261 = sbr.rel (%p1259) target = $region106
        $region105: #{discriminator_forward.7} parent=85 // pred_region
          _
        $region106: #{discriminator_forward.7} parent=85 // pred_fallthru
          _
        // Predicated region
        $region107: #{discriminator_forward.7} parent=85 // pred_check
          %p1262 = pneg %p188
        $region108: #{discriminator_forward.7} parent=85 // pred_check_branch
          %1264 = sbr.rel (%p1262) target = $region110
        $region109: #{discriminator_forward.7} parent=85 // pred_region
          _
        $region110: #{discriminator_forward.7} parent=85 // pred_fallthru
          _
      $region86: #{discriminator_forward.7} parent=5 // pred_fallthru
        _
      %p1265 = scmp.le.s32.totalorder 2, %s13
      // Predicated region
      $region111: #{discriminator_forward.7} parent=5 // pred_check
        %p1266 = pneg %p1265
      $region112: #{discriminator_forward.7} parent=5 // pred_check_branch
        %1268 = sbr.rel (%p1266) target = $region114
      $region113: #{discriminator_forward.7} parent=5 // pred_region
        %s1269 = ssub.s32 %s13, 2
      $region114: #{discriminator_forward.7} parent=5 // pred_fallthru
        _
    $region6: #{discriminator_forward.7} parent=1 // loop_footer
      %s17 = sadd.s32 1, %s13
    $region7: #{discriminator_forward.7} parent=1 // loop_footer_branch
      %12 = sbr.rel target = $region3
    $region8: #{discriminator_forward.7} parent=1 // loop_exit
      _

</llo_original>
